<compile_context>
chip_gen: v6e
topology: v6e:2x2x1
jax: 0.10.0
libtpu: 0.0.40
codegen_flags: <defaults>
</compile_context>

<pallas_src>
import jax
import jax.numpy as jnp
from jax import lax
from jax.experimental import pallas as pl
from jax.experimental.pallas import tpu as pltpu

EPS = 1e-5

# ConvTranspose2d(3x3, s2, p1, op1) sub-pixel taps:
#   output parity (r, c):  y[2i+r, 2j+c] += xz[i+dh, j+dw] @ W[:, :, kh, kw]
_CONVT_TAPS = {
    (0, 0): ((1, 1, 0, 0),),
    (0, 1): ((1, 0, 0, 1), (1, 2, 0, 0)),
    (1, 0): ((0, 1, 1, 0), (2, 1, 0, 0)),
    (1, 1): ((0, 0, 1, 1), (0, 2, 1, 0), (2, 0, 0, 1), (2, 2, 0, 0)),
}


# ---------------------------------------------------------------------------
# Fused kernel: one grid step == one full forward pass for one sample
# ---------------------------------------------------------------------------
def _fused_kernel(col_ref, w1_ref, b1_ref, w4_ref, b4_ref, w7_ref, b7_ref,
                  w11_ref, b11_ref, w13_ref, b13_ref, out_ref,
                  pp1_ref, pp3_ref, xdw_ref, xz_ref):
    f32 = jnp.float32
    bf16 = jnp.bfloat16

    # ---- t0..t3: 7x7 conv (3->16) as a single tap-folded dot + IN + ReLU ----
    a1 = jnp.dot(col_ref[0], w1_ref[...], preferred_element_type=f32)   # (256,16)
    a1 = a1 + b1_ref[...]
    mu = jnp.sum(a1, axis=0, keepdims=True) * (1.0 / 256.0)
    d = a1 - mu
    var = jnp.sum(d * d, axis=0, keepdims=True) * (1.0 / 256.0)
    x1b = jnp.maximum(d * lax.rsqrt(var + EPS), 0.0).astype(bf16)       # cast once
    # rows are ordered by (h%4, w%4) group (done in the wrapper's im2col).

    # ---- scatter x1 into mod-4 phase buffers of the zero-padded 18x18 map ----
    pp1_ref[...] = jnp.zeros(pp1_ref.shape, pp1_ref.dtype)
    for s in range(4):
        for t in range(4):
            src = (((s - 1) % 4) * 4 + ((t - 1) % 4)) * 16
            u0 = 1 if s == 0 else 0
            v0 = 1 if t == 0 else 0
            pid = s * 4 + t
            for u in range(4):
                pp1_ref[pid, u0 + u, v0:v0 + 4, :] = \
                    x1b[src + 4 * u: src + 4 * u + 4, :]

    # ---- t4..t6: 3x3 conv s2 (16->64) + IN + ReLU; output parity-grouped ----
    acc2 = jnp.zeros((64, 64), f32)
    for kh in range(3):
        for kw in range(3):
            pieces = []
            for r in range(2):
                for c in range(2):
                    qh, qw = 2 * r + kh, 2 * c + kw
                    pid = (qh % 4) * 4 + (qw % 4)
                    h0, w0 = qh // 4, qw // 4
                    pieces.append(pp1_ref[pid, h0:h0 + 4, w0:w0 + 4, :])
            lhs = jnp.stack(pieces, axis=0).reshape(64, 16)              # M=64
            acc2 = acc2 + jnp.dot(lhs, w4_ref[kh * 3 + kw],
                                  preferred_element_type=f32)
    acc2 = acc2 + b4_ref[...]
    mu = jnp.sum(acc2, axis=0, keepdims=True) * (1.0 / 64.0)
    d = acc2 - mu
    var = jnp.sum(d * d, axis=0, keepdims=True) * (1.0 / 64.0)
    x2b = jnp.maximum(d * lax.rsqrt(var + EPS), 0.0).astype(bf16)        # cast once

    # ---- scatter x2 (parity-grouped rows) into mod-2 padded-phase buffers ----
    pp3_ref[...] = jnp.zeros(pp3_ref.shape, pp3_ref.dtype)
    for r in range(2):
        for c in range(2):
            src = (((r - 1) % 2) * 2 + ((c - 1) % 2)) * 16
            u0 = 1 if r == 0 else 0
            v0 = 1 if c == 0 else 0
            pid = r * 2 + c
            for u in range(4):
                pp3_ref[pid, u0 + u, v0:v0 + 4, :] = \
                    x2b[src + 4 * u: src + 4 * u + 4, :]

    # ---- t7..t9: 3x3 conv s2 (64->64) + IN + ReLU -> x_add (16 pix x 64 ch) ----
    acc3 = jnp.zeros((16, 64), f32)
    for kh in range(3):
        for kw in range(3):
            pid = (kh % 2) * 2 + (kw % 2)
            piece = pp3_ref[pid, kh // 2: kh // 2 + 4, kw // 2: kw // 2 + 4, :]
            acc3 = acc3 + jnp.dot(piece.reshape(16, 64), w7_ref[kh * 3 + kw],
                                  preferred_element_type=f32)
    acc3 = acc3 + b7_ref[...]
    mu = jnp.sum(acc3, axis=0, keepdims=True) * (1.0 / 16.0)
    d = acc3 - mu
    var = jnp.sum(d * d, axis=0, keepdims=True) * (1.0 / 16.0)
    x_add = jnp.maximum(d * lax.rsqrt(var + EPS), 0.0)                   # (16,64) f32

    # ---- t10..t12 + residual: reflect-pad(1) + depthwise 3x3 + IN + x_add ----
    for h in range(4):
        xdw_ref[h + 1, 1:5, :] = x_add[4 * h: 4 * h + 4, :]
    xdw_ref[0, 1:5, :] = x_add[4:8, :]        # reflect: pad row 0 <- row 1
    xdw_ref[5, 1:5, :] = x_add[8:12, :]       # reflect: pad row 5 <- row 2
    xdw_ref[:, 0, :] = xdw_ref[:, 2, :]       # reflect cols (covers corners)
    xdw_ref[:, 5, :] = xdw_ref[:, 3, :]

    accd = jnp.zeros((4, 4, 64), f32)
    for kh in range(3):
        for kw in range(3):
            tap = kh * 3 + kw
            accd = accd + xdw_ref[kh:kh + 4, kw:kw + 4, :] * w11_ref[tap:tap + 1, :]
    accd = accd + b11_ref[...]
    s_ = jnp.sum(accd, axis=1, keepdims=True)
    mu = jnp.sum(s_, axis=0, keepdims=True) * (1.0 / 16.0)
    d = accd - mu
    v_ = jnp.sum(jnp.sum(d * d, axis=1, keepdims=True), axis=0,
                 keepdims=True) * (1.0 / 16.0)
    xres = d * lax.rsqrt(v_ + EPS) + xdw_ref[1:5, 1:5, :]                # + x_add

    # ---- t13: ConvTranspose2d(64->32, 3x3, s2, p1, op1) via sub-pixel parities ----
    xz_ref[...] = jnp.zeros(xz_ref.shape, xz_ref.dtype)
    xz_ref[0:4, 0:4, :] = xres.astype(bf16)                              # cast once
    for r in range(2):
        for c in range(2):
            acc = jnp.zeros((16, 32), f32)
            for (kh, kw, dh, dw) in _CONVT_TAPS[(r, c)]:
                lhs = xz_ref[dh:dh + 4, dw:dw + 4, :].reshape(16, 64)
                acc = acc + jnp.dot(lhs, w13_ref[kh * 3 + kw],
                                    preferred_element_type=f32)
            out_ref[0, r, c, :, :] = (acc + b13_ref[...]).astype(out_ref.dtype)


def _forward_pallas(col, w1p, b1p, w4p, b4p, w7p, b7p, w11p, b11p, w13p, b13p):
    N = col.shape[0]
    flops = N * 2 * (256 * 147 * 16 + 64 * 144 * 64 + 16 * 576 * 64
                     + 16 * 9 * 64 + 16 * 9 * 64 * 32)
    bytes_acc = (col.size * 2 + N * 2 * 2 * 16 * 32 * 4
                 + 2 * (w1p.size + w4p.size + w7p.size + w13p.size)
                 + 4 * (w11p.size + 16 + 3 * 64 + 32))
    return pl.pallas_call(
        _fused_kernel,
        out_shape=jax.ShapeDtypeStruct((N, 2, 2, 16, 32), jnp.float32),
        grid=(N,),
        in_specs=[
            pl.BlockSpec((1, 256, 256), lambda n: (n, 0, 0)),     # stage-1 im2col
            pl.BlockSpec((256, 16), lambda n: (0, 0)),            # w1
            pl.BlockSpec((1, 16), lambda n: (0, 0)),              # b1
            pl.BlockSpec((9, 16, 64), lambda n: (0, 0, 0)),       # w4
            pl.BlockSpec((1, 64), lambda n: (0, 0)),              # b4
            pl.BlockSpec((9, 64, 64), lambda n: (0, 0, 0)),       # w7
            pl.BlockSpec((1, 64), lambda n: (0, 0)),              # b7
            pl.BlockSpec((9, 64), lambda n: (0, 0)),              # w11 (depthwise)
            pl.BlockSpec((1, 64), lambda n: (0, 0)),              # b11
            pl.BlockSpec((9, 64, 32), lambda n: (0, 0, 0)),       # w13 (convT)
            pl.BlockSpec((1, 32), lambda n: (0, 0)),              # b13
        ],
        out_specs=pl.BlockSpec((1, 2, 2, 16, 32), lambda n: (n, 0, 0, 0, 0)),
        scratch_shapes=[
            pltpu.VMEM((16, 5, 5, 16), jnp.bfloat16),   # padded-x1 mod-4 phases
            pltpu.VMEM((4, 5, 5, 64), jnp.bfloat16),    # padded-x2 mod-2 phases
            pltpu.VMEM((6, 6, 64), jnp.float32),        # reflect-padded x_add
            pltpu.VMEM((5, 5, 64), jnp.bfloat16),       # zero-padded convT input
        ],
        compiler_params=pltpu.CompilerParams(
            dimension_semantics=("parallel",),          # batch shards across TCs
            vmem_limit_bytes=32 * 1024 * 1024),
        cost_estimate=pl.CostEstimate(flops=flops, transcendentals=N * 208,
                                      bytes_accessed=bytes_acc),
    )(col, w1p, b1p, w4p, b4p, w7p, b7p, w11p, b11p, w13p, b13p)


# ---------------------------------------------------------------------------
# Parameter packing and wrapper-side glue (input/output tensors only)
# ---------------------------------------------------------------------------
def _pack_params(p):
    w1 = jnp.transpose(p["w1"], (2, 3, 1, 0)).reshape(147, 16)           # (tap*3+ci, co)
    w1p = jnp.pad(w1, ((0, 256 - 147), (0, 0))).astype(jnp.bfloat16)
    w4p = jnp.transpose(p["w4"], (2, 3, 1, 0)).reshape(9, 16, 64).astype(jnp.bfloat16)
    w7p = jnp.transpose(p["w7"], (2, 3, 1, 0)).reshape(9, 64, 64).astype(jnp.bfloat16)
    w11p = jnp.transpose(p["w11"].reshape(64, 9), (1, 0)).astype(jnp.float32)
    w13p = jnp.transpose(p["w13"], (2, 3, 0, 1)).reshape(9, 64, 32).astype(jnp.bfloat16)
    b1p = p["b1"].reshape(1, 16).astype(jnp.float32)
    b4p = p["b4"].reshape(1, 64).astype(jnp.float32)
    b7p = p["b7"].reshape(1, 64).astype(jnp.float32)
    b11p = p["b11"].reshape(1, 64).astype(jnp.float32)
    b13p = p["b13"].reshape(1, 32).astype(jnp.float32)
    return (w1p, b1p, w4p, b4p, w7p, b7p, w11p, b11p, w13p, b13p)


def _stage1_cols(x_nchw):
    # NCHW -> NHWC, ReflectionPad(3), 7x7 tap-folded im2col (K = 147 -> 256, bf16),
    # with output pixels reordered into (h%4, w%4) groups for the in-kernel
    # stride-2 phase decomposition.
    N = x_nchw.shape[0]
    x = jnp.transpose(x_nchw, (0, 2, 3, 1)).astype(jnp.float32)          # (N,16,16,3)
    xp = jnp.pad(x, ((0, 0), (3, 3), (3, 3), (0, 0)), mode="reflect")    # (N,22,22,3)
    pats = jnp.stack([xp[:, kh:kh + 16, kw:kw + 16, :]
                      for kh in range(7) for kw in range(7)], axis=3)    # (N,16,16,49,3)
    pats = pats.reshape(N, 16, 16, 147)
    pats = pats.reshape(N, 4, 4, 4, 4, 147).transpose(0, 2, 4, 1, 3, 5)
    pats = pats.reshape(N, 256, 147)
    return jnp.pad(pats, ((0, 0), (0, 0), (0, 256 - 147))).astype(jnp.bfloat16)


def simple_model_forward(x_nchw, params):
    N, C, H, W = x_nchw.shape
    assert (C, H, W) == (3, 16, 16), "kernel is specialized for 3x16x16 inputs"
    packed = _pack_params(params)
    col = _stage1_cols(x_nchw)
    out = _forward_pallas(col, *packed)                                  # (N,2,2,16,32)
    # out[n, r, c, i*4+j, ch] = y[n, 2i+r, 2j+c, ch]
    y = out.reshape(N, 2, 2, 4, 4, 32).transpose(0, 3, 1, 4, 2, 5).reshape(N, 8, 8, 32)
    return jnp.transpose(y, (0, 3, 1, 2))                                # NCHW (N,32,8,8)


# ---------------------------------------------------------------------------
# Deterministic synthetic parameters (match the torch module's layer shapes)
# ---------------------------------------------------------------------------
def init_params():
    ks = jax.random.split(jax.random.PRNGKey(0), 10)
    return {
        "w1": 0.05 * jax.random.normal(ks[0], (16, 3, 7, 7), jnp.float32),
        "b1": 0.01 * jax.random.normal(ks[1], (16,), jnp.float32),
        "w4": 0.05 * jax.random.normal(ks[2], (64, 16, 3, 3), jnp.float32),
        "b4": 0.01 * jax.random.normal(ks[3], (64,), jnp.float32),
        "w7": 0.05 * jax.random.normal(ks[4], (64, 64, 3, 3), jnp.float32),
        "b7": 0.01 * jax.random.normal(ks[5], (64,), jnp.float32),
        "w11": 0.05 * jax.random.normal(ks[6], (64, 1, 3, 3), jnp.float32),
        "b11": 0.01 * jax.random.normal(ks[7], (64,), jnp.float32),
        "w13": 0.05 * jax.random.normal(ks[8], (64, 32, 3, 3), jnp.float32),
        "b13": 0.01 * jax.random.normal(ks[9], (32,), jnp.float32),
    }


if __name__ == "__main__":
    params = init_params()
    x = jax.random.normal(jax.random.PRNGKey(0), (2, 3, 16, 16), jnp.float32)

    fwd = jax.jit(lambda inp: simple_model_forward(inp, params))
    out = jax.block_until_ready(fwd(x))

    assert out.shape == (2, 32, 8, 8), out.shape
    assert out.dtype == jnp.float32
    assert bool(jnp.all(jnp.isfinite(out)))
    print("KERNEL_OK")
</pallas_src>

<mosaic_0001>
module attributes {stable_mosaic.version = 11 : i64} {
  func.func @_fused_kernel(%arg0: i32, %arg1: memref<1x256x256xbf16, #tpu.memory_space<vmem>>, %arg2: memref<256x16xbf16, #tpu.memory_space<vmem>>, %arg3: memref<1x16xf32, #tpu.memory_space<vmem>>, %arg4: memref<9x16x64xbf16, #tpu.memory_space<vmem>>, %arg5: memref<1x64xf32, #tpu.memory_space<vmem>>, %arg6: memref<9x64x64xbf16, #tpu.memory_space<vmem>>, %arg7: memref<1x64xf32, #tpu.memory_space<vmem>>, %arg8: memref<9x64xf32, #tpu.memory_space<vmem>>, %arg9: memref<1x64xf32, #tpu.memory_space<vmem>>, %arg10: memref<9x64x32xbf16, #tpu.memory_space<vmem>>, %arg11: memref<1x32xf32, #tpu.memory_space<vmem>>, %arg12: memref<1x2x2x16x32xf32, #tpu.memory_space<vmem>>, %arg13: memref<16x5x5x16xbf16, #tpu.memory_space<vmem>>, %arg14: memref<4x5x5x64xbf16, #tpu.memory_space<vmem>>, %arg15: memref<6x6x64xf32, #tpu.memory_space<vmem>>, %arg16: memref<5x5x64xbf16, #tpu.memory_space<vmem>>) attributes {dimension_semantics = [#tpu.dimension_semantics<parallel>], iteration_bounds = array<i64: 2>, scalar_prefetch = 0 : i64, scratch_operands = 4 : i64, tpu.core_type = #tpu.core_type<tc>, window_params = [{transform_indices = @transform_0, window_bounds = array<i64: 1, 256, 256>}, {pipeline_mode = #tpu.pipeline_mode<synchronous>, transform_indices = @transform_1, window_bounds = array<i64: 256, 16>}, {pipeline_mode = #tpu.pipeline_mode<synchronous>, transform_indices = @transform_2, window_bounds = array<i64: 1, 16>}, {pipeline_mode = #tpu.pipeline_mode<synchronous>, transform_indices = @transform_3, window_bounds = array<i64: 9, 16, 64>}, {pipeline_mode = #tpu.pipeline_mode<synchronous>, transform_indices = @transform_4, window_bounds = array<i64: 1, 64>}, {pipeline_mode = #tpu.pipeline_mode<synchronous>, transform_indices = @transform_5, window_bounds = array<i64: 9, 64, 64>}, {pipeline_mode = #tpu.pipeline_mode<synchronous>, transform_indices = @transform_6, window_bounds = array<i64: 1, 64>}, {pipeline_mode = #tpu.pipeline_mode<synchronous>, transform_indices = @transform_7, window_bounds = array<i64: 9, 64>}, {pipeline_mode = #tpu.pipeline_mode<synchronous>, transform_indices = @transform_8, window_bounds = array<i64: 1, 64>}, {pipeline_mode = #tpu.pipeline_mode<synchronous>, transform_indices = @transform_9, window_bounds = array<i64: 9, 64, 32>}, {pipeline_mode = #tpu.pipeline_mode<synchronous>, transform_indices = @transform_10, window_bounds = array<i64: 1, 32>}, {transform_indices = @transform_11, window_bounds = array<i64: 1, 2, 2, 16, 32>}]} {
    %c0 = arith.constant 0 : index
    %c0_0 = arith.constant 0 : index
    %c0_1 = arith.constant 0 : index
    %0 = vector.load %arg1[%c0, %c0_0, %c0_1] : memref<1x256x256xbf16, #tpu.memory_space<vmem>>, vector<1x256x256xbf16>
    %1 = vector.shape_cast %0 : vector<1x256x256xbf16> to vector<256x256xbf16>
    %c0_2 = arith.constant 0 : index
    %c0_3 = arith.constant 0 : index
    %2 = vector.load %arg2[%c0_2, %c0_3] : memref<256x16xbf16, #tpu.memory_space<vmem>>, vector<256x16xbf16>
    %cst = arith.constant dense<0.000000e+00> : vector<256x16xf32>
    %3 = tpu.matmul %1, %2, %cst {dimension_numbers = #tpu.dot_dimension_numbers<[1], [0], [0], [1], [0, 0, 1, 1], [], []>} : vector<256x256xbf16>, vector<256x16xbf16>, vector<256x16xf32> -> vector<256x16xf32>
    %c0_4 = arith.constant 0 : index
    %c0_5 = arith.constant 0 : index
    %4 = vector.load %arg3[%c0_4, %c0_5] : memref<1x16xf32, #tpu.memory_space<vmem>>, vector<1x16xf32>
    %5 = vector.broadcast %4 : vector<1x16xf32> to vector<256x16xf32>
    %6 = arith.addf %3, %5 : vector<256x16xf32>
    %cst_6 = arith.constant dense<0.000000e+00> : vector<16xf32>
    %7 = vector.multi_reduction <add>, %6, %cst_6 [0] : vector<256x16xf32> to vector<16xf32>
    %8 = vector.shape_cast %7 : vector<16xf32> to vector<1x16xf32>
    %cst_7 = arith.constant 3.906250e-03 : f32
    %9 = vector.broadcast %cst_7 : f32 to vector<1x16xf32>
    %10 = arith.mulf %8, %9 : vector<1x16xf32>
    %11 = vector.broadcast %10 : vector<1x16xf32> to vector<256x16xf32>
    %12 = arith.subf %6, %11 : vector<256x16xf32>
    %13 = arith.mulf %12, %12 : vector<256x16xf32>
    %cst_8 = arith.constant dense<0.000000e+00> : vector<16xf32>
    %14 = vector.multi_reduction <add>, %13, %cst_8 [0] : vector<256x16xf32> to vector<16xf32>
    %15 = vector.shape_cast %14 : vector<16xf32> to vector<1x16xf32>
    %cst_9 = arith.constant 3.906250e-03 : f32
    %16 = vector.broadcast %cst_9 : f32 to vector<1x16xf32>
    %17 = arith.mulf %15, %16 : vector<1x16xf32>
    %cst_10 = arith.constant 9.99999974E-6 : f32
    %18 = vector.broadcast %cst_10 : f32 to vector<1x16xf32>
    %19 = arith.addf %17, %18 : vector<1x16xf32>
    %20 = math.rsqrt %19 : vector<1x16xf32>
    %21 = vector.broadcast %20 : vector<1x16xf32> to vector<256x16xf32>
    %22 = arith.mulf %12, %21 : vector<256x16xf32>
    %cst_11 = arith.constant 0.000000e+00 : f32
    %23 = vector.broadcast %cst_11 : f32 to vector<256x16xf32>
    %24 = arith.maximumf %22, %23 : vector<256x16xf32>
    %25 = arith.truncf %24 : vector<256x16xf32> to vector<256x16xbf16>
    %cst_12 = arith.constant 0.000000e+00 : bf16
    %26 = vector.broadcast %cst_12 : bf16 to vector<16x5x5x16xbf16>
    %c0_13 = arith.constant 0 : index
    %c0_14 = arith.constant 0 : index
    %c0_15 = arith.constant 0 : index
    %c0_16 = arith.constant 0 : index
    %27 = vector.load %arg13[%c0_13, %c0_14, %c0_15, %c0_16] : memref<16x5x5x16xbf16, #tpu.memory_space<vmem>>, vector<16x5x5x16xbf16>
    tpu.vector_store %arg13[%c0_13, %c0_14, %c0_15, %c0_16], %26 {strides = array<i32>} : memref<16x5x5x16xbf16, #tpu.memory_space<vmem>>, vector<16x5x5x16xbf16>,
    %28 = vector.extract_strided_slice %25 {offsets = [240, 0], sizes = [4, 16], strides = [1, 1]} : vector<256x16xbf16> to vector<4x16xbf16>
    %c0_17 = arith.constant 0 : index
    %c1 = arith.constant 1 : index
    %c1_18 = arith.constant 1 : index
    %c0_19 = arith.constant 0 : index
    %29 = vector.load %arg13[%c0_17, %c1, %c1_18, %c0_19] : memref<16x5x5x16xbf16, #tpu.memory_space<vmem>>, vector<1x1x4x16xbf16>
    %30 = vector.shape_cast %29 : vector<1x1x4x16xbf16> to vector<4x16xbf16>
    %31 = vector.shape_cast %28 : vector<4x16xbf16> to vector<1x1x4x16xbf16>
    tpu.vector_store %arg13[%c0_17, %c1, %c1_18, %c0_19], %31 {strides = array<i32>} : memref<16x5x5x16xbf16, #tpu.memory_space<vmem>>, vector<1x1x4x16xbf16>,
    %32 = vector.extract_strided_slice %25 {offsets = [244, 0], sizes = [4, 16], strides = [1, 1]} : vector<256x16xbf16> to vector<4x16xbf16>
    %c0_20 = arith.constant 0 : index
    %c2 = arith.constant 2 : index
    %c1_21 = arith.constant 1 : index
    %c0_22 = arith.constant 0 : index
    %33 = vector.load %arg13[%c0_20, %c2, %c1_21, %c0_22] : memref<16x5x5x16xbf16, #tpu.memory_space<vmem>>, vector<1x1x4x16xbf16>
    %34 = vector.shape_cast %33 : vector<1x1x4x16xbf16> to vector<4x16xbf16>
    %35 = vector.shape_cast %32 : vector<4x16xbf16> to vector<1x1x4x16xbf16>
    tpu.vector_store %arg13[%c0_20, %c2, %c1_21, %c0_22], %35 {strides = array<i32>} : memref<16x5x5x16xbf16, #tpu.memory_space<vmem>>, vector<1x1x4x16xbf16>,
    %36 = vector.extract_strided_slice %25 {offsets = [248, 0], sizes = [4, 16], strides = [1, 1]} : vector<256x16xbf16> to vector<4x16xbf16>
    %c0_23 = arith.constant 0 : index
    %c3 = arith.constant 3 : index
    %c1_24 = arith.constant 1 : index
    %c0_25 = arith.constant 0 : index
    %37 = vector.load %arg13[%c0_23, %c3, %c1_24, %c0_25] : memref<16x5x5x16xbf16, #tpu.memory_space<vmem>>, vector<1x1x4x16xbf16>
    %38 = vector.shape_cast %37 : vector<1x1x4x16xbf16> to vector<4x16xbf16>
    %39 = vector.shape_cast %36 : vector<4x16xbf16> to vector<1x1x4x16xbf16>
    tpu.vector_store %arg13[%c0_23, %c3, %c1_24, %c0_25], %39 {strides = array<i32>} : memref<16x5x5x16xbf16, #tpu.memory_space<vmem>>, vector<1x1x4x16xbf16>,
    %40 = vector.extract_strided_slice %25 {offsets = [252, 0], sizes = [4, 16], strides = [1, 1]} : vector<256x16xbf16> to vector<4x16xbf16>
    %c0_26 = arith.constant 0 : index
    %c4 = arith.constant 4 : index
    %c1_27 = arith.constant 1 : index
    %c0_28 = arith.constant 0 : index
    %41 = vector.load %arg13[%c0_26, %c4, %c1_27, %c0_28] : memref<16x5x5x16xbf16, #tpu.memory_space<vmem>>, vector<1x1x4x16xbf16>
    %42 = vector.shape_cast %41 : vector<1x1x4x16xbf16> to vector<4x16xbf16>
    %43 = vector.shape_cast %40 : vector<4x16xbf16> to vector<1x1x4x16xbf16>
    tpu.vector_store %arg13[%c0_26, %c4, %c1_27, %c0_28], %43 {strides = array<i32>} : memref<16x5x5x16xbf16, #tpu.memory_space<vmem>>, vector<1x1x4x16xbf16>,
    %44 = vector.extract_strided_slice %25 {offsets = [192, 0], sizes = [4, 16], strides = [1, 1]} : vector<256x16xbf16> to vector<4x16xbf16>
    %c1_29 = arith.constant 1 : index
    %c1_30 = arith.constant 1 : index
    %c0_31 = arith.constant 0 : index
    %c0_32 = arith.constant 0 : index
    %45 = vector.load %arg13[%c1_29, %c1_30, %c0_31, %c0_32] : memref<16x5x5x16xbf16, #tpu.memory_space<vmem>>, vector<1x1x4x16xbf16>
    %46 = vector.shape_cast %45 : vector<1x1x4x16xbf16> to vector<4x16xbf16>
    %47 = vector.shape_cast %44 : vector<4x16xbf16> to vector<1x1x4x16xbf16>
    tpu.vector_store %arg13[%c1_29, %c1_30, %c0_31, %c0_32], %47 {strides = array<i32>} : memref<16x5x5x16xbf16, #tpu.memory_space<vmem>>, vector<1x1x4x16xbf16>,
    %48 = vector.extract_strided_slice %25 {offsets = [196, 0], sizes = [4, 16], strides = [1, 1]} : vector<256x16xbf16> to vector<4x16xbf16>
    %c1_33 = arith.constant 1 : index
    %c2_34 = arith.constant 2 : index
    %c0_35 = arith.constant 0 : index
    %c0_36 = arith.constant 0 : index
    %49 = vector.load %arg13[%c1_33, %c2_34, %c0_35, %c0_36] : memref<16x5x5x16xbf16, #tpu.memory_space<vmem>>, vector<1x1x4x16xbf16>
    %50 = vector.shape_cast %49 : vector<1x1x4x16xbf16> to vector<4x16xbf16>
    %51 = vector.shape_cast %48 : vector<4x16xbf16> to vector<1x1x4x16xbf16>
    tpu.vector_store %arg13[%c1_33, %c2_34, %c0_35, %c0_36], %51 {strides = array<i32>} : memref<16x5x5x16xbf16, #tpu.memory_space<vmem>>, vector<1x1x4x16xbf16>,
    %52 = vector.extract_strided_slice %25 {offsets = [200, 0], sizes = [4, 16], strides = [1, 1]} : vector<256x16xbf16> to vector<4x16xbf16>
    %c1_37 = arith.constant 1 : index
    %c3_38 = arith.constant 3 : index
    %c0_39 = arith.constant 0 : index
    %c0_40 = arith.constant 0 : index
    %53 = vector.load %arg13[%c1_37, %c3_38, %c0_39, %c0_40] : memref<16x5x5x16xbf16, #tpu.memory_space<vmem>>, vector<1x1x4x16xbf16>
    %54 = vector.shape_cast %53 : vector<1x1x4x16xbf16> to vector<4x16xbf16>
    %55 = vector.shape_cast %52 : vector<4x16xbf16> to vector<1x1x4x16xbf16>
    tpu.vector_store %arg13[%c1_37, %c3_38, %c0_39, %c0_40], %55 {strides = array<i32>} : memref<16x5x5x16xbf16, #tpu.memory_space<vmem>>, vector<1x1x4x16xbf16>,
    %56 = vector.extract_strided_slice %25 {offsets = [204, 0], sizes = [4, 16], strides = [1, 1]} : vector<256x16xbf16> to vector<4x16xbf16>
    %c1_41 = arith.constant 1 : index
    %c4_42 = arith.constant 4 : index
    %c0_43 = arith.constant 0 : index
    %c0_44 = arith.constant 0 : index
    %57 = vector.load %arg13[%c1_41, %c4_42, %c0_43, %c0_44] : memref<16x5x5x16xbf16, #tpu.memory_space<vmem>>, vector<1x1x4x16xbf16>
    %58 = vector.shape_cast %57 : vector<1x1x4x16xbf16> to vector<4x16xbf16>
    %59 = vector.shape_cast %56 : vector<4x16xbf16> to vector<1x1x4x16xbf16>
    tpu.vector_store %arg13[%c1_41, %c4_42, %c0_43, %c0_44], %59 {strides = array<i32>} : memref<16x5x5x16xbf16, #tpu.memory_space<vmem>>, vector<1x1x4x16xbf16>,
    %60 = vector.extract_strided_slice %25 {offsets = [208, 0], sizes = [4, 16], strides = [1, 1]} : vector<256x16xbf16> to vector<4x16xbf16>
    %c2_45 = arith.constant 2 : index
    %c1_46 = arith.constant 1 : index
    %c0_47 = arith.constant 0 : index
    %c0_48 = arith.constant 0 : index
    %61 = vector.load %arg13[%c2_45, %c1_46, %c0_47, %c0_48] : memref<16x5x5x16xbf16, #tpu.memory_space<vmem>>, vector<1x1x4x16xbf16>
    %62 = vector.shape_cast %61 : vector<1x1x4x16xbf16> to vector<4x16xbf16>
    %63 = vector.shape_cast %60 : vector<4x16xbf16> to vector<1x1x4x16xbf16>
    tpu.vector_store %arg13[%c2_45, %c1_46, %c0_47, %c0_48], %63 {strides = array<i32>} : memref<16x5x5x16xbf16, #tpu.memory_space<vmem>>, vector<1x1x4x16xbf16>,
    %64 = vector.extract_strided_slice %25 {offsets = [212, 0], sizes = [4, 16], strides = [1, 1]} : vector<256x16xbf16> to vector<4x16xbf16>
    %c2_49 = arith.constant 2 : index
    %c2_50 = arith.constant 2 : index
    %c0_51 = arith.constant 0 : index
    %c0_52 = arith.constant 0 : index
    %65 = vector.load %arg13[%c2_49, %c2_50, %c0_51, %c0_52] : memref<16x5x5x16xbf16, #tpu.memory_space<vmem>>, vector<1x1x4x16xbf16>
    %66 = vector.shape_cast %65 : vector<1x1x4x16xbf16> to vector<4x16xbf16>
    %67 = vector.shape_cast %64 : vector<4x16xbf16> to vector<1x1x4x16xbf16>
    tpu.vector_store %arg13[%c2_49, %c2_50, %c0_51, %c0_52], %67 {strides = array<i32>} : memref<16x5x5x16xbf16, #tpu.memory_space<vmem>>, vector<1x1x4x16xbf16>,
    %68 = vector.extract_strided_slice %25 {offsets = [216, 0], sizes = [4, 16], strides = [1, 1]} : vector<256x16xbf16> to vector<4x16xbf16>
    %c2_53 = arith.constant 2 : index
    %c3_54 = arith.constant 3 : index
    %c0_55 = arith.constant 0 : index
    %c0_56 = arith.constant 0 : index
    %69 = vector.load %arg13[%c2_53, %c3_54, %c0_55, %c0_56] : memref<16x5x5x16xbf16, #tpu.memory_space<vmem>>, vector<1x1x4x16xbf16>
    %70 = vector.shape_cast %69 : vector<1x1x4x16xbf16> to vector<4x16xbf16>
    %71 = vector.shape_cast %68 : vector<4x16xbf16> to vector<1x1x4x16xbf16>
    tpu.vector_store %arg13[%c2_53, %c3_54, %c0_55, %c0_56], %71 {strides = array<i32>} : memref<16x5x5x16xbf16, #tpu.memory_space<vmem>>, vector<1x1x4x16xbf16>,
    %72 = vector.extract_strided_slice %25 {offsets = [220, 0], sizes = [4, 16], strides = [1, 1]} : vector<256x16xbf16> to vector<4x16xbf16>
    %c2_57 = arith.constant 2 : index
    %c4_58 = arith.constant 4 : index
    %c0_59 = arith.constant 0 : index
    %c0_60 = arith.constant 0 : index
    %73 = vector.load %arg13[%c2_57, %c4_58, %c0_59, %c0_60] : memref<16x5x5x16xbf16, #tpu.memory_space<vmem>>, vector<1x1x4x16xbf16>
    %74 = vector.shape_cast %73 : vector<1x1x4x16xbf16> to vector<4x16xbf16>
    %75 = vector.shape_cast %72 : vector<4x16xbf16> to vector<1x1x4x16xbf16>
    tpu.vector_store %arg13[%c2_57, %c4_58, %c0_59, %c0_60], %75 {strides = array<i32>} : memref<16x5x5x16xbf16, #tpu.memory_space<vmem>>, vector<1x1x4x16xbf16>,
    %76 = vector.extract_strided_slice %25 {offsets = [224, 0], sizes = [4, 16], strides = [1, 1]} : vector<256x16xbf16> to vector<4x16xbf16>
    %c3_61 = arith.constant 3 : index
    %c1_62 = arith.constant 1 : index
    %c0_63 = arith.constant 0 : index
    %c0_64 = arith.constant 0 : index
    %77 = vector.load %arg13[%c3_61, %c1_62, %c0_63, %c0_64] : memref<16x5x5x16xbf16, #tpu.memory_space<vmem>>, vector<1x1x4x16xbf16>
    %78 = vector.shape_cast %77 : vector<1x1x4x16xbf16> to vector<4x16xbf16>
    %79 = vector.shape_cast %76 : vector<4x16xbf16> to vector<1x1x4x16xbf16>
    tpu.vector_store %arg13[%c3_61, %c1_62, %c0_63, %c0_64], %79 {strides = array<i32>} : memref<16x5x5x16xbf16, #tpu.memory_space<vmem>>, vector<1x1x4x16xbf16>,
    %80 = vector.extract_strided_slice %25 {offsets = [228, 0], sizes = [4, 16], strides = [1, 1]} : vector<256x16xbf16> to vector<4x16xbf16>
    %c3_65 = arith.constant 3 : index
    %c2_66 = arith.constant 2 : index
    %c0_67 = arith.constant 0 : index
    %c0_68 = arith.constant 0 : index
    %81 = vector.load %arg13[%c3_65, %c2_66, %c0_67, %c0_68] : memref<16x5x5x16xbf16, #tpu.memory_space<vmem>>, vector<1x1x4x16xbf16>
    %82 = vector.shape_cast %81 : vector<1x1x4x16xbf16> to vector<4x16xbf16>
    %83 = vector.shape_cast %80 : vector<4x16xbf16> to vector<1x1x4x16xbf16>
    tpu.vector_store %arg13[%c3_65, %c2_66, %c0_67, %c0_68], %83 {strides = array<i32>} : memref<16x5x5x16xbf16, #tpu.memory_space<vmem>>, vector<1x1x4x16xbf16>,
    %84 = vector.extract_strided_slice %25 {offsets = [232, 0], sizes = [4, 16], strides = [1, 1]} : vector<256x16xbf16> to vector<4x16xbf16>
    %c3_69 = arith.constant 3 : index
    %c3_70 = arith.constant 3 : index
    %c0_71 = arith.constant 0 : index
    %c0_72 = arith.constant 0 : index
    %85 = vector.load %arg13[%c3_69, %c3_70, %c0_71, %c0_72] : memref<16x5x5x16xbf16, #tpu.memory_space<vmem>>, vector<1x1x4x16xbf16>
    %86 = vector.shape_cast %85 : vector<1x1x4x16xbf16> to vector<4x16xbf16>
    %87 = vector.shape_cast %84 : vector<4x16xbf16> to vector<1x1x4x16xbf16>
    tpu.vector_store %arg13[%c3_69, %c3_70, %c0_71, %c0_72], %87 {strides = array<i32>} : memref<16x5x5x16xbf16, #tpu.memory_space<vmem>>, vector<1x1x4x16xbf16>,
    %88 = vector.extract_strided_slice %25 {offsets = [236, 0], sizes = [4, 16], strides = [1, 1]} : vector<256x16xbf16> to vector<4x16xbf16>
    %c3_73 = arith.constant 3 : index
    %c4_74 = arith.constant 4 : index
    %c0_75 = arith.constant 0 : index
    %c0_76 = arith.constant 0 : index
    %89 = vector.load %arg13[%c3_73, %c4_74, %c0_75, %c0_76] : memref<16x5x5x16xbf16, #tpu.memory_space<vmem>>, vector<1x1x4x16xbf16>
    %90 = vector.shape_cast %89 : vector<1x1x4x16xbf16> to vector<4x16xbf16>
    %91 = vector.shape_cast %88 : vector<4x16xbf16> to vector<1x1x4x16xbf16>
    tpu.vector_store %arg13[%c3_73, %c4_74, %c0_75, %c0_76], %91 {strides = array<i32>} : memref<16x5x5x16xbf16, #tpu.memory_space<vmem>>, vector<1x1x4x16xbf16>,
    %92 = vector.extract_strided_slice %25 {offsets = [48, 0], sizes = [4, 16], strides = [1, 1]} : vector<256x16xbf16> to vector<4x16xbf16>
    %c4_77 = arith.constant 4 : index
    %c0_78 = arith.constant 0 : index
    %c1_79 = arith.constant 1 : index
    %c0_80 = arith.constant 0 : index
    %93 = vector.load %arg13[%c4_77, %c0_78, %c1_79, %c0_80] : memref<16x5x5x16xbf16, #tpu.memory_space<vmem>>, vector<1x1x4x16xbf16>
    %94 = vector.shape_cast %93 : vector<1x1x4x16xbf16> to vector<4x16xbf16>
    %95 = vector.shape_cast %92 : vector<4x16xbf16> to vector<1x1x4x16xbf16>
    tpu.vector_store %arg13[%c4_77, %c0_78, %c1_79, %c0_80], %95 {strides = array<i32>} : memref<16x5x5x16xbf16, #tpu.memory_space<vmem>>, vector<1x1x4x16xbf16>,
    %96 = vector.extract_strided_slice %25 {offsets = [52, 0], sizes = [4, 16], strides = [1, 1]} : vector<256x16xbf16> to vector<4x16xbf16>
    %c4_81 = arith.constant 4 : index
    %c1_82 = arith.constant 1 : index
    %c1_83 = arith.constant 1 : index
    %c0_84 = arith.constant 0 : index
    %97 = vector.load %arg13[%c4_81, %c1_82, %c1_83, %c0_84] : memref<16x5x5x16xbf16, #tpu.memory_space<vmem>>, vector<1x1x4x16xbf16>
    %98 = vector.shape_cast %97 : vector<1x1x4x16xbf16> to vector<4x16xbf16>
    %99 = vector.shape_cast %96 : vector<4x16xbf16> to vector<1x1x4x16xbf16>
    tpu.vector_store %arg13[%c4_81, %c1_82, %c1_83, %c0_84], %99 {strides = array<i32>} : memref<16x5x5x16xbf16, #tpu.memory_space<vmem>>, vector<1x1x4x16xbf16>,
    %100 = vector.extract_strided_slice %25 {offsets = [56, 0], sizes = [4, 16], strides = [1, 1]} : vector<256x16xbf16> to vector<4x16xbf16>
    %c4_85 = arith.constant 4 : index
    %c2_86 = arith.constant 2 : index
    %c1_87 = arith.constant 1 : index
    %c0_88 = arith.constant 0 : index
    %101 = vector.load %arg13[%c4_85, %c2_86, %c1_87, %c0_88] : memref<16x5x5x16xbf16, #tpu.memory_space<vmem>>, vector<1x1x4x16xbf16>
    %102 = vector.shape_cast %101 : vector<1x1x4x16xbf16> to vector<4x16xbf16>
    %103 = vector.shape_cast %100 : vector<4x16xbf16> to vector<1x1x4x16xbf16>
    tpu.vector_store %arg13[%c4_85, %c2_86, %c1_87, %c0_88], %103 {strides = array<i32>} : memref<16x5x5x16xbf16, #tpu.memory_space<vmem>>, vector<1x1x4x16xbf16>,
    %104 = vector.extract_strided_slice %25 {offsets = [60, 0], sizes = [4, 16], strides = [1, 1]} : vector<256x16xbf16> to vector<4x16xbf16>
    %c4_89 = arith.constant 4 : index
    %c3_90 = arith.constant 3 : index
    %c1_91 = arith.constant 1 : index
    %c0_92 = arith.constant 0 : index
    %105 = vector.load %arg13[%c4_89, %c3_90, %c1_91, %c0_92] : memref<16x5x5x16xbf16, #tpu.memory_space<vmem>>, vector<1x1x4x16xbf16>
    %106 = vector.shape_cast %105 : vector<1x1x4x16xbf16> to vector<4x16xbf16>
    %107 = vector.shape_cast %104 : vector<4x16xbf16> to vector<1x1x4x16xbf16>
    tpu.vector_store %arg13[%c4_89, %c3_90, %c1_91, %c0_92], %107 {strides = array<i32>} : memref<16x5x5x16xbf16, #tpu.memory_space<vmem>>, vector<1x1x4x16xbf16>,
    %108 = vector.extract_strided_slice %25 {offsets = [0, 0], sizes = [4, 16], strides = [1, 1]} : vector<256x16xbf16> to vector<4x16xbf16>
    %c5 = arith.constant 5 : index
    %c0_93 = arith.constant 0 : index
    %c0_94 = arith.constant 0 : index
    %c0_95 = arith.constant 0 : index
    %109 = vector.load %arg13[%c5, %c0_93, %c0_94, %c0_95] : memref<16x5x5x16xbf16, #tpu.memory_space<vmem>>, vector<1x1x4x16xbf16>
    %110 = vector.shape_cast %109 : vector<1x1x4x16xbf16> to vector<4x16xbf16>
    %111 = vector.shape_cast %108 : vector<4x16xbf16> to vector<1x1x4x16xbf16>
    tpu.vector_store %arg13[%c5, %c0_93, %c0_94, %c0_95], %111 {strides = array<i32>} : memref<16x5x5x16xbf16, #tpu.memory_space<vmem>>, vector<1x1x4x16xbf16>,
    %112 = vector.extract_strided_slice %25 {offsets = [4, 0], sizes = [4, 16], strides = [1, 1]} : vector<256x16xbf16> to vector<4x16xbf16>
    %c5_96 = arith.constant 5 : index
    %c1_97 = arith.constant 1 : index
    %c0_98 = arith.constant 0 : index
    %c0_99 = arith.constant 0 : index
    %113 = vector.load %arg13[%c5_96, %c1_97, %c0_98, %c0_99] : memref<16x5x5x16xbf16, #tpu.memory_space<vmem>>, vector<1x1x4x16xbf16>
    %114 = vector.shape_cast %113 : vector<1x1x4x16xbf16> to vector<4x16xbf16>
    %115 = vector.shape_cast %112 : vector<4x16xbf16> to vector<1x1x4x16xbf16>
    tpu.vector_store %arg13[%c5_96, %c1_97, %c0_98, %c0_99], %115 {strides = array<i32>} : memref<16x5x5x16xbf16, #tpu.memory_space<vmem>>, vector<1x1x4x16xbf16>,
    %116 = vector.extract_strided_slice %25 {offsets = [8, 0], sizes = [4, 16], strides = [1, 1]} : vector<256x16xbf16> to vector<4x16xbf16>
    %c5_100 = arith.constant 5 : index
    %c2_101 = arith.constant 2 : index
    %c0_102 = arith.constant 0 : index
    %c0_103 = arith.constant 0 : index
    %117 = vector.load %arg13[%c5_100, %c2_101, %c0_102, %c0_103] : memref<16x5x5x16xbf16, #tpu.memory_space<vmem>>, vector<1x1x4x16xbf16>
    %118 = vector.shape_cast %117 : vector<1x1x4x16xbf16> to vector<4x16xbf16>
    %119 = vector.shape_cast %116 : vector<4x16xbf16> to vector<1x1x4x16xbf16>
    tpu.vector_store %arg13[%c5_100, %c2_101, %c0_102, %c0_103], %119 {strides = array<i32>} : memref<16x5x5x16xbf16, #tpu.memory_space<vmem>>, vector<1x1x4x16xbf16>,
    %120 = vector.extract_strided_slice %25 {offsets = [12, 0], sizes = [4, 16], strides = [1, 1]} : vector<256x16xbf16> to vector<4x16xbf16>
    %c5_104 = arith.constant 5 : index
    %c3_105 = arith.constant 3 : index
    %c0_106 = arith.constant 0 : index
    %c0_107 = arith.constant 0 : index
    %121 = vector.load %arg13[%c5_104, %c3_105, %c0_106, %c0_107] : memref<16x5x5x16xbf16, #tpu.memory_space<vmem>>, vector<1x1x4x16xbf16>
    %122 = vector.shape_cast %121 : vector<1x1x4x16xbf16> to vector<4x16xbf16>
    %123 = vector.shape_cast %120 : vector<4x16xbf16> to vector<1x1x4x16xbf16>
    tpu.vector_store %arg13[%c5_104, %c3_105, %c0_106, %c0_107], %123 {strides = array<i32>} : memref<16x5x5x16xbf16, #tpu.memory_space<vmem>>, vector<1x1x4x16xbf16>,
    %124 = vector.extract_strided_slice %25 {offsets = [16, 0], sizes = [4, 16], strides = [1, 1]} : vector<256x16xbf16> to vector<4x16xbf16>
    %c6 = arith.constant 6 : index
    %c0_108 = arith.constant 0 : index
    %c0_109 = arith.constant 0 : index
    %c0_110 = arith.constant 0 : index
    %125 = vector.load %arg13[%c6, %c0_108, %c0_109, %c0_110] : memref<16x5x5x16xbf16, #tpu.memory_space<vmem>>, vector<1x1x4x16xbf16>
    %126 = vector.shape_cast %125 : vector<1x1x4x16xbf16> to vector<4x16xbf16>
    %127 = vector.shape_cast %124 : vector<4x16xbf16> to vector<1x1x4x16xbf16>
    tpu.vector_store %arg13[%c6, %c0_108, %c0_109, %c0_110], %127 {strides = array<i32>} : memref<16x5x5x16xbf16, #tpu.memory_space<vmem>>, vector<1x1x4x16xbf16>,
    %128 = vector.extract_strided_slice %25 {offsets = [20, 0], sizes = [4, 16], strides = [1, 1]} : vector<256x16xbf16> to vector<4x16xbf16>
    %c6_111 = arith.constant 6 : index
    %c1_112 = arith.constant 1 : index
    %c0_113 = arith.constant 0 : index
    %c0_114 = arith.constant 0 : index
    %129 = vector.load %arg13[%c6_111, %c1_112, %c0_113, %c0_114] : memref<16x5x5x16xbf16, #tpu.memory_space<vmem>>, vector<1x1x4x16xbf16>
    %130 = vector.shape_cast %129 : vector<1x1x4x16xbf16> to vector<4x16xbf16>
    %131 = vector.shape_cast %128 : vector<4x16xbf16> to vector<1x1x4x16xbf16>
    tpu.vector_store %arg13[%c6_111, %c1_112, %c0_113, %c0_114], %131 {strides = array<i32>} : memref<16x5x5x16xbf16, #tpu.memory_space<vmem>>, vector<1x1x4x16xbf16>,
    %132 = vector.extract_strided_slice %25 {offsets = [24, 0], sizes = [4, 16], strides = [1, 1]} : vector<256x16xbf16> to vector<4x16xbf16>
    %c6_115 = arith.constant 6 : index
    %c2_116 = arith.constant 2 : index
    %c0_117 = arith.constant 0 : index
    %c0_118 = arith.constant 0 : index
    %133 = vector.load %arg13[%c6_115, %c2_116, %c0_117, %c0_118] : memref<16x5x5x16xbf16, #tpu.memory_space<vmem>>, vector<1x1x4x16xbf16>
    %134 = vector.shape_cast %133 : vector<1x1x4x16xbf16> to vector<4x16xbf16>
    %135 = vector.shape_cast %132 : vector<4x16xbf16> to vector<1x1x4x16xbf16>
    tpu.vector_store %arg13[%c6_115, %c2_116, %c0_117, %c0_118], %135 {strides = array<i32>} : memref<16x5x5x16xbf16, #tpu.memory_space<vmem>>, vector<1x1x4x16xbf16>,
    %136 = vector.extract_strided_slice %25 {offsets = [28, 0], sizes = [4, 16], strides = [1, 1]} : vector<256x16xbf16> to vector<4x16xbf16>
    %c6_119 = arith.constant 6 : index
    %c3_120 = arith.constant 3 : index
    %c0_121 = arith.constant 0 : index
    %c0_122 = arith.constant 0 : index
    %137 = vector.load %arg13[%c6_119, %c3_120, %c0_121, %c0_122] : memref<16x5x5x16xbf16, #tpu.memory_space<vmem>>, vector<1x1x4x16xbf16>
    %138 = vector.shape_cast %137 : vector<1x1x4x16xbf16> to vector<4x16xbf16>
    %139 = vector.shape_cast %136 : vector<4x16xbf16> to vector<1x1x4x16xbf16>
    tpu.vector_store %arg13[%c6_119, %c3_120, %c0_121, %c0_122], %139 {strides = array<i32>} : memref<16x5x5x16xbf16, #tpu.memory_space<vmem>>, vector<1x1x4x16xbf16>,
    %140 = vector.extract_strided_slice %25 {offsets = [32, 0], sizes = [4, 16], strides = [1, 1]} : vector<256x16xbf16> to vector<4x16xbf16>
    %c7 = arith.constant 7 : index
    %c0_123 = arith.constant 0 : index
    %c0_124 = arith.constant 0 : index
    %c0_125 = arith.constant 0 : index
    %141 = vector.load %arg13[%c7, %c0_123, %c0_124, %c0_125] : memref<16x5x5x16xbf16, #tpu.memory_space<vmem>>, vector<1x1x4x16xbf16>
    %142 = vector.shape_cast %141 : vector<1x1x4x16xbf16> to vector<4x16xbf16>
    %143 = vector.shape_cast %140 : vector<4x16xbf16> to vector<1x1x4x16xbf16>
    tpu.vector_store %arg13[%c7, %c0_123, %c0_124, %c0_125], %143 {strides = array<i32>} : memref<16x5x5x16xbf16, #tpu.memory_space<vmem>>, vector<1x1x4x16xbf16>,
    %144 = vector.extract_strided_slice %25 {offsets = [36, 0], sizes = [4, 16], strides = [1, 1]} : vector<256x16xbf16> to vector<4x16xbf16>
    %c7_126 = arith.constant 7 : index
    %c1_127 = arith.constant 1 : index
    %c0_128 = arith.constant 0 : index
    %c0_129 = arith.constant 0 : index
    %145 = vector.load %arg13[%c7_126, %c1_127, %c0_128, %c0_129] : memref<16x5x5x16xbf16, #tpu.memory_space<vmem>>, vector<1x1x4x16xbf16>
    %146 = vector.shape_cast %145 : vector<1x1x4x16xbf16> to vector<4x16xbf16>
    %147 = vector.shape_cast %144 : vector<4x16xbf16> to vector<1x1x4x16xbf16>
    tpu.vector_store %arg13[%c7_126, %c1_127, %c0_128, %c0_129], %147 {strides = array<i32>} : memref<16x5x5x16xbf16, #tpu.memory_space<vmem>>, vector<1x1x4x16xbf16>,
    %148 = vector.extract_strided_slice %25 {offsets = [40, 0], sizes = [4, 16], strides = [1, 1]} : vector<256x16xbf16> to vector<4x16xbf16>
    %c7_130 = arith.constant 7 : index
    %c2_131 = arith.constant 2 : index
    %c0_132 = arith.constant 0 : index
    %c0_133 = arith.constant 0 : index
    %149 = vector.load %arg13[%c7_130, %c2_131, %c0_132, %c0_133] : memref<16x5x5x16xbf16, #tpu.memory_space<vmem>>, vector<1x1x4x16xbf16>
    %150 = vector.shape_cast %149 : vector<1x1x4x16xbf16> to vector<4x16xbf16>
    %151 = vector.shape_cast %148 : vector<4x16xbf16> to vector<1x1x4x16xbf16>
    tpu.vector_store %arg13[%c7_130, %c2_131, %c0_132, %c0_133], %151 {strides = array<i32>} : memref<16x5x5x16xbf16, #tpu.memory_space<vmem>>, vector<1x1x4x16xbf16>,
    %152 = vector.extract_strided_slice %25 {offsets = [44, 0], sizes = [4, 16], strides = [1, 1]} : vector<256x16xbf16> to vector<4x16xbf16>
    %c7_134 = arith.constant 7 : index
    %c3_135 = arith.constant 3 : index
    %c0_136 = arith.constant 0 : index
    %c0_137 = arith.constant 0 : index
    %153 = vector.load %arg13[%c7_134, %c3_135, %c0_136, %c0_137] : memref<16x5x5x16xbf16, #tpu.memory_space<vmem>>, vector<1x1x4x16xbf16>
    %154 = vector.shape_cast %153 : vector<1x1x4x16xbf16> to vector<4x16xbf16>
    %155 = vector.shape_cast %152 : vector<4x16xbf16> to vector<1x1x4x16xbf16>
    tpu.vector_store %arg13[%c7_134, %c3_135, %c0_136, %c0_137], %155 {strides = array<i32>} : memref<16x5x5x16xbf16, #tpu.memory_space<vmem>>, vector<1x1x4x16xbf16>,
    %156 = vector.extract_strided_slice %25 {offsets = [112, 0], sizes = [4, 16], strides = [1, 1]} : vector<256x16xbf16> to vector<4x16xbf16>
    %c8 = arith.constant 8 : index
    %c0_138 = arith.constant 0 : index
    %c1_139 = arith.constant 1 : index
    %c0_140 = arith.constant 0 : index
    %157 = vector.load %arg13[%c8, %c0_138, %c1_139, %c0_140] : memref<16x5x5x16xbf16, #tpu.memory_space<vmem>>, vector<1x1x4x16xbf16>
    %158 = vector.shape_cast %157 : vector<1x1x4x16xbf16> to vector<4x16xbf16>
    %159 = vector.shape_cast %156 : vector<4x16xbf16> to vector<1x1x4x16xbf16>
    tpu.vector_store %arg13[%c8, %c0_138, %c1_139, %c0_140], %159 {strides = array<i32>} : memref<16x5x5x16xbf16, #tpu.memory_space<vmem>>, vector<1x1x4x16xbf16>,
    %160 = vector.extract_strided_slice %25 {offsets = [116, 0], sizes = [4, 16], strides = [1, 1]} : vector<256x16xbf16> to vector<4x16xbf16>
    %c8_141 = arith.constant 8 : index
    %c1_142 = arith.constant 1 : index
    %c1_143 = arith.constant 1 : index
    %c0_144 = arith.constant 0 : index
    %161 = vector.load %arg13[%c8_141, %c1_142, %c1_143, %c0_144] : memref<16x5x5x16xbf16, #tpu.memory_space<vmem>>, vector<1x1x4x16xbf16>
    %162 = vector.shape_cast %161 : vector<1x1x4x16xbf16> to vector<4x16xbf16>
    %163 = vector.shape_cast %160 : vector<4x16xbf16> to vector<1x1x4x16xbf16>
    tpu.vector_store %arg13[%c8_141, %c1_142, %c1_143, %c0_144], %163 {strides = array<i32>} : memref<16x5x5x16xbf16, #tpu.memory_space<vmem>>, vector<1x1x4x16xbf16>,
    %164 = vector.extract_strided_slice %25 {offsets = [120, 0], sizes = [4, 16], strides = [1, 1]} : vector<256x16xbf16> to vector<4x16xbf16>
    %c8_145 = arith.constant 8 : index
    %c2_146 = arith.constant 2 : index
    %c1_147 = arith.constant 1 : index
    %c0_148 = arith.constant 0 : index
    %165 = vector.load %arg13[%c8_145, %c2_146, %c1_147, %c0_148] : memref<16x5x5x16xbf16, #tpu.memory_space<vmem>>, vector<1x1x4x16xbf16>
    %166 = vector.shape_cast %165 : vector<1x1x4x16xbf16> to vector<4x16xbf16>
    %167 = vector.shape_cast %164 : vector<4x16xbf16> to vector<1x1x4x16xbf16>
    tpu.vector_store %arg13[%c8_145, %c2_146, %c1_147, %c0_148], %167 {strides = array<i32>} : memref<16x5x5x16xbf16, #tpu.memory_space<vmem>>, vector<1x1x4x16xbf16>,
    %168 = vector.extract_strided_slice %25 {offsets = [124, 0], sizes = [4, 16], strides = [1, 1]} : vector<256x16xbf16> to vector<4x16xbf16>
    %c8_149 = arith.constant 8 : index
    %c3_150 = arith.constant 3 : index
    %c1_151 = arith.constant 1 : index
    %c0_152 = arith.constant 0 : index
    %169 = vector.load %arg13[%c8_149, %c3_150, %c1_151, %c0_152] : memref<16x5x5x16xbf16, #tpu.memory_space<vmem>>, vector<1x1x4x16xbf16>
    %170 = vector.shape_cast %169 : vector<1x1x4x16xbf16> to vector<4x16xbf16>
    %171 = vector.shape_cast %168 : vector<4x16xbf16> to vector<1x1x4x16xbf16>
    tpu.vector_store %arg13[%c8_149, %c3_150, %c1_151, %c0_152], %171 {strides = array<i32>} : memref<16x5x5x16xbf16, #tpu.memory_space<vmem>>, vector<1x1x4x16xbf16>,
    %172 = vector.extract_strided_slice %25 {offsets = [64, 0], sizes = [4, 16], strides = [1, 1]} : vector<256x16xbf16> to vector<4x16xbf16>
    %c9 = arith.constant 9 : index
    %c0_153 = arith.constant 0 : index
    %c0_154 = arith.constant 0 : index
    %c0_155 = arith.constant 0 : index
    %173 = vector.load %arg13[%c9, %c0_153, %c0_154, %c0_155] : memref<16x5x5x16xbf16, #tpu.memory_space<vmem>>, vector<1x1x4x16xbf16>
    %174 = vector.shape_cast %173 : vector<1x1x4x16xbf16> to vector<4x16xbf16>
    %175 = vector.shape_cast %172 : vector<4x16xbf16> to vector<1x1x4x16xbf16>
    tpu.vector_store %arg13[%c9, %c0_153, %c0_154, %c0_155], %175 {strides = array<i32>} : memref<16x5x5x16xbf16, #tpu.memory_space<vmem>>, vector<1x1x4x16xbf16>,
    %176 = vector.extract_strided_slice %25 {offsets = [68, 0], sizes = [4, 16], strides = [1, 1]} : vector<256x16xbf16> to vector<4x16xbf16>
    %c9_156 = arith.constant 9 : index
    %c1_157 = arith.constant 1 : index
    %c0_158 = arith.constant 0 : index
    %c0_159 = arith.constant 0 : index
    %177 = vector.load %arg13[%c9_156, %c1_157, %c0_158, %c0_159] : memref<16x5x5x16xbf16, #tpu.memory_space<vmem>>, vector<1x1x4x16xbf16>
    %178 = vector.shape_cast %177 : vector<1x1x4x16xbf16> to vector<4x16xbf16>
    %179 = vector.shape_cast %176 : vector<4x16xbf16> to vector<1x1x4x16xbf16>
    tpu.vector_store %arg13[%c9_156, %c1_157, %c0_158, %c0_159], %179 {strides = array<i32>} : memref<16x5x5x16xbf16, #tpu.memory_space<vmem>>, vector<1x1x4x16xbf16>,
    %180 = vector.extract_strided_slice %25 {offsets = [72, 0], sizes = [4, 16], strides = [1, 1]} : vector<256x16xbf16> to vector<4x16xbf16>
    %c9_160 = arith.constant 9 : index
    %c2_161 = arith.constant 2 : index
    %c0_162 = arith.constant 0 : index
    %c0_163 = arith.constant 0 : index
    %181 = vector.load %arg13[%c9_160, %c2_161, %c0_162, %c0_163] : memref<16x5x5x16xbf16, #tpu.memory_space<vmem>>, vector<1x1x4x16xbf16>
    %182 = vector.shape_cast %181 : vector<1x1x4x16xbf16> to vector<4x16xbf16>
    %183 = vector.shape_cast %180 : vector<4x16xbf16> to vector<1x1x4x16xbf16>
    tpu.vector_store %arg13[%c9_160, %c2_161, %c0_162, %c0_163], %183 {strides = array<i32>} : memref<16x5x5x16xbf16, #tpu.memory_space<vmem>>, vector<1x1x4x16xbf16>,
    %184 = vector.extract_strided_slice %25 {offsets = [76, 0], sizes = [4, 16], strides = [1, 1]} : vector<256x16xbf16> to vector<4x16xbf16>
    %c9_164 = arith.constant 9 : index
    %c3_165 = arith.constant 3 : index
    %c0_166 = arith.constant 0 : index
    %c0_167 = arith.constant 0 : index
    %185 = vector.load %arg13[%c9_164, %c3_165, %c0_166, %c0_167] : memref<16x5x5x16xbf16, #tpu.memory_space<vmem>>, vector<1x1x4x16xbf16>
    %186 = vector.shape_cast %185 : vector<1x1x4x16xbf16> to vector<4x16xbf16>
    %187 = vector.shape_cast %184 : vector<4x16xbf16> to vector<1x1x4x16xbf16>
    tpu.vector_store %arg13[%c9_164, %c3_165, %c0_166, %c0_167], %187 {strides = array<i32>} : memref<16x5x5x16xbf16, #tpu.memory_space<vmem>>, vector<1x1x4x16xbf16>,
    %188 = vector.extract_strided_slice %25 {offsets = [80, 0], sizes = [4, 16], strides = [1, 1]} : vector<256x16xbf16> to vector<4x16xbf16>
    %c10 = arith.constant 10 : index
    %c0_168 = arith.constant 0 : index
    %c0_169 = arith.constant 0 : index
    %c0_170 = arith.constant 0 : index
    %189 = vector.load %arg13[%c10, %c0_168, %c0_169, %c0_170] : memref<16x5x5x16xbf16, #tpu.memory_space<vmem>>, vector<1x1x4x16xbf16>
    %190 = vector.shape_cast %189 : vector<1x1x4x16xbf16> to vector<4x16xbf16>
    %191 = vector.shape_cast %188 : vector<4x16xbf16> to vector<1x1x4x16xbf16>
    tpu.vector_store %arg13[%c10, %c0_168, %c0_169, %c0_170], %191 {strides = array<i32>} : memref<16x5x5x16xbf16, #tpu.memory_space<vmem>>, vector<1x1x4x16xbf16>,
    %192 = vector.extract_strided_slice %25 {offsets = [84, 0], sizes = [4, 16], strides = [1, 1]} : vector<256x16xbf16> to vector<4x16xbf16>
    %c10_171 = arith.constant 10 : index
    %c1_172 = arith.constant 1 : index
    %c0_173 = arith.constant 0 : index
    %c0_174 = arith.constant 0 : index
    %193 = vector.load %arg13[%c10_171, %c1_172, %c0_173, %c0_174] : memref<16x5x5x16xbf16, #tpu.memory_space<vmem>>, vector<1x1x4x16xbf16>
    %194 = vector.shape_cast %193 : vector<1x1x4x16xbf16> to vector<4x16xbf16>
    %195 = vector.shape_cast %192 : vector<4x16xbf16> to vector<1x1x4x16xbf16>
    tpu.vector_store %arg13[%c10_171, %c1_172, %c0_173, %c0_174], %195 {strides = array<i32>} : memref<16x5x5x16xbf16, #tpu.memory_space<vmem>>, vector<1x1x4x16xbf16>,
    %196 = vector.extract_strided_slice %25 {offsets = [88, 0], sizes = [4, 16], strides = [1, 1]} : vector<256x16xbf16> to vector<4x16xbf16>
    %c10_175 = arith.constant 10 : index
    %c2_176 = arith.constant 2 : index
    %c0_177 = arith.constant 0 : index
    %c0_178 = arith.constant 0 : index
    %197 = vector.load %arg13[%c10_175, %c2_176, %c0_177, %c0_178] : memref<16x5x5x16xbf16, #tpu.memory_space<vmem>>, vector<1x1x4x16xbf16>
    %198 = vector.shape_cast %197 : vector<1x1x4x16xbf16> to vector<4x16xbf16>
    %199 = vector.shape_cast %196 : vector<4x16xbf16> to vector<1x1x4x16xbf16>
    tpu.vector_store %arg13[%c10_175, %c2_176, %c0_177, %c0_178], %199 {strides = array<i32>} : memref<16x5x5x16xbf16, #tpu.memory_space<vmem>>, vector<1x1x4x16xbf16>,
    %200 = vector.extract_strided_slice %25 {offsets = [92, 0], sizes = [4, 16], strides = [1, 1]} : vector<256x16xbf16> to vector<4x16xbf16>
    %c10_179 = arith.constant 10 : index
    %c3_180 = arith.constant 3 : index
    %c0_181 = arith.constant 0 : index
    %c0_182 = arith.constant 0 : index
    %201 = vector.load %arg13[%c10_179, %c3_180, %c0_181, %c0_182] : memref<16x5x5x16xbf16, #tpu.memory_space<vmem>>, vector<1x1x4x16xbf16>
    %202 = vector.shape_cast %201 : vector<1x1x4x16xbf16> to vector<4x16xbf16>
    %203 = vector.shape_cast %200 : vector<4x16xbf16> to vector<1x1x4x16xbf16>
    tpu.vector_store %arg13[%c10_179, %c3_180, %c0_181, %c0_182], %203 {strides = array<i32>} : memref<16x5x5x16xbf16, #tpu.memory_space<vmem>>, vector<1x1x4x16xbf16>,
    %204 = vector.extract_strided_slice %25 {offsets = [96, 0], sizes = [4, 16], strides = [1, 1]} : vector<256x16xbf16> to vector<4x16xbf16>
    %c11 = arith.constant 11 : index
    %c0_183 = arith.constant 0 : index
    %c0_184 = arith.constant 0 : index
    %c0_185 = arith.constant 0 : index
    %205 = vector.load %arg13[%c11, %c0_183, %c0_184, %c0_185] : memref<16x5x5x16xbf16, #tpu.memory_space<vmem>>, vector<1x1x4x16xbf16>
    %206 = vector.shape_cast %205 : vector<1x1x4x16xbf16> to vector<4x16xbf16>
    %207 = vector.shape_cast %204 : vector<4x16xbf16> to vector<1x1x4x16xbf16>
    tpu.vector_store %arg13[%c11, %c0_183, %c0_184, %c0_185], %207 {strides = array<i32>} : memref<16x5x5x16xbf16, #tpu.memory_space<vmem>>, vector<1x1x4x16xbf16>,
    %208 = vector.extract_strided_slice %25 {offsets = [100, 0], sizes = [4, 16], strides = [1, 1]} : vector<256x16xbf16> to vector<4x16xbf16>
    %c11_186 = arith.constant 11 : index
    %c1_187 = arith.constant 1 : index
    %c0_188 = arith.constant 0 : index
    %c0_189 = arith.constant 0 : index
    %209 = vector.load %arg13[%c11_186, %c1_187, %c0_188, %c0_189] : memref<16x5x5x16xbf16, #tpu.memory_space<vmem>>, vector<1x1x4x16xbf16>
    %210 = vector.shape_cast %209 : vector<1x1x4x16xbf16> to vector<4x16xbf16>
    %211 = vector.shape_cast %208 : vector<4x16xbf16> to vector<1x1x4x16xbf16>
    tpu.vector_store %arg13[%c11_186, %c1_187, %c0_188, %c0_189], %211 {strides = array<i32>} : memref<16x5x5x16xbf16, #tpu.memory_space<vmem>>, vector<1x1x4x16xbf16>,
    %212 = vector.extract_strided_slice %25 {offsets = [104, 0], sizes = [4, 16], strides = [1, 1]} : vector<256x16xbf16> to vector<4x16xbf16>
    %c11_190 = arith.constant 11 : index
    %c2_191 = arith.constant 2 : index
    %c0_192 = arith.constant 0 : index
    %c0_193 = arith.constant 0 : index
    %213 = vector.load %arg13[%c11_190, %c2_191, %c0_192, %c0_193] : memref<16x5x5x16xbf16, #tpu.memory_space<vmem>>, vector<1x1x4x16xbf16>
    %214 = vector.shape_cast %213 : vector<1x1x4x16xbf16> to vector<4x16xbf16>
    %215 = vector.shape_cast %212 : vector<4x16xbf16> to vector<1x1x4x16xbf16>
    tpu.vector_store %arg13[%c11_190, %c2_191, %c0_192, %c0_193], %215 {strides = array<i32>} : memref<16x5x5x16xbf16, #tpu.memory_space<vmem>>, vector<1x1x4x16xbf16>,
    %216 = vector.extract_strided_slice %25 {offsets = [108, 0], sizes = [4, 16], strides = [1, 1]} : vector<256x16xbf16> to vector<4x16xbf16>
    %c11_194 = arith.constant 11 : index
    %c3_195 = arith.constant 3 : index
    %c0_196 = arith.constant 0 : index
    %c0_197 = arith.constant 0 : index
    %217 = vector.load %arg13[%c11_194, %c3_195, %c0_196, %c0_197] : memref<16x5x5x16xbf16, #tpu.memory_space<vmem>>, vector<1x1x4x16xbf16>
    %218 = vector.shape_cast %217 : vector<1x1x4x16xbf16> to vector<4x16xbf16>
    %219 = vector.shape_cast %216 : vector<4x16xbf16> to vector<1x1x4x16xbf16>
    tpu.vector_store %arg13[%c11_194, %c3_195, %c0_196, %c0_197], %219 {strides = array<i32>} : memref<16x5x5x16xbf16, #tpu.memory_space<vmem>>, vector<1x1x4x16xbf16>,
    %220 = vector.extract_strided_slice %25 {offsets = [176, 0], sizes = [4, 16], strides = [1, 1]} : vector<256x16xbf16> to vector<4x16xbf16>
    %c12 = arith.constant 12 : index
    %c0_198 = arith.constant 0 : index
    %c1_199 = arith.constant 1 : index
    %c0_200 = arith.constant 0 : index
    %221 = vector.load %arg13[%c12, %c0_198, %c1_199, %c0_200] : memref<16x5x5x16xbf16, #tpu.memory_space<vmem>>, vector<1x1x4x16xbf16>
    %222 = vector.shape_cast %221 : vector<1x1x4x16xbf16> to vector<4x16xbf16>
    %223 = vector.shape_cast %220 : vector<4x16xbf16> to vector<1x1x4x16xbf16>
    tpu.vector_store %arg13[%c12, %c0_198, %c1_199, %c0_200], %223 {strides = array<i32>} : memref<16x5x5x16xbf16, #tpu.memory_space<vmem>>, vector<1x1x4x16xbf16>,
    %224 = vector.extract_strided_slice %25 {offsets = [180, 0], sizes = [4, 16], strides = [1, 1]} : vector<256x16xbf16> to vector<4x16xbf16>
    %c12_201 = arith.constant 12 : index
    %c1_202 = arith.constant 1 : index
    %c1_203 = arith.constant 1 : index
    %c0_204 = arith.constant 0 : index
    %225 = vector.load %arg13[%c12_201, %c1_202, %c1_203, %c0_204] : memref<16x5x5x16xbf16, #tpu.memory_space<vmem>>, vector<1x1x4x16xbf16>
    %226 = vector.shape_cast %225 : vector<1x1x4x16xbf16> to vector<4x16xbf16>
    %227 = vector.shape_cast %224 : vector<4x16xbf16> to vector<1x1x4x16xbf16>
    tpu.vector_store %arg13[%c12_201, %c1_202, %c1_203, %c0_204], %227 {strides = array<i32>} : memref<16x5x5x16xbf16, #tpu.memory_space<vmem>>, vector<1x1x4x16xbf16>,
    %228 = vector.extract_strided_slice %25 {offsets = [184, 0], sizes = [4, 16], strides = [1, 1]} : vector<256x16xbf16> to vector<4x16xbf16>
    %c12_205 = arith.constant 12 : index
    %c2_206 = arith.constant 2 : index
    %c1_207 = arith.constant 1 : index
    %c0_208 = arith.constant 0 : index
    %229 = vector.load %arg13[%c12_205, %c2_206, %c1_207, %c0_208] : memref<16x5x5x16xbf16, #tpu.memory_space<vmem>>, vector<1x1x4x16xbf16>
    %230 = vector.shape_cast %229 : vector<1x1x4x16xbf16> to vector<4x16xbf16>
    %231 = vector.shape_cast %228 : vector<4x16xbf16> to vector<1x1x4x16xbf16>
    tpu.vector_store %arg13[%c12_205, %c2_206, %c1_207, %c0_208], %231 {strides = array<i32>} : memref<16x5x5x16xbf16, #tpu.memory_space<vmem>>, vector<1x1x4x16xbf16>,
    %232 = vector.extract_strided_slice %25 {offsets = [188, 0], sizes = [4, 16], strides = [1, 1]} : vector<256x16xbf16> to vector<4x16xbf16>
    %c12_209 = arith.constant 12 : index
    %c3_210 = arith.constant 3 : index
    %c1_211 = arith.constant 1 : index
    %c0_212 = arith.constant 0 : index
    %233 = vector.load %arg13[%c12_209, %c3_210, %c1_211, %c0_212] : memref<16x5x5x16xbf16, #tpu.memory_space<vmem>>, vector<1x1x4x16xbf16>
    %234 = vector.shape_cast %233 : vector<1x1x4x16xbf16> to vector<4x16xbf16>
    %235 = vector.shape_cast %232 : vector<4x16xbf16> to vector<1x1x4x16xbf16>
    tpu.vector_store %arg13[%c12_209, %c3_210, %c1_211, %c0_212], %235 {strides = array<i32>} : memref<16x5x5x16xbf16, #tpu.memory_space<vmem>>, vector<1x1x4x16xbf16>,
    %236 = vector.extract_strided_slice %25 {offsets = [128, 0], sizes = [4, 16], strides = [1, 1]} : vector<256x16xbf16> to vector<4x16xbf16>
    %c13 = arith.constant 13 : index
    %c0_213 = arith.constant 0 : index
    %c0_214 = arith.constant 0 : index
    %c0_215 = arith.constant 0 : index
    %237 = vector.load %arg13[%c13, %c0_213, %c0_214, %c0_215] : memref<16x5x5x16xbf16, #tpu.memory_space<vmem>>, vector<1x1x4x16xbf16>
    %238 = vector.shape_cast %237 : vector<1x1x4x16xbf16> to vector<4x16xbf16>
    %239 = vector.shape_cast %236 : vector<4x16xbf16> to vector<1x1x4x16xbf16>
    tpu.vector_store %arg13[%c13, %c0_213, %c0_214, %c0_215], %239 {strides = array<i32>} : memref<16x5x5x16xbf16, #tpu.memory_space<vmem>>, vector<1x1x4x16xbf16>,
    %240 = vector.extract_strided_slice %25 {offsets = [132, 0], sizes = [4, 16], strides = [1, 1]} : vector<256x16xbf16> to vector<4x16xbf16>
    %c13_216 = arith.constant 13 : index
    %c1_217 = arith.constant 1 : index
    %c0_218 = arith.constant 0 : index
    %c0_219 = arith.constant 0 : index
    %241 = vector.load %arg13[%c13_216, %c1_217, %c0_218, %c0_219] : memref<16x5x5x16xbf16, #tpu.memory_space<vmem>>, vector<1x1x4x16xbf16>
    %242 = vector.shape_cast %241 : vector<1x1x4x16xbf16> to vector<4x16xbf16>
    %243 = vector.shape_cast %240 : vector<4x16xbf16> to vector<1x1x4x16xbf16>
    tpu.vector_store %arg13[%c13_216, %c1_217, %c0_218, %c0_219], %243 {strides = array<i32>} : memref<16x5x5x16xbf16, #tpu.memory_space<vmem>>, vector<1x1x4x16xbf16>,
    %244 = vector.extract_strided_slice %25 {offsets = [136, 0], sizes = [4, 16], strides = [1, 1]} : vector<256x16xbf16> to vector<4x16xbf16>
    %c13_220 = arith.constant 13 : index
    %c2_221 = arith.constant 2 : index
    %c0_222 = arith.constant 0 : index
    %c0_223 = arith.constant 0 : index
    %245 = vector.load %arg13[%c13_220, %c2_221, %c0_222, %c0_223] : memref<16x5x5x16xbf16, #tpu.memory_space<vmem>>, vector<1x1x4x16xbf16>
    %246 = vector.shape_cast %245 : vector<1x1x4x16xbf16> to vector<4x16xbf16>
    %247 = vector.shape_cast %244 : vector<4x16xbf16> to vector<1x1x4x16xbf16>
    tpu.vector_store %arg13[%c13_220, %c2_221, %c0_222, %c0_223], %247 {strides = array<i32>} : memref<16x5x5x16xbf16, #tpu.memory_space<vmem>>, vector<1x1x4x16xbf16>,
    %248 = vector.extract_strided_slice %25 {offsets = [140, 0], sizes = [4, 16], strides = [1, 1]} : vector<256x16xbf16> to vector<4x16xbf16>
    %c13_224 = arith.constant 13 : index
    %c3_225 = arith.constant 3 : index
    %c0_226 = arith.constant 0 : index
    %c0_227 = arith.constant 0 : index
    %249 = vector.load %arg13[%c13_224, %c3_225, %c0_226, %c0_227] : memref<16x5x5x16xbf16, #tpu.memory_space<vmem>>, vector<1x1x4x16xbf16>
    %250 = vector.shape_cast %249 : vector<1x1x4x16xbf16> to vector<4x16xbf16>
    %251 = vector.shape_cast %248 : vector<4x16xbf16> to vector<1x1x4x16xbf16>
    tpu.vector_store %arg13[%c13_224, %c3_225, %c0_226, %c0_227], %251 {strides = array<i32>} : memref<16x5x5x16xbf16, #tpu.memory_space<vmem>>, vector<1x1x4x16xbf16>,
    %252 = vector.extract_strided_slice %25 {offsets = [144, 0], sizes = [4, 16], strides = [1, 1]} : vector<256x16xbf16> to vector<4x16xbf16>
    %c14 = arith.constant 14 : index
    %c0_228 = arith.constant 0 : index
    %c0_229 = arith.constant 0 : index
    %c0_230 = arith.constant 0 : index
    %253 = vector.load %arg13[%c14, %c0_228, %c0_229, %c0_230] : memref<16x5x5x16xbf16, #tpu.memory_space<vmem>>, vector<1x1x4x16xbf16>
    %254 = vector.shape_cast %253 : vector<1x1x4x16xbf16> to vector<4x16xbf16>
    %255 = vector.shape_cast %252 : vector<4x16xbf16> to vector<1x1x4x16xbf16>
    tpu.vector_store %arg13[%c14, %c0_228, %c0_229, %c0_230], %255 {strides = array<i32>} : memref<16x5x5x16xbf16, #tpu.memory_space<vmem>>, vector<1x1x4x16xbf16>,
    %256 = vector.extract_strided_slice %25 {offsets = [148, 0], sizes = [4, 16], strides = [1, 1]} : vector<256x16xbf16> to vector<4x16xbf16>
    %c14_231 = arith.constant 14 : index
    %c1_232 = arith.constant 1 : index
    %c0_233 = arith.constant 0 : index
    %c0_234 = arith.constant 0 : index
    %257 = vector.load %arg13[%c14_231, %c1_232, %c0_233, %c0_234] : memref<16x5x5x16xbf16, #tpu.memory_space<vmem>>, vector<1x1x4x16xbf16>
    %258 = vector.shape_cast %257 : vector<1x1x4x16xbf16> to vector<4x16xbf16>
    %259 = vector.shape_cast %256 : vector<4x16xbf16> to vector<1x1x4x16xbf16>
    tpu.vector_store %arg13[%c14_231, %c1_232, %c0_233, %c0_234], %259 {strides = array<i32>} : memref<16x5x5x16xbf16, #tpu.memory_space<vmem>>, vector<1x1x4x16xbf16>,
    %260 = vector.extract_strided_slice %25 {offsets = [152, 0], sizes = [4, 16], strides = [1, 1]} : vector<256x16xbf16> to vector<4x16xbf16>
    %c14_235 = arith.constant 14 : index
    %c2_236 = arith.constant 2 : index
    %c0_237 = arith.constant 0 : index
    %c0_238 = arith.constant 0 : index
    %261 = vector.load %arg13[%c14_235, %c2_236, %c0_237, %c0_238] : memref<16x5x5x16xbf16, #tpu.memory_space<vmem>>, vector<1x1x4x16xbf16>
    %262 = vector.shape_cast %261 : vector<1x1x4x16xbf16> to vector<4x16xbf16>
    %263 = vector.shape_cast %260 : vector<4x16xbf16> to vector<1x1x4x16xbf16>
    tpu.vector_store %arg13[%c14_235, %c2_236, %c0_237, %c0_238], %263 {strides = array<i32>} : memref<16x5x5x16xbf16, #tpu.memory_space<vmem>>, vector<1x1x4x16xbf16>,
    %264 = vector.extract_strided_slice %25 {offsets = [156, 0], sizes = [4, 16], strides = [1, 1]} : vector<256x16xbf16> to vector<4x16xbf16>
    %c14_239 = arith.constant 14 : index
    %c3_240 = arith.constant 3 : index
    %c0_241 = arith.constant 0 : index
    %c0_242 = arith.constant 0 : index
    %265 = vector.load %arg13[%c14_239, %c3_240, %c0_241, %c0_242] : memref<16x5x5x16xbf16, #tpu.memory_space<vmem>>, vector<1x1x4x16xbf16>
    %266 = vector.shape_cast %265 : vector<1x1x4x16xbf16> to vector<4x16xbf16>
    %267 = vector.shape_cast %264 : vector<4x16xbf16> to vector<1x1x4x16xbf16>
    tpu.vector_store %arg13[%c14_239, %c3_240, %c0_241, %c0_242], %267 {strides = array<i32>} : memref<16x5x5x16xbf16, #tpu.memory_space<vmem>>, vector<1x1x4x16xbf16>,
    %268 = vector.extract_strided_slice %25 {offsets = [160, 0], sizes = [4, 16], strides = [1, 1]} : vector<256x16xbf16> to vector<4x16xbf16>
    %c15 = arith.constant 15 : index
    %c0_243 = arith.constant 0 : index
    %c0_244 = arith.constant 0 : index
    %c0_245 = arith.constant 0 : index
    %269 = vector.load %arg13[%c15, %c0_243, %c0_244, %c0_245] : memref<16x5x5x16xbf16, #tpu.memory_space<vmem>>, vector<1x1x4x16xbf16>
    %270 = vector.shape_cast %269 : vector<1x1x4x16xbf16> to vector<4x16xbf16>
    %271 = vector.shape_cast %268 : vector<4x16xbf16> to vector<1x1x4x16xbf16>
    tpu.vector_store %arg13[%c15, %c0_243, %c0_244, %c0_245], %271 {strides = array<i32>} : memref<16x5x5x16xbf16, #tpu.memory_space<vmem>>, vector<1x1x4x16xbf16>,
    %272 = vector.extract_strided_slice %25 {offsets = [164, 0], sizes = [4, 16], strides = [1, 1]} : vector<256x16xbf16> to vector<4x16xbf16>
    %c15_246 = arith.constant 15 : index
    %c1_247 = arith.constant 1 : index
    %c0_248 = arith.constant 0 : index
    %c0_249 = arith.constant 0 : index
    %273 = vector.load %arg13[%c15_246, %c1_247, %c0_248, %c0_249] : memref<16x5x5x16xbf16, #tpu.memory_space<vmem>>, vector<1x1x4x16xbf16>
    %274 = vector.shape_cast %273 : vector<1x1x4x16xbf16> to vector<4x16xbf16>
    %275 = vector.shape_cast %272 : vector<4x16xbf16> to vector<1x1x4x16xbf16>
    tpu.vector_store %arg13[%c15_246, %c1_247, %c0_248, %c0_249], %275 {strides = array<i32>} : memref<16x5x5x16xbf16, #tpu.memory_space<vmem>>, vector<1x1x4x16xbf16>,
    %276 = vector.extract_strided_slice %25 {offsets = [168, 0], sizes = [4, 16], strides = [1, 1]} : vector<256x16xbf16> to vector<4x16xbf16>
    %c15_250 = arith.constant 15 : index
    %c2_251 = arith.constant 2 : index
    %c0_252 = arith.constant 0 : index
    %c0_253 = arith.constant 0 : index
    %277 = vector.load %arg13[%c15_250, %c2_251, %c0_252, %c0_253] : memref<16x5x5x16xbf16, #tpu.memory_space<vmem>>, vector<1x1x4x16xbf16>
    %278 = vector.shape_cast %277 : vector<1x1x4x16xbf16> to vector<4x16xbf16>
    %279 = vector.shape_cast %276 : vector<4x16xbf16> to vector<1x1x4x16xbf16>
    tpu.vector_store %arg13[%c15_250, %c2_251, %c0_252, %c0_253], %279 {strides = array<i32>} : memref<16x5x5x16xbf16, #tpu.memory_space<vmem>>, vector<1x1x4x16xbf16>,
    %280 = vector.extract_strided_slice %25 {offsets = [172, 0], sizes = [4, 16], strides = [1, 1]} : vector<256x16xbf16> to vector<4x16xbf16>
    %c15_254 = arith.constant 15 : index
    %c3_255 = arith.constant 3 : index
    %c0_256 = arith.constant 0 : index
    %c0_257 = arith.constant 0 : index
    %281 = vector.load %arg13[%c15_254, %c3_255, %c0_256, %c0_257] : memref<16x5x5x16xbf16, #tpu.memory_space<vmem>>, vector<1x1x4x16xbf16>
    %282 = vector.shape_cast %281 : vector<1x1x4x16xbf16> to vector<4x16xbf16>
    %283 = vector.shape_cast %280 : vector<4x16xbf16> to vector<1x1x4x16xbf16>
    tpu.vector_store %arg13[%c15_254, %c3_255, %c0_256, %c0_257], %283 {strides = array<i32>} : memref<16x5x5x16xbf16, #tpu.memory_space<vmem>>, vector<1x1x4x16xbf16>,
    %cst_258 = arith.constant 0.000000e+00 : f32
    %284 = vector.broadcast %cst_258 : f32 to vector<64x64xf32>
    %c0_259 = arith.constant 0 : index
    %c0_260 = arith.constant 0 : index
    %c0_261 = arith.constant 0 : index
    %c0_262 = arith.constant 0 : index
    %285 = vector.load %arg13[%c0_259, %c0_260, %c0_261, %c0_262] : memref<16x5x5x16xbf16, #tpu.memory_space<vmem>>, vector<1x4x4x16xbf16>
    %286 = vector.shape_cast %285 : vector<1x4x4x16xbf16> to vector<4x4x16xbf16>
    %c2_263 = arith.constant 2 : index
    %c0_264 = arith.constant 0 : index
    %c0_265 = arith.constant 0 : index
    %c0_266 = arith.constant 0 : index
    %287 = vector.load %arg13[%c2_263, %c0_264, %c0_265, %c0_266] : memref<16x5x5x16xbf16, #tpu.memory_space<vmem>>, vector<1x4x4x16xbf16>
    %288 = vector.shape_cast %287 : vector<1x4x4x16xbf16> to vector<4x4x16xbf16>
    %c8_267 = arith.constant 8 : index
    %c0_268 = arith.constant 0 : index
    %c0_269 = arith.constant 0 : index
    %c0_270 = arith.constant 0 : index
    %289 = vector.load %arg13[%c8_267, %c0_268, %c0_269, %c0_270] : memref<16x5x5x16xbf16, #tpu.memory_space<vmem>>, vector<1x4x4x16xbf16>
    %290 = vector.shape_cast %289 : vector<1x4x4x16xbf16> to vector<4x4x16xbf16>
    %c10_271 = arith.constant 10 : index
    %c0_272 = arith.constant 0 : index
    %c0_273 = arith.constant 0 : index
    %c0_274 = arith.constant 0 : index
    %291 = vector.load %arg13[%c10_271, %c0_272, %c0_273, %c0_274] : memref<16x5x5x16xbf16, #tpu.memory_space<vmem>>, vector<1x4x4x16xbf16>
    %292 = vector.shape_cast %291 : vector<1x4x4x16xbf16> to vector<4x4x16xbf16>
    %293 = vector.shape_cast %286 : vector<4x4x16xbf16> to vector<1x4x4x16xbf16>
    %294 = vector.shape_cast %288 : vector<4x4x16xbf16> to vector<1x4x4x16xbf16>
    %295 = vector.shape_cast %290 : vector<4x4x16xbf16> to vector<1x4x4x16xbf16>
    %296 = vector.shape_cast %292 : vector<4x4x16xbf16> to vector<1x4x4x16xbf16>
    %297 = tpu.concatenate %293, %294, %295, %296 in 0 : vector<1x4x4x16xbf16>, vector<1x4x4x16xbf16>, vector<1x4x4x16xbf16>, vector<1x4x4x16xbf16> -> vector<4x4x4x16xbf16>
    %298 = vector.shape_cast %297 : vector<4x4x4x16xbf16> to vector<64x16xbf16>
    %c0_275 = arith.constant 0 : index
    %c0_276 = arith.constant 0 : index
    %c0_277 = arith.constant 0 : index
    %299 = vector.load %arg4[%c0_275, %c0_276, %c0_277] : memref<9x16x64xbf16, #tpu.memory_space<vmem>>, vector<1x16x64xbf16>
    %300 = vector.shape_cast %299 : vector<1x16x64xbf16> to vector<16x64xbf16>
    %cst_278 = arith.constant dense<0.000000e+00> : vector<64x64xf32>
    %301 = tpu.matmul %298, %300, %cst_278 {dimension_numbers = #tpu.dot_dimension_numbers<[1], [0], [0], [1], [0, 0, 1, 1], [], []>} : vector<64x16xbf16>, vector<16x64xbf16>, vector<64x64xf32> -> vector<64x64xf32>
    %302 = arith.addf %284, %301 : vector<64x64xf32>
    %c1_279 = arith.constant 1 : index
    %c0_280 = arith.constant 0 : index
    %c0_281 = arith.constant 0 : index
    %c0_282 = arith.constant 0 : index
    %303 = vector.load %arg13[%c1_279, %c0_280, %c0_281, %c0_282] : memref<16x5x5x16xbf16, #tpu.memory_space<vmem>>, vector<1x4x4x16xbf16>
    %304 = vector.shape_cast %303 : vector<1x4x4x16xbf16> to vector<4x4x16xbf16>
    %c3_283 = arith.constant 3 : index
    %c0_284 = arith.constant 0 : index
    %c0_285 = arith.constant 0 : index
    %c0_286 = arith.constant 0 : index
    %305 = vector.load %arg13[%c3_283, %c0_284, %c0_285, %c0_286] : memref<16x5x5x16xbf16, #tpu.memory_space<vmem>>, vector<1x4x4x16xbf16>
    %306 = vector.shape_cast %305 : vector<1x4x4x16xbf16> to vector<4x4x16xbf16>
    %c9_287 = arith.constant 9 : index
    %c0_288 = arith.constant 0 : index
    %c0_289 = arith.constant 0 : index
    %c0_290 = arith.constant 0 : index
    %307 = vector.load %arg13[%c9_287, %c0_288, %c0_289, %c0_290] : memref<16x5x5x16xbf16, #tpu.memory_space<vmem>>, vector<1x4x4x16xbf16>
    %308 = vector.shape_cast %307 : vector<1x4x4x16xbf16> to vector<4x4x16xbf16>
    %c11_291 = arith.constant 11 : index
    %c0_292 = arith.constant 0 : index
    %c0_293 = arith.constant 0 : index
    %c0_294 = arith.constant 0 : index
    %309 = vector.load %arg13[%c11_291, %c0_292, %c0_293, %c0_294] : memref<16x5x5x16xbf16, #tpu.memory_space<vmem>>, vector<1x4x4x16xbf16>
    %310 = vector.shape_cast %309 : vector<1x4x4x16xbf16> to vector<4x4x16xbf16>
    %311 = vector.shape_cast %304 : vector<4x4x16xbf16> to vector<1x4x4x16xbf16>
    %312 = vector.shape_cast %306 : vector<4x4x16xbf16> to vector<1x4x4x16xbf16>
    %313 = vector.shape_cast %308 : vector<4x4x16xbf16> to vector<1x4x4x16xbf16>
    %314 = vector.shape_cast %310 : vector<4x4x16xbf16> to vector<1x4x4x16xbf16>
    %315 = tpu.concatenate %311, %312, %313, %314 in 0 : vector<1x4x4x16xbf16>, vector<1x4x4x16xbf16>, vector<1x4x4x16xbf16>, vector<1x4x4x16xbf16> -> vector<4x4x4x16xbf16>
    %316 = vector.shape_cast %315 : vector<4x4x4x16xbf16> to vector<64x16xbf16>
    %c1_295 = arith.constant 1 : index
    %c0_296 = arith.constant 0 : index
    %c0_297 = arith.constant 0 : index
    %317 = vector.load %arg4[%c1_295, %c0_296, %c0_297] : memref<9x16x64xbf16, #tpu.memory_space<vmem>>, vector<1x16x64xbf16>
    %318 = vector.shape_cast %317 : vector<1x16x64xbf16> to vector<16x64xbf16>
    %cst_298 = arith.constant dense<0.000000e+00> : vector<64x64xf32>
    %319 = tpu.matmul %316, %318, %cst_298 {dimension_numbers = #tpu.dot_dimension_numbers<[1], [0], [0], [1], [0, 0, 1, 1], [], []>} : vector<64x16xbf16>, vector<16x64xbf16>, vector<64x64xf32> -> vector<64x64xf32>
    %320 = arith.addf %302, %319 : vector<64x64xf32>
    %c2_299 = arith.constant 2 : index
    %c0_300 = arith.constant 0 : index
    %c0_301 = arith.constant 0 : index
    %c0_302 = arith.constant 0 : index
    %321 = vector.load %arg13[%c2_299, %c0_300, %c0_301, %c0_302] : memref<16x5x5x16xbf16, #tpu.memory_space<vmem>>, vector<1x4x4x16xbf16>
    %322 = vector.shape_cast %321 : vector<1x4x4x16xbf16> to vector<4x4x16xbf16>
    %c0_303 = arith.constant 0 : index
    %c0_304 = arith.constant 0 : index
    %c1_305 = arith.constant 1 : index
    %c0_306 = arith.constant 0 : index
    %323 = vector.load %arg13[%c0_303, %c0_304, %c1_305, %c0_306] : memref<16x5x5x16xbf16, #tpu.memory_space<vmem>>, vector<1x4x4x16xbf16>
    %324 = vector.shape_cast %323 : vector<1x4x4x16xbf16> to vector<4x4x16xbf16>
    %c10_307 = arith.constant 10 : index
    %c0_308 = arith.constant 0 : index
    %c0_309 = arith.constant 0 : index
    %c0_310 = arith.constant 0 : index
    %325 = vector.load %arg13[%c10_307, %c0_308, %c0_309, %c0_310] : memref<16x5x5x16xbf16, #tpu.memory_space<vmem>>, vector<1x4x4x16xbf16>
    %326 = vector.shape_cast %325 : vector<1x4x4x16xbf16> to vector<4x4x16xbf16>
    %c8_311 = arith.constant 8 : index
    %c0_312 = arith.constant 0 : index
    %c1_313 = arith.constant 1 : index
    %c0_314 = arith.constant 0 : index
    %327 = vector.load %arg13[%c8_311, %c0_312, %c1_313, %c0_314] : memref<16x5x5x16xbf16, #tpu.memory_space<vmem>>, vector<1x4x4x16xbf16>
    %328 = vector.shape_cast %327 : vector<1x4x4x16xbf16> to vector<4x4x16xbf16>
    %329 = vector.shape_cast %322 : vector<4x4x16xbf16> to vector<1x4x4x16xbf16>
    %330 = vector.shape_cast %324 : vector<4x4x16xbf16> to vector<1x4x4x16xbf16>
    %331 = vector.shape_cast %326 : vector<4x4x16xbf16> to vector<1x4x4x16xbf16>
    %332 = vector.shape_cast %328 : vector<4x4x16xbf16> to vector<1x4x4x16xbf16>
    %333 = tpu.concatenate %329, %330, %331, %332 in 0 : vector<1x4x4x16xbf16>, vector<1x4x4x16xbf16>, vector<1x4x4x16xbf16>, vector<1x4x4x16xbf16> -> vector<4x4x4x16xbf16>
    %334 = vector.shape_cast %333 : vector<4x4x4x16xbf16> to vector<64x16xbf16>
    %c2_315 = arith.constant 2 : index
    %c0_316 = arith.constant 0 : index
    %c0_317 = arith.constant 0 : index
    %335 = vector.load %arg4[%c2_315, %c0_316, %c0_317] : memref<9x16x64xbf16, #tpu.memory_space<vmem>>, vector<1x16x64xbf16>
    %336 = vector.shape_cast %335 : vector<1x16x64xbf16> to vector<16x64xbf16>
    %cst_318 = arith.constant dense<0.000000e+00> : vector<64x64xf32>
    %337 = tpu.matmul %334, %336, %cst_318 {dimension_numbers = #tpu.dot_dimension_numbers<[1], [0], [0], [1], [0, 0, 1, 1], [], []>} : vector<64x16xbf16>, vector<16x64xbf16>, vector<64x64xf32> -> vector<64x64xf32>
    %338 = arith.addf %320, %337 : vector<64x64xf32>
    %c4_319 = arith.constant 4 : index
    %c0_320 = arith.constant 0 : index
    %c0_321 = arith.constant 0 : index
    %c0_322 = arith.constant 0 : index
    %339 = vector.load %arg13[%c4_319, %c0_320, %c0_321, %c0_322] : memref<16x5x5x16xbf16, #tpu.memory_space<vmem>>, vector<1x4x4x16xbf16>
    %340 = vector.shape_cast %339 : vector<1x4x4x16xbf16> to vector<4x4x16xbf16>
    %c6_323 = arith.constant 6 : index
    %c0_324 = arith.constant 0 : index
    %c0_325 = arith.constant 0 : index
    %c0_326 = arith.constant 0 : index
    %341 = vector.load %arg13[%c6_323, %c0_324, %c0_325, %c0_326] : memref<16x5x5x16xbf16, #tpu.memory_space<vmem>>, vector<1x4x4x16xbf16>
    %342 = vector.shape_cast %341 : vector<1x4x4x16xbf16> to vector<4x4x16xbf16>
    %c12_327 = arith.constant 12 : index
    %c0_328 = arith.constant 0 : index
    %c0_329 = arith.constant 0 : index
    %c0_330 = arith.constant 0 : index
    %343 = vector.load %arg13[%c12_327, %c0_328, %c0_329, %c0_330] : memref<16x5x5x16xbf16, #tpu.memory_space<vmem>>, vector<1x4x4x16xbf16>
    %344 = vector.shape_cast %343 : vector<1x4x4x16xbf16> to vector<4x4x16xbf16>
    %c14_331 = arith.constant 14 : index
    %c0_332 = arith.constant 0 : index
    %c0_333 = arith.constant 0 : index
    %c0_334 = arith.constant 0 : index
    %345 = vector.load %arg13[%c14_331, %c0_332, %c0_333, %c0_334] : memref<16x5x5x16xbf16, #tpu.memory_space<vmem>>, vector<1x4x4x16xbf16>
    %346 = vector.shape_cast %345 : vector<1x4x4x16xbf16> to vector<4x4x16xbf16>
    %347 = vector.shape_cast %340 : vector<4x4x16xbf16> to vector<1x4x4x16xbf16>
    %348 = vector.shape_cast %342 : vector<4x4x16xbf16> to vector<1x4x4x16xbf16>
    %349 = vector.shape_cast %344 : vector<4x4x16xbf16> to vector<1x4x4x16xbf16>
    %350 = vector.shape_cast %346 : vector<4x4x16xbf16> to vector<1x4x4x16xbf16>
    %351 = tpu.concatenate %347, %348, %349, %350 in 0 : vector<1x4x4x16xbf16>, vector<1x4x4x16xbf16>, vector<1x4x4x16xbf16>, vector<1x4x4x16xbf16> -> vector<4x4x4x16xbf16>
    %352 = vector.shape_cast %351 : vector<4x4x4x16xbf16> to vector<64x16xbf16>
    %c3_335 = arith.constant 3 : index
    %c0_336 = arith.constant 0 : index
    %c0_337 = arith.constant 0 : index
    %353 = vector.load %arg4[%c3_335, %c0_336, %c0_337] : memref<9x16x64xbf16, #tpu.memory_space<vmem>>, vector<1x16x64xbf16>
    %354 = vector.shape_cast %353 : vector<1x16x64xbf16> to vector<16x64xbf16>
    %cst_338 = arith.constant dense<0.000000e+00> : vector<64x64xf32>
    %355 = tpu.matmul %352, %354, %cst_338 {dimension_numbers = #tpu.dot_dimension_numbers<[1], [0], [0], [1], [0, 0, 1, 1], [], []>} : vector<64x16xbf16>, vector<16x64xbf16>, vector<64x64xf32> -> vector<64x64xf32>
    %356 = arith.addf %338, %355 : vector<64x64xf32>
    %c5_339 = arith.constant 5 : index
    %c0_340 = arith.constant 0 : index
    %c0_341 = arith.constant 0 : index
    %c0_342 = arith.constant 0 : index
    %357 = vector.load %arg13[%c5_339, %c0_340, %c0_341, %c0_342] : memref<16x5x5x16xbf16, #tpu.memory_space<vmem>>, vector<1x4x4x16xbf16>
    %358 = vector.shape_cast %357 : vector<1x4x4x16xbf16> to vector<4x4x16xbf16>
    %c7_343 = arith.constant 7 : index
    %c0_344 = arith.constant 0 : index
    %c0_345 = arith.constant 0 : index
    %c0_346 = arith.constant 0 : index
    %359 = vector.load %arg13[%c7_343, %c0_344, %c0_345, %c0_346] : memref<16x5x5x16xbf16, #tpu.memory_space<vmem>>, vector<1x4x4x16xbf16>
    %360 = vector.shape_cast %359 : vector<1x4x4x16xbf16> to vector<4x4x16xbf16>
    %c13_347 = arith.constant 13 : index
    %c0_348 = arith.constant 0 : index
    %c0_349 = arith.constant 0 : index
    %c0_350 = arith.constant 0 : index
    %361 = vector.load %arg13[%c13_347, %c0_348, %c0_349, %c0_350] : memref<16x5x5x16xbf16, #tpu.memory_space<vmem>>, vector<1x4x4x16xbf16>
    %362 = vector.shape_cast %361 : vector<1x4x4x16xbf16> to vector<4x4x16xbf16>
    %c15_351 = arith.constant 15 : index
    %c0_352 = arith.constant 0 : index
    %c0_353 = arith.constant 0 : index
    %c0_354 = arith.constant 0 : index
    %363 = vector.load %arg13[%c15_351, %c0_352, %c0_353, %c0_354] : memref<16x5x5x16xbf16, #tpu.memory_space<vmem>>, vector<1x4x4x16xbf16>
    %364 = vector.shape_cast %363 : vector<1x4x4x16xbf16> to vector<4x4x16xbf16>
    %365 = vector.shape_cast %358 : vector<4x4x16xbf16> to vector<1x4x4x16xbf16>
    %366 = vector.shape_cast %360 : vector<4x4x16xbf16> to vector<1x4x4x16xbf16>
    %367 = vector.shape_cast %362 : vector<4x4x16xbf16> to vector<1x4x4x16xbf16>
    %368 = vector.shape_cast %364 : vector<4x4x16xbf16> to vector<1x4x4x16xbf16>
    %369 = tpu.concatenate %365, %366, %367, %368 in 0 : vector<1x4x4x16xbf16>, vector<1x4x4x16xbf16>, vector<1x4x4x16xbf16>, vector<1x4x4x16xbf16> -> vector<4x4x4x16xbf16>
    %370 = vector.shape_cast %369 : vector<4x4x4x16xbf16> to vector<64x16xbf16>
    %c4_355 = arith.constant 4 : index
    %c0_356 = arith.constant 0 : index
    %c0_357 = arith.constant 0 : index
    %371 = vector.load %arg4[%c4_355, %c0_356, %c0_357] : memref<9x16x64xbf16, #tpu.memory_space<vmem>>, vector<1x16x64xbf16>
    %372 = vector.shape_cast %371 : vector<1x16x64xbf16> to vector<16x64xbf16>
    %cst_358 = arith.constant dense<0.000000e+00> : vector<64x64xf32>
    %373 = tpu.matmul %370, %372, %cst_358 {dimension_numbers = #tpu.dot_dimension_numbers<[1], [0], [0], [1], [0, 0, 1, 1], [], []>} : vector<64x16xbf16>, vector<16x64xbf16>, vector<64x64xf32> -> vector<64x64xf32>
    %374 = arith.addf %356, %373 : vector<64x64xf32>
    %c6_359 = arith.constant 6 : index
    %c0_360 = arith.constant 0 : index
    %c0_361 = arith.constant 0 : index
    %c0_362 = arith.constant 0 : index
    %375 = vector.load %arg13[%c6_359, %c0_360, %c0_361, %c0_362] : memref<16x5x5x16xbf16, #tpu.memory_space<vmem>>, vector<1x4x4x16xbf16>
    %376 = vector.shape_cast %375 : vector<1x4x4x16xbf16> to vector<4x4x16xbf16>
    %c4_363 = arith.constant 4 : index
    %c0_364 = arith.constant 0 : index
    %c1_365 = arith.constant 1 : index
    %c0_366 = arith.constant 0 : index
    %377 = vector.load %arg13[%c4_363, %c0_364, %c1_365, %c0_366] : memref<16x5x5x16xbf16, #tpu.memory_space<vmem>>, vector<1x4x4x16xbf16>
    %378 = vector.shape_cast %377 : vector<1x4x4x16xbf16> to vector<4x4x16xbf16>
    %c14_367 = arith.constant 14 : index
    %c0_368 = arith.constant 0 : index
    %c0_369 = arith.constant 0 : index
    %c0_370 = arith.constant 0 : index
    %379 = vector.load %arg13[%c14_367, %c0_368, %c0_369, %c0_370] : memref<16x5x5x16xbf16, #tpu.memory_space<vmem>>, vector<1x4x4x16xbf16>
    %380 = vector.shape_cast %379 : vector<1x4x4x16xbf16> to vector<4x4x16xbf16>
    %c12_371 = arith.constant 12 : index
    %c0_372 = arith.constant 0 : index
    %c1_373 = arith.constant 1 : index
    %c0_374 = arith.constant 0 : index
    %381 = vector.load %arg13[%c12_371, %c0_372, %c1_373, %c0_374] : memref<16x5x5x16xbf16, #tpu.memory_space<vmem>>, vector<1x4x4x16xbf16>
    %382 = vector.shape_cast %381 : vector<1x4x4x16xbf16> to vector<4x4x16xbf16>
    %383 = vector.shape_cast %376 : vector<4x4x16xbf16> to vector<1x4x4x16xbf16>
    %384 = vector.shape_cast %378 : vector<4x4x16xbf16> to vector<1x4x4x16xbf16>
    %385 = vector.shape_cast %380 : vector<4x4x16xbf16> to vector<1x4x4x16xbf16>
    %386 = vector.shape_cast %382 : vector<4x4x16xbf16> to vector<1x4x4x16xbf16>
    %387 = tpu.concatenate %383, %384, %385, %386 in 0 : vector<1x4x4x16xbf16>, vector<1x4x4x16xbf16>, vector<1x4x4x16xbf16>, vector<1x4x4x16xbf16> -> vector<4x4x4x16xbf16>
    %388 = vector.shape_cast %387 : vector<4x4x4x16xbf16> to vector<64x16xbf16>
    %c5_375 = arith.constant 5 : index
    %c0_376 = arith.constant 0 : index
    %c0_377 = arith.constant 0 : index
    %389 = vector.load %arg4[%c5_375, %c0_376, %c0_377] : memref<9x16x64xbf16, #tpu.memory_space<vmem>>, vector<1x16x64xbf16>
    %390 = vector.shape_cast %389 : vector<1x16x64xbf16> to vector<16x64xbf16>
    %cst_378 = arith.constant dense<0.000000e+00> : vector<64x64xf32>
    %391 = tpu.matmul %388, %390, %cst_378 {dimension_numbers = #tpu.dot_dimension_numbers<[1], [0], [0], [1], [0, 0, 1, 1], [], []>} : vector<64x16xbf16>, vector<16x64xbf16>, vector<64x64xf32> -> vector<64x64xf32>
    %392 = arith.addf %374, %391 : vector<64x64xf32>
    %c8_379 = arith.constant 8 : index
    %c0_380 = arith.constant 0 : index
    %c0_381 = arith.constant 0 : index
    %c0_382 = arith.constant 0 : index
    %393 = vector.load %arg13[%c8_379, %c0_380, %c0_381, %c0_382] : memref<16x5x5x16xbf16, #tpu.memory_space<vmem>>, vector<1x4x4x16xbf16>
    %394 = vector.shape_cast %393 : vector<1x4x4x16xbf16> to vector<4x4x16xbf16>
    %c10_383 = arith.constant 10 : index
    %c0_384 = arith.constant 0 : index
    %c0_385 = arith.constant 0 : index
    %c0_386 = arith.constant 0 : index
    %395 = vector.load %arg13[%c10_383, %c0_384, %c0_385, %c0_386] : memref<16x5x5x16xbf16, #tpu.memory_space<vmem>>, vector<1x4x4x16xbf16>
    %396 = vector.shape_cast %395 : vector<1x4x4x16xbf16> to vector<4x4x16xbf16>
    %c0_387 = arith.constant 0 : index
    %c1_388 = arith.constant 1 : index
    %c0_389 = arith.constant 0 : index
    %c0_390 = arith.constant 0 : index
    %397 = vector.load %arg13[%c0_387, %c1_388, %c0_389, %c0_390] : memref<16x5x5x16xbf16, #tpu.memory_space<vmem>>, vector<1x4x4x16xbf16>
    %398 = vector.shape_cast %397 : vector<1x4x4x16xbf16> to vector<4x4x16xbf16>
    %c2_391 = arith.constant 2 : index
    %c1_392 = arith.constant 1 : index
    %c0_393 = arith.constant 0 : index
    %c0_394 = arith.constant 0 : index
    %399 = vector.load %arg13[%c2_391, %c1_392, %c0_393, %c0_394] : memref<16x5x5x16xbf16, #tpu.memory_space<vmem>>, vector<1x4x4x16xbf16>
    %400 = vector.shape_cast %399 : vector<1x4x4x16xbf16> to vector<4x4x16xbf16>
    %401 = vector.shape_cast %394 : vector<4x4x16xbf16> to vector<1x4x4x16xbf16>
    %402 = vector.shape_cast %396 : vector<4x4x16xbf16> to vector<1x4x4x16xbf16>
    %403 = vector.shape_cast %398 : vector<4x4x16xbf16> to vector<1x4x4x16xbf16>
    %404 = vector.shape_cast %400 : vector<4x4x16xbf16> to vector<1x4x4x16xbf16>
    %405 = tpu.concatenate %401, %402, %403, %404 in 0 : vector<1x4x4x16xbf16>, vector<1x4x4x16xbf16>, vector<1x4x4x16xbf16>, vector<1x4x4x16xbf16> -> vector<4x4x4x16xbf16>
    %406 = vector.shape_cast %405 : vector<4x4x4x16xbf16> to vector<64x16xbf16>
    %c6_395 = arith.constant 6 : index
    %c0_396 = arith.constant 0 : index
    %c0_397 = arith.constant 0 : index
    %407 = vector.load %arg4[%c6_395, %c0_396, %c0_397] : memref<9x16x64xbf16, #tpu.memory_space<vmem>>, vector<1x16x64xbf16>
    %408 = vector.shape_cast %407 : vector<1x16x64xbf16> to vector<16x64xbf16>
    %cst_398 = arith.constant dense<0.000000e+00> : vector<64x64xf32>
    %409 = tpu.matmul %406, %408, %cst_398 {dimension_numbers = #tpu.dot_dimension_numbers<[1], [0], [0], [1], [0, 0, 1, 1], [], []>} : vector<64x16xbf16>, vector<16x64xbf16>, vector<64x64xf32> -> vector<64x64xf32>
    %410 = arith.addf %392, %409 : vector<64x64xf32>
    %c9_399 = arith.constant 9 : index
    %c0_400 = arith.constant 0 : index
    %c0_401 = arith.constant 0 : index
    %c0_402 = arith.constant 0 : index
    %411 = vector.load %arg13[%c9_399, %c0_400, %c0_401, %c0_402] : memref<16x5x5x16xbf16, #tpu.memory_space<vmem>>, vector<1x4x4x16xbf16>
    %412 = vector.shape_cast %411 : vector<1x4x4x16xbf16> to vector<4x4x16xbf16>
    %c11_403 = arith.constant 11 : index
    %c0_404 = arith.constant 0 : index
    %c0_405 = arith.constant 0 : index
    %c0_406 = arith.constant 0 : index
    %413 = vector.load %arg13[%c11_403, %c0_404, %c0_405, %c0_406] : memref<16x5x5x16xbf16, #tpu.memory_space<vmem>>, vector<1x4x4x16xbf16>
    %414 = vector.shape_cast %413 : vector<1x4x4x16xbf16> to vector<4x4x16xbf16>
    %c1_407 = arith.constant 1 : index
    %c1_408 = arith.constant 1 : index
    %c0_409 = arith.constant 0 : index
    %c0_410 = arith.constant 0 : index
    %415 = vector.load %arg13[%c1_407, %c1_408, %c0_409, %c0_410] : memref<16x5x5x16xbf16, #tpu.memory_space<vmem>>, vector<1x4x4x16xbf16>
    %416 = vector.shape_cast %415 : vector<1x4x4x16xbf16> to vector<4x4x16xbf16>
    %c3_411 = arith.constant 3 : index
    %c1_412 = arith.constant 1 : index
    %c0_413 = arith.constant 0 : index
    %c0_414 = arith.constant 0 : index
    %417 = vector.load %arg13[%c3_411, %c1_412, %c0_413, %c0_414] : memref<16x5x5x16xbf16, #tpu.memory_space<vmem>>, vector<1x4x4x16xbf16>
    %418 = vector.shape_cast %417 : vector<1x4x4x16xbf16> to vector<4x4x16xbf16>
    %419 = vector.shape_cast %412 : vector<4x4x16xbf16> to vector<1x4x4x16xbf16>
    %420 = vector.shape_cast %414 : vector<4x4x16xbf16> to vector<1x4x4x16xbf16>
    %421 = vector.shape_cast %416 : vector<4x4x16xbf16> to vector<1x4x4x16xbf16>
    %422 = vector.shape_cast %418 : vector<4x4x16xbf16> to vector<1x4x4x16xbf16>
    %423 = tpu.concatenate %419, %420, %421, %422 in 0 : vector<1x4x4x16xbf16>, vector<1x4x4x16xbf16>, vector<1x4x4x16xbf16>, vector<1x4x4x16xbf16> -> vector<4x4x4x16xbf16>
    %424 = vector.shape_cast %423 : vector<4x4x4x16xbf16> to vector<64x16xbf16>
    %c7_415 = arith.constant 7 : index
    %c0_416 = arith.constant 0 : index
    %c0_417 = arith.constant 0 : index
    %425 = vector.load %arg4[%c7_415, %c0_416, %c0_417] : memref<9x16x64xbf16, #tpu.memory_space<vmem>>, vector<1x16x64xbf16>
    %426 = vector.shape_cast %425 : vector<1x16x64xbf16> to vector<16x64xbf16>
    %cst_418 = arith.constant dense<0.000000e+00> : vector<64x64xf32>
    %427 = tpu.matmul %424, %426, %cst_418 {dimension_numbers = #tpu.dot_dimension_numbers<[1], [0], [0], [1], [0, 0, 1, 1], [], []>} : vector<64x16xbf16>, vector<16x64xbf16>, vector<64x64xf32> -> vector<64x64xf32>
    %428 = arith.addf %410, %427 : vector<64x64xf32>
    %c10_419 = arith.constant 10 : index
    %c0_420 = arith.constant 0 : index
    %c0_421 = arith.constant 0 : index
    %c0_422 = arith.constant 0 : index
    %429 = vector.load %arg13[%c10_419, %c0_420, %c0_421, %c0_422] : memref<16x5x5x16xbf16, #tpu.memory_space<vmem>>, vector<1x4x4x16xbf16>
    %430 = vector.shape_cast %429 : vector<1x4x4x16xbf16> to vector<4x4x16xbf16>
    %c8_423 = arith.constant 8 : index
    %c0_424 = arith.constant 0 : index
    %c1_425 = arith.constant 1 : index
    %c0_426 = arith.constant 0 : index
    %431 = vector.load %arg13[%c8_423, %c0_424, %c1_425, %c0_426] : memref<16x5x5x16xbf16, #tpu.memory_space<vmem>>, vector<1x4x4x16xbf16>
    %432 = vector.shape_cast %431 : vector<1x4x4x16xbf16> to vector<4x4x16xbf16>
    %c2_427 = arith.constant 2 : index
    %c1_428 = arith.constant 1 : index
    %c0_429 = arith.constant 0 : index
    %c0_430 = arith.constant 0 : index
    %433 = vector.load %arg13[%c2_427, %c1_428, %c0_429, %c0_430] : memref<16x5x5x16xbf16, #tpu.memory_space<vmem>>, vector<1x4x4x16xbf16>
    %434 = vector.shape_cast %433 : vector<1x4x4x16xbf16> to vector<4x4x16xbf16>
    %c0_431 = arith.constant 0 : index
    %c1_432 = arith.constant 1 : index
    %c1_433 = arith.constant 1 : index
    %c0_434 = arith.constant 0 : index
    %435 = vector.load %arg13[%c0_431, %c1_432, %c1_433, %c0_434] : memref<16x5x5x16xbf16, #tpu.memory_space<vmem>>, vector<1x4x4x16xbf16>
    %436 = vector.shape_cast %435 : vector<1x4x4x16xbf16> to vector<4x4x16xbf16>
    %437 = vector.shape_cast %430 : vector<4x4x16xbf16> to vector<1x4x4x16xbf16>
    %438 = vector.shape_cast %432 : vector<4x4x16xbf16> to vector<1x4x4x16xbf16>
    %439 = vector.shape_cast %434 : vector<4x4x16xbf16> to vector<1x4x4x16xbf16>
    %440 = vector.shape_cast %436 : vector<4x4x16xbf16> to vector<1x4x4x16xbf16>
    %441 = tpu.concatenate %437, %438, %439, %440 in 0 : vector<1x4x4x16xbf16>, vector<1x4x4x16xbf16>, vector<1x4x4x16xbf16>, vector<1x4x4x16xbf16> -> vector<4x4x4x16xbf16>
    %442 = vector.shape_cast %441 : vector<4x4x4x16xbf16> to vector<64x16xbf16>
    %c8_435 = arith.constant 8 : index
    %c0_436 = arith.constant 0 : index
    %c0_437 = arith.constant 0 : index
    %443 = vector.load %arg4[%c8_435, %c0_436, %c0_437] : memref<9x16x64xbf16, #tpu.memory_space<vmem>>, vector<1x16x64xbf16>
    %444 = vector.shape_cast %443 : vector<1x16x64xbf16> to vector<16x64xbf16>
    %cst_438 = arith.constant dense<0.000000e+00> : vector<64x64xf32>
    %445 = tpu.matmul %442, %444, %cst_438 {dimension_numbers = #tpu.dot_dimension_numbers<[1], [0], [0], [1], [0, 0, 1, 1], [], []>} : vector<64x16xbf16>, vector<16x64xbf16>, vector<64x64xf32> -> vector<64x64xf32>
    %446 = arith.addf %428, %445 : vector<64x64xf32>
    %c0_439 = arith.constant 0 : index
    %c0_440 = arith.constant 0 : index
    %447 = vector.load %arg5[%c0_439, %c0_440] : memref<1x64xf32, #tpu.memory_space<vmem>>, vector<1x64xf32>
    %448 = vector.broadcast %447 : vector<1x64xf32> to vector<64x64xf32>
    %449 = arith.addf %446, %448 : vector<64x64xf32>
    %cst_441 = arith.constant dense<0.000000e+00> : vector<64xf32>
    %450 = vector.multi_reduction <add>, %449, %cst_441 [0] : vector<64x64xf32> to vector<64xf32>
    %451 = vector.shape_cast %450 : vector<64xf32> to vector<1x64xf32>
    %cst_442 = arith.constant 1.562500e-02 : f32
    %452 = vector.broadcast %cst_442 : f32 to vector<1x64xf32>
    %453 = arith.mulf %451, %452 : vector<1x64xf32>
    %454 = vector.broadcast %453 : vector<1x64xf32> to vector<64x64xf32>
    %455 = arith.subf %449, %454 : vector<64x64xf32>
    %456 = arith.mulf %455, %455 : vector<64x64xf32>
    %cst_443 = arith.constant dense<0.000000e+00> : vector<64xf32>
    %457 = vector.multi_reduction <add>, %456, %cst_443 [0] : vector<64x64xf32> to vector<64xf32>
    %458 = vector.shape_cast %457 : vector<64xf32> to vector<1x64xf32>
    %cst_444 = arith.constant 1.562500e-02 : f32
    %459 = vector.broadcast %cst_444 : f32 to vector<1x64xf32>
    %460 = arith.mulf %458, %459 : vector<1x64xf32>
    %cst_445 = arith.constant 9.99999974E-6 : f32
    %461 = vector.broadcast %cst_445 : f32 to vector<1x64xf32>
    %462 = arith.addf %460, %461 : vector<1x64xf32>
    %463 = math.rsqrt %462 : vector<1x64xf32>
    %464 = vector.broadcast %463 : vector<1x64xf32> to vector<64x64xf32>
    %465 = arith.mulf %455, %464 : vector<64x64xf32>
    %cst_446 = arith.constant 0.000000e+00 : f32
    %466 = vector.broadcast %cst_446 : f32 to vector<64x64xf32>
    %467 = arith.maximumf %465, %466 : vector<64x64xf32>
    %468 = arith.truncf %467 : vector<64x64xf32> to vector<64x64xbf16>
    %cst_447 = arith.constant 0.000000e+00 : bf16
    %469 = vector.broadcast %cst_447 : bf16 to vector<4x5x5x64xbf16>
    %c0_448 = arith.constant 0 : index
    %c0_449 = arith.constant 0 : index
    %c0_450 = arith.constant 0 : index
    %c0_451 = arith.constant 0 : index
    %470 = vector.load %arg14[%c0_448, %c0_449, %c0_450, %c0_451] : memref<4x5x5x64xbf16, #tpu.memory_space<vmem>>, vector<4x5x5x64xbf16>
    tpu.vector_store %arg14[%c0_448, %c0_449, %c0_450, %c0_451], %469 {strides = array<i32>} : memref<4x5x5x64xbf16, #tpu.memory_space<vmem>>, vector<4x5x5x64xbf16>,
    %471 = vector.extract_strided_slice %468 {offsets = [48, 0], sizes = [4, 64], strides = [1, 1]} : vector<64x64xbf16> to vector<4x64xbf16>
    %c0_452 = arith.constant 0 : index
    %c1_453 = arith.constant 1 : index
    %c1_454 = arith.constant 1 : index
    %c0_455 = arith.constant 0 : index
    %472 = vector.load %arg14[%c0_452, %c1_453, %c1_454, %c0_455] : memref<4x5x5x64xbf16, #tpu.memory_space<vmem>>, vector<1x1x4x64xbf16>
    %473 = vector.shape_cast %472 : vector<1x1x4x64xbf16> to vector<4x64xbf16>
    %474 = vector.shape_cast %471 : vector<4x64xbf16> to vector<1x1x4x64xbf16>
    tpu.vector_store %arg14[%c0_452, %c1_453, %c1_454, %c0_455], %474 {strides = array<i32>} : memref<4x5x5x64xbf16, #tpu.memory_space<vmem>>, vector<1x1x4x64xbf16>,
    %475 = vector.extract_strided_slice %468 {offsets = [52, 0], sizes = [4, 64], strides = [1, 1]} : vector<64x64xbf16> to vector<4x64xbf16>
    %c0_456 = arith.constant 0 : index
    %c2_457 = arith.constant 2 : index
    %c1_458 = arith.constant 1 : index
    %c0_459 = arith.constant 0 : index
    %476 = vector.load %arg14[%c0_456, %c2_457, %c1_458, %c0_459] : memref<4x5x5x64xbf16, #tpu.memory_space<vmem>>, vector<1x1x4x64xbf16>
    %477 = vector.shape_cast %476 : vector<1x1x4x64xbf16> to vector<4x64xbf16>
    %478 = vector.shape_cast %475 : vector<4x64xbf16> to vector<1x1x4x64xbf16>
    tpu.vector_store %arg14[%c0_456, %c2_457, %c1_458, %c0_459], %478 {strides = array<i32>} : memref<4x5x5x64xbf16, #tpu.memory_space<vmem>>, vector<1x1x4x64xbf16>,
    %479 = vector.extract_strided_slice %468 {offsets = [56, 0], sizes = [4, 64], strides = [1, 1]} : vector<64x64xbf16> to vector<4x64xbf16>
    %c0_460 = arith.constant 0 : index
    %c3_461 = arith.constant 3 : index
    %c1_462 = arith.constant 1 : index
    %c0_463 = arith.constant 0 : index
    %480 = vector.load %arg14[%c0_460, %c3_461, %c1_462, %c0_463] : memref<4x5x5x64xbf16, #tpu.memory_space<vmem>>, vector<1x1x4x64xbf16>
    %481 = vector.shape_cast %480 : vector<1x1x4x64xbf16> to vector<4x64xbf16>
    %482 = vector.shape_cast %479 : vector<4x64xbf16> to vector<1x1x4x64xbf16>
    tpu.vector_store %arg14[%c0_460, %c3_461, %c1_462, %c0_463], %482 {strides = array<i32>} : memref<4x5x5x64xbf16, #tpu.memory_space<vmem>>, vector<1x1x4x64xbf16>,
    %483 = vector.extract_strided_slice %468 {offsets = [60, 0], sizes = [4, 64], strides = [1, 1]} : vector<64x64xbf16> to vector<4x64xbf16>
    %c0_464 = arith.constant 0 : index
    %c4_465 = arith.constant 4 : index
    %c1_466 = arith.constant 1 : index
    %c0_467 = arith.constant 0 : index
    %484 = vector.load %arg14[%c0_464, %c4_465, %c1_466, %c0_467] : memref<4x5x5x64xbf16, #tpu.memory_space<vmem>>, vector<1x1x4x64xbf16>
    %485 = vector.shape_cast %484 : vector<1x1x4x64xbf16> to vector<4x64xbf16>
    %486 = vector.shape_cast %483 : vector<4x64xbf16> to vector<1x1x4x64xbf16>
    tpu.vector_store %arg14[%c0_464, %c4_465, %c1_466, %c0_467], %486 {strides = array<i32>} : memref<4x5x5x64xbf16, #tpu.memory_space<vmem>>, vector<1x1x4x64xbf16>,
    %487 = vector.extract_strided_slice %468 {offsets = [32, 0], sizes = [4, 64], strides = [1, 1]} : vector<64x64xbf16> to vector<4x64xbf16>
    %c1_468 = arith.constant 1 : index
    %c1_469 = arith.constant 1 : index
    %c0_470 = arith.constant 0 : index
    %c0_471 = arith.constant 0 : index
    %488 = vector.load %arg14[%c1_468, %c1_469, %c0_470, %c0_471] : memref<4x5x5x64xbf16, #tpu.memory_space<vmem>>, vector<1x1x4x64xbf16>
    %489 = vector.shape_cast %488 : vector<1x1x4x64xbf16> to vector<4x64xbf16>
    %490 = vector.shape_cast %487 : vector<4x64xbf16> to vector<1x1x4x64xbf16>
    tpu.vector_store %arg14[%c1_468, %c1_469, %c0_470, %c0_471], %490 {strides = array<i32>} : memref<4x5x5x64xbf16, #tpu.memory_space<vmem>>, vector<1x1x4x64xbf16>,
    %491 = vector.extract_strided_slice %468 {offsets = [36, 0], sizes = [4, 64], strides = [1, 1]} : vector<64x64xbf16> to vector<4x64xbf16>
    %c1_472 = arith.constant 1 : index
    %c2_473 = arith.constant 2 : index
    %c0_474 = arith.constant 0 : index
    %c0_475 = arith.constant 0 : index
    %492 = vector.load %arg14[%c1_472, %c2_473, %c0_474, %c0_475] : memref<4x5x5x64xbf16, #tpu.memory_space<vmem>>, vector<1x1x4x64xbf16>
    %493 = vector.shape_cast %492 : vector<1x1x4x64xbf16> to vector<4x64xbf16>
    %494 = vector.shape_cast %491 : vector<4x64xbf16> to vector<1x1x4x64xbf16>
    tpu.vector_store %arg14[%c1_472, %c2_473, %c0_474, %c0_475], %494 {strides = array<i32>} : memref<4x5x5x64xbf16, #tpu.memory_space<vmem>>, vector<1x1x4x64xbf16>,
    %495 = vector.extract_strided_slice %468 {offsets = [40, 0], sizes = [4, 64], strides = [1, 1]} : vector<64x64xbf16> to vector<4x64xbf16>
    %c1_476 = arith.constant 1 : index
    %c3_477 = arith.constant 3 : index
    %c0_478 = arith.constant 0 : index
    %c0_479 = arith.constant 0 : index
    %496 = vector.load %arg14[%c1_476, %c3_477, %c0_478, %c0_479] : memref<4x5x5x64xbf16, #tpu.memory_space<vmem>>, vector<1x1x4x64xbf16>
    %497 = vector.shape_cast %496 : vector<1x1x4x64xbf16> to vector<4x64xbf16>
    %498 = vector.shape_cast %495 : vector<4x64xbf16> to vector<1x1x4x64xbf16>
    tpu.vector_store %arg14[%c1_476, %c3_477, %c0_478, %c0_479], %498 {strides = array<i32>} : memref<4x5x5x64xbf16, #tpu.memory_space<vmem>>, vector<1x1x4x64xbf16>,
    %499 = vector.extract_strided_slice %468 {offsets = [44, 0], sizes = [4, 64], strides = [1, 1]} : vector<64x64xbf16> to vector<4x64xbf16>
    %c1_480 = arith.constant 1 : index
    %c4_481 = arith.constant 4 : index
    %c0_482 = arith.constant 0 : index
    %c0_483 = arith.constant 0 : index
    %500 = vector.load %arg14[%c1_480, %c4_481, %c0_482, %c0_483] : memref<4x5x5x64xbf16, #tpu.memory_space<vmem>>, vector<1x1x4x64xbf16>
    %501 = vector.shape_cast %500 : vector<1x1x4x64xbf16> to vector<4x64xbf16>
    %502 = vector.shape_cast %499 : vector<4x64xbf16> to vector<1x1x4x64xbf16>
    tpu.vector_store %arg14[%c1_480, %c4_481, %c0_482, %c0_483], %502 {strides = array<i32>} : memref<4x5x5x64xbf16, #tpu.memory_space<vmem>>, vector<1x1x4x64xbf16>,
    %503 = vector.extract_strided_slice %468 {offsets = [16, 0], sizes = [4, 64], strides = [1, 1]} : vector<64x64xbf16> to vector<4x64xbf16>
    %c2_484 = arith.constant 2 : index
    %c0_485 = arith.constant 0 : index
    %c1_486 = arith.constant 1 : index
    %c0_487 = arith.constant 0 : index
    %504 = vector.load %arg14[%c2_484, %c0_485, %c1_486, %c0_487] : memref<4x5x5x64xbf16, #tpu.memory_space<vmem>>, vector<1x1x4x64xbf16>
    %505 = vector.shape_cast %504 : vector<1x1x4x64xbf16> to vector<4x64xbf16>
    %506 = vector.shape_cast %503 : vector<4x64xbf16> to vector<1x1x4x64xbf16>
    tpu.vector_store %arg14[%c2_484, %c0_485, %c1_486, %c0_487], %506 {strides = array<i32>} : memref<4x5x5x64xbf16, #tpu.memory_space<vmem>>, vector<1x1x4x64xbf16>,
    %507 = vector.extract_strided_slice %468 {offsets = [20, 0], sizes = [4, 64], strides = [1, 1]} : vector<64x64xbf16> to vector<4x64xbf16>
    %c2_488 = arith.constant 2 : index
    %c1_489 = arith.constant 1 : index
    %c1_490 = arith.constant 1 : index
    %c0_491 = arith.constant 0 : index
    %508 = vector.load %arg14[%c2_488, %c1_489, %c1_490, %c0_491] : memref<4x5x5x64xbf16, #tpu.memory_space<vmem>>, vector<1x1x4x64xbf16>
    %509 = vector.shape_cast %508 : vector<1x1x4x64xbf16> to vector<4x64xbf16>
    %510 = vector.shape_cast %507 : vector<4x64xbf16> to vector<1x1x4x64xbf16>
    tpu.vector_store %arg14[%c2_488, %c1_489, %c1_490, %c0_491], %510 {strides = array<i32>} : memref<4x5x5x64xbf16, #tpu.memory_space<vmem>>, vector<1x1x4x64xbf16>,
    %511 = vector.extract_strided_slice %468 {offsets = [24, 0], sizes = [4, 64], strides = [1, 1]} : vector<64x64xbf16> to vector<4x64xbf16>
    %c2_492 = arith.constant 2 : index
    %c2_493 = arith.constant 2 : index
    %c1_494 = arith.constant 1 : index
    %c0_495 = arith.constant 0 : index
    %512 = vector.load %arg14[%c2_492, %c2_493, %c1_494, %c0_495] : memref<4x5x5x64xbf16, #tpu.memory_space<vmem>>, vector<1x1x4x64xbf16>
    %513 = vector.shape_cast %512 : vector<1x1x4x64xbf16> to vector<4x64xbf16>
    %514 = vector.shape_cast %511 : vector<4x64xbf16> to vector<1x1x4x64xbf16>
    tpu.vector_store %arg14[%c2_492, %c2_493, %c1_494, %c0_495], %514 {strides = array<i32>} : memref<4x5x5x64xbf16, #tpu.memory_space<vmem>>, vector<1x1x4x64xbf16>,
    %515 = vector.extract_strided_slice %468 {offsets = [28, 0], sizes = [4, 64], strides = [1, 1]} : vector<64x64xbf16> to vector<4x64xbf16>
    %c2_496 = arith.constant 2 : index
    %c3_497 = arith.constant 3 : index
    %c1_498 = arith.constant 1 : index
    %c0_499 = arith.constant 0 : index
    %516 = vector.load %arg14[%c2_496, %c3_497, %c1_498, %c0_499] : memref<4x5x5x64xbf16, #tpu.memory_space<vmem>>, vector<1x1x4x64xbf16>
    %517 = vector.shape_cast %516 : vector<1x1x4x64xbf16> to vector<4x64xbf16>
    %518 = vector.shape_cast %515 : vector<4x64xbf16> to vector<1x1x4x64xbf16>
    tpu.vector_store %arg14[%c2_496, %c3_497, %c1_498, %c0_499], %518 {strides = array<i32>} : memref<4x5x5x64xbf16, #tpu.memory_space<vmem>>, vector<1x1x4x64xbf16>,
    %519 = vector.extract_strided_slice %468 {offsets = [0, 0], sizes = [4, 64], strides = [1, 1]} : vector<64x64xbf16> to vector<4x64xbf16>
    %c3_500 = arith.constant 3 : index
    %c0_501 = arith.constant 0 : index
    %c0_502 = arith.constant 0 : index
    %c0_503 = arith.constant 0 : index
    %520 = vector.load %arg14[%c3_500, %c0_501, %c0_502, %c0_503] : memref<4x5x5x64xbf16, #tpu.memory_space<vmem>>, vector<1x1x4x64xbf16>
    %521 = vector.shape_cast %520 : vector<1x1x4x64xbf16> to vector<4x64xbf16>
    %522 = vector.shape_cast %519 : vector<4x64xbf16> to vector<1x1x4x64xbf16>
    tpu.vector_store %arg14[%c3_500, %c0_501, %c0_502, %c0_503], %522 {strides = array<i32>} : memref<4x5x5x64xbf16, #tpu.memory_space<vmem>>, vector<1x1x4x64xbf16>,
    %523 = vector.extract_strided_slice %468 {offsets = [4, 0], sizes = [4, 64], strides = [1, 1]} : vector<64x64xbf16> to vector<4x64xbf16>
    %c3_504 = arith.constant 3 : index
    %c1_505 = arith.constant 1 : index
    %c0_506 = arith.constant 0 : index
    %c0_507 = arith.constant 0 : index
    %524 = vector.load %arg14[%c3_504, %c1_505, %c0_506, %c0_507] : memref<4x5x5x64xbf16, #tpu.memory_space<vmem>>, vector<1x1x4x64xbf16>
    %525 = vector.shape_cast %524 : vector<1x1x4x64xbf16> to vector<4x64xbf16>
    %526 = vector.shape_cast %523 : vector<4x64xbf16> to vector<1x1x4x64xbf16>
    tpu.vector_store %arg14[%c3_504, %c1_505, %c0_506, %c0_507], %526 {strides = array<i32>} : memref<4x5x5x64xbf16, #tpu.memory_space<vmem>>, vector<1x1x4x64xbf16>,
    %527 = vector.extract_strided_slice %468 {offsets = [8, 0], sizes = [4, 64], strides = [1, 1]} : vector<64x64xbf16> to vector<4x64xbf16>
    %c3_508 = arith.constant 3 : index
    %c2_509 = arith.constant 2 : index
    %c0_510 = arith.constant 0 : index
    %c0_511 = arith.constant 0 : index
    %528 = vector.load %arg14[%c3_508, %c2_509, %c0_510, %c0_511] : memref<4x5x5x64xbf16, #tpu.memory_space<vmem>>, vector<1x1x4x64xbf16>
    %529 = vector.shape_cast %528 : vector<1x1x4x64xbf16> to vector<4x64xbf16>
    %530 = vector.shape_cast %527 : vector<4x64xbf16> to vector<1x1x4x64xbf16>
    tpu.vector_store %arg14[%c3_508, %c2_509, %c0_510, %c0_511], %530 {strides = array<i32>} : memref<4x5x5x64xbf16, #tpu.memory_space<vmem>>, vector<1x1x4x64xbf16>,
    %531 = vector.extract_strided_slice %468 {offsets = [12, 0], sizes = [4, 64], strides = [1, 1]} : vector<64x64xbf16> to vector<4x64xbf16>
    %c3_512 = arith.constant 3 : index
    %c3_513 = arith.constant 3 : index
    %c0_514 = arith.constant 0 : index
    %c0_515 = arith.constant 0 : index
    %532 = vector.load %arg14[%c3_512, %c3_513, %c0_514, %c0_515] : memref<4x5x5x64xbf16, #tpu.memory_space<vmem>>, vector<1x1x4x64xbf16>
    %533 = vector.shape_cast %532 : vector<1x1x4x64xbf16> to vector<4x64xbf16>
    %534 = vector.shape_cast %531 : vector<4x64xbf16> to vector<1x1x4x64xbf16>
    tpu.vector_store %arg14[%c3_512, %c3_513, %c0_514, %c0_515], %534 {strides = array<i32>} : memref<4x5x5x64xbf16, #tpu.memory_space<vmem>>, vector<1x1x4x64xbf16>,
    %cst_516 = arith.constant 0.000000e+00 : f32
    %535 = vector.broadcast %cst_516 : f32 to vector<16x64xf32>
    %c0_517 = arith.constant 0 : index
    %c0_518 = arith.constant 0 : index
    %c0_519 = arith.constant 0 : index
    %c0_520 = arith.constant 0 : index
    %536 = vector.load %arg14[%c0_517, %c0_518, %c0_519, %c0_520] : memref<4x5x5x64xbf16, #tpu.memory_space<vmem>>, vector<1x4x4x64xbf16>
    %537 = vector.shape_cast %536 : vector<1x4x4x64xbf16> to vector<4x4x64xbf16>
    %538 = vector.shape_cast %537 : vector<4x4x64xbf16> to vector<16x64xbf16>
    %c0_521 = arith.constant 0 : index
    %c0_522 = arith.constant 0 : index
    %c0_523 = arith.constant 0 : index
    %539 = vector.load %arg6[%c0_521, %c0_522, %c0_523] : memref<9x64x64xbf16, #tpu.memory_space<vmem>>, vector<1x64x64xbf16>
    %540 = vector.shape_cast %539 : vector<1x64x64xbf16> to vector<64x64xbf16>
    %cst_524 = arith.constant dense<0.000000e+00> : vector<16x64xf32>
    %541 = tpu.matmul %538, %540, %cst_524 {dimension_numbers = #tpu.dot_dimension_numbers<[1], [0], [0], [1], [0, 0, 1, 1], [], []>} : vector<16x64xbf16>, vector<64x64xbf16>, vector<16x64xf32> -> vector<16x64xf32>
    %542 = arith.addf %535, %541 : vector<16x64xf32>
    %c1_525 = arith.constant 1 : index
    %c0_526 = arith.constant 0 : index
    %c0_527 = arith.constant 0 : index
    %c0_528 = arith.constant 0 : index
    %543 = vector.load %arg14[%c1_525, %c0_526, %c0_527, %c0_528] : memref<4x5x5x64xbf16, #tpu.memory_space<vmem>>, vector<1x4x4x64xbf16>
    %544 = vector.shape_cast %543 : vector<1x4x4x64xbf16> to vector<4x4x64xbf16>
    %545 = vector.shape_cast %544 : vector<4x4x64xbf16> to vector<16x64xbf16>
    %c1_529 = arith.constant 1 : index
    %c0_530 = arith.constant 0 : index
    %c0_531 = arith.constant 0 : index
    %546 = vector.load %arg6[%c1_529, %c0_530, %c0_531] : memref<9x64x64xbf16, #tpu.memory_space<vmem>>, vector<1x64x64xbf16>
    %547 = vector.shape_cast %546 : vector<1x64x64xbf16> to vector<64x64xbf16>
    %cst_532 = arith.constant dense<0.000000e+00> : vector<16x64xf32>
    %548 = tpu.matmul %545, %547, %cst_532 {dimension_numbers = #tpu.dot_dimension_numbers<[1], [0], [0], [1], [0, 0, 1, 1], [], []>} : vector<16x64xbf16>, vector<64x64xbf16>, vector<16x64xf32> -> vector<16x64xf32>
    %549 = arith.addf %542, %548 : vector<16x64xf32>
    %c0_533 = arith.constant 0 : index
    %c0_534 = arith.constant 0 : index
    %c1_535 = arith.constant 1 : index
    %c0_536 = arith.constant 0 : index
    %550 = vector.load %arg14[%c0_533, %c0_534, %c1_535, %c0_536] : memref<4x5x5x64xbf16, #tpu.memory_space<vmem>>, vector<1x4x4x64xbf16>
    %551 = vector.shape_cast %550 : vector<1x4x4x64xbf16> to vector<4x4x64xbf16>
    %552 = vector.shape_cast %551 : vector<4x4x64xbf16> to vector<16x64xbf16>
    %c2_537 = arith.constant 2 : index
    %c0_538 = arith.constant 0 : index
    %c0_539 = arith.constant 0 : index
    %553 = vector.load %arg6[%c2_537, %c0_538, %c0_539] : memref<9x64x64xbf16, #tpu.memory_space<vmem>>, vector<1x64x64xbf16>
    %554 = vector.shape_cast %553 : vector<1x64x64xbf16> to vector<64x64xbf16>
    %cst_540 = arith.constant dense<0.000000e+00> : vector<16x64xf32>
    %555 = tpu.matmul %552, %554, %cst_540 {dimension_numbers = #tpu.dot_dimension_numbers<[1], [0], [0], [1], [0, 0, 1, 1], [], []>} : vector<16x64xbf16>, vector<64x64xbf16>, vector<16x64xf32> -> vector<16x64xf32>
    %556 = arith.addf %549, %555 : vector<16x64xf32>
    %c2_541 = arith.constant 2 : index
    %c0_542 = arith.constant 0 : index
    %c0_543 = arith.constant 0 : index
    %c0_544 = arith.constant 0 : index
    %557 = vector.load %arg14[%c2_541, %c0_542, %c0_543, %c0_544] : memref<4x5x5x64xbf16, #tpu.memory_space<vmem>>, vector<1x4x4x64xbf16>
    %558 = vector.shape_cast %557 : vector<1x4x4x64xbf16> to vector<4x4x64xbf16>
    %559 = vector.shape_cast %558 : vector<4x4x64xbf16> to vector<16x64xbf16>
    %c3_545 = arith.constant 3 : index
    %c0_546 = arith.constant 0 : index
    %c0_547 = arith.constant 0 : index
    %560 = vector.load %arg6[%c3_545, %c0_546, %c0_547] : memref<9x64x64xbf16, #tpu.memory_space<vmem>>, vector<1x64x64xbf16>
    %561 = vector.shape_cast %560 : vector<1x64x64xbf16> to vector<64x64xbf16>
    %cst_548 = arith.constant dense<0.000000e+00> : vector<16x64xf32>
    %562 = tpu.matmul %559, %561, %cst_548 {dimension_numbers = #tpu.dot_dimension_numbers<[1], [0], [0], [1], [0, 0, 1, 1], [], []>} : vector<16x64xbf16>, vector<64x64xbf16>, vector<16x64xf32> -> vector<16x64xf32>
    %563 = arith.addf %556, %562 : vector<16x64xf32>
    %c3_549 = arith.constant 3 : index
    %c0_550 = arith.constant 0 : index
    %c0_551 = arith.constant 0 : index
    %c0_552 = arith.constant 0 : index
    %564 = vector.load %arg14[%c3_549, %c0_550, %c0_551, %c0_552] : memref<4x5x5x64xbf16, #tpu.memory_space<vmem>>, vector<1x4x4x64xbf16>
    %565 = vector.shape_cast %564 : vector<1x4x4x64xbf16> to vector<4x4x64xbf16>
    %566 = vector.shape_cast %565 : vector<4x4x64xbf16> to vector<16x64xbf16>
    %c4_553 = arith.constant 4 : index
    %c0_554 = arith.constant 0 : index
    %c0_555 = arith.constant 0 : index
    %567 = vector.load %arg6[%c4_553, %c0_554, %c0_555] : memref<9x64x64xbf16, #tpu.memory_space<vmem>>, vector<1x64x64xbf16>
    %568 = vector.shape_cast %567 : vector<1x64x64xbf16> to vector<64x64xbf16>
    %cst_556 = arith.constant dense<0.000000e+00> : vector<16x64xf32>
    %569 = tpu.matmul %566, %568, %cst_556 {dimension_numbers = #tpu.dot_dimension_numbers<[1], [0], [0], [1], [0, 0, 1, 1], [], []>} : vector<16x64xbf16>, vector<64x64xbf16>, vector<16x64xf32> -> vector<16x64xf32>
    %570 = arith.addf %563, %569 : vector<16x64xf32>
    %c2_557 = arith.constant 2 : index
    %c0_558 = arith.constant 0 : index
    %c1_559 = arith.constant 1 : index
    %c0_560 = arith.constant 0 : index
    %571 = vector.load %arg14[%c2_557, %c0_558, %c1_559, %c0_560] : memref<4x5x5x64xbf16, #tpu.memory_space<vmem>>, vector<1x4x4x64xbf16>
    %572 = vector.shape_cast %571 : vector<1x4x4x64xbf16> to vector<4x4x64xbf16>
    %573 = vector.shape_cast %572 : vector<4x4x64xbf16> to vector<16x64xbf16>
    %c5_561 = arith.constant 5 : index
    %c0_562 = arith.constant 0 : index
    %c0_563 = arith.constant 0 : index
    %574 = vector.load %arg6[%c5_561, %c0_562, %c0_563] : memref<9x64x64xbf16, #tpu.memory_space<vmem>>, vector<1x64x64xbf16>
    %575 = vector.shape_cast %574 : vector<1x64x64xbf16> to vector<64x64xbf16>
    %cst_564 = arith.constant dense<0.000000e+00> : vector<16x64xf32>
    %576 = tpu.matmul %573, %575, %cst_564 {dimension_numbers = #tpu.dot_dimension_numbers<[1], [0], [0], [1], [0, 0, 1, 1], [], []>} : vector<16x64xbf16>, vector<64x64xbf16>, vector<16x64xf32> -> vector<16x64xf32>
    %577 = arith.addf %570, %576 : vector<16x64xf32>
    %c0_565 = arith.constant 0 : index
    %c1_566 = arith.constant 1 : index
    %c0_567 = arith.constant 0 : index
    %c0_568 = arith.constant 0 : index
    %578 = vector.load %arg14[%c0_565, %c1_566, %c0_567, %c0_568] : memref<4x5x5x64xbf16, #tpu.memory_space<vmem>>, vector<1x4x4x64xbf16>
    %579 = vector.shape_cast %578 : vector<1x4x4x64xbf16> to vector<4x4x64xbf16>
    %580 = vector.shape_cast %579 : vector<4x4x64xbf16> to vector<16x64xbf16>
    %c6_569 = arith.constant 6 : index
    %c0_570 = arith.constant 0 : index
    %c0_571 = arith.constant 0 : index
    %581 = vector.load %arg6[%c6_569, %c0_570, %c0_571] : memref<9x64x64xbf16, #tpu.memory_space<vmem>>, vector<1x64x64xbf16>
    %582 = vector.shape_cast %581 : vector<1x64x64xbf16> to vector<64x64xbf16>
    %cst_572 = arith.constant dense<0.000000e+00> : vector<16x64xf32>
    %583 = tpu.matmul %580, %582, %cst_572 {dimension_numbers = #tpu.dot_dimension_numbers<[1], [0], [0], [1], [0, 0, 1, 1], [], []>} : vector<16x64xbf16>, vector<64x64xbf16>, vector<16x64xf32> -> vector<16x64xf32>
    %584 = arith.addf %577, %583 : vector<16x64xf32>
    %c1_573 = arith.constant 1 : index
    %c1_574 = arith.constant 1 : index
    %c0_575 = arith.constant 0 : index
    %c0_576 = arith.constant 0 : index
    %585 = vector.load %arg14[%c1_573, %c1_574, %c0_575, %c0_576] : memref<4x5x5x64xbf16, #tpu.memory_space<vmem>>, vector<1x4x4x64xbf16>
    %586 = vector.shape_cast %585 : vector<1x4x4x64xbf16> to vector<4x4x64xbf16>
    %587 = vector.shape_cast %586 : vector<4x4x64xbf16> to vector<16x64xbf16>
    %c7_577 = arith.constant 7 : index
    %c0_578 = arith.constant 0 : index
    %c0_579 = arith.constant 0 : index
    %588 = vector.load %arg6[%c7_577, %c0_578, %c0_579] : memref<9x64x64xbf16, #tpu.memory_space<vmem>>, vector<1x64x64xbf16>
    %589 = vector.shape_cast %588 : vector<1x64x64xbf16> to vector<64x64xbf16>
    %cst_580 = arith.constant dense<0.000000e+00> : vector<16x64xf32>
    %590 = tpu.matmul %587, %589, %cst_580 {dimension_numbers = #tpu.dot_dimension_numbers<[1], [0], [0], [1], [0, 0, 1, 1], [], []>} : vector<16x64xbf16>, vector<64x64xbf16>, vector<16x64xf32> -> vector<16x64xf32>
    %591 = arith.addf %584, %590 : vector<16x64xf32>
    %c0_581 = arith.constant 0 : index
    %c1_582 = arith.constant 1 : index
    %c1_583 = arith.constant 1 : index
    %c0_584 = arith.constant 0 : index
    %592 = vector.load %arg14[%c0_581, %c1_582, %c1_583, %c0_584] : memref<4x5x5x64xbf16, #tpu.memory_space<vmem>>, vector<1x4x4x64xbf16>
    %593 = vector.shape_cast %592 : vector<1x4x4x64xbf16> to vector<4x4x64xbf16>
    %594 = vector.shape_cast %593 : vector<4x4x64xbf16> to vector<16x64xbf16>
    %c8_585 = arith.constant 8 : index
    %c0_586 = arith.constant 0 : index
    %c0_587 = arith.constant 0 : index
    %595 = vector.load %arg6[%c8_585, %c0_586, %c0_587] : memref<9x64x64xbf16, #tpu.memory_space<vmem>>, vector<1x64x64xbf16>
    %596 = vector.shape_cast %595 : vector<1x64x64xbf16> to vector<64x64xbf16>
    %cst_588 = arith.constant dense<0.000000e+00> : vector<16x64xf32>
    %597 = tpu.matmul %594, %596, %cst_588 {dimension_numbers = #tpu.dot_dimension_numbers<[1], [0], [0], [1], [0, 0, 1, 1], [], []>} : vector<16x64xbf16>, vector<64x64xbf16>, vector<16x64xf32> -> vector<16x64xf32>
    %598 = arith.addf %591, %597 : vector<16x64xf32>
    %c0_589 = arith.constant 0 : index
    %c0_590 = arith.constant 0 : index
    %599 = vector.load %arg7[%c0_589, %c0_590] : memref<1x64xf32, #tpu.memory_space<vmem>>, vector<1x64xf32>
    %600 = vector.broadcast %599 : vector<1x64xf32> to vector<16x64xf32>
    %601 = arith.addf %598, %600 : vector<16x64xf32>
    %cst_591 = arith.constant dense<0.000000e+00> : vector<64xf32>
    %602 = vector.multi_reduction <add>, %601, %cst_591 [0] : vector<16x64xf32> to vector<64xf32>
    %603 = vector.shape_cast %602 : vector<64xf32> to vector<1x64xf32>
    %cst_592 = arith.constant 6.250000e-02 : f32
    %604 = vector.broadcast %cst_592 : f32 to vector<1x64xf32>
    %605 = arith.mulf %603, %604 : vector<1x64xf32>
    %606 = vector.broadcast %605 : vector<1x64xf32> to vector<16x64xf32>
    %607 = arith.subf %601, %606 : vector<16x64xf32>
    %608 = arith.mulf %607, %607 : vector<16x64xf32>
    %cst_593 = arith.constant dense<0.000000e+00> : vector<64xf32>
    %609 = vector.multi_reduction <add>, %608, %cst_593 [0] : vector<16x64xf32> to vector<64xf32>
    %610 = vector.shape_cast %609 : vector<64xf32> to vector<1x64xf32>
    %cst_594 = arith.constant 6.250000e-02 : f32
    %611 = vector.broadcast %cst_594 : f32 to vector<1x64xf32>
    %612 = arith.mulf %610, %611 : vector<1x64xf32>
    %cst_595 = arith.constant 9.99999974E-6 : f32
    %613 = vector.broadcast %cst_595 : f32 to vector<1x64xf32>
    %614 = arith.addf %612, %613 : vector<1x64xf32>
    %615 = math.rsqrt %614 : vector<1x64xf32>
    %616 = vector.broadcast %615 : vector<1x64xf32> to vector<16x64xf32>
    %617 = arith.mulf %607, %616 : vector<16x64xf32>
    %cst_596 = arith.constant 0.000000e+00 : f32
    %618 = vector.broadcast %cst_596 : f32 to vector<16x64xf32>
    %619 = arith.maximumf %617, %618 : vector<16x64xf32>
    %620 = vector.extract_strided_slice %619 {offsets = [0, 0], sizes = [4, 64], strides = [1, 1]} : vector<16x64xf32> to vector<4x64xf32>
    %c1_597 = arith.constant 1 : index
    %c1_598 = arith.constant 1 : index
    %c0_599 = arith.constant 0 : index
    %621 = vector.load %arg15[%c1_597, %c1_598, %c0_599] : memref<6x6x64xf32, #tpu.memory_space<vmem>>, vector<1x4x64xf32>
    %622 = vector.shape_cast %621 : vector<1x4x64xf32> to vector<4x64xf32>
    %623 = vector.shape_cast %620 : vector<4x64xf32> to vector<1x4x64xf32>
    tpu.vector_store %arg15[%c1_597, %c1_598, %c0_599], %623 {strides = array<i32>} : memref<6x6x64xf32, #tpu.memory_space<vmem>>, vector<1x4x64xf32>,
    %624 = vector.extract_strided_slice %619 {offsets = [4, 0], sizes = [4, 64], strides = [1, 1]} : vector<16x64xf32> to vector<4x64xf32>
    %c2_600 = arith.constant 2 : index
    %c1_601 = arith.constant 1 : index
    %c0_602 = arith.constant 0 : index
    %625 = vector.load %arg15[%c2_600, %c1_601, %c0_602] : memref<6x6x64xf32, #tpu.memory_space<vmem>>, vector<1x4x64xf32>
    %626 = vector.shape_cast %625 : vector<1x4x64xf32> to vector<4x64xf32>
    %627 = vector.shape_cast %624 : vector<4x64xf32> to vector<1x4x64xf32>
    tpu.vector_store %arg15[%c2_600, %c1_601, %c0_602], %627 {strides = array<i32>} : memref<6x6x64xf32, #tpu.memory_space<vmem>>, vector<1x4x64xf32>,
    %628 = vector.extract_strided_slice %619 {offsets = [8, 0], sizes = [4, 64], strides = [1, 1]} : vector<16x64xf32> to vector<4x64xf32>
    %c3_603 = arith.constant 3 : index
    %c1_604 = arith.constant 1 : index
    %c0_605 = arith.constant 0 : index
    %629 = vector.load %arg15[%c3_603, %c1_604, %c0_605] : memref<6x6x64xf32, #tpu.memory_space<vmem>>, vector<1x4x64xf32>
    %630 = vector.shape_cast %629 : vector<1x4x64xf32> to vector<4x64xf32>
    %631 = vector.shape_cast %628 : vector<4x64xf32> to vector<1x4x64xf32>
    tpu.vector_store %arg15[%c3_603, %c1_604, %c0_605], %631 {strides = array<i32>} : memref<6x6x64xf32, #tpu.memory_space<vmem>>, vector<1x4x64xf32>,
    %632 = vector.extract_strided_slice %619 {offsets = [12, 0], sizes = [4, 64], strides = [1, 1]} : vector<16x64xf32> to vector<4x64xf32>
    %c4_606 = arith.constant 4 : index
    %c1_607 = arith.constant 1 : index
    %c0_608 = arith.constant 0 : index
    %633 = vector.load %arg15[%c4_606, %c1_607, %c0_608] : memref<6x6x64xf32, #tpu.memory_space<vmem>>, vector<1x4x64xf32>
    %634 = vector.shape_cast %633 : vector<1x4x64xf32> to vector<4x64xf32>
    %635 = vector.shape_cast %632 : vector<4x64xf32> to vector<1x4x64xf32>
    tpu.vector_store %arg15[%c4_606, %c1_607, %c0_608], %635 {strides = array<i32>} : memref<6x6x64xf32, #tpu.memory_space<vmem>>, vector<1x4x64xf32>,
    %636 = vector.extract_strided_slice %619 {offsets = [4, 0], sizes = [4, 64], strides = [1, 1]} : vector<16x64xf32> to vector<4x64xf32>
    %c0_609 = arith.constant 0 : index
    %c1_610 = arith.constant 1 : index
    %c0_611 = arith.constant 0 : index
    %637 = vector.load %arg15[%c0_609, %c1_610, %c0_611] : memref<6x6x64xf32, #tpu.memory_space<vmem>>, vector<1x4x64xf32>
    %638 = vector.shape_cast %637 : vector<1x4x64xf32> to vector<4x64xf32>
    %639 = vector.shape_cast %636 : vector<4x64xf32> to vector<1x4x64xf32>
    tpu.vector_store %arg15[%c0_609, %c1_610, %c0_611], %639 {strides = array<i32>} : memref<6x6x64xf32, #tpu.memory_space<vmem>>, vector<1x4x64xf32>,
    %640 = vector.extract_strided_slice %619 {offsets = [8, 0], sizes = [4, 64], strides = [1, 1]} : vector<16x64xf32> to vector<4x64xf32>
    %c5_612 = arith.constant 5 : index
    %c1_613 = arith.constant 1 : index
    %c0_614 = arith.constant 0 : index
    %641 = vector.load %arg15[%c5_612, %c1_613, %c0_614] : memref<6x6x64xf32, #tpu.memory_space<vmem>>, vector<1x4x64xf32>
    %642 = vector.shape_cast %641 : vector<1x4x64xf32> to vector<4x64xf32>
    %643 = vector.shape_cast %640 : vector<4x64xf32> to vector<1x4x64xf32>
    tpu.vector_store %arg15[%c5_612, %c1_613, %c0_614], %643 {strides = array<i32>} : memref<6x6x64xf32, #tpu.memory_space<vmem>>, vector<1x4x64xf32>,
    %c0_615 = arith.constant 0 : index
    %c2_616 = arith.constant 2 : index
    %c0_617 = arith.constant 0 : index
    %644 = vector.load %arg15[%c0_615, %c2_616, %c0_617] : memref<6x6x64xf32, #tpu.memory_space<vmem>>, vector<6x1x64xf32>
    %645 = vector.shape_cast %644 : vector<6x1x64xf32> to vector<6x64xf32>
    %c0_618 = arith.constant 0 : index
    %c0_619 = arith.constant 0 : index
    %c0_620 = arith.constant 0 : index
    %646 = vector.load %arg15[%c0_618, %c0_619, %c0_620] : memref<6x6x64xf32, #tpu.memory_space<vmem>>, vector<6x1x64xf32>
    %647 = vector.shape_cast %646 : vector<6x1x64xf32> to vector<6x64xf32>
    %648 = vector.shape_cast %645 : vector<6x64xf32> to vector<6x1x64xf32>
    tpu.vector_store %arg15[%c0_618, %c0_619, %c0_620], %648 {strides = array<i32>} : memref<6x6x64xf32, #tpu.memory_space<vmem>>, vector<6x1x64xf32>,
    %c0_621 = arith.constant 0 : index
    %c3_622 = arith.constant 3 : index
    %c0_623 = arith.constant 0 : index
    %649 = vector.load %arg15[%c0_621, %c3_622, %c0_623] : memref<6x6x64xf32, #tpu.memory_space<vmem>>, vector<6x1x64xf32>
    %650 = vector.shape_cast %649 : vector<6x1x64xf32> to vector<6x64xf32>
    %c0_624 = arith.constant 0 : index
    %c5_625 = arith.constant 5 : index
    %c0_626 = arith.constant 0 : index
    %651 = vector.load %arg15[%c0_624, %c5_625, %c0_626] : memref<6x6x64xf32, #tpu.memory_space<vmem>>, vector<6x1x64xf32>
    %652 = vector.shape_cast %651 : vector<6x1x64xf32> to vector<6x64xf32>
    %653 = vector.shape_cast %650 : vector<6x64xf32> to vector<6x1x64xf32>
    tpu.vector_store %arg15[%c0_624, %c5_625, %c0_626], %653 {strides = array<i32>} : memref<6x6x64xf32, #tpu.memory_space<vmem>>, vector<6x1x64xf32>,
    %cst_627 = arith.constant 0.000000e+00 : f32
    %654 = vector.broadcast %cst_627 : f32 to vector<4x4x64xf32>
    %c0_628 = arith.constant 0 : index
    %c0_629 = arith.constant 0 : index
    %c0_630 = arith.constant 0 : index
    %655 = vector.load %arg15[%c0_628, %c0_629, %c0_630] : memref<6x6x64xf32, #tpu.memory_space<vmem>>, vector<4x4x64xf32>
    %c0_631 = arith.constant 0 : index
    %c0_632 = arith.constant 0 : index
    %656 = vector.load %arg8[%c0_631, %c0_632] : memref<9x64xf32, #tpu.memory_space<vmem>>, vector<1x64xf32>
    %657 = vector.shape_cast %656 : vector<1x64xf32> to vector<1x1x64xf32>
    %658 = vector.broadcast %657 : vector<1x1x64xf32> to vector<4x4x64xf32>
    %659 = arith.mulf %655, %658 : vector<4x4x64xf32>
    %660 = arith.addf %654, %659 : vector<4x4x64xf32>
    %c0_633 = arith.constant 0 : index
    %c1_634 = arith.constant 1 : index
    %c0_635 = arith.constant 0 : index
    %661 = vector.load %arg15[%c0_633, %c1_634, %c0_635] : memref<6x6x64xf32, #tpu.memory_space<vmem>>, vector<4x4x64xf32>
    %c1_636 = arith.constant 1 : index
    %c0_637 = arith.constant 0 : index
    %662 = vector.load %arg8[%c1_636, %c0_637] : memref<9x64xf32, #tpu.memory_space<vmem>>, vector<1x64xf32>
    %663 = vector.shape_cast %662 : vector<1x64xf32> to vector<1x1x64xf32>
    %664 = vector.broadcast %663 : vector<1x1x64xf32> to vector<4x4x64xf32>
    %665 = arith.mulf %661, %664 : vector<4x4x64xf32>
    %666 = arith.addf %660, %665 : vector<4x4x64xf32>
    %c0_638 = arith.constant 0 : index
    %c2_639 = arith.constant 2 : index
    %c0_640 = arith.constant 0 : index
    %667 = vector.load %arg15[%c0_638, %c2_639, %c0_640] : memref<6x6x64xf32, #tpu.memory_space<vmem>>, vector<4x4x64xf32>
    %c2_641 = arith.constant 2 : index
    %c0_642 = arith.constant 0 : index
    %668 = vector.load %arg8[%c2_641, %c0_642] : memref<9x64xf32, #tpu.memory_space<vmem>>, vector<1x64xf32>
    %669 = vector.shape_cast %668 : vector<1x64xf32> to vector<1x1x64xf32>
    %670 = vector.broadcast %669 : vector<1x1x64xf32> to vector<4x4x64xf32>
    %671 = arith.mulf %667, %670 : vector<4x4x64xf32>
    %672 = arith.addf %666, %671 : vector<4x4x64xf32>
    %c1_643 = arith.constant 1 : index
    %c0_644 = arith.constant 0 : index
    %c0_645 = arith.constant 0 : index
    %673 = vector.load %arg15[%c1_643, %c0_644, %c0_645] : memref<6x6x64xf32, #tpu.memory_space<vmem>>, vector<4x4x64xf32>
    %c3_646 = arith.constant 3 : index
    %c0_647 = arith.constant 0 : index
    %674 = vector.load %arg8[%c3_646, %c0_647] : memref<9x64xf32, #tpu.memory_space<vmem>>, vector<1x64xf32>
    %675 = vector.shape_cast %674 : vector<1x64xf32> to vector<1x1x64xf32>
    %676 = vector.broadcast %675 : vector<1x1x64xf32> to vector<4x4x64xf32>
    %677 = arith.mulf %673, %676 : vector<4x4x64xf32>
    %678 = arith.addf %672, %677 : vector<4x4x64xf32>
    %c1_648 = arith.constant 1 : index
    %c1_649 = arith.constant 1 : index
    %c0_650 = arith.constant 0 : index
    %679 = vector.load %arg15[%c1_648, %c1_649, %c0_650] : memref<6x6x64xf32, #tpu.memory_space<vmem>>, vector<4x4x64xf32>
    %c4_651 = arith.constant 4 : index
    %c0_652 = arith.constant 0 : index
    %680 = vector.load %arg8[%c4_651, %c0_652] : memref<9x64xf32, #tpu.memory_space<vmem>>, vector<1x64xf32>
    %681 = vector.shape_cast %680 : vector<1x64xf32> to vector<1x1x64xf32>
    %682 = vector.broadcast %681 : vector<1x1x64xf32> to vector<4x4x64xf32>
    %683 = arith.mulf %679, %682 : vector<4x4x64xf32>
    %684 = arith.addf %678, %683 : vector<4x4x64xf32>
    %c1_653 = arith.constant 1 : index
    %c2_654 = arith.constant 2 : index
    %c0_655 = arith.constant 0 : index
    %685 = vector.load %arg15[%c1_653, %c2_654, %c0_655] : memref<6x6x64xf32, #tpu.memory_space<vmem>>, vector<4x4x64xf32>
    %c5_656 = arith.constant 5 : index
    %c0_657 = arith.constant 0 : index
    %686 = vector.load %arg8[%c5_656, %c0_657] : memref<9x64xf32, #tpu.memory_space<vmem>>, vector<1x64xf32>
    %687 = vector.shape_cast %686 : vector<1x64xf32> to vector<1x1x64xf32>
    %688 = vector.broadcast %687 : vector<1x1x64xf32> to vector<4x4x64xf32>
    %689 = arith.mulf %685, %688 : vector<4x4x64xf32>
    %690 = arith.addf %684, %689 : vector<4x4x64xf32>
    %c2_658 = arith.constant 2 : index
    %c0_659 = arith.constant 0 : index
    %c0_660 = arith.constant 0 : index
    %691 = vector.load %arg15[%c2_658, %c0_659, %c0_660] : memref<6x6x64xf32, #tpu.memory_space<vmem>>, vector<4x4x64xf32>
    %c6_661 = arith.constant 6 : index
    %c0_662 = arith.constant 0 : index
    %692 = vector.load %arg8[%c6_661, %c0_662] : memref<9x64xf32, #tpu.memory_space<vmem>>, vector<1x64xf32>
    %693 = vector.shape_cast %692 : vector<1x64xf32> to vector<1x1x64xf32>
    %694 = vector.broadcast %693 : vector<1x1x64xf32> to vector<4x4x64xf32>
    %695 = arith.mulf %691, %694 : vector<4x4x64xf32>
    %696 = arith.addf %690, %695 : vector<4x4x64xf32>
    %c2_663 = arith.constant 2 : index
    %c1_664 = arith.constant 1 : index
    %c0_665 = arith.constant 0 : index
    %697 = vector.load %arg15[%c2_663, %c1_664, %c0_665] : memref<6x6x64xf32, #tpu.memory_space<vmem>>, vector<4x4x64xf32>
    %c7_666 = arith.constant 7 : index
    %c0_667 = arith.constant 0 : index
    %698 = vector.load %arg8[%c7_666, %c0_667] : memref<9x64xf32, #tpu.memory_space<vmem>>, vector<1x64xf32>
    %699 = vector.shape_cast %698 : vector<1x64xf32> to vector<1x1x64xf32>
    %700 = vector.broadcast %699 : vector<1x1x64xf32> to vector<4x4x64xf32>
    %701 = arith.mulf %697, %700 : vector<4x4x64xf32>
    %702 = arith.addf %696, %701 : vector<4x4x64xf32>
    %c2_668 = arith.constant 2 : index
    %c2_669 = arith.constant 2 : index
    %c0_670 = arith.constant 0 : index
    %703 = vector.load %arg15[%c2_668, %c2_669, %c0_670] : memref<6x6x64xf32, #tpu.memory_space<vmem>>, vector<4x4x64xf32>
    %c8_671 = arith.constant 8 : index
    %c0_672 = arith.constant 0 : index
    %704 = vector.load %arg8[%c8_671, %c0_672] : memref<9x64xf32, #tpu.memory_space<vmem>>, vector<1x64xf32>
    %705 = vector.shape_cast %704 : vector<1x64xf32> to vector<1x1x64xf32>
    %706 = vector.broadcast %705 : vector<1x1x64xf32> to vector<4x4x64xf32>
    %707 = arith.mulf %703, %706 : vector<4x4x64xf32>
    %708 = arith.addf %702, %707 : vector<4x4x64xf32>
    %c0_673 = arith.constant 0 : index
    %c0_674 = arith.constant 0 : index
    %709 = vector.load %arg9[%c0_673, %c0_674] : memref<1x64xf32, #tpu.memory_space<vmem>>, vector<1x64xf32>
    %710 = vector.shape_cast %709 : vector<1x64xf32> to vector<1x1x64xf32>
    %711 = vector.broadcast %710 : vector<1x1x64xf32> to vector<4x4x64xf32>
    %712 = arith.addf %708, %711 : vector<4x4x64xf32>
    %cst_675 = arith.constant dense<0.000000e+00> : vector<4x64xf32>
    %713 = vector.multi_reduction <add>, %712, %cst_675 [1] : vector<4x4x64xf32> to vector<4x64xf32>
    %714 = vector.shape_cast %713 : vector<4x64xf32> to vector<4x1x64xf32>
    %cst_676 = arith.constant dense<0.000000e+00> : vector<1x64xf32>
    %715 = vector.multi_reduction <add>, %714, %cst_676 [0] : vector<4x1x64xf32> to vector<1x64xf32>
    %716 = vector.shape_cast %715 : vector<1x64xf32> to vector<1x1x64xf32>
    %cst_677 = arith.constant 6.250000e-02 : f32
    %717 = vector.broadcast %cst_677 : f32 to vector<1x1x64xf32>
    %718 = arith.mulf %716, %717 : vector<1x1x64xf32>
    %719 = vector.broadcast %718 : vector<1x1x64xf32> to vector<4x4x64xf32>
    %720 = arith.subf %712, %719 : vector<4x4x64xf32>
    %721 = arith.mulf %720, %720 : vector<4x4x64xf32>
    %cst_678 = arith.constant dense<0.000000e+00> : vector<4x64xf32>
    %722 = vector.multi_reduction <add>, %721, %cst_678 [1] : vector<4x4x64xf32> to vector<4x64xf32>
    %723 = vector.shape_cast %722 : vector<4x64xf32> to vector<4x1x64xf32>
    %cst_679 = arith.constant dense<0.000000e+00> : vector<1x64xf32>
    %724 = vector.multi_reduction <add>, %723, %cst_679 [0] : vector<4x1x64xf32> to vector<1x64xf32>
    %725 = vector.shape_cast %724 : vector<1x64xf32> to vector<1x1x64xf32>
    %cst_680 = arith.constant 6.250000e-02 : f32
    %726 = vector.broadcast %cst_680 : f32 to vector<1x1x64xf32>
    %727 = arith.mulf %725, %726 : vector<1x1x64xf32>
    %cst_681 = arith.constant 9.99999974E-6 : f32
    %728 = vector.broadcast %cst_681 : f32 to vector<1x1x64xf32>
    %729 = arith.addf %727, %728 : vector<1x1x64xf32>
    %730 = math.rsqrt %729 : vector<1x1x64xf32>
    %731 = vector.broadcast %730 : vector<1x1x64xf32> to vector<4x4x64xf32>
    %732 = arith.mulf %720, %731 : vector<4x4x64xf32>
    %c1_682 = arith.constant 1 : index
    %c1_683 = arith.constant 1 : index
    %c0_684 = arith.constant 0 : index
    %733 = vector.load %arg15[%c1_682, %c1_683, %c0_684] : memref<6x6x64xf32, #tpu.memory_space<vmem>>, vector<4x4x64xf32>
    %734 = arith.addf %732, %733 : vector<4x4x64xf32>
    %cst_685 = arith.constant 0.000000e+00 : bf16
    %735 = vector.broadcast %cst_685 : bf16 to vector<5x5x64xbf16>
    %c0_686 = arith.constant 0 : index
    %c0_687 = arith.constant 0 : index
    %c0_688 = arith.constant 0 : index
    %736 = vector.load %arg16[%c0_686, %c0_687, %c0_688] : memref<5x5x64xbf16, #tpu.memory_space<vmem>>, vector<5x5x64xbf16>
    tpu.vector_store %arg16[%c0_686, %c0_687, %c0_688], %735 {strides = array<i32>} : memref<5x5x64xbf16, #tpu.memory_space<vmem>>, vector<5x5x64xbf16>,
    %737 = arith.truncf %734 : vector<4x4x64xf32> to vector<4x4x64xbf16>
    %c0_689 = arith.constant 0 : index
    %c0_690 = arith.constant 0 : index
    %c0_691 = arith.constant 0 : index
    %738 = vector.load %arg16[%c0_689, %c0_690, %c0_691] : memref<5x5x64xbf16, #tpu.memory_space<vmem>>, vector<4x4x64xbf16>
    tpu.vector_store %arg16[%c0_689, %c0_690, %c0_691], %737 {strides = array<i32>} : memref<5x5x64xbf16, #tpu.memory_space<vmem>>, vector<4x4x64xbf16>,
    %cst_692 = arith.constant 0.000000e+00 : f32
    %739 = vector.broadcast %cst_692 : f32 to vector<16x32xf32>
    %c0_693 = arith.constant 0 : index
    %c0_694 = arith.constant 0 : index
    %c0_695 = arith.constant 0 : index
    %740 = vector.load %arg16[%c0_693, %c0_694, %c0_695] : memref<5x5x64xbf16, #tpu.memory_space<vmem>>, vector<4x4x64xbf16>
    %741 = vector.shape_cast %740 : vector<4x4x64xbf16> to vector<16x64xbf16>
    %c4_696 = arith.constant 4 : index
    %c0_697 = arith.constant 0 : index
    %c0_698 = arith.constant 0 : index
    %742 = vector.load %arg10[%c4_696, %c0_697, %c0_698] : memref<9x64x32xbf16, #tpu.memory_space<vmem>>, vector<1x64x32xbf16>
    %743 = vector.shape_cast %742 : vector<1x64x32xbf16> to vector<64x32xbf16>
    %cst_699 = arith.constant dense<0.000000e+00> : vector<16x32xf32>
    %744 = tpu.matmul %741, %743, %cst_699 {dimension_numbers = #tpu.dot_dimension_numbers<[1], [0], [0], [1], [0, 0, 1, 1], [], []>} : vector<16x64xbf16>, vector<64x32xbf16>, vector<16x32xf32> -> vector<16x32xf32>
    %745 = arith.addf %739, %744 : vector<16x32xf32>
    %c0_700 = arith.constant 0 : index
    %c0_701 = arith.constant 0 : index
    %746 = vector.load %arg11[%c0_700, %c0_701] : memref<1x32xf32, #tpu.memory_space<vmem>>, vector<1x32xf32>
    %747 = vector.broadcast %746 : vector<1x32xf32> to vector<16x32xf32>
    %748 = arith.addf %745, %747 : vector<16x32xf32>
    %c0_702 = arith.constant 0 : index
    %c0_703 = arith.constant 0 : index
    %c0_704 = arith.constant 0 : index
    %c0_705 = arith.constant 0 : index
    %c0_706 = arith.constant 0 : index
    %749 = vector.load %arg12[%c0_702, %c0_703, %c0_704, %c0_705, %c0_706] : memref<1x2x2x16x32xf32, #tpu.memory_space<vmem>>, vector<1x1x1x16x32xf32>
    %750 = vector.shape_cast %749 : vector<1x1x1x16x32xf32> to vector<16x32xf32>
    %751 = vector.shape_cast %748 : vector<16x32xf32> to vector<1x1x1x16x32xf32>
    tpu.vector_store %arg12[%c0_702, %c0_703, %c0_704, %c0_705, %c0_706], %751 {strides = array<i32>} : memref<1x2x2x16x32xf32, #tpu.memory_space<vmem>>, vector<1x1x1x16x32xf32>,
    %cst_707 = arith.constant 0.000000e+00 : f32
    %752 = vector.broadcast %cst_707 : f32 to vector<16x32xf32>
    %c0_708 = arith.constant 0 : index
    %c1_709 = arith.constant 1 : index
    %c0_710 = arith.constant 0 : index
    %753 = vector.load %arg16[%c0_708, %c1_709, %c0_710] : memref<5x5x64xbf16, #tpu.memory_space<vmem>>, vector<4x4x64xbf16>
    %754 = vector.shape_cast %753 : vector<4x4x64xbf16> to vector<16x64xbf16>
    %c3_711 = arith.constant 3 : index
    %c0_712 = arith.constant 0 : index
    %c0_713 = arith.constant 0 : index
    %755 = vector.load %arg10[%c3_711, %c0_712, %c0_713] : memref<9x64x32xbf16, #tpu.memory_space<vmem>>, vector<1x64x32xbf16>
    %756 = vector.shape_cast %755 : vector<1x64x32xbf16> to vector<64x32xbf16>
    %cst_714 = arith.constant dense<0.000000e+00> : vector<16x32xf32>
    %757 = tpu.matmul %754, %756, %cst_714 {dimension_numbers = #tpu.dot_dimension_numbers<[1], [0], [0], [1], [0, 0, 1, 1], [], []>} : vector<16x64xbf16>, vector<64x32xbf16>, vector<16x32xf32> -> vector<16x32xf32>
    %758 = arith.addf %752, %757 : vector<16x32xf32>
    %c0_715 = arith.constant 0 : index
    %c0_716 = arith.constant 0 : index
    %c0_717 = arith.constant 0 : index
    %759 = vector.load %arg16[%c0_715, %c0_716, %c0_717] : memref<5x5x64xbf16, #tpu.memory_space<vmem>>, vector<4x4x64xbf16>
    %760 = vector.shape_cast %759 : vector<4x4x64xbf16> to vector<16x64xbf16>
    %c5_718 = arith.constant 5 : index
    %c0_719 = arith.constant 0 : index
    %c0_720 = arith.constant 0 : index
    %761 = vector.load %arg10[%c5_718, %c0_719, %c0_720] : memref<9x64x32xbf16, #tpu.memory_space<vmem>>, vector<1x64x32xbf16>
    %762 = vector.shape_cast %761 : vector<1x64x32xbf16> to vector<64x32xbf16>
    %cst_721 = arith.constant dense<0.000000e+00> : vector<16x32xf32>
    %763 = tpu.matmul %760, %762, %cst_721 {dimension_numbers = #tpu.dot_dimension_numbers<[1], [0], [0], [1], [0, 0, 1, 1], [], []>} : vector<16x64xbf16>, vector<64x32xbf16>, vector<16x32xf32> -> vector<16x32xf32>
    %764 = arith.addf %758, %763 : vector<16x32xf32>
    %c0_722 = arith.constant 0 : index
    %c0_723 = arith.constant 0 : index
    %765 = vector.load %arg11[%c0_722, %c0_723] : memref<1x32xf32, #tpu.memory_space<vmem>>, vector<1x32xf32>
    %766 = vector.broadcast %765 : vector<1x32xf32> to vector<16x32xf32>
    %767 = arith.addf %764, %766 : vector<16x32xf32>
    %c0_724 = arith.constant 0 : index
    %c0_725 = arith.constant 0 : index
    %c1_726 = arith.constant 1 : index
    %c0_727 = arith.constant 0 : index
    %c0_728 = arith.constant 0 : index
    %768 = vector.load %arg12[%c0_724, %c0_725, %c1_726, %c0_727, %c0_728] : memref<1x2x2x16x32xf32, #tpu.memory_space<vmem>>, vector<1x1x1x16x32xf32>
    %769 = vector.shape_cast %768 : vector<1x1x1x16x32xf32> to vector<16x32xf32>
    %770 = vector.shape_cast %767 : vector<16x32xf32> to vector<1x1x1x16x32xf32>
    tpu.vector_store %arg12[%c0_724, %c0_725, %c1_726, %c0_727, %c0_728], %770 {strides = array<i32>} : memref<1x2x2x16x32xf32, #tpu.memory_space<vmem>>, vector<1x1x1x16x32xf32>,
    %cst_729 = arith.constant 0.000000e+00 : f32
    %771 = vector.broadcast %cst_729 : f32 to vector<16x32xf32>
    %c1_730 = arith.constant 1 : index
    %c0_731 = arith.constant 0 : index
    %c0_732 = arith.constant 0 : index
    %772 = vector.load %arg16[%c1_730, %c0_731, %c0_732] : memref<5x5x64xbf16, #tpu.memory_space<vmem>>, vector<4x4x64xbf16>
    %773 = vector.shape_cast %772 : vector<4x4x64xbf16> to vector<16x64xbf16>
    %c1_733 = arith.constant 1 : index
    %c0_734 = arith.constant 0 : index
    %c0_735 = arith.constant 0 : index
    %774 = vector.load %arg10[%c1_733, %c0_734, %c0_735] : memref<9x64x32xbf16, #tpu.memory_space<vmem>>, vector<1x64x32xbf16>
    %775 = vector.shape_cast %774 : vector<1x64x32xbf16> to vector<64x32xbf16>
    %cst_736 = arith.constant dense<0.000000e+00> : vector<16x32xf32>
    %776 = tpu.matmul %773, %775, %cst_736 {dimension_numbers = #tpu.dot_dimension_numbers<[1], [0], [0], [1], [0, 0, 1, 1], [], []>} : vector<16x64xbf16>, vector<64x32xbf16>, vector<16x32xf32> -> vector<16x32xf32>
    %777 = arith.addf %771, %776 : vector<16x32xf32>
    %c0_737 = arith.constant 0 : index
    %c0_738 = arith.constant 0 : index
    %c0_739 = arith.constant 0 : index
    %778 = vector.load %arg16[%c0_737, %c0_738, %c0_739] : memref<5x5x64xbf16, #tpu.memory_space<vmem>>, vector<4x4x64xbf16>
    %779 = vector.shape_cast %778 : vector<4x4x64xbf16> to vector<16x64xbf16>
    %c7_740 = arith.constant 7 : index
    %c0_741 = arith.constant 0 : index
    %c0_742 = arith.constant 0 : index
    %780 = vector.load %arg10[%c7_740, %c0_741, %c0_742] : memref<9x64x32xbf16, #tpu.memory_space<vmem>>, vector<1x64x32xbf16>
    %781 = vector.shape_cast %780 : vector<1x64x32xbf16> to vector<64x32xbf16>
    %cst_743 = arith.constant dense<0.000000e+00> : vector<16x32xf32>
    %782 = tpu.matmul %779, %781, %cst_743 {dimension_numbers = #tpu.dot_dimension_numbers<[1], [0], [0], [1], [0, 0, 1, 1], [], []>} : vector<16x64xbf16>, vector<64x32xbf16>, vector<16x32xf32> -> vector<16x32xf32>
    %783 = arith.addf %777, %782 : vector<16x32xf32>
    %c0_744 = arith.constant 0 : index
    %c0_745 = arith.constant 0 : index
    %784 = vector.load %arg11[%c0_744, %c0_745] : memref<1x32xf32, #tpu.memory_space<vmem>>, vector<1x32xf32>
    %785 = vector.broadcast %784 : vector<1x32xf32> to vector<16x32xf32>
    %786 = arith.addf %783, %785 : vector<16x32xf32>
    %c0_746 = arith.constant 0 : index
    %c1_747 = arith.constant 1 : index
    %c0_748 = arith.constant 0 : index
    %c0_749 = arith.constant 0 : index
    %c0_750 = arith.constant 0 : index
    %787 = vector.load %arg12[%c0_746, %c1_747, %c0_748, %c0_749, %c0_750] : memref<1x2x2x16x32xf32, #tpu.memory_space<vmem>>, vector<1x1x1x16x32xf32>
    %788 = vector.shape_cast %787 : vector<1x1x1x16x32xf32> to vector<16x32xf32>
    %789 = vector.shape_cast %786 : vector<16x32xf32> to vector<1x1x1x16x32xf32>
    tpu.vector_store %arg12[%c0_746, %c1_747, %c0_748, %c0_749, %c0_750], %789 {strides = array<i32>} : memref<1x2x2x16x32xf32, #tpu.memory_space<vmem>>, vector<1x1x1x16x32xf32>,
    %cst_751 = arith.constant 0.000000e+00 : f32
    %790 = vector.broadcast %cst_751 : f32 to vector<16x32xf32>
    %c1_752 = arith.constant 1 : index
    %c1_753 = arith.constant 1 : index
    %c0_754 = arith.constant 0 : index
    %791 = vector.load %arg16[%c1_752, %c1_753, %c0_754] : memref<5x5x64xbf16, #tpu.memory_space<vmem>>, vector<4x4x64xbf16>
    %792 = vector.shape_cast %791 : vector<4x4x64xbf16> to vector<16x64xbf16>
    %c0_755 = arith.constant 0 : index
    %c0_756 = arith.constant 0 : index
    %c0_757 = arith.constant 0 : index
    %793 = vector.load %arg10[%c0_755, %c0_756, %c0_757] : memref<9x64x32xbf16, #tpu.memory_space<vmem>>, vector<1x64x32xbf16>
    %794 = vector.shape_cast %793 : vector<1x64x32xbf16> to vector<64x32xbf16>
    %cst_758 = arith.constant dense<0.000000e+00> : vector<16x32xf32>
    %795 = tpu.matmul %792, %794, %cst_758 {dimension_numbers = #tpu.dot_dimension_numbers<[1], [0], [0], [1], [0, 0, 1, 1], [], []>} : vector<16x64xbf16>, vector<64x32xbf16>, vector<16x32xf32> -> vector<16x32xf32>
    %796 = arith.addf %790, %795 : vector<16x32xf32>
    %c1_759 = arith.constant 1 : index
    %c0_760 = arith.constant 0 : index
    %c0_761 = arith.constant 0 : index
    %797 = vector.load %arg16[%c1_759, %c0_760, %c0_761] : memref<5x5x64xbf16, #tpu.memory_space<vmem>>, vector<4x4x64xbf16>
    %798 = vector.shape_cast %797 : vector<4x4x64xbf16> to vector<16x64xbf16>
    %c2_762 = arith.constant 2 : index
    %c0_763 = arith.constant 0 : index
    %c0_764 = arith.constant 0 : index
    %799 = vector.load %arg10[%c2_762, %c0_763, %c0_764] : memref<9x64x32xbf16, #tpu.memory_space<vmem>>, vector<1x64x32xbf16>
    %800 = vector.shape_cast %799 : vector<1x64x32xbf16> to vector<64x32xbf16>
    %cst_765 = arith.constant dense<0.000000e+00> : vector<16x32xf32>
    %801 = tpu.matmul %798, %800, %cst_765 {dimension_numbers = #tpu.dot_dimension_numbers<[1], [0], [0], [1], [0, 0, 1, 1], [], []>} : vector<16x64xbf16>, vector<64x32xbf16>, vector<16x32xf32> -> vector<16x32xf32>
    %802 = arith.addf %796, %801 : vector<16x32xf32>
    %c0_766 = arith.constant 0 : index
    %c1_767 = arith.constant 1 : index
    %c0_768 = arith.constant 0 : index
    %803 = vector.load %arg16[%c0_766, %c1_767, %c0_768] : memref<5x5x64xbf16, #tpu.memory_space<vmem>>, vector<4x4x64xbf16>
    %804 = vector.shape_cast %803 : vector<4x4x64xbf16> to vector<16x64xbf16>
    %c6_769 = arith.constant 6 : index
    %c0_770 = arith.constant 0 : index
    %c0_771 = arith.constant 0 : index
    %805 = vector.load %arg10[%c6_769, %c0_770, %c0_771] : memref<9x64x32xbf16, #tpu.memory_space<vmem>>, vector<1x64x32xbf16>
    %806 = vector.shape_cast %805 : vector<1x64x32xbf16> to vector<64x32xbf16>
    %cst_772 = arith.constant dense<0.000000e+00> : vector<16x32xf32>
    %807 = tpu.matmul %804, %806, %cst_772 {dimension_numbers = #tpu.dot_dimension_numbers<[1], [0], [0], [1], [0, 0, 1, 1], [], []>} : vector<16x64xbf16>, vector<64x32xbf16>, vector<16x32xf32> -> vector<16x32xf32>
    %808 = arith.addf %802, %807 : vector<16x32xf32>
    %c0_773 = arith.constant 0 : index
    %c0_774 = arith.constant 0 : index
    %c0_775 = arith.constant 0 : index
    %809 = vector.load %arg16[%c0_773, %c0_774, %c0_775] : memref<5x5x64xbf16, #tpu.memory_space<vmem>>, vector<4x4x64xbf16>
    %810 = vector.shape_cast %809 : vector<4x4x64xbf16> to vector<16x64xbf16>
    %c8_776 = arith.constant 8 : index
    %c0_777 = arith.constant 0 : index
    %c0_778 = arith.constant 0 : index
    %811 = vector.load %arg10[%c8_776, %c0_777, %c0_778] : memref<9x64x32xbf16, #tpu.memory_space<vmem>>, vector<1x64x32xbf16>
    %812 = vector.shape_cast %811 : vector<1x64x32xbf16> to vector<64x32xbf16>
    %cst_779 = arith.constant dense<0.000000e+00> : vector<16x32xf32>
    %813 = tpu.matmul %810, %812, %cst_779 {dimension_numbers = #tpu.dot_dimension_numbers<[1], [0], [0], [1], [0, 0, 1, 1], [], []>} : vector<16x64xbf16>, vector<64x32xbf16>, vector<16x32xf32> -> vector<16x32xf32>
    %814 = arith.addf %808, %813 : vector<16x32xf32>
    %c0_780 = arith.constant 0 : index
    %c0_781 = arith.constant 0 : index
    %815 = vector.load %arg11[%c0_780, %c0_781] : memref<1x32xf32, #tpu.memory_space<vmem>>, vector<1x32xf32>
    %816 = vector.broadcast %815 : vector<1x32xf32> to vector<16x32xf32>
    %817 = arith.addf %814, %816 : vector<16x32xf32>
    %c0_782 = arith.constant 0 : index
    %c1_783 = arith.constant 1 : index
    %c1_784 = arith.constant 1 : index
    %c0_785 = arith.constant 0 : index
    %c0_786 = arith.constant 0 : index
    %818 = vector.load %arg12[%c0_782, %c1_783, %c1_784, %c0_785, %c0_786] : memref<1x2x2x16x32xf32, #tpu.memory_space<vmem>>, vector<1x1x1x16x32xf32>
    %819 = vector.shape_cast %818 : vector<1x1x1x16x32xf32> to vector<16x32xf32>
    %820 = vector.shape_cast %817 : vector<16x32xf32> to vector<1x1x1x16x32xf32>
    tpu.vector_store %arg12[%c0_782, %c1_783, %c1_784, %c0_785, %c0_786], %820 {strides = array<i32>} : memref<1x2x2x16x32xf32, #tpu.memory_space<vmem>>, vector<1x1x1x16x32xf32>,
    return
  }
  func.func @transform_0(%arg0: i32) -> (i32, i32, i32) {
    %c0_i32 = arith.constant 0 : i32
    %c0_i32_0 = arith.constant 0 : i32
    %c0_i32_1 = arith.constant 0 : i32
    return %arg0, %c0_i32, %c0_i32_0 : i32, i32, i32
  }
  func.func @transform_1(%arg0: i32) -> (i32, i32) {
    %c0_i32 = arith.constant 0 : i32
    %c0_i32_0 = arith.constant 0 : i32
    %c0_i32_1 = arith.constant 0 : i32
    return %c0_i32, %c0_i32_0 : i32, i32
  }
  func.func @transform_2(%arg0: i32) -> (i32, i32) {
    %c0_i32 = arith.constant 0 : i32
    %c0_i32_0 = arith.constant 0 : i32
    %c0_i32_1 = arith.constant 0 : i32
    return %c0_i32, %c0_i32_0 : i32, i32
  }
  func.func @transform_3(%arg0: i32) -> (i32, i32, i32) {
    %c0_i32 = arith.constant 0 : i32
    %c0_i32_0 = arith.constant 0 : i32
    %c0_i32_1 = arith.constant 0 : i32
    %c0_i32_2 = arith.constant 0 : i32
    return %c0_i32, %c0_i32_0, %c0_i32_1 : i32, i32, i32
  }
  func.func @transform_4(%arg0: i32) -> (i32, i32) {
    %c0_i32 = arith.constant 0 : i32
    %c0_i32_0 = arith.constant 0 : i32
    %c0_i32_1 = arith.constant 0 : i32
    return %c0_i32, %c0_i32_0 : i32, i32
  }
  func.func @transform_5(%arg0: i32) -> (i32, i32, i32) {
    %c0_i32 = arith.constant 0 : i32
    %c0_i32_0 = arith.constant 0 : i32
    %c0_i32_1 = arith.constant 0 : i32
    %c0_i32_2 = arith.constant 0 : i32
    return %c0_i32, %c0_i32_0, %c0_i32_1 : i32, i32, i32
  }
  func.func @transform_6(%arg0: i32) -> (i32, i32) {
    %c0_i32 = arith.constant 0 : i32
    %c0_i32_0 = arith.constant 0 : i32
    %c0_i32_1 = arith.constant 0 : i32
    return %c0_i32, %c0_i32_0 : i32, i32
  }
  func.func @transform_7(%arg0: i32) -> (i32, i32) {
    %c0_i32 = arith.constant 0 : i32
    %c0_i32_0 = arith.constant 0 : i32
    %c0_i32_1 = arith.constant 0 : i32
    return %c0_i32, %c0_i32_0 : i32, i32
  }
  func.func @transform_8(%arg0: i32) -> (i32, i32) {
    %c0_i32 = arith.constant 0 : i32
    %c0_i32_0 = arith.constant 0 : i32
    %c0_i32_1 = arith.constant 0 : i32
    return %c0_i32, %c0_i32_0 : i32, i32
  }
  func.func @transform_9(%arg0: i32) -> (i32, i32, i32) {
    %c0_i32 = arith.constant 0 : i32
    %c0_i32_0 = arith.constant 0 : i32
    %c0_i32_1 = arith.constant 0 : i32
    %c0_i32_2 = arith.constant 0 : i32
    return %c0_i32, %c0_i32_0, %c0_i32_1 : i32, i32, i32
  }
  func.func @transform_10(%arg0: i32) -> (i32, i32) {
    %c0_i32 = arith.constant 0 : i32
    %c0_i32_0 = arith.constant 0 : i32
    %c0_i32_1 = arith.constant 0 : i32
    return %c0_i32, %c0_i32_0 : i32, i32
  }
  func.func @transform_11(%arg0: i32) -> (i32, i32, i32, i32, i32) {
    %c0_i32 = arith.constant 0 : i32
    %c0_i32_0 = arith.constant 0 : i32
    %c0_i32_1 = arith.constant 0 : i32
    %c0_i32_2 = arith.constant 0 : i32
    %c0_i32_3 = arith.constant 0 : i32
    return %arg0, %c0_i32, %c0_i32_0, %c0_i32_1, %c0_i32_2 : i32, i32, i32, i32, i32
  }
}

</mosaic_0001>

<llo_original>
// kernel: _lambda_.1
$region0: #{_lambda_.1}
  #allocation0 [shape = 'u32[]', space=smem, size = 0x4, offset = 0x4, fixed_abs, tag = 'smem constant byte address 0x4 - core index']
  #allocation1 [shape = 'u32[144,128]{1,0:T(1,128)}', space=vmem, size = 0x12000, scoped, tag = 'internal scratch']
  #allocation2 [shape = 'bf16[16,5,5,16]{3,2,1,0:T(8,128)(2,1)}', space=vmem, size = 0x28000, scoped, tag = 'scratch operand']
  #allocation3 [shape = 'bf16[4,5,5,64]{3,2,1,0:T(8,128)(2,1)}', space=vmem, size = 0xa000, scoped, tag = 'scratch operand']
  #allocation4 [shape = 'f32[6,6,64]{2,1,0:T(8,128)}', space=vmem, size = 0x6000, scoped, tag = 'scratch operand']
  #allocation5 [shape = 'bf16[5,5,64]{2,1,0:T(8,128)(2,1)}', space=vmem, size = 0x2800, scoped, tag = 'scratch operand']
  %s0 = inlined_call_operand.vmem [shape: bf16[2,256,256], index: 0, kind: input, shape index: {}]
  %s1 = inlined_call_operand.vmem [shape: bf16[256,16], index: 1, kind: input, shape index: {}]
  %s2 = inlined_call_operand.vmem [shape: f32[1,16], index: 2, kind: input, shape index: {}]
  %s3 = inlined_call_operand.vmem [shape: bf16[9,16,64], index: 3, kind: input, shape index: {}]
  %s4 = inlined_call_operand.vmem [shape: f32[1,64], index: 4, kind: input, shape index: {}]
  %s5 = inlined_call_operand.vmem [shape: bf16[9,64,64], index: 5, kind: input, shape index: {}]
  %s6 = inlined_call_operand.vmem [shape: f32[1,64], index: 6, kind: input, shape index: {}]
  %s7 = inlined_call_operand.vmem [shape: f32[9,64], index: 7, kind: input, shape index: {}]
  %s8 = inlined_call_operand.vmem [shape: f32[1,64], index: 8, kind: input, shape index: {}]
  %s9 = inlined_call_operand.vmem [shape: bf16[9,64,32], index: 9, kind: input, shape index: {}]
  %s10 = inlined_call_operand.vmem [shape: f32[1,32], index: 10, kind: input, shape index: {}]
  %s11 = inlined_call_operand.vmem [shape: f32[2,2,2,16,32], index: 11, kind: output, shape index: {}]
  %s12 = sld [smem:[#allocation0]]
  $region77: #{_lambda_.1} parent=0
    _
  %s14 = ssub.s32 1, %s12
  %s15 = scalar_select 0, %s14, %s12
  loop: start=0, step=1, limit=4
  $region2: #{_lambda_.1} parent=0 // loop_pre_header
    _
  $region3: #{_lambda_.1} parent=0 // loop_header
    %s17 = sphi 0, %s21
    %p18 = scmp.ge.s32.totalorder %s17, 4
    %s27 = sphi 0, %s29
    %s30 = sphi 0, %s27
    %s31 = sphi 0, %s30
    %s47 = sphi 0, %s31
    %s51 = sphi 0, %s51
    %s53 = sphi 0, %s51
    %s54 = sphi 0, %s53
    %s68 = sphi 0, %s54
    %s72 = sphi 0, %s72
    %s74 = sphi 0, %s72
    %s75 = sphi 0, %s74
    %s89 = sphi 0, %s75
    %s93 = sphi 0, %s93
    %s95 = sphi 0, %s93
    %s96 = sphi 0, %s95
    %s110 = sphi 0, %s96
    %s114 = sphi 0, %s114
    %s116 = sphi 0, %s114
    %s117 = sphi 0, %s116
    %s131 = sphi 0, %s117
    %s135 = sphi 0, %s135
    %s137 = sphi 0, %s135
    %s138 = sphi 0, %s137
    %s152 = sphi 0, %s138
    %s156 = sphi 0, %s156
    %s158 = sphi 0, %s156
    %s159 = sphi 0, %s158
    %s173 = sphi 0, %s159
    %s177 = sphi 0, %s177
    %s179 = sphi 0, %s177
    %s180 = sphi 0, %s179
    %s194 = sphi 0, %s180
    %s198 = sphi 0, %s198
    %s200 = sphi 0, %s198
    %s201 = sphi 0, %s200
    %s215 = sphi 0, %s201
    %s219 = sphi 0, %s219
    %s221 = sphi 0, %s219
    %s222 = sphi 0, %s221
    %s236 = sphi 0, %s222
    %s240 = sphi 0, %s240
    %s242 = sphi 0, %s240
    %s243 = sphi 0, %s242
    %s257 = sphi 0, %s243
    %s263 = sphi 0, %s265
    %s266 = sphi 0, %s263
    %s267 = sphi 0, %s266
    %s283 = sphi 0, %s267
  $region4: #{_lambda_.1} parent=0 // loop_header_branch
    %20 = sbr.rel (%p18) target = $region8
  $region5: #{_lambda_.1} parent=0 // loop_body
    %s22 = ssub.s32 %s17, 1
    %s23 = ssub.s32 %s17, 2
    %s24 = sadd.s32 %s17, 1
    %s25 = ssub.s32 %s17, %s24
    %p26 = scmp.eq.s32.totalorder %s25, 0
    %s28 = sadd.s32 %s27, 1
    %s29 = scalar_select %p26, %s27, %s28
    %p32 = pneg %p26
    %p33 = scmp.eq.s32.totalorder %s17, 1
    %p34 = por %p32, %p33
    %p35 = scmp.ne.s32.totalorder %s27, %s30
    %p36 = scmp.eq.s32.totalorder %s17, 0
    %p37 = por %p35, %p36
    %p38 = scmp.ne.s32.totalorder %s27, %s30
    %p39 = scmp.eq.s32.totalorder %s22, 1
    %p40 = por %p38, %p39
    %p41 = scmp.ne.s32.totalorder %s30, %s31
    %p42 = scmp.eq.s32.totalorder %s22, 0
    %p43 = por %p41, %p42
    %p44 = scmp.ne.s32.totalorder %s30, %s31
    %p45 = scmp.eq.s32.totalorder %s23, 1
    %p46 = por %p44, %p45
    %p48 = scmp.ne.s32.totalorder %s31, %s47
    %p49 = scmp.eq.s32.totalorder %s23, 0
    %p50 = por %p48, %p49
    %s52 = sadd.s32 %s51, 1
    %p55 = scmp.eq.s32.totalorder %s17, 1
    %p56 = scmp.ne.s32.totalorder %s51, %s53
    %p57 = scmp.eq.s32.totalorder %s17, 0
    %p58 = por %p56, %p57
    %p59 = scmp.ne.s32.totalorder %s51, %s53
    %p60 = scmp.eq.s32.totalorder %s22, 1
    %p61 = por %p59, %p60
    %p62 = scmp.ne.s32.totalorder %s53, %s54
    %p63 = scmp.eq.s32.totalorder %s22, 0
    %p64 = por %p62, %p63
    %p65 = scmp.ne.s32.totalorder %s53, %s54
    %p66 = scmp.eq.s32.totalorder %s23, 1
    %p67 = por %p65, %p66
    %p69 = scmp.ne.s32.totalorder %s54, %s68
    %p70 = scmp.eq.s32.totalorder %s23, 0
    %p71 = por %p69, %p70
    %s73 = sadd.s32 %s72, 1
    %p76 = scmp.eq.s32.totalorder %s17, 1
    %p77 = scmp.ne.s32.totalorder %s72, %s74
    %p78 = scmp.eq.s32.totalorder %s17, 0
    %p79 = por %p77, %p78
    %p80 = scmp.ne.s32.totalorder %s72, %s74
    %p81 = scmp.eq.s32.totalorder %s22, 1
    %p82 = por %p80, %p81
    %p83 = scmp.ne.s32.totalorder %s74, %s75
    %p84 = scmp.eq.s32.totalorder %s22, 0
    %p85 = por %p83, %p84
    %p86 = scmp.ne.s32.totalorder %s74, %s75
    %p87 = scmp.eq.s32.totalorder %s23, 1
    %p88 = por %p86, %p87
    %p90 = scmp.ne.s32.totalorder %s75, %s89
    %p91 = scmp.eq.s32.totalorder %s23, 0
    %p92 = por %p90, %p91
    %s94 = sadd.s32 %s93, 1
    %p97 = scmp.eq.s32.totalorder %s17, 1
    %p98 = scmp.ne.s32.totalorder %s93, %s95
    %p99 = scmp.eq.s32.totalorder %s17, 0
    %p100 = por %p98, %p99
    %p101 = scmp.ne.s32.totalorder %s93, %s95
    %p102 = scmp.eq.s32.totalorder %s22, 1
    %p103 = por %p101, %p102
    %p104 = scmp.ne.s32.totalorder %s95, %s96
    %p105 = scmp.eq.s32.totalorder %s22, 0
    %p106 = por %p104, %p105
    %p107 = scmp.ne.s32.totalorder %s95, %s96
    %p108 = scmp.eq.s32.totalorder %s23, 1
    %p109 = por %p107, %p108
    %p111 = scmp.ne.s32.totalorder %s96, %s110
    %p112 = scmp.eq.s32.totalorder %s23, 0
    %p113 = por %p111, %p112
    %s115 = sadd.s32 %s114, 1
    %p118 = scmp.eq.s32.totalorder %s17, 1
    %p119 = scmp.ne.s32.totalorder %s114, %s116
    %p120 = scmp.eq.s32.totalorder %s17, 0
    %p121 = por %p119, %p120
    %p122 = scmp.ne.s32.totalorder %s114, %s116
    %p123 = scmp.eq.s32.totalorder %s22, 1
    %p124 = por %p122, %p123
    %p125 = scmp.ne.s32.totalorder %s116, %s117
    %p126 = scmp.eq.s32.totalorder %s22, 0
    %p127 = por %p125, %p126
    %p128 = scmp.ne.s32.totalorder %s116, %s117
    %p129 = scmp.eq.s32.totalorder %s23, 1
    %p130 = por %p128, %p129
    %p132 = scmp.ne.s32.totalorder %s117, %s131
    %p133 = scmp.eq.s32.totalorder %s23, 0
    %p134 = por %p132, %p133
    %s136 = sadd.s32 %s135, 1
    %p139 = scmp.eq.s32.totalorder %s17, 1
    %p140 = scmp.ne.s32.totalorder %s135, %s137
    %p141 = scmp.eq.s32.totalorder %s17, 0
    %p142 = por %p140, %p141
    %p143 = scmp.ne.s32.totalorder %s135, %s137
    %p144 = scmp.eq.s32.totalorder %s22, 1
    %p145 = por %p143, %p144
    %p146 = scmp.ne.s32.totalorder %s137, %s138
    %p147 = scmp.eq.s32.totalorder %s22, 0
    %p148 = por %p146, %p147
    %p149 = scmp.ne.s32.totalorder %s137, %s138
    %p150 = scmp.eq.s32.totalorder %s23, 1
    %p151 = por %p149, %p150
    %p153 = scmp.ne.s32.totalorder %s138, %s152
    %p154 = scmp.eq.s32.totalorder %s23, 0
    %p155 = por %p153, %p154
    %s157 = sadd.s32 %s156, 1
    %p160 = scmp.eq.s32.totalorder %s17, 1
    %p161 = scmp.ne.s32.totalorder %s156, %s158
    %p162 = scmp.eq.s32.totalorder %s17, 0
    %p163 = por %p161, %p162
    %p164 = scmp.ne.s32.totalorder %s156, %s158
    %p165 = scmp.eq.s32.totalorder %s22, 1
    %p166 = por %p164, %p165
    %p167 = scmp.ne.s32.totalorder %s158, %s159
    %p168 = scmp.eq.s32.totalorder %s22, 0
    %p169 = por %p167, %p168
    %p170 = scmp.ne.s32.totalorder %s158, %s159
    %p171 = scmp.eq.s32.totalorder %s23, 1
    %p172 = por %p170, %p171
    %p174 = scmp.ne.s32.totalorder %s159, %s173
    %p175 = scmp.eq.s32.totalorder %s23, 0
    %p176 = por %p174, %p175
    %s178 = sadd.s32 %s177, 1
    %p181 = scmp.eq.s32.totalorder %s17, 1
    %p182 = scmp.ne.s32.totalorder %s177, %s179
    %p183 = scmp.eq.s32.totalorder %s17, 0
    %p184 = por %p182, %p183
    %p185 = scmp.ne.s32.totalorder %s177, %s179
    %p186 = scmp.eq.s32.totalorder %s22, 1
    %p187 = por %p185, %p186
    %p188 = scmp.ne.s32.totalorder %s179, %s180
    %p189 = scmp.eq.s32.totalorder %s22, 0
    %p190 = por %p188, %p189
    %p191 = scmp.ne.s32.totalorder %s179, %s180
    %p192 = scmp.eq.s32.totalorder %s23, 1
    %p193 = por %p191, %p192
    %p195 = scmp.ne.s32.totalorder %s180, %s194
    %p196 = scmp.eq.s32.totalorder %s23, 0
    %p197 = por %p195, %p196
    %s199 = sadd.s32 %s198, 1
    %p202 = scmp.eq.s32.totalorder %s17, 1
    %p203 = scmp.ne.s32.totalorder %s198, %s200
    %p204 = scmp.eq.s32.totalorder %s17, 0
    %p205 = por %p203, %p204
    %p206 = scmp.ne.s32.totalorder %s198, %s200
    %p207 = scmp.eq.s32.totalorder %s22, 1
    %p208 = por %p206, %p207
    %p209 = scmp.ne.s32.totalorder %s200, %s201
    %p210 = scmp.eq.s32.totalorder %s22, 0
    %p211 = por %p209, %p210
    %p212 = scmp.ne.s32.totalorder %s200, %s201
    %p213 = scmp.eq.s32.totalorder %s23, 1
    %p214 = por %p212, %p213
    %p216 = scmp.ne.s32.totalorder %s201, %s215
    %p217 = scmp.eq.s32.totalorder %s23, 0
    %p218 = por %p216, %p217
    %s220 = sadd.s32 %s219, 1
    %p223 = scmp.eq.s32.totalorder %s17, 1
    %p224 = scmp.ne.s32.totalorder %s219, %s221
    %p225 = scmp.eq.s32.totalorder %s17, 0
    %p226 = por %p224, %p225
    %p227 = scmp.ne.s32.totalorder %s219, %s221
    %p228 = scmp.eq.s32.totalorder %s22, 1
    %p229 = por %p227, %p228
    %p230 = scmp.ne.s32.totalorder %s221, %s222
    %p231 = scmp.eq.s32.totalorder %s22, 0
    %p232 = por %p230, %p231
    %p233 = scmp.ne.s32.totalorder %s221, %s222
    %p234 = scmp.eq.s32.totalorder %s23, 1
    %p235 = por %p233, %p234
    %p237 = scmp.ne.s32.totalorder %s222, %s236
    %p238 = scmp.eq.s32.totalorder %s23, 0
    %p239 = por %p237, %p238
    %s241 = sadd.s32 %s240, 1
    %p244 = scmp.eq.s32.totalorder %s17, 1
    %p245 = scmp.ne.s32.totalorder %s240, %s242
    %p246 = scmp.eq.s32.totalorder %s17, 0
    %p247 = por %p245, %p246
    %p248 = scmp.ne.s32.totalorder %s240, %s242
    %p249 = scmp.eq.s32.totalorder %s22, 1
    %p250 = por %p248, %p249
    %p251 = scmp.ne.s32.totalorder %s242, %s243
    %p252 = scmp.eq.s32.totalorder %s22, 0
    %p253 = por %p251, %p252
    %p254 = scmp.ne.s32.totalorder %s242, %s243
    %p255 = scmp.eq.s32.totalorder %s23, 1
    %p256 = por %p254, %p255
    %p258 = scmp.ne.s32.totalorder %s243, %s257
    %p259 = scmp.eq.s32.totalorder %s23, 0
    %p260 = por %p258, %p259
    %s261 = ssub.s32 %s17, %s24
    %p262 = scmp.eq.s32.totalorder %s261, 0
    %s264 = sadd.s32 %s263, 1
    %s265 = scalar_select %p262, %s263, %s264
    %p268 = pneg %p262
    %p269 = scmp.eq.s32.totalorder %s17, 1
    %p270 = por %p268, %p269
    %p271 = scmp.ne.s32.totalorder %s263, %s266
    %p272 = scmp.eq.s32.totalorder %s17, 0
    %p273 = por %p271, %p272
    %p274 = scmp.ne.s32.totalorder %s263, %s266
    %p275 = scmp.eq.s32.totalorder %s22, 1
    %p276 = por %p274, %p275
    %p277 = scmp.ne.s32.totalorder %s266, %s267
    %p278 = scmp.eq.s32.totalorder %s22, 0
    %p279 = por %p277, %p278
    %p280 = scmp.ne.s32.totalorder %s266, %s267
    %p281 = scmp.eq.s32.totalorder %s23, 1
    %p282 = por %p280, %p281
    %p284 = scmp.ne.s32.totalorder %s267, %s283
    %p285 = scmp.eq.s32.totalorder %s23, 0
    %p286 = por %p284, %p285
    %p287 = scmp.le.s32.totalorder 1, %s17
    %p288 = scmp.lt.s32.totalorder %s17, 3
    %p289 = pnand %p287, %p288
    %p290 = pneg %p289
    // Predicated region
    $region9: #{_lambda_.1} parent=5 // pred_check
      _
    $region10: #{_lambda_.1} parent=5 // pred_check_branch
      %292 = sbr.rel (%p289) target = $region12
    $region11: #{_lambda_.1} parent=5 // pred_region
      %s293 = ssub.s32 %s17, 1
      // Predicated region
      $region13: #{_lambda_.1} parent=11 // pred_check
        %p294 = pneg %p64
      $region14: #{_lambda_.1} parent=11 // pred_check_branch
        %296 = sbr.rel (%p294) target = $region16
      $region15: #{_lambda_.1} parent=11 // pred_region
        _
      $region16: #{_lambda_.1} parent=11 // pred_fallthru
        _
      // Predicated region
      $region17: #{_lambda_.1} parent=11 // pred_check
        %p297 = pneg %p85
      $region18: #{_lambda_.1} parent=11 // pred_check_branch
        %299 = sbr.rel (%p297) target = $region20
      $region19: #{_lambda_.1} parent=11 // pred_region
        _
      $region20: #{_lambda_.1} parent=11 // pred_fallthru
        _
      // Predicated region
      $region21: #{_lambda_.1} parent=11 // pred_check
        %p300 = pneg %p106
      $region22: #{_lambda_.1} parent=11 // pred_check_branch
        %302 = sbr.rel (%p300) target = $region24
      $region23: #{_lambda_.1} parent=11 // pred_region
        _
      $region24: #{_lambda_.1} parent=11 // pred_fallthru
        _
      // Predicated region
      $region25: #{_lambda_.1} parent=11 // pred_check
        %p303 = pneg %p127
      $region26: #{_lambda_.1} parent=11 // pred_check_branch
        %305 = sbr.rel (%p303) target = $region28
      $region27: #{_lambda_.1} parent=11 // pred_region
        _
      $region28: #{_lambda_.1} parent=11 // pred_fallthru
        _
      // Predicated region
      $region29: #{_lambda_.1} parent=11 // pred_check
        %p306 = pneg %p148
      $region30: #{_lambda_.1} parent=11 // pred_check_branch
        %308 = sbr.rel (%p306) target = $region32
      $region31: #{_lambda_.1} parent=11 // pred_region
        _
      $region32: #{_lambda_.1} parent=11 // pred_fallthru
        _
      // Predicated region
      $region33: #{_lambda_.1} parent=11 // pred_check
        %p309 = pneg %p169
      $region34: #{_lambda_.1} parent=11 // pred_check_branch
        %311 = sbr.rel (%p309) target = $region36
      $region35: #{_lambda_.1} parent=11 // pred_region
        _
      $region36: #{_lambda_.1} parent=11 // pred_fallthru
        _
      // Predicated region
      $region37: #{_lambda_.1} parent=11 // pred_check
        %p312 = pneg %p190
      $region38: #{_lambda_.1} parent=11 // pred_check_branch
        %314 = sbr.rel (%p312) target = $region40
      $region39: #{_lambda_.1} parent=11 // pred_region
        _
      $region40: #{_lambda_.1} parent=11 // pred_fallthru
        _
      // Predicated region
      $region41: #{_lambda_.1} parent=11 // pred_check
        %p315 = pneg %p211
      $region42: #{_lambda_.1} parent=11 // pred_check_branch
        %317 = sbr.rel (%p315) target = $region44
      $region43: #{_lambda_.1} parent=11 // pred_region
        _
      $region44: #{_lambda_.1} parent=11 // pred_fallthru
        _
      // Predicated region
      $region45: #{_lambda_.1} parent=11 // pred_check
        %p318 = pneg %p232
      $region46: #{_lambda_.1} parent=11 // pred_check_branch
        %320 = sbr.rel (%p318) target = $region48
      $region47: #{_lambda_.1} parent=11 // pred_region
        _
      $region48: #{_lambda_.1} parent=11 // pred_fallthru
        _
      // Predicated region
      $region49: #{_lambda_.1} parent=11 // pred_check
        %p321 = pneg %p253
      $region50: #{_lambda_.1} parent=11 // pred_check_branch
        %323 = sbr.rel (%p321) target = $region52
      $region51: #{_lambda_.1} parent=11 // pred_region
        _
      $region52: #{_lambda_.1} parent=11 // pred_fallthru
        _
    $region12: #{_lambda_.1} parent=5 // pred_fallthru
      _
    %p324 = scmp.lt.s32.totalorder %s17, 2
    // Predicated region
    $region53: #{_lambda_.1} parent=5 // pred_check
      %p325 = pneg %p324
    $region54: #{_lambda_.1} parent=5 // pred_check_branch
      %327 = sbr.rel (%p325) target = $region56
    $region55: #{_lambda_.1} parent=5 // pred_region
      // Predicated region
      $region57: #{_lambda_.1} parent=55 // pred_check
        %p328 = pneg %p37
      $region58: #{_lambda_.1} parent=55 // pred_check_branch
        %330 = sbr.rel (%p328) target = $region60
      $region59: #{_lambda_.1} parent=55 // pred_region
        %p331 = scmp.lt.s32.totalorder %s17, 1
        %s332 = scalar_select %p331, %s17, 1
        %s333 = smul.addr %s332, 64
        %s334 = smul.addr %s333, 4
        %s335 = scalar_lea.vmem %s0, %s334
      $region60: #{_lambda_.1} parent=55 // pred_fallthru
        _
    $region56: #{_lambda_.1} parent=5 // pred_fallthru
      _
    %p336 = scmp.le.s32.totalorder 1, %s17
    %p337 = scmp.lt.s32.totalorder %s17, 3
    %p338 = pnand %p336, %p337
    %p339 = pneg %p338
    // Predicated region
    $region61: #{_lambda_.1} parent=5 // pred_check
      _
    $region62: #{_lambda_.1} parent=5 // pred_check_branch
      %341 = sbr.rel (%p338) target = $region64
    $region63: #{_lambda_.1} parent=5 // pred_region
      %s342 = ssub.s32 %s17, 1
      %p343 = scmp.lt.s32.totalorder %s22, 1
      %s344 = scalar_select %p343, %s22, 1
      %s345 = smul.addr %s344, 64
      %s346 = smul.addr %s345, 4
      %s347 = scalar_lea.vmem %s0, %s346
      %p348 = pneg %p43
      %p349 = pneg %p40
      %p350 = pneg %p64
      %p351 = pneg %p61
      %p352 = pneg %p85
      %p353 = pneg %p82
      %p354 = pneg %p106
      %p355 = pneg %p103
      %p356 = pneg %p127
      %p357 = pneg %p124
      %p358 = pneg %p148
      %p359 = pneg %p145
      %p360 = pneg %p169
      %p361 = pneg %p166
      %p362 = pneg %p190
      %p363 = pneg %p187
      %p364 = pneg %p211
      %p365 = pneg %p208
      %p366 = pneg %p232
      %p367 = pneg %p229
      %p368 = pneg %p253
      %p369 = pneg %p250
      %p370 = pneg %p279
      %p371 = pneg %p276
      %p372 = scmp.lt.s32.totalorder %s22, 1
      %s373 = scalar_select %p372, %s22, 1
      %s374 = smul.addr %s373, 8
      %s375 = smul.addr %s374, 8
      %s376 = scalar_lea.vmem %s11, %s375
      %p377 = scmp.lt.s32.totalorder %s22, 1
      %s378 = scalar_select %p377, %s22, 1
      %s379 = smul.addr %s378, 64
      %s380 = smul.addr %s379, 4
      %s381 = scalar_lea.vmem %s0, %s380
      %p382 = scmp.lt.s32.totalorder %s22, 1
      %s383 = scalar_select %p382, %s22, 1
      %s384 = smul.addr %s383, 8
      %s385 = smul.addr %s384, 8
      %s386 = scalar_lea.vmem %s11, %s385
      %v388 = vld [vmem:[%s381] sm:$0xff]
      %v389 = vld [vmem:[%s381 + $0x8] sm:$0xff]
      %v390 = vld [vmem:[%s381 + $0x10] sm:$0xff]
      %v391 = vld [vmem:[%s381 + $0x18] sm:$0xff]
      %v392 = vld [vmem:[%s381 + $0x20] sm:$0xff]
      %v393 = vld [vmem:[%s381 + $0x28] sm:$0xff]
      %v394 = vld [vmem:[%s381 + $0x30] sm:$0xff]
      %v395 = vld [vmem:[%s381 + $0x38] sm:$0xff]
      %v396 = vld [vmem:[%s381 + $0x40] sm:$0xff]
      %v397 = vld [vmem:[%s381 + $0x48] sm:$0xff]
      %v398 = vld [vmem:[%s381 + $0x50] sm:$0xff]
      %v399 = vld [vmem:[%s381 + $0x58] sm:$0xff]
      %v400 = vld [vmem:[%s381 + $0x60] sm:$0xff]
      %v401 = vld [vmem:[%s381 + $0x68] sm:$0xff]
      %v402 = vld [vmem:[%s381 + $0x70] sm:$0xff]
      %v403 = vld [vmem:[%s381 + $0x78] sm:$0xff]
      %v404 = vld [vmem:[%s381 + $0x80] sm:$0xff]
      %v405 = vld [vmem:[%s381 + $0x88] sm:$0xff]
      %v406 = vld [vmem:[%s381 + $0x90] sm:$0xff]
      %v407 = vld [vmem:[%s381 + $0x98] sm:$0xff]
      %v408 = vld [vmem:[%s381 + $0xa0] sm:$0xff]
      %v409 = vld [vmem:[%s381 + $0xa8] sm:$0xff]
      %v410 = vld [vmem:[%s381 + $0xb0] sm:$0xff]
      %v411 = vld [vmem:[%s381 + $0xb8] sm:$0xff]
      %v412 = vld [vmem:[%s381 + $0xc0] sm:$0xff]
      %v413 = vld [vmem:[%s381 + $0xc8] sm:$0xff]
      %v414 = vld [vmem:[%s381 + $0xd0] sm:$0xff]
      %v415 = vld [vmem:[%s381 + $0xd8] sm:$0xff]
      %v416 = vld [vmem:[%s381 + $0xe0] sm:$0xff]
      %v417 = vld [vmem:[%s381 + $0xe8] sm:$0xff]
      %v418 = vld [vmem:[%s381 + $0xf0] sm:$0xff]
      %v419 = vld [vmem:[%s381 + $0xf8] sm:$0xff]
      %v420 = vld [vmem:[%s1] sm:$0xf]
      %v421 = vld [vmem:[%s1 + $0x4] sm:$0xf]
      %v422 = vld [vmem:[%s1 + $0x8] sm:$0xf]
      %v423 = vld [vmem:[%s1 + $0xc] sm:$0xf]
      %v424 = vld [vmem:[%s1 + $0x10] sm:$0xf]
      %v425 = vld [vmem:[%s1 + $0x14] sm:$0xf]
      %v426 = vld [vmem:[%s1 + $0x18] sm:$0xf]
      %v427 = vld [vmem:[%s1 + $0x1c] sm:$0xf]
      %v428 = vld [vmem:[%s1 + $0x20] sm:$0xf]
      %v429 = vld [vmem:[%s1 + $0x24] sm:$0xf]
      %v430 = vld [vmem:[%s1 + $0x28] sm:$0xf]
      %v431 = vld [vmem:[%s1 + $0x2c] sm:$0xf]
      %v432 = vld [vmem:[%s1 + $0x30] sm:$0xf]
      %v433 = vld [vmem:[%s1 + $0x34] sm:$0xf]
      %v434 = vld [vmem:[%s1 + $0x38] sm:$0xf]
      %v435 = vld [vmem:[%s1 + $0x3c] sm:$0xf]
      %v436 = vld [vmem:[%s1 + $0x40] sm:$0xf]
      %v437 = vld [vmem:[%s1 + $0x44] sm:$0xf]
      %v438 = vld [vmem:[%s1 + $0x48] sm:$0xf]
      %v439 = vld [vmem:[%s1 + $0x4c] sm:$0xf]
      %v440 = vld [vmem:[%s1 + $0x50] sm:$0xf]
      %v441 = vld [vmem:[%s1 + $0x54] sm:$0xf]
      %v442 = vld [vmem:[%s1 + $0x58] sm:$0xf]
      %v443 = vld [vmem:[%s1 + $0x5c] sm:$0xf]
      %v444 = vld [vmem:[%s1 + $0x60] sm:$0xf]
      %v445 = vld [vmem:[%s1 + $0x64] sm:$0xf]
      %v446 = vld [vmem:[%s1 + $0x68] sm:$0xf]
      %v447 = vld [vmem:[%s1 + $0x6c] sm:$0xf]
      %v448 = vld [vmem:[%s1 + $0x70] sm:$0xf]
      %v449 = vld [vmem:[%s1 + $0x74] sm:$0xf]
      %v450 = vld [vmem:[%s1 + $0x78] sm:$0xf]
      %v451 = vld [vmem:[%s1 + $0x7c] sm:$0xf]
      %v452 = vld [vmem:[%s2] sm:$0x1]
      %v454 = vlaneseq
      %v455 = vshrl.u32 %v454, 7
      %v456 = vsub.s32 0, %v455
      %v457 = vrot.slane %v452, %v456
      %v491 = vunpack.c.l.b16 %v388
      %v492 = vunpack.c.h.b16 %v388
      %v493 = vunpack.c.l.b16 %v389
      %v494 = vunpack.c.h.b16 %v389
      %v495 = vunpack.c.l.b16 %v390
      %v496 = vunpack.c.h.b16 %v390
      %v497 = vunpack.c.l.b16 %v391
      %v498 = vunpack.c.h.b16 %v391
      %v499 = vunpack.c.l.b16 %v392
      %v500 = vunpack.c.h.b16 %v392
      %v501 = vunpack.c.l.b16 %v393
      %v502 = vunpack.c.h.b16 %v393
      %v503 = vunpack.c.l.b16 %v394
      %v504 = vunpack.c.h.b16 %v394
      %v505 = vunpack.c.l.b16 %v395
      %v506 = vunpack.c.h.b16 %v395
      %v507 = vunpack.c.l.b16 %v396
      %v508 = vunpack.c.h.b16 %v396
      %v509 = vunpack.c.l.b16 %v397
      %v510 = vunpack.c.h.b16 %v397
      %v511 = vunpack.c.l.b16 %v398
      %v512 = vunpack.c.h.b16 %v398
      %v513 = vunpack.c.l.b16 %v399
      %v514 = vunpack.c.h.b16 %v399
      %v515 = vunpack.c.l.b16 %v400
      %v516 = vunpack.c.h.b16 %v400
      %v517 = vunpack.c.l.b16 %v401
      %v518 = vunpack.c.h.b16 %v401
      %v519 = vunpack.c.l.b16 %v402
      %v520 = vunpack.c.h.b16 %v402
      %v521 = vunpack.c.l.b16 %v403
      %v522 = vunpack.c.h.b16 %v403
      %v523 = vunpack.c.l.b16 %v404
      %v524 = vunpack.c.h.b16 %v404
      %v525 = vunpack.c.l.b16 %v405
      %v526 = vunpack.c.h.b16 %v405
      %v527 = vunpack.c.l.b16 %v406
      %v528 = vunpack.c.h.b16 %v406
      %v529 = vunpack.c.l.b16 %v407
      %v530 = vunpack.c.h.b16 %v407
      %v531 = vunpack.c.l.b16 %v408
      %v532 = vunpack.c.h.b16 %v408
      %v533 = vunpack.c.l.b16 %v409
      %v534 = vunpack.c.h.b16 %v409
      %v535 = vunpack.c.l.b16 %v410
      %v536 = vunpack.c.h.b16 %v410
      %v537 = vunpack.c.l.b16 %v411
      %v538 = vunpack.c.h.b16 %v411
      %v539 = vunpack.c.l.b16 %v412
      %v540 = vunpack.c.h.b16 %v412
      %v541 = vunpack.c.l.b16 %v413
      %v542 = vunpack.c.h.b16 %v413
      %v543 = vunpack.c.l.b16 %v414
      %v544 = vunpack.c.h.b16 %v414
      %v545 = vunpack.c.l.b16 %v415
      %v546 = vunpack.c.h.b16 %v415
      %v547 = vunpack.c.l.b16 %v416
      %v548 = vunpack.c.h.b16 %v416
      %v549 = vunpack.c.l.b16 %v417
      %v550 = vunpack.c.h.b16 %v417
      %v551 = vunpack.c.l.b16 %v418
      %v552 = vunpack.c.h.b16 %v418
      %v553 = vunpack.c.l.b16 %v419
      %v554 = vunpack.c.h.b16 %v419
      %v555 = vpack.c.b16 %v493, %v491
      %v556 = vpack.c.b16 %v494, %v492
      %v557 = vpack.c.b16 %v497, %v495
      %v558 = vpack.c.b16 %v498, %v496
      %v559 = vpack.c.b16 %v501, %v499
      %v560 = vpack.c.b16 %v502, %v500
      %v561 = vpack.c.b16 %v505, %v503
      %v562 = vpack.c.b16 %v506, %v504
      %v563 = vpack.c.b16 %v509, %v507
      %v564 = vpack.c.b16 %v510, %v508
      %v565 = vpack.c.b16 %v513, %v511
      %v566 = vpack.c.b16 %v514, %v512
      %v567 = vpack.c.b16 %v517, %v515
      %v568 = vpack.c.b16 %v518, %v516
      %v569 = vpack.c.b16 %v521, %v519
      %v570 = vpack.c.b16 %v522, %v520
      %v571 = vpack.c.b16 %v525, %v523
      %v572 = vpack.c.b16 %v526, %v524
      %v573 = vpack.c.b16 %v529, %v527
      %v574 = vpack.c.b16 %v530, %v528
      %v575 = vpack.c.b16 %v533, %v531
      %v576 = vpack.c.b16 %v534, %v532
      %v577 = vpack.c.b16 %v537, %v535
      %v578 = vpack.c.b16 %v538, %v536
      %v579 = vpack.c.b16 %v541, %v539
      %v580 = vpack.c.b16 %v542, %v540
      %v581 = vpack.c.b16 %v545, %v543
      %v582 = vpack.c.b16 %v546, %v544
      %v583 = vpack.c.b16 %v549, %v547
      %v584 = vpack.c.b16 %v550, %v548
      %v585 = vpack.c.b16 %v553, %v551
      %v586 = vpack.c.b16 %v554, %v552
      %v651 = vunpack.c.l.b16 %v420
      %v652 = vunpack.c.l.b16 %v421
      %v653 = vunpack.c.l.b16 %v422
      %v654 = vunpack.c.l.b16 %v423
      %v655 = vunpack.c.l.b16 %v424
      %v656 = vunpack.c.l.b16 %v425
      %v657 = vunpack.c.l.b16 %v426
      %v658 = vunpack.c.l.b16 %v427
      %v659 = vunpack.c.l.b16 %v428
      %v660 = vunpack.c.l.b16 %v429
      %v661 = vunpack.c.l.b16 %v430
      %v662 = vunpack.c.l.b16 %v431
      %v663 = vunpack.c.l.b16 %v432
      %v664 = vunpack.c.l.b16 %v433
      %v665 = vunpack.c.l.b16 %v434
      %v666 = vunpack.c.l.b16 %v435
      %v667 = vunpack.c.l.b16 %v436
      %v668 = vunpack.c.l.b16 %v437
      %v669 = vunpack.c.l.b16 %v438
      %v670 = vunpack.c.l.b16 %v439
      %v671 = vunpack.c.l.b16 %v440
      %v672 = vunpack.c.l.b16 %v441
      %v673 = vunpack.c.l.b16 %v442
      %v674 = vunpack.c.l.b16 %v443
      %v675 = vunpack.c.l.b16 %v444
      %v676 = vunpack.c.l.b16 %v445
      %v677 = vunpack.c.l.b16 %v446
      %v678 = vunpack.c.l.b16 %v447
      %v679 = vunpack.c.l.b16 %v448
      %v680 = vunpack.c.l.b16 %v449
      %v681 = vunpack.c.l.b16 %v450
      %v682 = vunpack.c.l.b16 %v451
      %v683 = vpack.c.b16 %v652, %v651
      %v684 = vpack.c.b16 %v654, %v653
      %v685 = vpack.c.b16 %v656, %v655
      %v686 = vpack.c.b16 %v658, %v657
      %v687 = vpack.c.b16 %v660, %v659
      %v688 = vpack.c.b16 %v662, %v661
      %v689 = vpack.c.b16 %v664, %v663
      %v690 = vpack.c.b16 %v666, %v665
      %v691 = vpack.c.b16 %v668, %v667
      %v692 = vpack.c.b16 %v670, %v669
      %v693 = vpack.c.b16 %v672, %v671
      %v694 = vpack.c.b16 %v674, %v673
      %v695 = vpack.c.b16 %v676, %v675
      %v696 = vpack.c.b16 %v678, %v677
      %v697 = vpack.c.b16 %v680, %v679
      %v698 = vpack.c.b16 %v682, %v681
      %715 = vmatprep.subr.bf16.mxu0 0
      %716 = vmatpush1.bf16.msra.mxu0 %v690
      %717 = vmatprep.subr.bf16.mxu0 0
      %718 = vmatpush1.bf16.msra.mxu0 %v689
      %719 = vmatprep.subr.bf16.mxu0 0
      %720 = vmatpush1.bf16.msra.mxu0 %v688
      %721 = vmatprep.subr.bf16.mxu0 0
      %722 = vmatpush1.bf16.msra.mxu0 %v687
      %723 = vmatprep.subr.bf16.mxu0 0
      %724 = vmatpush1.bf16.msra.mxu0 %v686
      %725 = vmatprep.subr.bf16.mxu0 0
      %726 = vmatpush1.bf16.msra.mxu0 %v685
      %727 = vmatprep.subr.bf16.mxu0 0
      %728 = vmatpush1.bf16.msra.mxu0 %v684
      %729 = vmatprep.subr.bf16.mxu0 0
      %730 = vmatpush1.bf16.msra.mxu0 %v683
      %731 = vmatprep.subr.bf16.mxu0 0
      %732 = vmatpush2.bf16.msra.mxu0 %v698
      %733 = vmatprep.subr.bf16.mxu0 0
      %734 = vmatpush2.bf16.msra.mxu0 %v697
      %735 = vmatprep.subr.bf16.mxu0 0
      %736 = vmatpush2.bf16.msra.mxu0 %v696
      %737 = vmatprep.subr.bf16.mxu0 0
      %738 = vmatpush2.bf16.msra.mxu0 %v695
      %739 = vmatprep.subr.bf16.mxu0 0
      %740 = vmatpush2.bf16.msra.mxu0 %v694
      %741 = vmatprep.subr.bf16.mxu0 0
      %742 = vmatpush2.bf16.msra.mxu0 %v693
      %743 = vmatprep.subr.bf16.mxu0 0
      %744 = vmatpush2.bf16.msra.mxu0 %v692
      %745 = vmatprep.subr.bf16.mxu0 0
      %746 = vmatpush2.bf16.msra.mxu0 %v691
      %747 = vmatprep.mubr.bf16.mxu0 %v556
      %748 = vmatmul.mubr.bf16.gmra.mxu0 %v555
      %v749 = vpop.f32.mrf.mxu0
      %v750 = vadd.f32 %v457, %v749
      %v751 = vpop.f32.mrf.mxu0
      %v752 = vpop.f32.mrf.mxu0
      %v753 = vadd.f32 %v457, %v752
      %v754 = vpop.f32.mrf.mxu0
      %755 = vmatprep.mubr.bf16.mxu0 %v558
      %756 = vmatmul.mubr.bf16.gmra.mxu0 %v557
      %v757 = vpop.f32.mrf.mxu0
      %v758 = vadd.f32 %v457, %v757
      %v759 = vpop.f32.mrf.mxu0
      %v760 = vpop.f32.mrf.mxu0
      %v761 = vadd.f32 %v457, %v760
      %v762 = vpop.f32.mrf.mxu0
      %763 = vmatprep.mubr.bf16.mxu0 %v560
      %764 = vmatmul.mubr.bf16.gmra.mxu0 %v559
      %v765 = vpop.f32.mrf.mxu0
      %v766 = vadd.f32 %v457, %v765
      %v767 = vpop.f32.mrf.mxu0
      %v768 = vpop.f32.mrf.mxu0
      %v769 = vadd.f32 %v457, %v768
      %v770 = vpop.f32.mrf.mxu0
      %771 = vmatprep.mubr.bf16.mxu0 %v562
      %772 = vmatmul.mubr.bf16.gmra.mxu0 %v561
      %v773 = vpop.f32.mrf.mxu0
      %v774 = vadd.f32 %v457, %v773
      %v775 = vpop.f32.mrf.mxu0
      %v776 = vpop.f32.mrf.mxu0
      %v777 = vadd.f32 %v457, %v776
      %v778 = vpop.f32.mrf.mxu0
      %779 = vmatprep.mubr.bf16.mxu0 %v564
      %780 = vmatmul.mubr.bf16.gmra.mxu0 %v563
      %v781 = vpop.f32.mrf.mxu0
      %v782 = vadd.f32 %v457, %v781
      %v783 = vpop.f32.mrf.mxu0
      %v784 = vpop.f32.mrf.mxu0
      %v785 = vadd.f32 %v457, %v784
      %v786 = vpop.f32.mrf.mxu0
      %787 = vmatprep.mubr.bf16.mxu0 %v566
      %788 = vmatmul.mubr.bf16.gmra.mxu0 %v565
      %v789 = vpop.f32.mrf.mxu0
      %v790 = vadd.f32 %v457, %v789
      %v791 = vpop.f32.mrf.mxu0
      %v792 = vpop.f32.mrf.mxu0
      %v793 = vadd.f32 %v457, %v792
      %v794 = vpop.f32.mrf.mxu0
      %795 = vmatprep.mubr.bf16.mxu0 %v568
      %796 = vmatmul.mubr.bf16.gmra.mxu0 %v567
      %v797 = vpop.f32.mrf.mxu0
      %v798 = vadd.f32 %v457, %v797
      %v799 = vpop.f32.mrf.mxu0
      %v800 = vpop.f32.mrf.mxu0
      %v801 = vadd.f32 %v457, %v800
      %v802 = vpop.f32.mrf.mxu0
      %803 = vmatprep.mubr.bf16.mxu0 %v570
      %804 = vmatmul.mubr.bf16.gmra.mxu0 %v569
      %v805 = vpop.f32.mrf.mxu0
      %v806 = vadd.f32 %v457, %v805
      %v807 = vpop.f32.mrf.mxu0
      %v808 = vpop.f32.mrf.mxu0
      %v809 = vadd.f32 %v457, %v808
      %v810 = vpop.f32.mrf.mxu0
      %811 = vmatprep.mubr.bf16.mxu0 %v572
      %812 = vmatmul.mubr.bf16.gmra.mxu0 %v571
      %v813 = vpop.f32.mrf.mxu0
      %v814 = vadd.f32 %v457, %v813
      %v815 = vpop.f32.mrf.mxu0
      %v816 = vpop.f32.mrf.mxu0
      %v817 = vadd.f32 %v457, %v816
      %v818 = vpop.f32.mrf.mxu0
      %819 = vmatprep.mubr.bf16.mxu0 %v574
      %820 = vmatmul.mubr.bf16.gmra.mxu0 %v573
      %v821 = vpop.f32.mrf.mxu0
      %v822 = vadd.f32 %v457, %v821
      %v823 = vpop.f32.mrf.mxu0
      %v824 = vpop.f32.mrf.mxu0
      %v825 = vadd.f32 %v457, %v824
      %v826 = vpop.f32.mrf.mxu0
      %827 = vmatprep.mubr.bf16.mxu0 %v576
      %828 = vmatmul.mubr.bf16.gmra.mxu0 %v575
      %v829 = vpop.f32.mrf.mxu0
      %v830 = vadd.f32 %v457, %v829
      %v831 = vpop.f32.mrf.mxu0
      %v832 = vpop.f32.mrf.mxu0
      %v833 = vadd.f32 %v457, %v832
      %v834 = vpop.f32.mrf.mxu0
      %835 = vmatprep.mubr.bf16.mxu0 %v578
      %836 = vmatmul.mubr.bf16.gmra.mxu0 %v577
      %v837 = vpop.f32.mrf.mxu0
      %v838 = vadd.f32 %v457, %v837
      %v839 = vpop.f32.mrf.mxu0
      %v840 = vpop.f32.mrf.mxu0
      %v841 = vadd.f32 %v457, %v840
      %v842 = vpop.f32.mrf.mxu0
      %843 = vmatprep.mubr.bf16.mxu0 %v580
      %844 = vmatmul.mubr.bf16.gmra.mxu0 %v579
      %v845 = vpop.f32.mrf.mxu0
      %v846 = vadd.f32 %v457, %v845
      %v847 = vpop.f32.mrf.mxu0
      %v848 = vpop.f32.mrf.mxu0
      %v849 = vadd.f32 %v457, %v848
      %v850 = vpop.f32.mrf.mxu0
      %851 = vmatprep.mubr.bf16.mxu0 %v582
      %852 = vmatmul.mubr.bf16.gmra.mxu0 %v581
      %v853 = vpop.f32.mrf.mxu0
      %v854 = vadd.f32 %v457, %v853
      %v855 = vpop.f32.mrf.mxu0
      %v856 = vpop.f32.mrf.mxu0
      %v857 = vadd.f32 %v457, %v856
      %v858 = vpop.f32.mrf.mxu0
      %859 = vmatprep.mubr.bf16.mxu0 %v584
      %860 = vmatmul.mubr.bf16.gmra.mxu0 %v583
      %v861 = vpop.f32.mrf.mxu0
      %v862 = vadd.f32 %v457, %v861
      %v863 = vpop.f32.mrf.mxu0
      %v864 = vpop.f32.mrf.mxu0
      %v865 = vadd.f32 %v457, %v864
      %v866 = vpop.f32.mrf.mxu0
      %867 = vmatprep.mubr.bf16.mxu0 %v586
      %868 = vmatmul.mubr.bf16.gmra.mxu0 %v585
      %v869 = vpop.f32.mrf.mxu0
      %v870 = vadd.f32 %v457, %v869
      %v871 = vpop.f32.mrf.mxu0
      %v872 = vpop.f32.mrf.mxu0
      %v873 = vadd.f32 %v457, %v872
      %v874 = vpop.f32.mrf.mxu0
      %875 = vdwg.mxu0
      %vm876 = vcmask 130048
      %v877 = vsel %vm876, %v750, 0.0
      %v878 = vsel %vm876, %v753, 0.0
      %v879 = vadd.f32 %v877, %v878
      %v880 = vsel %vm876, %v758, 0.0
      %v881 = vadd.f32 %v879, %v880
      %v882 = vsel %vm876, %v761, 0.0
      %v883 = vadd.f32 %v881, %v882
      %v884 = vsel %vm876, %v766, 0.0
      %v885 = vadd.f32 %v883, %v884
      %v886 = vsel %vm876, %v769, 0.0
      %v887 = vadd.f32 %v885, %v886
      %v888 = vsel %vm876, %v774, 0.0
      %v889 = vadd.f32 %v887, %v888
      %v890 = vsel %vm876, %v777, 0.0
      %v891 = vadd.f32 %v889, %v890
      %v892 = vsel %vm876, %v782, 0.0
      %v893 = vadd.f32 %v891, %v892
      %v894 = vsel %vm876, %v785, 0.0
      %v895 = vadd.f32 %v893, %v894
      %v896 = vsel %vm876, %v790, 0.0
      %v897 = vadd.f32 %v895, %v896
      %v898 = vsel %vm876, %v793, 0.0
      %v899 = vadd.f32 %v897, %v898
      %v900 = vsel %vm876, %v798, 0.0
      %v901 = vadd.f32 %v899, %v900
      %v902 = vsel %vm876, %v801, 0.0
      %v903 = vadd.f32 %v901, %v902
      %v904 = vsel %vm876, %v806, 0.0
      %v905 = vadd.f32 %v903, %v904
      %v906 = vsel %vm876, %v809, 0.0
      %v907 = vadd.f32 %v905, %v906
      %v908 = vsel %vm876, %v814, 0.0
      %v909 = vadd.f32 %v907, %v908
      %v910 = vsel %vm876, %v817, 0.0
      %v911 = vadd.f32 %v909, %v910
      %v912 = vsel %vm876, %v822, 0.0
      %v913 = vadd.f32 %v911, %v912
      %v914 = vsel %vm876, %v825, 0.0
      %v915 = vadd.f32 %v913, %v914
      %v916 = vsel %vm876, %v830, 0.0
      %v917 = vadd.f32 %v915, %v916
      %v918 = vsel %vm876, %v833, 0.0
      %v919 = vadd.f32 %v917, %v918
      %v920 = vsel %vm876, %v838, 0.0
      %v921 = vadd.f32 %v919, %v920
      %v922 = vsel %vm876, %v841, 0.0
      %v923 = vadd.f32 %v921, %v922
      %v924 = vsel %vm876, %v846, 0.0
      %v925 = vadd.f32 %v923, %v924
      %v926 = vsel %vm876, %v849, 0.0
      %v927 = vadd.f32 %v925, %v926
      %v928 = vsel %vm876, %v854, 0.0
      %v929 = vadd.f32 %v927, %v928
      %v930 = vsel %vm876, %v857, 0.0
      %v931 = vadd.f32 %v929, %v930
      %v932 = vsel %vm876, %v862, 0.0
      %v933 = vadd.f32 %v931, %v932
      %v934 = vsel %vm876, %v865, 0.0
      %v935 = vadd.f32 %v933, %v934
      %v936 = vsel %vm876, %v870, 0.0
      %v937 = vadd.f32 %v935, %v936
      %v938 = vsel %vm876, %v873, 0.0
      %v939 = vadd.f32 %v937, %v938
      %v940 = vrot.slane %v939, 4
      %v941 = vadd.f32 %v939, %v940
      %v942 = vrot.slane %v941, 2
      %v943 = vadd.f32 %v941, %v942
      %v944 = vrot.slane %v943, 1
      %v945 = vadd.f32 %v943, %v944
      %v946 = vmul.f32 %v945, 0.00390625
      %v947 = vsub.f32 %v750, %v946
      %v948 = vsub.f32 %v753, %v946
      %v949 = vsub.f32 %v758, %v946
      %v950 = vsub.f32 %v761, %v946
      %v951 = vsub.f32 %v766, %v946
      %v952 = vsub.f32 %v769, %v946
      %v953 = vsub.f32 %v774, %v946
      %v954 = vsub.f32 %v777, %v946
      %v955 = vsub.f32 %v782, %v946
      %v956 = vsub.f32 %v785, %v946
      %v957 = vsub.f32 %v790, %v946
      %v958 = vsub.f32 %v793, %v946
      %v959 = vsub.f32 %v798, %v946
      %v960 = vsub.f32 %v801, %v946
      %v961 = vsub.f32 %v806, %v946
      %v962 = vsub.f32 %v809, %v946
      %v963 = vsub.f32 %v814, %v946
      %v964 = vsub.f32 %v817, %v946
      %v965 = vsub.f32 %v822, %v946
      %v966 = vsub.f32 %v825, %v946
      %v967 = vsub.f32 %v830, %v946
      %v968 = vsub.f32 %v833, %v946
      %v969 = vsub.f32 %v838, %v946
      %v970 = vsub.f32 %v841, %v946
      %v971 = vsub.f32 %v846, %v946
      %v972 = vsub.f32 %v849, %v946
      %v973 = vsub.f32 %v854, %v946
      %v974 = vsub.f32 %v857, %v946
      %v975 = vsub.f32 %v862, %v946
      %v976 = vsub.f32 %v865, %v946
      %v977 = vsub.f32 %v870, %v946
      %v978 = vsub.f32 %v873, %v946
      %v979 = vmul.f32 %v947, %v947
      %v980 = vmul.f32 %v948, %v948
      %v981 = vmul.f32 %v949, %v949
      %v982 = vmul.f32 %v950, %v950
      %v983 = vmul.f32 %v951, %v951
      %v984 = vmul.f32 %v952, %v952
      %v985 = vmul.f32 %v953, %v953
      %v986 = vmul.f32 %v954, %v954
      %v987 = vmul.f32 %v955, %v955
      %v988 = vmul.f32 %v956, %v956
      %v989 = vmul.f32 %v957, %v957
      %v990 = vmul.f32 %v958, %v958
      %v991 = vmul.f32 %v959, %v959
      %v992 = vmul.f32 %v960, %v960
      %v993 = vmul.f32 %v961, %v961
      %v994 = vmul.f32 %v962, %v962
      %v995 = vmul.f32 %v963, %v963
      %v996 = vmul.f32 %v964, %v964
      %v997 = vmul.f32 %v965, %v965
      %v998 = vmul.f32 %v966, %v966
      %v999 = vmul.f32 %v967, %v967
      %v1000 = vmul.f32 %v968, %v968
      %v1001 = vmul.f32 %v969, %v969
      %v1002 = vmul.f32 %v970, %v970
      %v1003 = vmul.f32 %v971, %v971
      %v1004 = vmul.f32 %v972, %v972
      %v1005 = vmul.f32 %v973, %v973
      %v1006 = vmul.f32 %v974, %v974
      %v1007 = vmul.f32 %v975, %v975
      %v1008 = vmul.f32 %v976, %v976
      %v1009 = vmul.f32 %v977, %v977
      %v1010 = vmul.f32 %v978, %v978
      %v1011 = vsel %vm876, %v979, 0.0
      %v1012 = vsel %vm876, %v980, 0.0
      %v1013 = vadd.f32 %v1011, %v1012
      %v1014 = vsel %vm876, %v981, 0.0
      %v1015 = vadd.f32 %v1013, %v1014
      %v1016 = vsel %vm876, %v982, 0.0
      %v1017 = vadd.f32 %v1015, %v1016
      %v1018 = vsel %vm876, %v983, 0.0
      %v1019 = vadd.f32 %v1017, %v1018
      %v1020 = vsel %vm876, %v984, 0.0
      %v1021 = vadd.f32 %v1019, %v1020
      %v1022 = vsel %vm876, %v985, 0.0
      %v1023 = vadd.f32 %v1021, %v1022
      %v1024 = vsel %vm876, %v986, 0.0
      %v1025 = vadd.f32 %v1023, %v1024
      %v1026 = vsel %vm876, %v987, 0.0
      %v1027 = vadd.f32 %v1025, %v1026
      %v1028 = vsel %vm876, %v988, 0.0
      %v1029 = vadd.f32 %v1027, %v1028
      %v1030 = vsel %vm876, %v989, 0.0
      %v1031 = vadd.f32 %v1029, %v1030
      %v1032 = vsel %vm876, %v990, 0.0
      %v1033 = vadd.f32 %v1031, %v1032
      %v1034 = vsel %vm876, %v991, 0.0
      %v1035 = vadd.f32 %v1033, %v1034
      %v1036 = vsel %vm876, %v992, 0.0
      %v1037 = vadd.f32 %v1035, %v1036
      %v1038 = vsel %vm876, %v993, 0.0
      %v1039 = vadd.f32 %v1037, %v1038
      %v1040 = vsel %vm876, %v994, 0.0
      %v1041 = vadd.f32 %v1039, %v1040
      %v1042 = vsel %vm876, %v995, 0.0
      %v1043 = vadd.f32 %v1041, %v1042
      %v1044 = vsel %vm876, %v996, 0.0
      %v1045 = vadd.f32 %v1043, %v1044
      %v1046 = vsel %vm876, %v997, 0.0
      %v1047 = vadd.f32 %v1045, %v1046
      %v1048 = vsel %vm876, %v998, 0.0
      %v1049 = vadd.f32 %v1047, %v1048
      %v1050 = vsel %vm876, %v999, 0.0
      %v1051 = vadd.f32 %v1049, %v1050
      %v1052 = vsel %vm876, %v1000, 0.0
      %v1053 = vadd.f32 %v1051, %v1052
      %v1054 = vsel %vm876, %v1001, 0.0
      %v1055 = vadd.f32 %v1053, %v1054
      %v1056 = vsel %vm876, %v1002, 0.0
      %v1057 = vadd.f32 %v1055, %v1056
      %v1058 = vsel %vm876, %v1003, 0.0
      %v1059 = vadd.f32 %v1057, %v1058
      %v1060 = vsel %vm876, %v1004, 0.0
      %v1061 = vadd.f32 %v1059, %v1060
      %v1062 = vsel %vm876, %v1005, 0.0
      %v1063 = vadd.f32 %v1061, %v1062
      %v1064 = vsel %vm876, %v1006, 0.0
      %v1065 = vadd.f32 %v1063, %v1064
      %v1066 = vsel %vm876, %v1007, 0.0
      %v1067 = vadd.f32 %v1065, %v1066
      %v1068 = vsel %vm876, %v1008, 0.0
      %v1069 = vadd.f32 %v1067, %v1068
      %v1070 = vsel %vm876, %v1009, 0.0
      %v1071 = vadd.f32 %v1069, %v1070
      %v1072 = vsel %vm876, %v1010, 0.0
      %v1073 = vadd.f32 %v1071, %v1072
      %v1074 = vrot.slane %v1073, 4
      %v1075 = vadd.f32 %v1073, %v1074
      %v1076 = vrot.slane %v1075, 2
      %v1077 = vadd.f32 %v1075, %v1076
      %v1078 = vrot.slane %v1077, 1
      %v1079 = vadd.f32 %v1077, %v1078
      %v1080 = vmul.f32 %v1079, 0.00390625
      %v1081 = vadd.f32 %v1080, 1e-05
      %v1082 = vrsqrt.pop %v1081
      %v1083 = vmul.f32 %v947, %v1082
      %v1084 = vmul.f32 %v948, %v1082
      %v1085 = vmul.f32 %v949, %v1082
      %v1086 = vmul.f32 %v950, %v1082
      %v1087 = vmul.f32 %v951, %v1082
      %v1088 = vmul.f32 %v952, %v1082
      %v1089 = vmul.f32 %v953, %v1082
      %v1090 = vmul.f32 %v954, %v1082
      %v1091 = vmul.f32 %v955, %v1082
      %v1092 = vmul.f32 %v956, %v1082
      %v1093 = vmul.f32 %v957, %v1082
      %v1094 = vmul.f32 %v958, %v1082
      %v1095 = vmul.f32 %v959, %v1082
      %v1096 = vmul.f32 %v960, %v1082
      %v1097 = vmul.f32 %v961, %v1082
      %v1098 = vmul.f32 %v962, %v1082
      %v1099 = vmul.f32 %v963, %v1082
      %v1100 = vmul.f32 %v964, %v1082
      %v1101 = vmul.f32 %v965, %v1082
      %v1102 = vmul.f32 %v966, %v1082
      %v1103 = vmul.f32 %v967, %v1082
      %v1104 = vmul.f32 %v968, %v1082
      %v1105 = vmul.f32 %v969, %v1082
      %v1106 = vmul.f32 %v970, %v1082
      %v1107 = vmul.f32 %v971, %v1082
      %v1108 = vmul.f32 %v972, %v1082
      %v1109 = vmul.f32 %v973, %v1082
      %v1110 = vmul.f32 %v974, %v1082
      %v1111 = vmul.f32 %v975, %v1082
      %v1112 = vmul.f32 %v976, %v1082
      %v1113 = vmul.f32 %v977, %v1082
      %v1114 = vmul.f32 %v978, %v1082
      %v1115 = vmax.f32 %v1083, 0.0
      %v1116 = vmax.f32 %v1084, 0.0
      %v1117 = vmax.f32 %v1085, 0.0
      %v1118 = vmax.f32 %v1086, 0.0
      %v1119 = vmax.f32 %v1087, 0.0
      %v1120 = vmax.f32 %v1088, 0.0
      %v1121 = vmax.f32 %v1089, 0.0
      %v1122 = vmax.f32 %v1090, 0.0
      %v1123 = vmax.f32 %v1091, 0.0
      %v1124 = vmax.f32 %v1092, 0.0
      %v1125 = vmax.f32 %v1093, 0.0
      %v1126 = vmax.f32 %v1094, 0.0
      %v1127 = vmax.f32 %v1095, 0.0
      %v1128 = vmax.f32 %v1096, 0.0
      %v1129 = vmax.f32 %v1097, 0.0
      %v1130 = vmax.f32 %v1098, 0.0
      %v1131 = vmax.f32 %v1099, 0.0
      %v1132 = vmax.f32 %v1100, 0.0
      %v1133 = vmax.f32 %v1101, 0.0
      %v1134 = vmax.f32 %v1102, 0.0
      %v1135 = vmax.f32 %v1103, 0.0
      %v1136 = vmax.f32 %v1104, 0.0
      %v1137 = vmax.f32 %v1105, 0.0
      %v1138 = vmax.f32 %v1106, 0.0
      %v1139 = vmax.f32 %v1107, 0.0
      %v1140 = vmax.f32 %v1108, 0.0
      %v1141 = vmax.f32 %v1109, 0.0
      %v1142 = vmax.f32 %v1110, 0.0
      %v1143 = vmax.f32 %v1111, 0.0
      %v1144 = vmax.f32 %v1112, 0.0
      %v1145 = vmax.f32 %v1113, 0.0
      %v1146 = vmax.f32 %v1114, 0.0
      %v1147 = vpack.c.bf16 %v1116, %v1115
      %v1148 = vpack.c.bf16 %v1118, %v1117
      %v1149 = vpack.c.bf16 %v1120, %v1119
      %v1150 = vpack.c.bf16 %v1122, %v1121
      %v1151 = vpack.c.bf16 %v1124, %v1123
      %v1152 = vpack.c.bf16 %v1126, %v1125
      %v1153 = vpack.c.bf16 %v1128, %v1127
      %v1154 = vpack.c.bf16 %v1130, %v1129
      %v1155 = vpack.c.bf16 %v1132, %v1131
      %v1156 = vpack.c.bf16 %v1134, %v1133
      %v1157 = vpack.c.bf16 %v1136, %v1135
      %v1158 = vpack.c.bf16 %v1138, %v1137
      %v1159 = vpack.c.bf16 %v1140, %v1139
      %v1160 = vpack.c.bf16 %v1142, %v1141
      %v1161 = vpack.c.bf16 %v1144, %v1143
      %v1162 = vpack.c.bf16 %v1146, %v1145
      %vm1163 = vcmask 124928
      %vm1164 = vsmask.f32 2304
      %vm1165 = vmand %vm1163, %vm1164
      %v1166 = vld [vmem:[#allocation2] sm:$0x7]
      %v1167 = vsel %vm1165, 0, %v1166
      %1168 = vst [vmem:[#allocation2] sm:$0x7] %v1167
      %v1169 = vld [vmem:[#allocation2 + $0x4] sm:$0x7]
      %v1170 = vsel %vm1165, 0, %v1169
      %1171 = vst [vmem:[#allocation2 + $0x4] sm:$0x7] %v1170
      %v1172 = vld [vmem:[#allocation2 + $0x8] sm:$0x7]
      %v1173 = vsel %vm1165, 0, %v1172
      %1174 = vst [vmem:[#allocation2 + $0x8] sm:$0x7] %v1173
      %v1175 = vld [vmem:[#allocation2 + $0xc] sm:$0x7]
      %v1176 = vsel %vm1165, 0, %v1175
      %1177 = vst [vmem:[#allocation2 + $0xc] sm:$0x7] %v1176
      %v1178 = vld [vmem:[#allocation2 + $0x10] sm:$0x7]
      %v1179 = vsel %vm1165, 0, %v1178
      %1180 = vst [vmem:[#allocation2 + $0x10] sm:$0x7] %v1179
      %v1181 = vld [vmem:[#allocation2 + $0x14] sm:$0x7]
      %v1182 = vsel %vm1165, 0, %v1181
      %1183 = vst [vmem:[#allocation2 + $0x14] sm:$0x7] %v1182
      %v1184 = vld [vmem:[#allocation2 + $0x18] sm:$0x7]
      %v1185 = vsel %vm1165, 0, %v1184
      %1186 = vst [vmem:[#allocation2 + $0x18] sm:$0x7] %v1185
      %v1187 = vld [vmem:[#allocation2 + $0x1c] sm:$0x7]
      %v1188 = vsel %vm1165, 0, %v1187
      %1189 = vst [vmem:[#allocation2 + $0x1c] sm:$0x7] %v1188
      %v1190 = vld [vmem:[#allocation2 + $0x20] sm:$0x7]
      %v1191 = vsel %vm1165, 0, %v1190
      %1192 = vst [vmem:[#allocation2 + $0x20] sm:$0x7] %v1191
      %v1193 = vld [vmem:[#allocation2 + $0x24] sm:$0x7]
      %v1194 = vsel %vm1165, 0, %v1193
      %1195 = vst [vmem:[#allocation2 + $0x24] sm:$0x7] %v1194
      %v1196 = vld [vmem:[#allocation2 + $0x28] sm:$0x7]
      %v1197 = vsel %vm1165, 0, %v1196
      %1198 = vst [vmem:[#allocation2 + $0x28] sm:$0x7] %v1197
      %v1199 = vld [vmem:[#allocation2 + $0x2c] sm:$0x7]
      %v1200 = vsel %vm1165, 0, %v1199
      %1201 = vst [vmem:[#allocation2 + $0x2c] sm:$0x7] %v1200
      %v1202 = vld [vmem:[#allocation2 + $0x30] sm:$0x7]
      %v1203 = vsel %vm1165, 0, %v1202
      %1204 = vst [vmem:[#allocation2 + $0x30] sm:$0x7] %v1203
      %v1205 = vld [vmem:[#allocation2 + $0x34] sm:$0x7]
      %v1206 = vsel %vm1165, 0, %v1205
      %1207 = vst [vmem:[#allocation2 + $0x34] sm:$0x7] %v1206
      %v1208 = vld [vmem:[#allocation2 + $0x38] sm:$0x7]
      %v1209 = vsel %vm1165, 0, %v1208
      %1210 = vst [vmem:[#allocation2 + $0x38] sm:$0x7] %v1209
      %v1211 = vld [vmem:[#allocation2 + $0x3c] sm:$0x7]
      %v1212 = vsel %vm1165, 0, %v1211
      %1213 = vst [vmem:[#allocation2 + $0x3c] sm:$0x7] %v1212
      %v1214 = vld [vmem:[#allocation2 + $0x40] sm:$0x7]
      %v1215 = vsel %vm1165, 0, %v1214
      %1216 = vst [vmem:[#allocation2 + $0x40] sm:$0x7] %v1215
      %v1217 = vld [vmem:[#allocation2 + $0x44] sm:$0x7]
      %v1218 = vsel %vm1165, 0, %v1217
      %1219 = vst [vmem:[#allocation2 + $0x44] sm:$0x7] %v1218
      %v1220 = vld [vmem:[#allocation2 + $0x48] sm:$0x7]
      %v1221 = vsel %vm1165, 0, %v1220
      %1222 = vst [vmem:[#allocation2 + $0x48] sm:$0x7] %v1221
      %v1223 = vld [vmem:[#allocation2 + $0x4c] sm:$0x7]
      %v1224 = vsel %vm1165, 0, %v1223
      %1225 = vst [vmem:[#allocation2 + $0x4c] sm:$0x7] %v1224
      %v1226 = vld [vmem:[#allocation2 + $0x50] sm:$0x7]
      %v1227 = vsel %vm1165, 0, %v1226
      %1228 = vst [vmem:[#allocation2 + $0x50] sm:$0x7] %v1227
      %v1229 = vld [vmem:[#allocation2 + $0x54] sm:$0x7]
      %v1230 = vsel %vm1165, 0, %v1229
      %1231 = vst [vmem:[#allocation2 + $0x54] sm:$0x7] %v1230
      %v1232 = vld [vmem:[#allocation2 + $0x58] sm:$0x7]
      %v1233 = vsel %vm1165, 0, %v1232
      %1234 = vst [vmem:[#allocation2 + $0x58] sm:$0x7] %v1233
      %v1235 = vld [vmem:[#allocation2 + $0x5c] sm:$0x7]
      %v1236 = vsel %vm1165, 0, %v1235
      %1237 = vst [vmem:[#allocation2 + $0x5c] sm:$0x7] %v1236
      %v1238 = vld [vmem:[#allocation2 + $0x60] sm:$0x7]
      %v1239 = vsel %vm1165, 0, %v1238
      %1240 = vst [vmem:[#allocation2 + $0x60] sm:$0x7] %v1239
      %v1241 = vld [vmem:[#allocation2 + $0x64] sm:$0x7]
      %v1242 = vsel %vm1165, 0, %v1241
      %1243 = vst [vmem:[#allocation2 + $0x64] sm:$0x7] %v1242
      %v1244 = vld [vmem:[#allocation2 + $0x68] sm:$0x7]
      %v1245 = vsel %vm1165, 0, %v1244
      %1246 = vst [vmem:[#allocation2 + $0x68] sm:$0x7] %v1245
      %v1247 = vld [vmem:[#allocation2 + $0x6c] sm:$0x7]
      %v1248 = vsel %vm1165, 0, %v1247
      %1249 = vst [vmem:[#allocation2 + $0x6c] sm:$0x7] %v1248
      %v1250 = vld [vmem:[#allocation2 + $0x70] sm:$0x7]
      %v1251 = vsel %vm1165, 0, %v1250
      %1252 = vst [vmem:[#allocation2 + $0x70] sm:$0x7] %v1251
      %v1253 = vld [vmem:[#allocation2 + $0x74] sm:$0x7]
      %v1254 = vsel %vm1165, 0, %v1253
      %1255 = vst [vmem:[#allocation2 + $0x74] sm:$0x7] %v1254
      %v1256 = vld [vmem:[#allocation2 + $0x78] sm:$0x7]
      %v1257 = vsel %vm1165, 0, %v1256
      %1258 = vst [vmem:[#allocation2 + $0x78] sm:$0x7] %v1257
      %v1259 = vld [vmem:[#allocation2 + $0x7c] sm:$0x7]
      %v1260 = vsel %vm1165, 0, %v1259
      %1261 = vst [vmem:[#allocation2 + $0x7c] sm:$0x7] %v1260
      %v1262 = vld [vmem:[#allocation2 + $0x80] sm:$0x7]
      %v1263 = vsel %vm1165, 0, %v1262
      %1264 = vst [vmem:[#allocation2 + $0x80] sm:$0x7] %v1263
      %v1265 = vld [vmem:[#allocation2 + $0x84] sm:$0x7]
      %v1266 = vsel %vm1165, 0, %v1265
      %1267 = vst [vmem:[#allocation2 + $0x84] sm:$0x7] %v1266
      %v1268 = vld [vmem:[#allocation2 + $0x88] sm:$0x7]
      %v1269 = vsel %vm1165, 0, %v1268
      %1270 = vst [vmem:[#allocation2 + $0x88] sm:$0x7] %v1269
      %v1271 = vld [vmem:[#allocation2 + $0x8c] sm:$0x7]
      %v1272 = vsel %vm1165, 0, %v1271
      %1273 = vst [vmem:[#allocation2 + $0x8c] sm:$0x7] %v1272
      %v1274 = vld [vmem:[#allocation2 + $0x90] sm:$0x7]
      %v1275 = vsel %vm1165, 0, %v1274
      %1276 = vst [vmem:[#allocation2 + $0x90] sm:$0x7] %v1275
      %v1277 = vld [vmem:[#allocation2 + $0x94] sm:$0x7]
      %v1278 = vsel %vm1165, 0, %v1277
      %1279 = vst [vmem:[#allocation2 + $0x94] sm:$0x7] %v1278
      %v1280 = vld [vmem:[#allocation2 + $0x98] sm:$0x7]
      %v1281 = vsel %vm1165, 0, %v1280
      %1282 = vst [vmem:[#allocation2 + $0x98] sm:$0x7] %v1281
      %v1283 = vld [vmem:[#allocation2 + $0x9c] sm:$0x7]
      %v1284 = vsel %vm1165, 0, %v1283
      %1285 = vst [vmem:[#allocation2 + $0x9c] sm:$0x7] %v1284
      %v1286 = vld [vmem:[#allocation2 + $0xa0] sm:$0x7]
      %v1287 = vsel %vm1165, 0, %v1286
      %1288 = vst [vmem:[#allocation2 + $0xa0] sm:$0x7] %v1287
      %v1289 = vld [vmem:[#allocation2 + $0xa4] sm:$0x7]
      %v1290 = vsel %vm1165, 0, %v1289
      %1291 = vst [vmem:[#allocation2 + $0xa4] sm:$0x7] %v1290
      %v1292 = vld [vmem:[#allocation2 + $0xa8] sm:$0x7]
      %v1293 = vsel %vm1165, 0, %v1292
      %1294 = vst [vmem:[#allocation2 + $0xa8] sm:$0x7] %v1293
      %v1295 = vld [vmem:[#allocation2 + $0xac] sm:$0x7]
      %v1296 = vsel %vm1165, 0, %v1295
      %1297 = vst [vmem:[#allocation2 + $0xac] sm:$0x7] %v1296
      %v1298 = vld [vmem:[#allocation2 + $0xb0] sm:$0x7]
      %v1299 = vsel %vm1165, 0, %v1298
      %1300 = vst [vmem:[#allocation2 + $0xb0] sm:$0x7] %v1299
      %v1301 = vld [vmem:[#allocation2 + $0xb4] sm:$0x7]
      %v1302 = vsel %vm1165, 0, %v1301
      %1303 = vst [vmem:[#allocation2 + $0xb4] sm:$0x7] %v1302
      %v1304 = vld [vmem:[#allocation2 + $0xb8] sm:$0x7]
      %v1305 = vsel %vm1165, 0, %v1304
      %1306 = vst [vmem:[#allocation2 + $0xb8] sm:$0x7] %v1305
      %v1307 = vld [vmem:[#allocation2 + $0xbc] sm:$0x7]
      %v1308 = vsel %vm1165, 0, %v1307
      %1309 = vst [vmem:[#allocation2 + $0xbc] sm:$0x7] %v1308
      %v1310 = vld [vmem:[#allocation2 + $0xc0] sm:$0x7]
      %v1311 = vsel %vm1165, 0, %v1310
      %1312 = vst [vmem:[#allocation2 + $0xc0] sm:$0x7] %v1311
      %v1313 = vld [vmem:[#allocation2 + $0xc4] sm:$0x7]
      %v1314 = vsel %vm1165, 0, %v1313
      %1315 = vst [vmem:[#allocation2 + $0xc4] sm:$0x7] %v1314
      %v1316 = vld [vmem:[#allocation2 + $0xc8] sm:$0x7]
      %v1317 = vsel %vm1165, 0, %v1316
      %1318 = vst [vmem:[#allocation2 + $0xc8] sm:$0x7] %v1317
      %v1319 = vld [vmem:[#allocation2 + $0xcc] sm:$0x7]
      %v1320 = vsel %vm1165, 0, %v1319
      %1321 = vst [vmem:[#allocation2 + $0xcc] sm:$0x7] %v1320
      %v1322 = vld [vmem:[#allocation2 + $0xd0] sm:$0x7]
      %v1323 = vsel %vm1165, 0, %v1322
      %1324 = vst [vmem:[#allocation2 + $0xd0] sm:$0x7] %v1323
      %v1325 = vld [vmem:[#allocation2 + $0xd4] sm:$0x7]
      %v1326 = vsel %vm1165, 0, %v1325
      %1327 = vst [vmem:[#allocation2 + $0xd4] sm:$0x7] %v1326
      %v1328 = vld [vmem:[#allocation2 + $0xd8] sm:$0x7]
      %v1329 = vsel %vm1165, 0, %v1328
      %1330 = vst [vmem:[#allocation2 + $0xd8] sm:$0x7] %v1329
      %v1331 = vld [vmem:[#allocation2 + $0xdc] sm:$0x7]
      %v1332 = vsel %vm1165, 0, %v1331
      %1333 = vst [vmem:[#allocation2 + $0xdc] sm:$0x7] %v1332
      %v1334 = vld [vmem:[#allocation2 + $0xe0] sm:$0x7]
      %v1335 = vsel %vm1165, 0, %v1334
      %1336 = vst [vmem:[#allocation2 + $0xe0] sm:$0x7] %v1335
      %v1337 = vld [vmem:[#allocation2 + $0xe4] sm:$0x7]
      %v1338 = vsel %vm1165, 0, %v1337
      %1339 = vst [vmem:[#allocation2 + $0xe4] sm:$0x7] %v1338
      %v1340 = vld [vmem:[#allocation2 + $0xe8] sm:$0x7]
      %v1341 = vsel %vm1165, 0, %v1340
      %1342 = vst [vmem:[#allocation2 + $0xe8] sm:$0x7] %v1341
      %v1343 = vld [vmem:[#allocation2 + $0xec] sm:$0x7]
      %v1344 = vsel %vm1165, 0, %v1343
      %1345 = vst [vmem:[#allocation2 + $0xec] sm:$0x7] %v1344
      %v1346 = vld [vmem:[#allocation2 + $0xf0] sm:$0x7]
      %v1347 = vsel %vm1165, 0, %v1346
      %1348 = vst [vmem:[#allocation2 + $0xf0] sm:$0x7] %v1347
      %v1349 = vld [vmem:[#allocation2 + $0xf4] sm:$0x7]
      %v1350 = vsel %vm1165, 0, %v1349
      %1351 = vst [vmem:[#allocation2 + $0xf4] sm:$0x7] %v1350
      %v1352 = vld [vmem:[#allocation2 + $0xf8] sm:$0x7]
      %v1353 = vsel %vm1165, 0, %v1352
      %1354 = vst [vmem:[#allocation2 + $0xf8] sm:$0x7] %v1353
      %v1355 = vld [vmem:[#allocation2 + $0xfc] sm:$0x7]
      %v1356 = vsel %vm1165, 0, %v1355
      %1357 = vst [vmem:[#allocation2 + $0xfc] sm:$0x7] %v1356
      %v1358 = vld [vmem:[#allocation2 + $0x100] sm:$0x7]
      %v1359 = vsel %vm1165, 0, %v1358
      %1360 = vst [vmem:[#allocation2 + $0x100] sm:$0x7] %v1359
      %v1361 = vld [vmem:[#allocation2 + $0x104] sm:$0x7]
      %v1362 = vsel %vm1165, 0, %v1361
      %1363 = vst [vmem:[#allocation2 + $0x104] sm:$0x7] %v1362
      %v1364 = vld [vmem:[#allocation2 + $0x108] sm:$0x7]
      %v1365 = vsel %vm1165, 0, %v1364
      %1366 = vst [vmem:[#allocation2 + $0x108] sm:$0x7] %v1365
      %v1367 = vld [vmem:[#allocation2 + $0x10c] sm:$0x7]
      %v1368 = vsel %vm1165, 0, %v1367
      %1369 = vst [vmem:[#allocation2 + $0x10c] sm:$0x7] %v1368
      %v1370 = vld [vmem:[#allocation2 + $0x110] sm:$0x7]
      %v1371 = vsel %vm1165, 0, %v1370
      %1372 = vst [vmem:[#allocation2 + $0x110] sm:$0x7] %v1371
      %v1373 = vld [vmem:[#allocation2 + $0x114] sm:$0x7]
      %v1374 = vsel %vm1165, 0, %v1373
      %1375 = vst [vmem:[#allocation2 + $0x114] sm:$0x7] %v1374
      %v1376 = vld [vmem:[#allocation2 + $0x118] sm:$0x7]
      %v1377 = vsel %vm1165, 0, %v1376
      %1378 = vst [vmem:[#allocation2 + $0x118] sm:$0x7] %v1377
      %v1379 = vld [vmem:[#allocation2 + $0x11c] sm:$0x7]
      %v1380 = vsel %vm1165, 0, %v1379
      %1381 = vst [vmem:[#allocation2 + $0x11c] sm:$0x7] %v1380
      %v1382 = vld [vmem:[#allocation2 + $0x120] sm:$0x7]
      %v1383 = vsel %vm1165, 0, %v1382
      %1384 = vst [vmem:[#allocation2 + $0x120] sm:$0x7] %v1383
      %v1385 = vld [vmem:[#allocation2 + $0x124] sm:$0x7]
      %v1386 = vsel %vm1165, 0, %v1385
      %1387 = vst [vmem:[#allocation2 + $0x124] sm:$0x7] %v1386
      %v1388 = vld [vmem:[#allocation2 + $0x128] sm:$0x7]
      %v1389 = vsel %vm1165, 0, %v1388
      %1390 = vst [vmem:[#allocation2 + $0x128] sm:$0x7] %v1389
      %v1391 = vld [vmem:[#allocation2 + $0x12c] sm:$0x7]
      %v1392 = vsel %vm1165, 0, %v1391
      %1393 = vst [vmem:[#allocation2 + $0x12c] sm:$0x7] %v1392
      %v1394 = vld [vmem:[#allocation2 + $0x130] sm:$0x7]
      %v1395 = vsel %vm1165, 0, %v1394
      %1396 = vst [vmem:[#allocation2 + $0x130] sm:$0x7] %v1395
      %v1397 = vld [vmem:[#allocation2 + $0x134] sm:$0x7]
      %v1398 = vsel %vm1165, 0, %v1397
      %1399 = vst [vmem:[#allocation2 + $0x134] sm:$0x7] %v1398
      %v1400 = vld [vmem:[#allocation2 + $0x138] sm:$0x7]
      %v1401 = vsel %vm1165, 0, %v1400
      %1402 = vst [vmem:[#allocation2 + $0x138] sm:$0x7] %v1401
      %v1403 = vld [vmem:[#allocation2 + $0x13c] sm:$0x7]
      %v1404 = vsel %vm1165, 0, %v1403
      %1405 = vst [vmem:[#allocation2 + $0x13c] sm:$0x7] %v1404
      %v1407 = vunpack.c.l.b16 %v1162
      %v1408 = vpack.c.b16 %v1407, %v1407
      %v1410 = vshrl.u32 %v1408, 16
      %v1412 = vrot.slane %v1410, 7
      %v1413 = vshll.u32 %v1408, 16
      %v1415 = vor.u32 %v1412, %v1413
      %s1417 = scalar_lea.vmem [#allocation2], 4
      %vm1418 = vsmask.f32 2306
      %vm1419 = vmand %vm1163, %vm1418
      %v1420 = vld [vmem:[%s1417] sm:$0x7]
      %v1421 = vsel %vm1419, %v1415, %v1420
      %1422 = vst [vmem:[%s1417] sm:$0x7] %v1421
      %v1423 = vrot.slane %v1410, 5
      %v1424 = vrot.slane %v1413, 6
      %v1425 = vor.u32 %v1423, %v1424
      %v1426 = vrot.slane %v1425, 4
      %s1428 = scalar_lea.vmem [#allocation2], 8
      %v1429 = vld [vmem:[%s1428] sm:$0x7]
      %v1430 = vsel %vm1419, %v1426, %v1429
      %1431 = vst [vmem:[%s1428] sm:$0x7] %v1430
      %v1432 = vunpack.c.h.b16 %v1162
      %v1433 = vpack.c.b16 %v1432, %v1432
      %v1435 = vshrl.u32 %v1433, 16
      %v1437 = vrot.slane %v1435, 7
      %v1438 = vshll.u32 %v1433, 16
      %v1440 = vor.u32 %v1437, %v1438
      %s1442 = scalar_lea.vmem [#allocation2], 12
      %v1443 = vld [vmem:[%s1442] sm:$0x7]
      %v1444 = vsel %vm1419, %v1440, %v1443
      %1445 = vst [vmem:[%s1442] sm:$0x7] %v1444
      %v1446 = vrot.slane %v1435, 5
      %v1447 = vrot.slane %v1438, 6
      %v1448 = vor.u32 %v1446, %v1447
      %v1449 = vrot.slane %v1448, 4
      %s1451 = scalar_lea.vmem [#allocation2], 16
      %v1452 = vld [vmem:[%s1451] sm:$0x7]
      %v1453 = vsel %vm1419, %v1449, %v1452
      %1454 = vst [vmem:[%s1451] sm:$0x7] %v1453
      %s1455 = scalar_lea.vmem [#allocation2], 24
      %vm1456 = vcmask 123904
      %1457 = vst.msk [vmem:[%s1455] sm:$0x3] %vm1456, %v1159
      %v1459 = vunpack.c.l.b16 %v1159
      %v1460 = vpack.c.b16 %v1459, %v1459
      %v1461 = vrot.slane %v1460, 6
      %v1462 = vrot.slane %v1461, 4
      %s1464 = scalar_lea.vmem [#allocation2], 28
      %1465 = vst.msk [vmem:[%s1464] sm:$0x3] %vm1456, %v1462
      %v1466 = vunpack.c.h.b16 %v1159
      %v1467 = vpack.c.b16 %v1466, %v1466
      %s1469 = scalar_lea.vmem [#allocation2], 32
      %1470 = vst.msk [vmem:[%s1469] sm:$0x3] %vm1456, %v1467
      %v1471 = vrot.slane %v1467, 6
      %v1472 = vrot.slane %v1471, 4
      %s1474 = scalar_lea.vmem [#allocation2], 36
      %1475 = vst.msk [vmem:[%s1474] sm:$0x3] %vm1456, %v1472
      %s1476 = scalar_lea.vmem [#allocation2], 44
      %1477 = vst.msk [vmem:[%s1476] sm:$0x3] %vm1456, %v1160
      %v1479 = vunpack.c.l.b16 %v1160
      %v1480 = vpack.c.b16 %v1479, %v1479
      %v1481 = vrot.slane %v1480, 6
      %v1482 = vrot.slane %v1481, 4
      %s1484 = scalar_lea.vmem [#allocation2], 48
      %1485 = vst.msk [vmem:[%s1484] sm:$0x3] %vm1456, %v1482
      %v1486 = vunpack.c.h.b16 %v1160
      %v1487 = vpack.c.b16 %v1486, %v1486
      %s1489 = scalar_lea.vmem [#allocation2], 52
      %1490 = vst.msk [vmem:[%s1489] sm:$0x3] %vm1456, %v1487
      %v1491 = vrot.slane %v1487, 6
      %v1492 = vrot.slane %v1491, 4
      %s1494 = scalar_lea.vmem [#allocation2], 56
      %1495 = vst.msk [vmem:[%s1494] sm:$0x3] %vm1456, %v1492
      %s1496 = scalar_lea.vmem [#allocation2], 64
      %1497 = vst.msk [vmem:[%s1496] sm:$0x3] %vm1456, %v1161
      %v1499 = vunpack.c.l.b16 %v1161
      %v1500 = vpack.c.b16 %v1499, %v1499
      %v1501 = vrot.slane %v1500, 6
      %v1502 = vrot.slane %v1501, 4
      %s1504 = scalar_lea.vmem [#allocation2], 68
      %1505 = vst.msk [vmem:[%s1504] sm:$0x3] %vm1456, %v1502
      %v1506 = vunpack.c.h.b16 %v1161
      %v1507 = vpack.c.b16 %v1506, %v1506
      %s1509 = scalar_lea.vmem [#allocation2], 72
      %1510 = vst.msk [vmem:[%s1509] sm:$0x3] %vm1456, %v1507
      %v1511 = vrot.slane %v1507, 6
      %v1512 = vrot.slane %v1511, 4
      %s1514 = scalar_lea.vmem [#allocation2], 76
      %1515 = vst.msk [vmem:[%s1514] sm:$0x3] %vm1456, %v1512
      %v1517 = vunpack.c.l.b16 %v1150
      %v1518 = vpack.c.b16 %v1517, %v1517
      %v1520 = vshrl.u32 %v1518, 16
      %v1522 = vrot.slane %v1520, 7
      %v1523 = vshll.u32 %v1518, 16
      %v1525 = vor.u32 %v1522, %v1523
      %s1527 = scalar_lea.vmem [#allocation2], 80
      %v1528 = vld [vmem:[%s1527] sm:$0x7]
      %v1529 = vsel %vm1419, %v1525, %v1528
      %1530 = vst [vmem:[%s1527] sm:$0x7] %v1529
      %v1531 = vrot.slane %v1520, 5
      %v1532 = vrot.slane %v1523, 6
      %v1533 = vor.u32 %v1531, %v1532
      %v1534 = vrot.slane %v1533, 4
      %s1536 = scalar_lea.vmem [#allocation2], 84
      %v1537 = vld [vmem:[%s1536] sm:$0x7]
      %v1538 = vsel %vm1419, %v1534, %v1537
      %1539 = vst [vmem:[%s1536] sm:$0x7] %v1538
      %v1540 = vunpack.c.h.b16 %v1150
      %v1541 = vpack.c.b16 %v1540, %v1540
      %v1543 = vshrl.u32 %v1541, 16
      %v1545 = vrot.slane %v1543, 7
      %v1546 = vshll.u32 %v1541, 16
      %v1548 = vor.u32 %v1545, %v1546
      %s1550 = scalar_lea.vmem [#allocation2], 88
      %v1551 = vld [vmem:[%s1550] sm:$0x7]
      %v1552 = vsel %vm1419, %v1548, %v1551
      %1553 = vst [vmem:[%s1550] sm:$0x7] %v1552
      %v1554 = vrot.slane %v1543, 5
      %v1555 = vrot.slane %v1546, 6
      %v1556 = vor.u32 %v1554, %v1555
      %v1557 = vrot.slane %v1556, 4
      %s1559 = scalar_lea.vmem [#allocation2], 92
      %v1560 = vld [vmem:[%s1559] sm:$0x7]
      %v1561 = vsel %vm1419, %v1557, %v1560
      %1562 = vst [vmem:[%s1559] sm:$0x7] %v1561
      %s1563 = scalar_lea.vmem [#allocation2], 100
      %1564 = vst.msk [vmem:[%s1563] sm:$0x3] %vm1456, %v1147
      %v1566 = vunpack.c.l.b16 %v1147
      %v1567 = vpack.c.b16 %v1566, %v1566
      %v1568 = vrot.slane %v1567, 6
      %v1569 = vrot.slane %v1568, 4
      %s1571 = scalar_lea.vmem [#allocation2], 104
      %1572 = vst.msk [vmem:[%s1571] sm:$0x3] %vm1456, %v1569
      %v1573 = vunpack.c.h.b16 %v1147
      %v1574 = vpack.c.b16 %v1573, %v1573
      %s1576 = scalar_lea.vmem [#allocation2], 108
      %1577 = vst.msk [vmem:[%s1576] sm:$0x3] %vm1456, %v1574
      %v1578 = vrot.slane %v1574, 6
      %v1579 = vrot.slane %v1578, 4
      %s1581 = scalar_lea.vmem [#allocation2], 112
      %1582 = vst.msk [vmem:[%s1581] sm:$0x3] %vm1456, %v1579
      %s1583 = scalar_lea.vmem [#allocation2], 120
      %1584 = vst.msk [vmem:[%s1583] sm:$0x3] %vm1456, %v1148
      %v1586 = vunpack.c.l.b16 %v1148
      %v1587 = vpack.c.b16 %v1586, %v1586
      %v1588 = vrot.slane %v1587, 6
      %v1589 = vrot.slane %v1588, 4
      %s1591 = scalar_lea.vmem [#allocation2], 124
      %1592 = vst.msk [vmem:[%s1591] sm:$0x3] %vm1456, %v1589
      %v1593 = vunpack.c.h.b16 %v1148
      %v1594 = vpack.c.b16 %v1593, %v1593
      %s1596 = scalar_lea.vmem [#allocation2], 128
      %1597 = vst.msk [vmem:[%s1596] sm:$0x3] %vm1456, %v1594
      %v1598 = vrot.slane %v1594, 6
      %v1599 = vrot.slane %v1598, 4
      %s1601 = scalar_lea.vmem [#allocation2], 132
      %1602 = vst.msk [vmem:[%s1601] sm:$0x3] %vm1456, %v1599
      %s1603 = scalar_lea.vmem [#allocation2], 140
      %1604 = vst.msk [vmem:[%s1603] sm:$0x3] %vm1456, %v1149
      %v1606 = vunpack.c.l.b16 %v1149
      %v1607 = vpack.c.b16 %v1606, %v1606
      %v1608 = vrot.slane %v1607, 6
      %v1609 = vrot.slane %v1608, 4
      %s1611 = scalar_lea.vmem [#allocation2], 144
      %1612 = vst.msk [vmem:[%s1611] sm:$0x3] %vm1456, %v1609
      %v1613 = vunpack.c.h.b16 %v1149
      %v1614 = vpack.c.b16 %v1613, %v1613
      %s1616 = scalar_lea.vmem [#allocation2], 148
      %1617 = vst.msk [vmem:[%s1616] sm:$0x3] %vm1456, %v1614
      %v1618 = vrot.slane %v1614, 6
      %v1619 = vrot.slane %v1618, 4
      %s1621 = scalar_lea.vmem [#allocation2], 152
      %1622 = vst.msk [vmem:[%s1621] sm:$0x3] %vm1456, %v1619
      %v1624 = vunpack.c.l.b16 %v1154
      %v1625 = vpack.c.b16 %v1624, %v1624
      %v1627 = vshrl.u32 %v1625, 16
      %v1629 = vrot.slane %v1627, 7
      %v1630 = vshll.u32 %v1625, 16
      %v1632 = vor.u32 %v1629, %v1630
      %s1634 = scalar_lea.vmem [#allocation2], 160
      %v1635 = vld [vmem:[%s1634] sm:$0x7]
      %v1636 = vsel %vm1419, %v1632, %v1635
      %1637 = vst [vmem:[%s1634] sm:$0x7] %v1636
      %v1638 = vrot.slane %v1627, 5
      %v1639 = vrot.slane %v1630, 6
      %v1640 = vor.u32 %v1638, %v1639
      %v1641 = vrot.slane %v1640, 4
      %s1643 = scalar_lea.vmem [#allocation2], 164
      %v1644 = vld [vmem:[%s1643] sm:$0x7]
      %v1645 = vsel %vm1419, %v1641, %v1644
      %1646 = vst [vmem:[%s1643] sm:$0x7] %v1645
      %v1647 = vunpack.c.h.b16 %v1154
      %v1648 = vpack.c.b16 %v1647, %v1647
      %v1650 = vshrl.u32 %v1648, 16
      %v1652 = vrot.slane %v1650, 7
      %v1653 = vshll.u32 %v1648, 16
      %v1655 = vor.u32 %v1652, %v1653
      %s1657 = scalar_lea.vmem [#allocation2], 168
      %v1658 = vld [vmem:[%s1657] sm:$0x7]
      %v1659 = vsel %vm1419, %v1655, %v1658
      %1660 = vst [vmem:[%s1657] sm:$0x7] %v1659
      %v1661 = vrot.slane %v1650, 5
      %v1662 = vrot.slane %v1653, 6
      %v1663 = vor.u32 %v1661, %v1662
      %v1664 = vrot.slane %v1663, 4
      %s1666 = scalar_lea.vmem [#allocation2], 172
      %v1667 = vld [vmem:[%s1666] sm:$0x7]
      %v1668 = vsel %vm1419, %v1664, %v1667
      %1669 = vst [vmem:[%s1666] sm:$0x7] %v1668
      %s1670 = scalar_lea.vmem [#allocation2], 180
      %1671 = vst.msk [vmem:[%s1670] sm:$0x3] %vm1456, %v1151
      %v1673 = vunpack.c.l.b16 %v1151
      %v1674 = vpack.c.b16 %v1673, %v1673
      %v1675 = vrot.slane %v1674, 6
      %v1676 = vrot.slane %v1675, 4
      %s1678 = scalar_lea.vmem [#allocation2], 184
      %1679 = vst.msk [vmem:[%s1678] sm:$0x3] %vm1456, %v1676
      %v1680 = vunpack.c.h.b16 %v1151
      %v1681 = vpack.c.b16 %v1680, %v1680
      %s1683 = scalar_lea.vmem [#allocation2], 188
      %1684 = vst.msk [vmem:[%s1683] sm:$0x3] %vm1456, %v1681
      %v1685 = vrot.slane %v1681, 6
      %v1686 = vrot.slane %v1685, 4
      %s1688 = scalar_lea.vmem [#allocation2], 192
      %1689 = vst.msk [vmem:[%s1688] sm:$0x3] %vm1456, %v1686
      %s1690 = scalar_lea.vmem [#allocation2], 200
      %1691 = vst.msk [vmem:[%s1690] sm:$0x3] %vm1456, %v1152
      %v1693 = vunpack.c.l.b16 %v1152
      %v1694 = vpack.c.b16 %v1693, %v1693
      %v1695 = vrot.slane %v1694, 6
      %v1696 = vrot.slane %v1695, 4
      %s1698 = scalar_lea.vmem [#allocation2], 204
      %1699 = vst.msk [vmem:[%s1698] sm:$0x3] %vm1456, %v1696
      %v1700 = vunpack.c.h.b16 %v1152
      %v1701 = vpack.c.b16 %v1700, %v1700
      %s1703 = scalar_lea.vmem [#allocation2], 208
      %1704 = vst.msk [vmem:[%s1703] sm:$0x3] %vm1456, %v1701
      %v1705 = vrot.slane %v1701, 6
      %v1706 = vrot.slane %v1705, 4
      %s1708 = scalar_lea.vmem [#allocation2], 212
      %1709 = vst.msk [vmem:[%s1708] sm:$0x3] %vm1456, %v1706
      %s1710 = scalar_lea.vmem [#allocation2], 220
      %1711 = vst.msk [vmem:[%s1710] sm:$0x3] %vm1456, %v1153
      %v1713 = vunpack.c.l.b16 %v1153
      %v1714 = vpack.c.b16 %v1713, %v1713
      %v1715 = vrot.slane %v1714, 6
      %v1716 = vrot.slane %v1715, 4
      %s1718 = scalar_lea.vmem [#allocation2], 224
      %1719 = vst.msk [vmem:[%s1718] sm:$0x3] %vm1456, %v1716
      %v1720 = vunpack.c.h.b16 %v1153
      %v1721 = vpack.c.b16 %v1720, %v1720
      %s1723 = scalar_lea.vmem [#allocation2], 228
      %1724 = vst.msk [vmem:[%s1723] sm:$0x3] %vm1456, %v1721
      %v1725 = vrot.slane %v1721, 6
      %v1726 = vrot.slane %v1725, 4
      %s1728 = scalar_lea.vmem [#allocation2], 232
      %1729 = vst.msk [vmem:[%s1728] sm:$0x3] %vm1456, %v1726
      %v1731 = vunpack.c.l.b16 %v1158
      %v1732 = vpack.c.b16 %v1731, %v1731
      %v1734 = vshrl.u32 %v1732, 16
      %v1736 = vrot.slane %v1734, 7
      %v1737 = vshll.u32 %v1732, 16
      %v1739 = vor.u32 %v1736, %v1737
      %s1741 = scalar_lea.vmem [#allocation2], 240
      %v1742 = vld [vmem:[%s1741] sm:$0x7]
      %v1743 = vsel %vm1419, %v1739, %v1742
      %1744 = vst [vmem:[%s1741] sm:$0x7] %v1743
      %v1745 = vrot.slane %v1734, 5
      %v1746 = vrot.slane %v1737, 6
      %v1747 = vor.u32 %v1745, %v1746
      %v1748 = vrot.slane %v1747, 4
      %s1750 = scalar_lea.vmem [#allocation2], 244
      %v1751 = vld [vmem:[%s1750] sm:$0x7]
      %v1752 = vsel %vm1419, %v1748, %v1751
      %1753 = vst [vmem:[%s1750] sm:$0x7] %v1752
      %v1754 = vunpack.c.h.b16 %v1158
      %v1755 = vpack.c.b16 %v1754, %v1754
      %v1757 = vshrl.u32 %v1755, 16
      %v1759 = vrot.slane %v1757, 7
      %v1760 = vshll.u32 %v1755, 16
      %v1762 = vor.u32 %v1759, %v1760
      %s1764 = scalar_lea.vmem [#allocation2], 248
      %v1765 = vld [vmem:[%s1764] sm:$0x7]
      %v1766 = vsel %vm1419, %v1762, %v1765
      %1767 = vst [vmem:[%s1764] sm:$0x7] %v1766
      %v1768 = vrot.slane %v1757, 5
      %v1769 = vrot.slane %v1760, 6
      %v1770 = vor.u32 %v1768, %v1769
      %v1771 = vrot.slane %v1770, 4
      %s1773 = scalar_lea.vmem [#allocation2], 252
      %v1774 = vld [vmem:[%s1773] sm:$0x7]
      %v1775 = vsel %vm1419, %v1771, %v1774
      %1776 = vst [vmem:[%s1773] sm:$0x7] %v1775
      %s1777 = scalar_lea.vmem [#allocation2], 260
      %1778 = vst.msk [vmem:[%s1777] sm:$0x3] %vm1456, %v1155
      %v1780 = vunpack.c.l.b16 %v1155
      %v1781 = vpack.c.b16 %v1780, %v1780
      %v1782 = vrot.slane %v1781, 6
      %v1783 = vrot.slane %v1782, 4
      %s1785 = scalar_lea.vmem [#allocation2], 264
      %1786 = vst.msk [vmem:[%s1785] sm:$0x3] %vm1456, %v1783
      %v1787 = vunpack.c.h.b16 %v1155
      %v1788 = vpack.c.b16 %v1787, %v1787
      %s1790 = scalar_lea.vmem [#allocation2], 268
      %1791 = vst.msk [vmem:[%s1790] sm:$0x3] %vm1456, %v1788
      %v1792 = vrot.slane %v1788, 6
      %v1793 = vrot.slane %v1792, 4
      %s1795 = scalar_lea.vmem [#allocation2], 272
      %1796 = vst.msk [vmem:[%s1795] sm:$0x3] %vm1456, %v1793
      %s1797 = scalar_lea.vmem [#allocation2], 280
      %1798 = vst.msk [vmem:[%s1797] sm:$0x3] %vm1456, %v1156
      %v1800 = vunpack.c.l.b16 %v1156
      %v1801 = vpack.c.b16 %v1800, %v1800
      %v1802 = vrot.slane %v1801, 6
      %v1803 = vrot.slane %v1802, 4
      %s1805 = scalar_lea.vmem [#allocation2], 284
      %1806 = vst.msk [vmem:[%s1805] sm:$0x3] %vm1456, %v1803
      %v1807 = vunpack.c.h.b16 %v1156
      %v1808 = vpack.c.b16 %v1807, %v1807
      %s1810 = scalar_lea.vmem [#allocation2], 288
      %1811 = vst.msk [vmem:[%s1810] sm:$0x3] %vm1456, %v1808
      %v1812 = vrot.slane %v1808, 6
      %v1813 = vrot.slane %v1812, 4
      %s1815 = scalar_lea.vmem [#allocation2], 292
      %1816 = vst.msk [vmem:[%s1815] sm:$0x3] %vm1456, %v1813
      %s1817 = scalar_lea.vmem [#allocation2], 300
      %1818 = vst.msk [vmem:[%s1817] sm:$0x3] %vm1456, %v1157
      %v1820 = vunpack.c.l.b16 %v1157
      %v1821 = vpack.c.b16 %v1820, %v1820
      %v1822 = vrot.slane %v1821, 6
      %v1823 = vrot.slane %v1822, 4
      %s1825 = scalar_lea.vmem [#allocation2], 304
      %1826 = vst.msk [vmem:[%s1825] sm:$0x3] %vm1456, %v1823
      %v1827 = vunpack.c.h.b16 %v1157
      %v1828 = vpack.c.b16 %v1827, %v1827
      %s1830 = scalar_lea.vmem [#allocation2], 308
      %1831 = vst.msk [vmem:[%s1830] sm:$0x3] %vm1456, %v1828
      %v1832 = vrot.slane %v1828, 6
      %v1833 = vrot.slane %v1832, 4
      %s1835 = scalar_lea.vmem [#allocation2], 312
      %1836 = vst.msk [vmem:[%s1835] sm:$0x3] %vm1456, %v1833
      %v1837 = vld [vmem:[#allocation2] sm:$0x3]
      %v1838 = vld [vmem:[#allocation2 + $0x4] sm:$0x3]
      %v1839 = vld [vmem:[#allocation2 + $0x8] sm:$0x3]
      %v1840 = vld [vmem:[#allocation2 + $0xc] sm:$0x3]
      %s1841 = scalar_lea.vmem [#allocation2], 40
      %v1842 = vld [vmem:[%s1841] sm:$0x3]
      %v1843 = vld [vmem:[%s1841 + $0x4] sm:$0x3]
      %v1844 = vld [vmem:[%s1841 + $0x8] sm:$0x3]
      %v1845 = vld [vmem:[%s1841 + $0xc] sm:$0x3]
      %v1846 = vld [vmem:[%s1634] sm:$0x3]
      %v1847 = vld [vmem:[%s1634 + $0x4] sm:$0x3]
      %v1848 = vld [vmem:[%s1634 + $0x8] sm:$0x3]
      %v1849 = vld [vmem:[%s1634 + $0xc] sm:$0x3]
      %v1850 = vld [vmem:[%s1690] sm:$0x3]
      %v1851 = vld [vmem:[%s1690 + $0x4] sm:$0x3]
      %v1852 = vld [vmem:[%s1690 + $0x8] sm:$0x3]
      %v1853 = vld [vmem:[%s1690 + $0xc] sm:$0x3]
      %v1854 = vld [vmem:[%s3] sm:$0xf]
      %v1855 = vld [vmem:[%s3 + $0x4] sm:$0xf]
      %s1856 = scalar_lea.vmem [#allocation2], 20
      %v1857 = vld [vmem:[%s1856] sm:$0x3]
      %v1858 = vld [vmem:[%s1856 + $0x4] sm:$0x3]
      %v1859 = vld [vmem:[%s1856 + $0x8] sm:$0x3]
      %v1860 = vld [vmem:[%s1856 + $0xc] sm:$0x3]
      %s1861 = scalar_lea.vmem [#allocation2], 60
      %v1862 = vld [vmem:[%s1861] sm:$0x3]
      %v1863 = vld [vmem:[%s1861 + $0x4] sm:$0x3]
      %v1864 = vld [vmem:[%s1861 + $0x8] sm:$0x3]
      %v1865 = vld [vmem:[%s1861 + $0xc] sm:$0x3]
      %v1866 = vld [vmem:[%s1670] sm:$0x3]
      %v1867 = vld [vmem:[%s1670 + $0x4] sm:$0x3]
      %v1868 = vld [vmem:[%s1670 + $0x8] sm:$0x3]
      %v1869 = vld [vmem:[%s1670 + $0xc] sm:$0x3]
      %v1870 = vld [vmem:[%s1710] sm:$0x3]
      %v1871 = vld [vmem:[%s1710 + $0x4] sm:$0x3]
      %v1872 = vld [vmem:[%s1710 + $0x8] sm:$0x3]
      %v1873 = vld [vmem:[%s1710 + $0xc] sm:$0x3]
      %s1874 = scalar_lea.vmem %s3, 8
      %v1875 = vld [vmem:[%s1874] sm:$0xf]
      %v1876 = vld [vmem:[%s1874 + $0x4] sm:$0xf]
      %v1893 = vcombine.low %v1857, %v1858
      %v1894 = vcombine.low %v1859, %v1860
      %v1896 = vunpack.c.l.s4 1983009808
      %v1897 = vunpack.c.0.s8 %v1896
      %v1898 = vlaneseq
      %v1899 = vshrl.u32 %v1898, 7
      %v1900 = vsub.s32 %v1897, %v1899
      %v1901 = vrot.slane %v1893, %v1900
      %v1903 = vunpack.c.l.s4 1983009808
      %v1904 = vunpack.c.0.s8 %v1903
      %v1905 = vlaneseq
      %v1906 = vshrl.u32 %v1905, 7
      %v1907 = vsub.s32 %v1904, %v1906
      %v1908 = vrot.slane %v1894, %v1907
      %v1909 = vcombine.low %v1901, %v1908
      %v1910 = vcombine.low %v1862, %v1863
      %v1911 = vcombine.low %v1864, %v1865
      %v1913 = vunpack.c.l.s4 1983009808
      %v1914 = vunpack.c.0.s8 %v1913
      %v1915 = vlaneseq
      %v1916 = vshrl.u32 %v1915, 7
      %v1917 = vsub.s32 %v1914, %v1916
      %v1918 = vrot.slane %v1910, %v1917
      %v1920 = vunpack.c.l.s4 1983009808
      %v1921 = vunpack.c.0.s8 %v1920
      %v1922 = vlaneseq
      %v1923 = vshrl.u32 %v1922, 7
      %v1924 = vsub.s32 %v1921, %v1923
      %v1925 = vrot.slane %v1911, %v1924
      %v1926 = vcombine.low %v1918, %v1925
      %v1927 = vcombine.low %v1866, %v1867
      %v1928 = vcombine.low %v1868, %v1869
      %v1930 = vunpack.c.l.s4 1983009808
      %v1931 = vunpack.c.0.s8 %v1930
      %v1932 = vlaneseq
      %v1933 = vshrl.u32 %v1932, 7
      %v1934 = vsub.s32 %v1931, %v1933
      %v1935 = vrot.slane %v1927, %v1934
      %v1937 = vunpack.c.l.s4 1983009808
      %v1938 = vunpack.c.0.s8 %v1937
      %v1939 = vlaneseq
      %v1940 = vshrl.u32 %v1939, 7
      %v1941 = vsub.s32 %v1938, %v1940
      %v1942 = vrot.slane %v1928, %v1941
      %v1943 = vcombine.low %v1935, %v1942
      %v1944 = vcombine.low %v1870, %v1871
      %v1945 = vcombine.low %v1872, %v1873
      %v1947 = vunpack.c.l.s4 1983009808
      %v1948 = vunpack.c.0.s8 %v1947
      %v1949 = vlaneseq
      %v1950 = vshrl.u32 %v1949, 7
      %v1951 = vsub.s32 %v1948, %v1950
      %v1952 = vrot.slane %v1944, %v1951
      %v1954 = vunpack.c.l.s4 1983009808
      %v1955 = vunpack.c.0.s8 %v1954
      %v1956 = vlaneseq
      %v1957 = vshrl.u32 %v1956, 7
      %v1958 = vsub.s32 %v1955, %v1957
      %v1959 = vrot.slane %v1945, %v1958
      %v1960 = vcombine.low %v1952, %v1959
      %v1963 = vunpack.c.l.b16 %v1875
      %v1964 = vunpack.c.l.b16 %v1876
      %v1965 = vpack.c.b16 %v1964, %v1963
      %v1968 = vsel %vm876, %v1909, 0
      %v1971 = vsel %vm876, %v1926, 0
      %v1974 = vsel %vm876, %v1943, 0
      %v1977 = vsel %vm876, %v1960, 0
      %1979 = vmatprep.subr.bf16.mxu0 0
      %1980 = vmatpush1.bf16.msra.mxu0 0
      %1981 = vmatprep.subr.bf16.mxu0 0
      %1982 = vmatpush1.bf16.msra.mxu0 0
      %1983 = vmatprep.subr.bf16.mxu0 0
      %1984 = vmatpush1.bf16.msra.mxu0 0
      %1985 = vmatprep.subr.bf16.mxu0 0
      %1986 = vmatpush1.bf16.msra.mxu0 0
      %1987 = vmatprep.subr.bf16.mxu0 0
      %1988 = vmatpush1.bf16.msra.mxu0 0
      %1989 = vmatprep.subr.bf16.mxu0 0
      %1990 = vmatpush1.bf16.msra.mxu0 0
      %1991 = vmatprep.subr.bf16.mxu0 0
      %1992 = vmatpush1.bf16.msra.mxu0 0
      %1993 = vmatprep.subr.bf16.mxu0 0
      %1994 = vmatpush1.bf16.msra.mxu0 %v1965
      %1995 = vmatprep.subr.bf16.mxu0 0
      %1996 = vmatpush2.bf16.msra.mxu0 0
      %1997 = vmatprep.subr.bf16.mxu0 0
      %1998 = vmatpush2.bf16.msra.mxu0 0
      %1999 = vmatprep.subr.bf16.mxu0 0
      %2000 = vmatpush2.bf16.msra.mxu0 0
      %2001 = vmatprep.subr.bf16.mxu0 0
      %2002 = vmatpush2.bf16.msra.mxu0 0
      %2003 = vmatprep.subr.bf16.mxu0 0
      %2004 = vmatpush2.bf16.msra.mxu0 0
      %2005 = vmatprep.subr.bf16.mxu0 0
      %2006 = vmatpush2.bf16.msra.mxu0 0
      %2007 = vmatprep.subr.bf16.mxu0 0
      %2008 = vmatpush2.bf16.msra.mxu0 0
      %2009 = vmatprep.subr.bf16.mxu0 0
      %2010 = vmatpush2.bf16.msra.mxu0 0
      %2011 = vmatprep.mubr.bf16.mxu0 0
      %2012 = vmatmul.mubr.bf16.gmra.mxu0 %v1968
      %v2013 = vpop.f32.mrf.mxu0
      %v2014 = vadd.f32 0.0, %v2013
      %v2015 = vpop.f32.mrf.mxu0
      %v2016 = vpop.f32.mrf.mxu0
      %v2017 = vadd.f32 0.0, %v2016
      %v2018 = vpop.f32.mrf.mxu0
      %2019 = vmatprep.mubr.bf16.mxu0 0
      %2020 = vmatmul.mubr.bf16.gmra.mxu0 %v1971
      %v2021 = vpop.f32.mrf.mxu0
      %v2022 = vadd.f32 0.0, %v2021
      %v2023 = vpop.f32.mrf.mxu0
      %v2024 = vpop.f32.mrf.mxu0
      %v2025 = vadd.f32 0.0, %v2024
      %v2026 = vpop.f32.mrf.mxu0
      %2027 = vmatprep.mubr.bf16.mxu0 0
      %2028 = vmatmul.mubr.bf16.gmra.mxu0 %v1974
      %v2029 = vpop.f32.mrf.mxu0
      %v2030 = vadd.f32 0.0, %v2029
      %v2031 = vpop.f32.mrf.mxu0
      %v2032 = vpop.f32.mrf.mxu0
      %v2033 = vadd.f32 0.0, %v2032
      %v2034 = vpop.f32.mrf.mxu0
      %2035 = vmatprep.mubr.bf16.mxu0 0
      %2036 = vmatmul.mubr.bf16.gmra.mxu0 %v1977
      %v2037 = vpop.f32.mrf.mxu0
      %v2038 = vadd.f32 0.0, %v2037
      %v2039 = vpop.f32.mrf.mxu0
      %v2040 = vpop.f32.mrf.mxu0
      %v2041 = vadd.f32 0.0, %v2040
      %v2042 = vpop.f32.mrf.mxu0
      %2043 = vdwg.mxu0
      %v2060 = vcombine.low %v1837, %v1838
      %v2061 = vcombine.low %v1839, %v1840
      %v2063 = vunpack.c.l.s4 1983009808
      %v2064 = vunpack.c.0.s8 %v2063
      %v2065 = vlaneseq
      %v2066 = vshrl.u32 %v2065, 7
      %v2067 = vsub.s32 %v2064, %v2066
      %v2068 = vrot.slane %v2060, %v2067
      %v2070 = vunpack.c.l.s4 1983009808
      %v2071 = vunpack.c.0.s8 %v2070
      %v2072 = vlaneseq
      %v2073 = vshrl.u32 %v2072, 7
      %v2074 = vsub.s32 %v2071, %v2073
      %v2075 = vrot.slane %v2061, %v2074
      %v2076 = vcombine.low %v2068, %v2075
      %v2077 = vcombine.low %v1842, %v1843
      %v2078 = vcombine.low %v1844, %v1845
      %v2080 = vunpack.c.l.s4 1983009808
      %v2081 = vunpack.c.0.s8 %v2080
      %v2082 = vlaneseq
      %v2083 = vshrl.u32 %v2082, 7
      %v2084 = vsub.s32 %v2081, %v2083
      %v2085 = vrot.slane %v2077, %v2084
      %v2087 = vunpack.c.l.s4 1983009808
      %v2088 = vunpack.c.0.s8 %v2087
      %v2089 = vlaneseq
      %v2090 = vshrl.u32 %v2089, 7
      %v2091 = vsub.s32 %v2088, %v2090
      %v2092 = vrot.slane %v2078, %v2091
      %v2093 = vcombine.low %v2085, %v2092
      %v2094 = vcombine.low %v1846, %v1847
      %v2095 = vcombine.low %v1848, %v1849
      %v2097 = vunpack.c.l.s4 1983009808
      %v2098 = vunpack.c.0.s8 %v2097
      %v2099 = vlaneseq
      %v2100 = vshrl.u32 %v2099, 7
      %v2101 = vsub.s32 %v2098, %v2100
      %v2102 = vrot.slane %v2094, %v2101
      %v2104 = vunpack.c.l.s4 1983009808
      %v2105 = vunpack.c.0.s8 %v2104
      %v2106 = vlaneseq
      %v2107 = vshrl.u32 %v2106, 7
      %v2108 = vsub.s32 %v2105, %v2107
      %v2109 = vrot.slane %v2095, %v2108
      %v2110 = vcombine.low %v2102, %v2109
      %v2111 = vcombine.low %v1850, %v1851
      %v2112 = vcombine.low %v1852, %v1853
      %v2114 = vunpack.c.l.s4 1983009808
      %v2115 = vunpack.c.0.s8 %v2114
      %v2116 = vlaneseq
      %v2117 = vshrl.u32 %v2116, 7
      %v2118 = vsub.s32 %v2115, %v2117
      %v2119 = vrot.slane %v2111, %v2118
      %v2121 = vunpack.c.l.s4 1983009808
      %v2122 = vunpack.c.0.s8 %v2121
      %v2123 = vlaneseq
      %v2124 = vshrl.u32 %v2123, 7
      %v2125 = vsub.s32 %v2122, %v2124
      %v2126 = vrot.slane %v2112, %v2125
      %v2127 = vcombine.low %v2119, %v2126
      %v2130 = vunpack.c.l.b16 %v1854
      %v2131 = vunpack.c.l.b16 %v1855
      %v2132 = vpack.c.b16 %v2131, %v2130
      %v2135 = vsel %vm876, %v2076, 0
      %v2138 = vsel %vm876, %v2093, 0
      %v2141 = vsel %vm876, %v2110, 0
      %v2144 = vsel %vm876, %v2127, 0
      %2146 = vmatprep.subr.bf16.mxu0 0
      %2147 = vmatpush1.bf16.msra.mxu0 0
      %2148 = vmatprep.subr.bf16.mxu0 0
      %2149 = vmatpush1.bf16.msra.mxu0 0
      %2150 = vmatprep.subr.bf16.mxu0 0
      %2151 = vmatpush1.bf16.msra.mxu0 0
      %2152 = vmatprep.subr.bf16.mxu0 0
      %2153 = vmatpush1.bf16.msra.mxu0 0
      %2154 = vmatprep.subr.bf16.mxu0 0
      %2155 = vmatpush1.bf16.msra.mxu0 0
      %2156 = vmatprep.subr.bf16.mxu0 0
      %2157 = vmatpush1.bf16.msra.mxu0 0
      %2158 = vmatprep.subr.bf16.mxu0 0
      %2159 = vmatpush1.bf16.msra.mxu0 0
      %2160 = vmatprep.subr.bf16.mxu0 0
      %2161 = vmatpush1.bf16.msra.mxu0 %v2132
      %2162 = vmatprep.subr.bf16.mxu0 0
      %2163 = vmatpush2.bf16.msra.mxu0 0
      %2164 = vmatprep.subr.bf16.mxu0 0
      %2165 = vmatpush2.bf16.msra.mxu0 0
      %2166 = vmatprep.subr.bf16.mxu0 0
      %2167 = vmatpush2.bf16.msra.mxu0 0
      %2168 = vmatprep.subr.bf16.mxu0 0
      %2169 = vmatpush2.bf16.msra.mxu0 0
      %2170 = vmatprep.subr.bf16.mxu0 0
      %2171 = vmatpush2.bf16.msra.mxu0 0
      %2172 = vmatprep.subr.bf16.mxu0 0
      %2173 = vmatpush2.bf16.msra.mxu0 0
      %2174 = vmatprep.subr.bf16.mxu0 0
      %2175 = vmatpush2.bf16.msra.mxu0 0
      %2176 = vmatprep.subr.bf16.mxu0 0
      %2177 = vmatpush2.bf16.msra.mxu0 0
      %2178 = vmatprep.mubr.bf16.mxu0 0
      %2179 = vmatmul.mubr.bf16.gmra.mxu0 %v2135
      %v2180 = vpop.f32.mrf.mxu0
      %v2181 = vadd.f32 %v2014, %v2180
      %v2182 = vpop.f32.mrf.mxu0
      %v2183 = vpop.f32.mrf.mxu0
      %v2184 = vadd.f32 %v2017, %v2183
      %v2185 = vpop.f32.mrf.mxu0
      %2186 = vmatprep.mubr.bf16.mxu0 0
      %2187 = vmatmul.mubr.bf16.gmra.mxu0 %v2138
      %v2188 = vpop.f32.mrf.mxu0
      %v2189 = vadd.f32 %v2022, %v2188
      %v2190 = vpop.f32.mrf.mxu0
      %v2191 = vpop.f32.mrf.mxu0
      %v2192 = vadd.f32 %v2025, %v2191
      %v2193 = vpop.f32.mrf.mxu0
      %2194 = vmatprep.mubr.bf16.mxu0 0
      %2195 = vmatmul.mubr.bf16.gmra.mxu0 %v2141
      %v2196 = vpop.f32.mrf.mxu0
      %v2197 = vadd.f32 %v2030, %v2196
      %v2198 = vpop.f32.mrf.mxu0
      %v2199 = vpop.f32.mrf.mxu0
      %v2200 = vadd.f32 %v2033, %v2199
      %v2201 = vpop.f32.mrf.mxu0
      %2202 = vmatprep.mubr.bf16.mxu0 0
      %2203 = vmatmul.mubr.bf16.gmra.mxu0 %v2144
      %v2204 = vpop.f32.mrf.mxu0
      %v2205 = vadd.f32 %v2038, %v2204
      %v2206 = vpop.f32.mrf.mxu0
      %v2207 = vpop.f32.mrf.mxu0
      %v2208 = vadd.f32 %v2041, %v2207
      %v2209 = vpop.f32.mrf.mxu0
      %2210 = vdwg.mxu0
      %v2211 = vld [vmem:[#allocation2] sm:$0x7]
      %v2212 = vld [vmem:[#allocation2 + $0x4] sm:$0x7]
      %v2213 = vld [vmem:[#allocation2 + $0x8] sm:$0x7]
      %v2214 = vld [vmem:[#allocation2 + $0xc] sm:$0x7]
      %v2215 = vld [vmem:[%s1634] sm:$0x7]
      %v2216 = vld [vmem:[%s1634 + $0x4] sm:$0x7]
      %v2217 = vld [vmem:[%s1634 + $0x8] sm:$0x7]
      %v2218 = vld [vmem:[%s1634 + $0xc] sm:$0x7]
      %v2220 = vshrl.u32 %v2211, 16
      %v2222 = vrot.slane %v2220, 4
      %v2223 = vshll.u32 %v2211, 16
      %v2225 = vrot.slane %v2223, 5
      %v2226 = vor.u32 %v2222, %v2225
      %v2227 = vrot.slane %v2226, 4
      %v2229 = vshrl.u32 %v2212, 16
      %v2231 = vrot.slane %v2229, 4
      %v2232 = vshll.u32 %v2212, 16
      %v2234 = vrot.slane %v2232, 5
      %v2235 = vor.u32 %v2231, %v2234
      %v2236 = vrot.slane %v2235, 4
      %v2238 = vshrl.u32 %v2213, 16
      %v2240 = vrot.slane %v2238, 4
      %v2241 = vshll.u32 %v2213, 16
      %v2243 = vrot.slane %v2241, 5
      %v2244 = vor.u32 %v2240, %v2243
      %v2245 = vrot.slane %v2244, 4
      %v2247 = vshrl.u32 %v2214, 16
      %v2249 = vrot.slane %v2247, 4
      %v2250 = vshll.u32 %v2214, 16
      %v2252 = vrot.slane %v2250, 5
      %v2253 = vor.u32 %v2249, %v2252
      %v2254 = vrot.slane %v2253, 4
      %v2256 = vshrl.u32 %v2215, 16
      %v2258 = vrot.slane %v2256, 4
      %v2259 = vshll.u32 %v2215, 16
      %v2261 = vrot.slane %v2259, 5
      %v2262 = vor.u32 %v2258, %v2261
      %v2263 = vrot.slane %v2262, 4
      %v2265 = vshrl.u32 %v2216, 16
      %v2267 = vrot.slane %v2265, 4
      %v2268 = vshll.u32 %v2216, 16
      %v2270 = vrot.slane %v2268, 5
      %v2271 = vor.u32 %v2267, %v2270
      %v2272 = vrot.slane %v2271, 4
      %v2274 = vshrl.u32 %v2217, 16
      %v2276 = vrot.slane %v2274, 4
      %v2277 = vshll.u32 %v2217, 16
      %v2279 = vrot.slane %v2277, 5
      %v2280 = vor.u32 %v2276, %v2279
      %v2281 = vrot.slane %v2280, 4
      %v2283 = vshrl.u32 %v2218, 16
      %v2285 = vrot.slane %v2283, 4
      %v2286 = vshll.u32 %v2218, 16
      %v2288 = vrot.slane %v2286, 5
      %v2289 = vor.u32 %v2285, %v2288
      %v2290 = vrot.slane %v2289, 4
      %s2291 = scalar_lea.vmem %s3, 16
      %v2292 = vld [vmem:[%s2291] sm:$0xf]
      %v2293 = vld [vmem:[%s2291 + $0x4] sm:$0xf]
      %v2294 = vcombine.low %v2227, %v2236
      %v2295 = vcombine.low %v2245, %v2254
      %v2297 = vunpack.c.l.s4 1983009808
      %v2298 = vunpack.c.0.s8 %v2297
      %v2299 = vlaneseq
      %v2300 = vshrl.u32 %v2299, 7
      %v2301 = vsub.s32 %v2298, %v2300
      %v2302 = vrot.slane %v2294, %v2301
      %v2304 = vunpack.c.l.s4 1983009808
      %v2305 = vunpack.c.0.s8 %v2304
      %v2306 = vlaneseq
      %v2307 = vshrl.u32 %v2306, 7
      %v2308 = vsub.s32 %v2305, %v2307
      %v2309 = vrot.slane %v2295, %v2308
      %v2310 = vcombine.low %v2302, %v2309
      %v2311 = vcombine.low %v2263, %v2272
      %v2312 = vcombine.low %v2281, %v2290
      %v2314 = vunpack.c.l.s4 1983009808
      %v2315 = vunpack.c.0.s8 %v2314
      %v2316 = vlaneseq
      %v2317 = vshrl.u32 %v2316, 7
      %v2318 = vsub.s32 %v2315, %v2317
      %v2319 = vrot.slane %v2311, %v2318
      %v2321 = vunpack.c.l.s4 1983009808
      %v2322 = vunpack.c.0.s8 %v2321
      %v2323 = vlaneseq
      %v2324 = vshrl.u32 %v2323, 7
      %v2325 = vsub.s32 %v2322, %v2324
      %v2326 = vrot.slane %v2312, %v2325
      %v2327 = vcombine.low %v2319, %v2326
      %v2330 = vunpack.c.l.b16 %v2292
      %v2331 = vunpack.c.l.b16 %v2293
      %v2332 = vpack.c.b16 %v2331, %v2330
      %v2335 = vsel %vm876, %v2310, 0
      %v2338 = vsel %vm876, %v2327, 0
      %2340 = vmatprep.subr.bf16.mxu0 0
      %2341 = vmatpush1.bf16.msra.mxu0 0
      %2342 = vmatprep.subr.bf16.mxu0 0
      %2343 = vmatpush1.bf16.msra.mxu0 0
      %2344 = vmatprep.subr.bf16.mxu0 0
      %2345 = vmatpush1.bf16.msra.mxu0 0
      %2346 = vmatprep.subr.bf16.mxu0 0
      %2347 = vmatpush1.bf16.msra.mxu0 0
      %2348 = vmatprep.subr.bf16.mxu0 0
      %2349 = vmatpush1.bf16.msra.mxu0 0
      %2350 = vmatprep.subr.bf16.mxu0 0
      %2351 = vmatpush1.bf16.msra.mxu0 0
      %2352 = vmatprep.subr.bf16.mxu0 0
      %2353 = vmatpush1.bf16.msra.mxu0 0
      %2354 = vmatprep.subr.bf16.mxu0 0
      %2355 = vmatpush1.bf16.msra.mxu0 %v2332
      %2356 = vmatprep.subr.bf16.mxu0 0
      %2357 = vmatpush2.bf16.msra.mxu0 0
      %2358 = vmatprep.subr.bf16.mxu0 0
      %2359 = vmatpush2.bf16.msra.mxu0 0
      %2360 = vmatprep.subr.bf16.mxu0 0
      %2361 = vmatpush2.bf16.msra.mxu0 0
      %2362 = vmatprep.subr.bf16.mxu0 0
      %2363 = vmatpush2.bf16.msra.mxu0 0
      %2364 = vmatprep.subr.bf16.mxu0 0
      %2365 = vmatpush2.bf16.msra.mxu0 0
      %2366 = vmatprep.subr.bf16.mxu0 0
      %2367 = vmatpush2.bf16.msra.mxu0 0
      %2368 = vmatprep.subr.bf16.mxu0 0
      %2369 = vmatpush2.bf16.msra.mxu0 0
      %2370 = vmatprep.subr.bf16.mxu0 0
      %2371 = vmatpush2.bf16.msra.mxu0 0
      %2372 = vmatprep.mubr.bf16.mxu0 0
      %2373 = vmatmul.mubr.bf16.gmra.mxu0 %v2138
      %v2374 = vpop.f32.mrf.mxu0
      %v2375 = vadd.f32 0.0, %v2374
      %v2376 = vpop.f32.mrf.mxu0
      %v2377 = vpop.f32.mrf.mxu0
      %v2378 = vadd.f32 0.0, %v2377
      %v2379 = vpop.f32.mrf.mxu0
      %2380 = vmatprep.mubr.bf16.mxu0 0
      %2381 = vmatmul.mubr.bf16.gmra.mxu0 %v2335
      %v2382 = vpop.f32.mrf.mxu0
      %v2383 = vadd.f32 0.0, %v2382
      %v2384 = vpop.f32.mrf.mxu0
      %v2385 = vpop.f32.mrf.mxu0
      %v2386 = vadd.f32 0.0, %v2385
      %v2387 = vpop.f32.mrf.mxu0
      %2388 = vmatprep.mubr.bf16.mxu0 0
      %2389 = vmatmul.mubr.bf16.gmra.mxu0 %v2144
      %v2390 = vpop.f32.mrf.mxu0
      %v2391 = vadd.f32 0.0, %v2390
      %v2392 = vpop.f32.mrf.mxu0
      %v2393 = vpop.f32.mrf.mxu0
      %v2394 = vadd.f32 0.0, %v2393
      %v2395 = vpop.f32.mrf.mxu0
      %2396 = vmatprep.mubr.bf16.mxu0 0
      %2397 = vmatmul.mubr.bf16.gmra.mxu0 %v2338
      %v2398 = vpop.f32.mrf.mxu0
      %v2399 = vadd.f32 0.0, %v2398
      %v2400 = vpop.f32.mrf.mxu0
      %v2401 = vpop.f32.mrf.mxu0
      %v2402 = vadd.f32 0.0, %v2401
      %v2403 = vpop.f32.mrf.mxu0
      %2404 = vdwg.mxu0
      %v2405 = vadd.f32 %v2181, %v2375
      %v2406 = vadd.f32 %v2184, %v2378
      %v2407 = vadd.f32 %v2189, %v2383
      %v2408 = vadd.f32 %v2192, %v2386
      %v2409 = vadd.f32 %v2197, %v2391
      %v2410 = vadd.f32 %v2200, %v2394
      %v2411 = vadd.f32 %v2205, %v2399
      %v2412 = vadd.f32 %v2208, %v2402
      %v2413 = vld [vmem:[%s1527] sm:$0x3]
      %v2414 = vld [vmem:[%s1527 + $0x4] sm:$0x3]
      %v2415 = vld [vmem:[%s1527 + $0x8] sm:$0x3]
      %v2416 = vld [vmem:[%s1527 + $0xc] sm:$0x3]
      %v2417 = vld [vmem:[%s1583] sm:$0x3]
      %v2418 = vld [vmem:[%s1583 + $0x4] sm:$0x3]
      %v2419 = vld [vmem:[%s1583 + $0x8] sm:$0x3]
      %v2420 = vld [vmem:[%s1583 + $0xc] sm:$0x3]
      %v2421 = vld [vmem:[%s1741] sm:$0x3]
      %v2422 = vld [vmem:[%s1741 + $0x4] sm:$0x3]
      %v2423 = vld [vmem:[%s1741 + $0x8] sm:$0x3]
      %v2424 = vld [vmem:[%s1741 + $0xc] sm:$0x3]
      %v2425 = vld [vmem:[%s1797] sm:$0x3]
      %v2426 = vld [vmem:[%s1797 + $0x4] sm:$0x3]
      %v2427 = vld [vmem:[%s1797 + $0x8] sm:$0x3]
      %v2428 = vld [vmem:[%s1797 + $0xc] sm:$0x3]
      %s2429 = scalar_lea.vmem %s3, 24
      %v2430 = vld [vmem:[%s2429] sm:$0xf]
      %v2431 = vld [vmem:[%s2429 + $0x4] sm:$0xf]
      %v2448 = vcombine.low %v2413, %v2414
      %v2449 = vcombine.low %v2415, %v2416
      %v2451 = vunpack.c.l.s4 1983009808
      %v2452 = vunpack.c.0.s8 %v2451
      %v2453 = vlaneseq
      %v2454 = vshrl.u32 %v2453, 7
      %v2455 = vsub.s32 %v2452, %v2454
      %v2456 = vrot.slane %v2448, %v2455
      %v2458 = vunpack.c.l.s4 1983009808
      %v2459 = vunpack.c.0.s8 %v2458
      %v2460 = vlaneseq
      %v2461 = vshrl.u32 %v2460, 7
      %v2462 = vsub.s32 %v2459, %v2461
      %v2463 = vrot.slane %v2449, %v2462
      %v2464 = vcombine.low %v2456, %v2463
      %v2465 = vcombine.low %v2417, %v2418
      %v2466 = vcombine.low %v2419, %v2420
      %v2468 = vunpack.c.l.s4 1983009808
      %v2469 = vunpack.c.0.s8 %v2468
      %v2470 = vlaneseq
      %v2471 = vshrl.u32 %v2470, 7
      %v2472 = vsub.s32 %v2469, %v2471
      %v2473 = vrot.slane %v2465, %v2472
      %v2475 = vunpack.c.l.s4 1983009808
      %v2476 = vunpack.c.0.s8 %v2475
      %v2477 = vlaneseq
      %v2478 = vshrl.u32 %v2477, 7
      %v2479 = vsub.s32 %v2476, %v2478
      %v2480 = vrot.slane %v2466, %v2479
      %v2481 = vcombine.low %v2473, %v2480
      %v2482 = vcombine.low %v2421, %v2422
      %v2483 = vcombine.low %v2423, %v2424
      %v2485 = vunpack.c.l.s4 1983009808
      %v2486 = vunpack.c.0.s8 %v2485
      %v2487 = vlaneseq
      %v2488 = vshrl.u32 %v2487, 7
      %v2489 = vsub.s32 %v2486, %v2488
      %v2490 = vrot.slane %v2482, %v2489
      %v2492 = vunpack.c.l.s4 1983009808
      %v2493 = vunpack.c.0.s8 %v2492
      %v2494 = vlaneseq
      %v2495 = vshrl.u32 %v2494, 7
      %v2496 = vsub.s32 %v2493, %v2495
      %v2497 = vrot.slane %v2483, %v2496
      %v2498 = vcombine.low %v2490, %v2497
      %v2499 = vcombine.low %v2425, %v2426
      %v2500 = vcombine.low %v2427, %v2428
      %v2502 = vunpack.c.l.s4 1983009808
      %v2503 = vunpack.c.0.s8 %v2502
      %v2504 = vlaneseq
      %v2505 = vshrl.u32 %v2504, 7
      %v2506 = vsub.s32 %v2503, %v2505
      %v2507 = vrot.slane %v2499, %v2506
      %v2509 = vunpack.c.l.s4 1983009808
      %v2510 = vunpack.c.0.s8 %v2509
      %v2511 = vlaneseq
      %v2512 = vshrl.u32 %v2511, 7
      %v2513 = vsub.s32 %v2510, %v2512
      %v2514 = vrot.slane %v2500, %v2513
      %v2515 = vcombine.low %v2507, %v2514
      %v2518 = vunpack.c.l.b16 %v2430
      %v2519 = vunpack.c.l.b16 %v2431
      %v2520 = vpack.c.b16 %v2519, %v2518
      %v2523 = vsel %vm876, %v2464, 0
      %v2526 = vsel %vm876, %v2481, 0
      %v2529 = vsel %vm876, %v2498, 0
      %v2532 = vsel %vm876, %v2515, 0
      %2534 = vmatprep.subr.bf16.mxu0 0
      %2535 = vmatpush1.bf16.msra.mxu0 0
      %2536 = vmatprep.subr.bf16.mxu0 0
      %2537 = vmatpush1.bf16.msra.mxu0 0
      %2538 = vmatprep.subr.bf16.mxu0 0
      %2539 = vmatpush1.bf16.msra.mxu0 0
      %2540 = vmatprep.subr.bf16.mxu0 0
      %2541 = vmatpush1.bf16.msra.mxu0 0
      %2542 = vmatprep.subr.bf16.mxu0 0
      %2543 = vmatpush1.bf16.msra.mxu0 0
      %2544 = vmatprep.subr.bf16.mxu0 0
      %2545 = vmatpush1.bf16.msra.mxu0 0
      %2546 = vmatprep.subr.bf16.mxu0 0
      %2547 = vmatpush1.bf16.msra.mxu0 0
      %2548 = vmatprep.subr.bf16.mxu0 0
      %2549 = vmatpush1.bf16.msra.mxu0 %v2520
      %2550 = vmatprep.subr.bf16.mxu0 0
      %2551 = vmatpush2.bf16.msra.mxu0 0
      %2552 = vmatprep.subr.bf16.mxu0 0
      %2553 = vmatpush2.bf16.msra.mxu0 0
      %2554 = vmatprep.subr.bf16.mxu0 0
      %2555 = vmatpush2.bf16.msra.mxu0 0
      %2556 = vmatprep.subr.bf16.mxu0 0
      %2557 = vmatpush2.bf16.msra.mxu0 0
      %2558 = vmatprep.subr.bf16.mxu0 0
      %2559 = vmatpush2.bf16.msra.mxu0 0
      %2560 = vmatprep.subr.bf16.mxu0 0
      %2561 = vmatpush2.bf16.msra.mxu0 0
      %2562 = vmatprep.subr.bf16.mxu0 0
      %2563 = vmatpush2.bf16.msra.mxu0 0
      %2564 = vmatprep.subr.bf16.mxu0 0
      %2565 = vmatpush2.bf16.msra.mxu0 0
      %2566 = vmatprep.mubr.bf16.mxu0 0
      %2567 = vmatmul.mubr.bf16.gmra.mxu0 %v2523
      %v2568 = vpop.f32.mrf.mxu0
      %v2569 = vadd.f32 0.0, %v2568
      %v2570 = vpop.f32.mrf.mxu0
      %v2571 = vpop.f32.mrf.mxu0
      %v2572 = vadd.f32 0.0, %v2571
      %v2573 = vpop.f32.mrf.mxu0
      %2574 = vmatprep.mubr.bf16.mxu0 0
      %2575 = vmatmul.mubr.bf16.gmra.mxu0 %v2526
      %v2576 = vpop.f32.mrf.mxu0
      %v2577 = vadd.f32 0.0, %v2576
      %v2578 = vpop.f32.mrf.mxu0
      %v2579 = vpop.f32.mrf.mxu0
      %v2580 = vadd.f32 0.0, %v2579
      %v2581 = vpop.f32.mrf.mxu0
      %2582 = vmatprep.mubr.bf16.mxu0 0
      %2583 = vmatmul.mubr.bf16.gmra.mxu0 %v2529
      %v2584 = vpop.f32.mrf.mxu0
      %v2585 = vadd.f32 0.0, %v2584
      %v2586 = vpop.f32.mrf.mxu0
      %v2587 = vpop.f32.mrf.mxu0
      %v2588 = vadd.f32 0.0, %v2587
      %v2589 = vpop.f32.mrf.mxu0
      %2590 = vmatprep.mubr.bf16.mxu0 0
      %2591 = vmatmul.mubr.bf16.gmra.mxu0 %v2532
      %v2592 = vpop.f32.mrf.mxu0
      %v2593 = vadd.f32 0.0, %v2592
      %v2594 = vpop.f32.mrf.mxu0
      %v2595 = vpop.f32.mrf.mxu0
      %v2596 = vadd.f32 0.0, %v2595
      %v2597 = vpop.f32.mrf.mxu0
      %2598 = vdwg.mxu0
      %v2599 = vadd.f32 %v2405, %v2569
      %v2600 = vadd.f32 %v2406, %v2572
      %v2601 = vadd.f32 %v2407, %v2577
      %v2602 = vadd.f32 %v2408, %v2580
      %v2603 = vadd.f32 %v2409, %v2585
      %v2604 = vadd.f32 %v2410, %v2588
      %v2605 = vadd.f32 %v2411, %v2593
      %v2606 = vadd.f32 %v2412, %v2596
      %v2607 = vld [vmem:[%s1563] sm:$0x3]
      %v2608 = vld [vmem:[%s1563 + $0x4] sm:$0x3]
      %v2609 = vld [vmem:[%s1563 + $0x8] sm:$0x3]
      %v2610 = vld [vmem:[%s1563 + $0xc] sm:$0x3]
      %v2611 = vld [vmem:[%s1603] sm:$0x3]
      %v2612 = vld [vmem:[%s1603 + $0x4] sm:$0x3]
      %v2613 = vld [vmem:[%s1603 + $0x8] sm:$0x3]
      %v2614 = vld [vmem:[%s1603 + $0xc] sm:$0x3]
      %v2615 = vld [vmem:[%s1777] sm:$0x3]
      %v2616 = vld [vmem:[%s1777 + $0x4] sm:$0x3]
      %v2617 = vld [vmem:[%s1777 + $0x8] sm:$0x3]
      %v2618 = vld [vmem:[%s1777 + $0xc] sm:$0x3]
      %v2619 = vld [vmem:[%s1817] sm:$0x3]
      %v2620 = vld [vmem:[%s1817 + $0x4] sm:$0x3]
      %v2621 = vld [vmem:[%s1817 + $0x8] sm:$0x3]
      %v2622 = vld [vmem:[%s1817 + $0xc] sm:$0x3]
      %s2623 = scalar_lea.vmem %s3, 32
      %v2624 = vld [vmem:[%s2623] sm:$0xf]
      %v2625 = vld [vmem:[%s2623 + $0x4] sm:$0xf]
      %v2642 = vcombine.low %v2607, %v2608
      %v2643 = vcombine.low %v2609, %v2610
      %v2645 = vunpack.c.l.s4 1983009808
      %v2646 = vunpack.c.0.s8 %v2645
      %v2647 = vlaneseq
      %v2648 = vshrl.u32 %v2647, 7
      %v2649 = vsub.s32 %v2646, %v2648
      %v2650 = vrot.slane %v2642, %v2649
      %v2652 = vunpack.c.l.s4 1983009808
      %v2653 = vunpack.c.0.s8 %v2652
      %v2654 = vlaneseq
      %v2655 = vshrl.u32 %v2654, 7
      %v2656 = vsub.s32 %v2653, %v2655
      %v2657 = vrot.slane %v2643, %v2656
      %v2658 = vcombine.low %v2650, %v2657
      %v2659 = vcombine.low %v2611, %v2612
      %v2660 = vcombine.low %v2613, %v2614
      %v2662 = vunpack.c.l.s4 1983009808
      %v2663 = vunpack.c.0.s8 %v2662
      %v2664 = vlaneseq
      %v2665 = vshrl.u32 %v2664, 7
      %v2666 = vsub.s32 %v2663, %v2665
      %v2667 = vrot.slane %v2659, %v2666
      %v2669 = vunpack.c.l.s4 1983009808
      %v2670 = vunpack.c.0.s8 %v2669
      %v2671 = vlaneseq
      %v2672 = vshrl.u32 %v2671, 7
      %v2673 = vsub.s32 %v2670, %v2672
      %v2674 = vrot.slane %v2660, %v2673
      %v2675 = vcombine.low %v2667, %v2674
      %v2676 = vcombine.low %v2615, %v2616
      %v2677 = vcombine.low %v2617, %v2618
      %v2679 = vunpack.c.l.s4 1983009808
      %v2680 = vunpack.c.0.s8 %v2679
      %v2681 = vlaneseq
      %v2682 = vshrl.u32 %v2681, 7
      %v2683 = vsub.s32 %v2680, %v2682
      %v2684 = vrot.slane %v2676, %v2683
      %v2686 = vunpack.c.l.s4 1983009808
      %v2687 = vunpack.c.0.s8 %v2686
      %v2688 = vlaneseq
      %v2689 = vshrl.u32 %v2688, 7
      %v2690 = vsub.s32 %v2687, %v2689
      %v2691 = vrot.slane %v2677, %v2690
      %v2692 = vcombine.low %v2684, %v2691
      %v2693 = vcombine.low %v2619, %v2620
      %v2694 = vcombine.low %v2621, %v2622
      %v2696 = vunpack.c.l.s4 1983009808
      %v2697 = vunpack.c.0.s8 %v2696
      %v2698 = vlaneseq
      %v2699 = vshrl.u32 %v2698, 7
      %v2700 = vsub.s32 %v2697, %v2699
      %v2701 = vrot.slane %v2693, %v2700
      %v2703 = vunpack.c.l.s4 1983009808
      %v2704 = vunpack.c.0.s8 %v2703
      %v2705 = vlaneseq
      %v2706 = vshrl.u32 %v2705, 7
      %v2707 = vsub.s32 %v2704, %v2706
      %v2708 = vrot.slane %v2694, %v2707
      %v2709 = vcombine.low %v2701, %v2708
      %v2712 = vunpack.c.l.b16 %v2624
      %v2713 = vunpack.c.l.b16 %v2625
      %v2714 = vpack.c.b16 %v2713, %v2712
      %v2717 = vsel %vm876, %v2658, 0
      %v2720 = vsel %vm876, %v2675, 0
      %v2723 = vsel %vm876, %v2692, 0
      %v2726 = vsel %vm876, %v2709, 0
      %2728 = vmatprep.subr.bf16.mxu0 0
      %2729 = vmatpush1.bf16.msra.mxu0 0
      %2730 = vmatprep.subr.bf16.mxu0 0
      %2731 = vmatpush1.bf16.msra.mxu0 0
      %2732 = vmatprep.subr.bf16.mxu0 0
      %2733 = vmatpush1.bf16.msra.mxu0 0
      %2734 = vmatprep.subr.bf16.mxu0 0
      %2735 = vmatpush1.bf16.msra.mxu0 0
      %2736 = vmatprep.subr.bf16.mxu0 0
      %2737 = vmatpush1.bf16.msra.mxu0 0
      %2738 = vmatprep.subr.bf16.mxu0 0
      %2739 = vmatpush1.bf16.msra.mxu0 0
      %2740 = vmatprep.subr.bf16.mxu0 0
      %2741 = vmatpush1.bf16.msra.mxu0 0
      %2742 = vmatprep.subr.bf16.mxu0 0
      %2743 = vmatpush1.bf16.msra.mxu0 %v2714
      %2744 = vmatprep.subr.bf16.mxu0 0
      %2745 = vmatpush2.bf16.msra.mxu0 0
      %2746 = vmatprep.subr.bf16.mxu0 0
      %2747 = vmatpush2.bf16.msra.mxu0 0
      %2748 = vmatprep.subr.bf16.mxu0 0
      %2749 = vmatpush2.bf16.msra.mxu0 0
      %2750 = vmatprep.subr.bf16.mxu0 0
      %2751 = vmatpush2.bf16.msra.mxu0 0
      %2752 = vmatprep.subr.bf16.mxu0 0
      %2753 = vmatpush2.bf16.msra.mxu0 0
      %2754 = vmatprep.subr.bf16.mxu0 0
      %2755 = vmatpush2.bf16.msra.mxu0 0
      %2756 = vmatprep.subr.bf16.mxu0 0
      %2757 = vmatpush2.bf16.msra.mxu0 0
      %2758 = vmatprep.subr.bf16.mxu0 0
      %2759 = vmatpush2.bf16.msra.mxu0 0
      %2760 = vmatprep.mubr.bf16.mxu0 0
      %2761 = vmatmul.mubr.bf16.gmra.mxu0 %v2717
      %v2762 = vpop.f32.mrf.mxu0
      %v2763 = vadd.f32 0.0, %v2762
      %v2764 = vpop.f32.mrf.mxu0
      %v2765 = vpop.f32.mrf.mxu0
      %v2766 = vadd.f32 0.0, %v2765
      %v2767 = vpop.f32.mrf.mxu0
      %2768 = vmatprep.mubr.bf16.mxu0 0
      %2769 = vmatmul.mubr.bf16.gmra.mxu0 %v2720
      %v2770 = vpop.f32.mrf.mxu0
      %v2771 = vadd.f32 0.0, %v2770
      %v2772 = vpop.f32.mrf.mxu0
      %v2773 = vpop.f32.mrf.mxu0
      %v2774 = vadd.f32 0.0, %v2773
      %v2775 = vpop.f32.mrf.mxu0
      %2776 = vmatprep.mubr.bf16.mxu0 0
      %2777 = vmatmul.mubr.bf16.gmra.mxu0 %v2723
      %v2778 = vpop.f32.mrf.mxu0
      %v2779 = vadd.f32 0.0, %v2778
      %v2780 = vpop.f32.mrf.mxu0
      %v2781 = vpop.f32.mrf.mxu0
      %v2782 = vadd.f32 0.0, %v2781
      %v2783 = vpop.f32.mrf.mxu0
      %2784 = vmatprep.mubr.bf16.mxu0 0
      %2785 = vmatmul.mubr.bf16.gmra.mxu0 %v2726
      %v2786 = vpop.f32.mrf.mxu0
      %v2787 = vadd.f32 0.0, %v2786
      %v2788 = vpop.f32.mrf.mxu0
      %v2789 = vpop.f32.mrf.mxu0
      %v2790 = vadd.f32 0.0, %v2789
      %v2791 = vpop.f32.mrf.mxu0
      %2792 = vdwg.mxu0
      %v2793 = vadd.f32 %v2599, %v2763
      %v2794 = vadd.f32 %v2600, %v2766
      %v2795 = vadd.f32 %v2601, %v2771
      %v2796 = vadd.f32 %v2602, %v2774
      %v2797 = vadd.f32 %v2603, %v2779
      %v2798 = vadd.f32 %v2604, %v2782
      %v2799 = vadd.f32 %v2605, %v2787
      %v2800 = vadd.f32 %v2606, %v2790
      %v2801 = vld [vmem:[%s1527] sm:$0x7]
      %v2802 = vld [vmem:[%s1527 + $0x4] sm:$0x7]
      %v2803 = vld [vmem:[%s1527 + $0x8] sm:$0x7]
      %v2804 = vld [vmem:[%s1527 + $0xc] sm:$0x7]
      %v2805 = vld [vmem:[%s1741] sm:$0x7]
      %v2806 = vld [vmem:[%s1741 + $0x4] sm:$0x7]
      %v2807 = vld [vmem:[%s1741 + $0x8] sm:$0x7]
      %v2808 = vld [vmem:[%s1741 + $0xc] sm:$0x7]
      %v2810 = vshrl.u32 %v2801, 16
      %v2812 = vrot.slane %v2810, 4
      %v2813 = vshll.u32 %v2801, 16
      %v2815 = vrot.slane %v2813, 5
      %v2816 = vor.u32 %v2812, %v2815
      %v2817 = vrot.slane %v2816, 4
      %v2819 = vshrl.u32 %v2802, 16
      %v2821 = vrot.slane %v2819, 4
      %v2822 = vshll.u32 %v2802, 16
      %v2824 = vrot.slane %v2822, 5
      %v2825 = vor.u32 %v2821, %v2824
      %v2826 = vrot.slane %v2825, 4
      %v2828 = vshrl.u32 %v2803, 16
      %v2830 = vrot.slane %v2828, 4
      %v2831 = vshll.u32 %v2803, 16
      %v2833 = vrot.slane %v2831, 5
      %v2834 = vor.u32 %v2830, %v2833
      %v2835 = vrot.slane %v2834, 4
      %v2837 = vshrl.u32 %v2804, 16
      %v2839 = vrot.slane %v2837, 4
      %v2840 = vshll.u32 %v2804, 16
      %v2842 = vrot.slane %v2840, 5
      %v2843 = vor.u32 %v2839, %v2842
      %v2844 = vrot.slane %v2843, 4
      %v2846 = vshrl.u32 %v2805, 16
      %v2848 = vrot.slane %v2846, 4
      %v2849 = vshll.u32 %v2805, 16
      %v2851 = vrot.slane %v2849, 5
      %v2852 = vor.u32 %v2848, %v2851
      %v2853 = vrot.slane %v2852, 4
      %v2855 = vshrl.u32 %v2806, 16
      %v2857 = vrot.slane %v2855, 4
      %v2858 = vshll.u32 %v2806, 16
      %v2860 = vrot.slane %v2858, 5
      %v2861 = vor.u32 %v2857, %v2860
      %v2862 = vrot.slane %v2861, 4
      %v2864 = vshrl.u32 %v2807, 16
      %v2866 = vrot.slane %v2864, 4
      %v2867 = vshll.u32 %v2807, 16
      %v2869 = vrot.slane %v2867, 5
      %v2870 = vor.u32 %v2866, %v2869
      %v2871 = vrot.slane %v2870, 4
      %v2873 = vshrl.u32 %v2808, 16
      %v2875 = vrot.slane %v2873, 4
      %v2876 = vshll.u32 %v2808, 16
      %v2878 = vrot.slane %v2876, 5
      %v2879 = vor.u32 %v2875, %v2878
      %v2880 = vrot.slane %v2879, 4
      %s2881 = scalar_lea.vmem %s3, 40
      %v2882 = vld [vmem:[%s2881] sm:$0xf]
      %v2883 = vld [vmem:[%s2881 + $0x4] sm:$0xf]
      %v2884 = vcombine.low %v2817, %v2826
      %v2885 = vcombine.low %v2835, %v2844
      %v2887 = vunpack.c.l.s4 1983009808
      %v2888 = vunpack.c.0.s8 %v2887
      %v2889 = vlaneseq
      %v2890 = vshrl.u32 %v2889, 7
      %v2891 = vsub.s32 %v2888, %v2890
      %v2892 = vrot.slane %v2884, %v2891
      %v2894 = vunpack.c.l.s4 1983009808
      %v2895 = vunpack.c.0.s8 %v2894
      %v2896 = vlaneseq
      %v2897 = vshrl.u32 %v2896, 7
      %v2898 = vsub.s32 %v2895, %v2897
      %v2899 = vrot.slane %v2885, %v2898
      %v2900 = vcombine.low %v2892, %v2899
      %v2901 = vcombine.low %v2853, %v2862
      %v2902 = vcombine.low %v2871, %v2880
      %v2904 = vunpack.c.l.s4 1983009808
      %v2905 = vunpack.c.0.s8 %v2904
      %v2906 = vlaneseq
      %v2907 = vshrl.u32 %v2906, 7
      %v2908 = vsub.s32 %v2905, %v2907
      %v2909 = vrot.slane %v2901, %v2908
      %v2911 = vunpack.c.l.s4 1983009808
      %v2912 = vunpack.c.0.s8 %v2911
      %v2913 = vlaneseq
      %v2914 = vshrl.u32 %v2913, 7
      %v2915 = vsub.s32 %v2912, %v2914
      %v2916 = vrot.slane %v2902, %v2915
      %v2917 = vcombine.low %v2909, %v2916
      %v2920 = vunpack.c.l.b16 %v2882
      %v2921 = vunpack.c.l.b16 %v2883
      %v2922 = vpack.c.b16 %v2921, %v2920
      %v2925 = vsel %vm876, %v2900, 0
      %v2928 = vsel %vm876, %v2917, 0
      %2930 = vmatprep.subr.bf16.mxu0 0
      %2931 = vmatpush1.bf16.msra.mxu0 0
      %2932 = vmatprep.subr.bf16.mxu0 0
      %2933 = vmatpush1.bf16.msra.mxu0 0
      %2934 = vmatprep.subr.bf16.mxu0 0
      %2935 = vmatpush1.bf16.msra.mxu0 0
      %2936 = vmatprep.subr.bf16.mxu0 0
      %2937 = vmatpush1.bf16.msra.mxu0 0
      %2938 = vmatprep.subr.bf16.mxu0 0
      %2939 = vmatpush1.bf16.msra.mxu0 0
      %2940 = vmatprep.subr.bf16.mxu0 0
      %2941 = vmatpush1.bf16.msra.mxu0 0
      %2942 = vmatprep.subr.bf16.mxu0 0
      %2943 = vmatpush1.bf16.msra.mxu0 0
      %2944 = vmatprep.subr.bf16.mxu0 0
      %2945 = vmatpush1.bf16.msra.mxu0 %v2922
      %2946 = vmatprep.subr.bf16.mxu0 0
      %2947 = vmatpush2.bf16.msra.mxu0 0
      %2948 = vmatprep.subr.bf16.mxu0 0
      %2949 = vmatpush2.bf16.msra.mxu0 0
      %2950 = vmatprep.subr.bf16.mxu0 0
      %2951 = vmatpush2.bf16.msra.mxu0 0
      %2952 = vmatprep.subr.bf16.mxu0 0
      %2953 = vmatpush2.bf16.msra.mxu0 0
      %2954 = vmatprep.subr.bf16.mxu0 0
      %2955 = vmatpush2.bf16.msra.mxu0 0
      %2956 = vmatprep.subr.bf16.mxu0 0
      %2957 = vmatpush2.bf16.msra.mxu0 0
      %2958 = vmatprep.subr.bf16.mxu0 0
      %2959 = vmatpush2.bf16.msra.mxu0 0
      %2960 = vmatprep.subr.bf16.mxu0 0
      %2961 = vmatpush2.bf16.msra.mxu0 0
      %2962 = vmatprep.mubr.bf16.mxu0 0
      %2963 = vmatmul.mubr.bf16.gmra.mxu0 %v2526
      %v2964 = vpop.f32.mrf.mxu0
      %v2965 = vadd.f32 0.0, %v2964
      %v2966 = vpop.f32.mrf.mxu0
      %v2967 = vpop.f32.mrf.mxu0
      %v2968 = vadd.f32 0.0, %v2967
      %v2969 = vpop.f32.mrf.mxu0
      %2970 = vmatprep.mubr.bf16.mxu0 0
      %2971 = vmatmul.mubr.bf16.gmra.mxu0 %v2925
      %v2972 = vpop.f32.mrf.mxu0
      %v2973 = vadd.f32 0.0, %v2972
      %v2974 = vpop.f32.mrf.mxu0
      %v2975 = vpop.f32.mrf.mxu0
      %v2976 = vadd.f32 0.0, %v2975
      %v2977 = vpop.f32.mrf.mxu0
      %2978 = vmatprep.mubr.bf16.mxu0 0
      %2979 = vmatmul.mubr.bf16.gmra.mxu0 %v2532
      %v2980 = vpop.f32.mrf.mxu0
      %v2981 = vadd.f32 0.0, %v2980
      %v2982 = vpop.f32.mrf.mxu0
      %v2983 = vpop.f32.mrf.mxu0
      %v2984 = vadd.f32 0.0, %v2983
      %v2985 = vpop.f32.mrf.mxu0
      %2986 = vmatprep.mubr.bf16.mxu0 0
      %2987 = vmatmul.mubr.bf16.gmra.mxu0 %v2928
      %v2988 = vpop.f32.mrf.mxu0
      %v2989 = vadd.f32 0.0, %v2988
      %v2990 = vpop.f32.mrf.mxu0
      %v2991 = vpop.f32.mrf.mxu0
      %v2992 = vadd.f32 0.0, %v2991
      %v2993 = vpop.f32.mrf.mxu0
      %2994 = vdwg.mxu0
      %v2995 = vadd.f32 %v2793, %v2965
      %v2996 = vadd.f32 %v2794, %v2968
      %v2997 = vadd.f32 %v2795, %v2973
      %v2998 = vadd.f32 %v2796, %v2976
      %v2999 = vadd.f32 %v2797, %v2981
      %v3000 = vadd.f32 %v2798, %v2984
      %v3001 = vadd.f32 %v2799, %v2989
      %v3002 = vadd.f32 %v2800, %v2992
      %v3003 = vld [vmem:[%s1417] sm:$0x3]
      %v3004 = vld [vmem:[%s1417 + $0x4] sm:$0x3]
      %v3005 = vld [vmem:[%s1417 + $0x8] sm:$0x3]
      %v3006 = vld [vmem:[%s1417 + $0xc] sm:$0x3]
      %v3007 = vld [vmem:[%s1476] sm:$0x3]
      %v3008 = vld [vmem:[%s1476 + $0x4] sm:$0x3]
      %v3009 = vld [vmem:[%s1476 + $0x8] sm:$0x3]
      %v3010 = vld [vmem:[%s1476 + $0xc] sm:$0x3]
      %s3011 = scalar_lea.vmem %s3, 48
      %v3012 = vld [vmem:[%s3011] sm:$0xf]
      %v3013 = vld [vmem:[%s3011 + $0x4] sm:$0xf]
      %v3022 = vcombine.low %v3003, %v3004
      %v3023 = vcombine.low %v3005, %v3006
      %v3025 = vunpack.c.l.s4 1983009808
      %v3026 = vunpack.c.0.s8 %v3025
      %v3027 = vlaneseq
      %v3028 = vshrl.u32 %v3027, 7
      %v3029 = vsub.s32 %v3026, %v3028
      %v3030 = vrot.slane %v3022, %v3029
      %v3032 = vunpack.c.l.s4 1983009808
      %v3033 = vunpack.c.0.s8 %v3032
      %v3034 = vlaneseq
      %v3035 = vshrl.u32 %v3034, 7
      %v3036 = vsub.s32 %v3033, %v3035
      %v3037 = vrot.slane %v3023, %v3036
      %v3038 = vcombine.low %v3030, %v3037
      %v3039 = vcombine.low %v3007, %v3008
      %v3040 = vcombine.low %v3009, %v3010
      %v3042 = vunpack.c.l.s4 1983009808
      %v3043 = vunpack.c.0.s8 %v3042
      %v3044 = vlaneseq
      %v3045 = vshrl.u32 %v3044, 7
      %v3046 = vsub.s32 %v3043, %v3045
      %v3047 = vrot.slane %v3039, %v3046
      %v3049 = vunpack.c.l.s4 1983009808
      %v3050 = vunpack.c.0.s8 %v3049
      %v3051 = vlaneseq
      %v3052 = vshrl.u32 %v3051, 7
      %v3053 = vsub.s32 %v3050, %v3052
      %v3054 = vrot.slane %v3040, %v3053
      %v3055 = vcombine.low %v3047, %v3054
      %v3058 = vunpack.c.l.b16 %v3012
      %v3059 = vunpack.c.l.b16 %v3013
      %v3060 = vpack.c.b16 %v3059, %v3058
      %v3063 = vsel %vm876, %v3038, 0
      %v3066 = vsel %vm876, %v3055, 0
      %3068 = vmatprep.subr.bf16.mxu0 0
      %3069 = vmatpush1.bf16.msra.mxu0 0
      %3070 = vmatprep.subr.bf16.mxu0 0
      %3071 = vmatpush1.bf16.msra.mxu0 0
      %3072 = vmatprep.subr.bf16.mxu0 0
      %3073 = vmatpush1.bf16.msra.mxu0 0
      %3074 = vmatprep.subr.bf16.mxu0 0
      %3075 = vmatpush1.bf16.msra.mxu0 0
      %3076 = vmatprep.subr.bf16.mxu0 0
      %3077 = vmatpush1.bf16.msra.mxu0 0
      %3078 = vmatprep.subr.bf16.mxu0 0
      %3079 = vmatpush1.bf16.msra.mxu0 0
      %3080 = vmatprep.subr.bf16.mxu0 0
      %3081 = vmatpush1.bf16.msra.mxu0 0
      %3082 = vmatprep.subr.bf16.mxu0 0
      %3083 = vmatpush1.bf16.msra.mxu0 %v3060
      %3084 = vmatprep.subr.bf16.mxu0 0
      %3085 = vmatpush2.bf16.msra.mxu0 0
      %3086 = vmatprep.subr.bf16.mxu0 0
      %3087 = vmatpush2.bf16.msra.mxu0 0
      %3088 = vmatprep.subr.bf16.mxu0 0
      %3089 = vmatpush2.bf16.msra.mxu0 0
      %3090 = vmatprep.subr.bf16.mxu0 0
      %3091 = vmatpush2.bf16.msra.mxu0 0
      %3092 = vmatprep.subr.bf16.mxu0 0
      %3093 = vmatpush2.bf16.msra.mxu0 0
      %3094 = vmatprep.subr.bf16.mxu0 0
      %3095 = vmatpush2.bf16.msra.mxu0 0
      %3096 = vmatprep.subr.bf16.mxu0 0
      %3097 = vmatpush2.bf16.msra.mxu0 0
      %3098 = vmatprep.subr.bf16.mxu0 0
      %3099 = vmatpush2.bf16.msra.mxu0 0
      %3100 = vmatprep.mubr.bf16.mxu0 0
      %3101 = vmatmul.mubr.bf16.gmra.mxu0 %v2141
      %v3102 = vpop.f32.mrf.mxu0
      %v3103 = vadd.f32 0.0, %v3102
      %v3104 = vpop.f32.mrf.mxu0
      %v3105 = vpop.f32.mrf.mxu0
      %v3106 = vadd.f32 0.0, %v3105
      %v3107 = vpop.f32.mrf.mxu0
      %3108 = vmatprep.mubr.bf16.mxu0 0
      %3109 = vmatmul.mubr.bf16.gmra.mxu0 %v2144
      %v3110 = vpop.f32.mrf.mxu0
      %v3111 = vadd.f32 0.0, %v3110
      %v3112 = vpop.f32.mrf.mxu0
      %v3113 = vpop.f32.mrf.mxu0
      %v3114 = vadd.f32 0.0, %v3113
      %v3115 = vpop.f32.mrf.mxu0
      %3116 = vmatprep.mubr.bf16.mxu0 0
      %3117 = vmatmul.mubr.bf16.gmra.mxu0 %v3063
      %v3118 = vpop.f32.mrf.mxu0
      %v3119 = vadd.f32 0.0, %v3118
      %v3120 = vpop.f32.mrf.mxu0
      %v3121 = vpop.f32.mrf.mxu0
      %v3122 = vadd.f32 0.0, %v3121
      %v3123 = vpop.f32.mrf.mxu0
      %3124 = vmatprep.mubr.bf16.mxu0 0
      %3125 = vmatmul.mubr.bf16.gmra.mxu0 %v3066
      %v3126 = vpop.f32.mrf.mxu0
      %v3127 = vadd.f32 0.0, %v3126
      %v3128 = vpop.f32.mrf.mxu0
      %v3129 = vpop.f32.mrf.mxu0
      %v3130 = vadd.f32 0.0, %v3129
      %v3131 = vpop.f32.mrf.mxu0
      %3132 = vdwg.mxu0
      %v3133 = vadd.f32 %v2995, %v3103
      %v3134 = vadd.f32 %v2996, %v3106
      %v3135 = vadd.f32 %v2997, %v3111
      %v3136 = vadd.f32 %v2998, %v3114
      %v3137 = vadd.f32 %v2999, %v3119
      %v3138 = vadd.f32 %v3000, %v3122
      %v3139 = vadd.f32 %v3001, %v3127
      %v3140 = vadd.f32 %v3002, %v3130
      %v3141 = vld [vmem:[%s1455] sm:$0x3]
      %v3142 = vld [vmem:[%s1455 + $0x4] sm:$0x3]
      %v3143 = vld [vmem:[%s1455 + $0x8] sm:$0x3]
      %v3144 = vld [vmem:[%s1455 + $0xc] sm:$0x3]
      %v3145 = vld [vmem:[%s1496] sm:$0x3]
      %v3146 = vld [vmem:[%s1496 + $0x4] sm:$0x3]
      %v3147 = vld [vmem:[%s1496 + $0x8] sm:$0x3]
      %v3148 = vld [vmem:[%s1496 + $0xc] sm:$0x3]
      %s3149 = scalar_lea.vmem %s3, 56
      %v3150 = vld [vmem:[%s3149] sm:$0xf]
      %v3151 = vld [vmem:[%s3149 + $0x4] sm:$0xf]
      %v3160 = vcombine.low %v3141, %v3142
      %v3161 = vcombine.low %v3143, %v3144
      %v3163 = vunpack.c.l.s4 1983009808
      %v3164 = vunpack.c.0.s8 %v3163
      %v3165 = vlaneseq
      %v3166 = vshrl.u32 %v3165, 7
      %v3167 = vsub.s32 %v3164, %v3166
      %v3168 = vrot.slane %v3160, %v3167
      %v3170 = vunpack.c.l.s4 1983009808
      %v3171 = vunpack.c.0.s8 %v3170
      %v3172 = vlaneseq
      %v3173 = vshrl.u32 %v3172, 7
      %v3174 = vsub.s32 %v3171, %v3173
      %v3175 = vrot.slane %v3161, %v3174
      %v3176 = vcombine.low %v3168, %v3175
      %v3177 = vcombine.low %v3145, %v3146
      %v3178 = vcombine.low %v3147, %v3148
      %v3180 = vunpack.c.l.s4 1983009808
      %v3181 = vunpack.c.0.s8 %v3180
      %v3182 = vlaneseq
      %v3183 = vshrl.u32 %v3182, 7
      %v3184 = vsub.s32 %v3181, %v3183
      %v3185 = vrot.slane %v3177, %v3184
      %v3187 = vunpack.c.l.s4 1983009808
      %v3188 = vunpack.c.0.s8 %v3187
      %v3189 = vlaneseq
      %v3190 = vshrl.u32 %v3189, 7
      %v3191 = vsub.s32 %v3188, %v3190
      %v3192 = vrot.slane %v3178, %v3191
      %v3193 = vcombine.low %v3185, %v3192
      %v3196 = vunpack.c.l.b16 %v3150
      %v3197 = vunpack.c.l.b16 %v3151
      %v3198 = vpack.c.b16 %v3197, %v3196
      %v3201 = vsel %vm876, %v3176, 0
      %v3204 = vsel %vm876, %v3193, 0
      %3206 = vmatprep.subr.bf16.mxu0 0
      %3207 = vmatpush1.bf16.msra.mxu0 0
      %3208 = vmatprep.subr.bf16.mxu0 0
      %3209 = vmatpush1.bf16.msra.mxu0 0
      %3210 = vmatprep.subr.bf16.mxu0 0
      %3211 = vmatpush1.bf16.msra.mxu0 0
      %3212 = vmatprep.subr.bf16.mxu0 0
      %3213 = vmatpush1.bf16.msra.mxu0 0
      %3214 = vmatprep.subr.bf16.mxu0 0
      %3215 = vmatpush1.bf16.msra.mxu0 0
      %3216 = vmatprep.subr.bf16.mxu0 0
      %3217 = vmatpush1.bf16.msra.mxu0 0
      %3218 = vmatprep.subr.bf16.mxu0 0
      %3219 = vmatpush1.bf16.msra.mxu0 0
      %3220 = vmatprep.subr.bf16.mxu0 0
      %3221 = vmatpush1.bf16.msra.mxu0 %v3198
      %3222 = vmatprep.subr.bf16.mxu0 0
      %3223 = vmatpush2.bf16.msra.mxu0 0
      %3224 = vmatprep.subr.bf16.mxu0 0
      %3225 = vmatpush2.bf16.msra.mxu0 0
      %3226 = vmatprep.subr.bf16.mxu0 0
      %3227 = vmatpush2.bf16.msra.mxu0 0
      %3228 = vmatprep.subr.bf16.mxu0 0
      %3229 = vmatpush2.bf16.msra.mxu0 0
      %3230 = vmatprep.subr.bf16.mxu0 0
      %3231 = vmatpush2.bf16.msra.mxu0 0
      %3232 = vmatprep.subr.bf16.mxu0 0
      %3233 = vmatpush2.bf16.msra.mxu0 0
      %3234 = vmatprep.subr.bf16.mxu0 0
      %3235 = vmatpush2.bf16.msra.mxu0 0
      %3236 = vmatprep.subr.bf16.mxu0 0
      %3237 = vmatpush2.bf16.msra.mxu0 0
      %3238 = vmatprep.mubr.bf16.mxu0 0
      %3239 = vmatmul.mubr.bf16.gmra.mxu0 %v1974
      %v3240 = vpop.f32.mrf.mxu0
      %v3241 = vadd.f32 0.0, %v3240
      %v3242 = vpop.f32.mrf.mxu0
      %v3243 = vpop.f32.mrf.mxu0
      %v3244 = vadd.f32 0.0, %v3243
      %v3245 = vpop.f32.mrf.mxu0
      %3246 = vmatprep.mubr.bf16.mxu0 0
      %3247 = vmatmul.mubr.bf16.gmra.mxu0 %v1977
      %v3248 = vpop.f32.mrf.mxu0
      %v3249 = vadd.f32 0.0, %v3248
      %v3250 = vpop.f32.mrf.mxu0
      %v3251 = vpop.f32.mrf.mxu0
      %v3252 = vadd.f32 0.0, %v3251
      %v3253 = vpop.f32.mrf.mxu0
      %3254 = vmatprep.mubr.bf16.mxu0 0
      %3255 = vmatmul.mubr.bf16.gmra.mxu0 %v3201
      %v3256 = vpop.f32.mrf.mxu0
      %v3257 = vadd.f32 0.0, %v3256
      %v3258 = vpop.f32.mrf.mxu0
      %v3259 = vpop.f32.mrf.mxu0
      %v3260 = vadd.f32 0.0, %v3259
      %v3261 = vpop.f32.mrf.mxu0
      %3262 = vmatprep.mubr.bf16.mxu0 0
      %3263 = vmatmul.mubr.bf16.gmra.mxu0 %v3204
      %v3264 = vpop.f32.mrf.mxu0
      %v3265 = vadd.f32 0.0, %v3264
      %v3266 = vpop.f32.mrf.mxu0
      %v3267 = vpop.f32.mrf.mxu0
      %v3268 = vadd.f32 0.0, %v3267
      %v3269 = vpop.f32.mrf.mxu0
      %3270 = vdwg.mxu0
      %v3271 = vadd.f32 %v3133, %v3241
      %v3272 = vadd.f32 %v3134, %v3244
      %v3273 = vadd.f32 %v3135, %v3249
      %v3274 = vadd.f32 %v3136, %v3252
      %v3275 = vadd.f32 %v3137, %v3257
      %v3276 = vadd.f32 %v3138, %v3260
      %v3277 = vadd.f32 %v3139, %v3265
      %v3278 = vadd.f32 %v3140, %v3268
      %v3279 = vld [vmem:[%s1417] sm:$0x7]
      %v3280 = vld [vmem:[%s1417 + $0x4] sm:$0x7]
      %v3281 = vld [vmem:[%s1417 + $0x8] sm:$0x7]
      %v3282 = vld [vmem:[%s1417 + $0xc] sm:$0x7]
      %v3284 = vshrl.u32 %v3279, 16
      %v3286 = vrot.slane %v3284, 4
      %v3287 = vshll.u32 %v3279, 16
      %v3289 = vrot.slane %v3287, 5
      %v3290 = vor.u32 %v3286, %v3289
      %v3291 = vrot.slane %v3290, 4
      %v3293 = vshrl.u32 %v3280, 16
      %v3295 = vrot.slane %v3293, 4
      %v3296 = vshll.u32 %v3280, 16
      %v3298 = vrot.slane %v3296, 5
      %v3299 = vor.u32 %v3295, %v3298
      %v3300 = vrot.slane %v3299, 4
      %v3302 = vshrl.u32 %v3281, 16
      %v3304 = vrot.slane %v3302, 4
      %v3305 = vshll.u32 %v3281, 16
      %v3307 = vrot.slane %v3305, 5
      %v3308 = vor.u32 %v3304, %v3307
      %v3309 = vrot.slane %v3308, 4
      %v3311 = vshrl.u32 %v3282, 16
      %v3313 = vrot.slane %v3311, 4
      %v3314 = vshll.u32 %v3282, 16
      %v3316 = vrot.slane %v3314, 5
      %v3317 = vor.u32 %v3313, %v3316
      %v3318 = vrot.slane %v3317, 4
      %s3319 = scalar_lea.vmem %s3, 64
      %v3320 = vld [vmem:[%s3319] sm:$0xf]
      %v3321 = vld [vmem:[%s3319 + $0x4] sm:$0xf]
      %v3322 = vcombine.low %v3291, %v3300
      %v3323 = vcombine.low %v3309, %v3318
      %v3325 = vunpack.c.l.s4 1983009808
      %v3326 = vunpack.c.0.s8 %v3325
      %v3327 = vlaneseq
      %v3328 = vshrl.u32 %v3327, 7
      %v3329 = vsub.s32 %v3326, %v3328
      %v3330 = vrot.slane %v3322, %v3329
      %v3332 = vunpack.c.l.s4 1983009808
      %v3333 = vunpack.c.0.s8 %v3332
      %v3334 = vlaneseq
      %v3335 = vshrl.u32 %v3334, 7
      %v3336 = vsub.s32 %v3333, %v3335
      %v3337 = vrot.slane %v3323, %v3336
      %v3338 = vcombine.low %v3330, %v3337
      %v3341 = vunpack.c.l.b16 %v3320
      %v3342 = vunpack.c.l.b16 %v3321
      %v3343 = vpack.c.b16 %v3342, %v3341
      %v3346 = vsel %vm876, %v3338, 0
      %3348 = vmatprep.subr.bf16.mxu0 0
      %3349 = vmatpush1.bf16.msra.mxu0 0
      %3350 = vmatprep.subr.bf16.mxu0 0
      %3351 = vmatpush1.bf16.msra.mxu0 0
      %3352 = vmatprep.subr.bf16.mxu0 0
      %3353 = vmatpush1.bf16.msra.mxu0 0
      %3354 = vmatprep.subr.bf16.mxu0 0
      %3355 = vmatpush1.bf16.msra.mxu0 0
      %3356 = vmatprep.subr.bf16.mxu0 0
      %3357 = vmatpush1.bf16.msra.mxu0 0
      %3358 = vmatprep.subr.bf16.mxu0 0
      %3359 = vmatpush1.bf16.msra.mxu0 0
      %3360 = vmatprep.subr.bf16.mxu0 0
      %3361 = vmatpush1.bf16.msra.mxu0 0
      %3362 = vmatprep.subr.bf16.mxu0 0
      %3363 = vmatpush1.bf16.msra.mxu0 %v3343
      %3364 = vmatprep.subr.bf16.mxu0 0
      %3365 = vmatpush2.bf16.msra.mxu0 0
      %3366 = vmatprep.subr.bf16.mxu0 0
      %3367 = vmatpush2.bf16.msra.mxu0 0
      %3368 = vmatprep.subr.bf16.mxu0 0
      %3369 = vmatpush2.bf16.msra.mxu0 0
      %3370 = vmatprep.subr.bf16.mxu0 0
      %3371 = vmatpush2.bf16.msra.mxu0 0
      %3372 = vmatprep.subr.bf16.mxu0 0
      %3373 = vmatpush2.bf16.msra.mxu0 0
      %3374 = vmatprep.subr.bf16.mxu0 0
      %3375 = vmatpush2.bf16.msra.mxu0 0
      %3376 = vmatprep.subr.bf16.mxu0 0
      %3377 = vmatpush2.bf16.msra.mxu0 0
      %3378 = vmatprep.subr.bf16.mxu0 0
      %3379 = vmatpush2.bf16.msra.mxu0 0
      %3380 = vmatprep.mubr.bf16.mxu0 0
      %3381 = vmatmul.mubr.bf16.gmra.mxu0 %v2144
      %v3382 = vpop.f32.mrf.mxu0
      %v3383 = vadd.f32 0.0, %v3382
      %v3384 = vpop.f32.mrf.mxu0
      %v3385 = vpop.f32.mrf.mxu0
      %v3386 = vadd.f32 0.0, %v3385
      %v3387 = vpop.f32.mrf.mxu0
      %3388 = vmatprep.mubr.bf16.mxu0 0
      %3389 = vmatmul.mubr.bf16.gmra.mxu0 %v2338
      %v3390 = vpop.f32.mrf.mxu0
      %v3391 = vadd.f32 0.0, %v3390
      %v3392 = vpop.f32.mrf.mxu0
      %v3393 = vpop.f32.mrf.mxu0
      %v3394 = vadd.f32 0.0, %v3393
      %v3395 = vpop.f32.mrf.mxu0
      %3396 = vmatprep.mubr.bf16.mxu0 0
      %3397 = vmatmul.mubr.bf16.gmra.mxu0 %v3066
      %v3398 = vpop.f32.mrf.mxu0
      %v3399 = vadd.f32 0.0, %v3398
      %v3400 = vpop.f32.mrf.mxu0
      %v3401 = vpop.f32.mrf.mxu0
      %v3402 = vadd.f32 0.0, %v3401
      %v3403 = vpop.f32.mrf.mxu0
      %3404 = vmatprep.mubr.bf16.mxu0 0
      %3405 = vmatmul.mubr.bf16.gmra.mxu0 %v3346
      %v3406 = vpop.f32.mrf.mxu0
      %v3407 = vadd.f32 0.0, %v3406
      %v3408 = vpop.f32.mrf.mxu0
      %v3409 = vpop.f32.mrf.mxu0
      %v3410 = vadd.f32 0.0, %v3409
      %v3411 = vpop.f32.mrf.mxu0
      %3412 = vdwg.mxu0
      %v3413 = vadd.f32 %v3271, %v3383
      %v3414 = vadd.f32 %v3272, %v3386
      %v3415 = vadd.f32 %v3273, %v3391
      %v3416 = vadd.f32 %v3274, %v3394
      %v3417 = vadd.f32 %v3275, %v3399
      %v3418 = vadd.f32 %v3276, %v3402
      %v3419 = vadd.f32 %v3277, %v3407
      %v3420 = vadd.f32 %v3278, %v3410
      %v3421 = vld [vmem:[%s4] sm:$0x1]
      %v3423 = vlaneseq
      %v3424 = vshrl.u32 %v3423, 7
      %v3425 = vsub.s32 0, %v3424
      %v3426 = vrot.slane %v3421, %v3425
      %v3428 = vadd.f32 %v3413, %v3426
      %v3429 = vadd.f32 %v3414, %v3426
      %v3430 = vadd.f32 %v3415, %v3426
      %v3431 = vadd.f32 %v3416, %v3426
      %v3432 = vadd.f32 %v3417, %v3426
      %v3433 = vadd.f32 %v3418, %v3426
      %v3434 = vadd.f32 %v3419, %v3426
      %v3435 = vadd.f32 %v3420, %v3426
      %vm3436 = vcmask 523264
      %v3437 = vsel %vm3436, %v3428, 0.0
      %v3438 = vsel %vm3436, %v3429, 0.0
      %v3439 = vadd.f32 %v3437, %v3438
      %v3440 = vsel %vm3436, %v3430, 0.0
      %v3441 = vadd.f32 %v3439, %v3440
      %v3442 = vsel %vm3436, %v3431, 0.0
      %v3443 = vadd.f32 %v3441, %v3442
      %v3444 = vsel %vm3436, %v3432, 0.0
      %v3445 = vadd.f32 %v3443, %v3444
      %v3446 = vsel %vm3436, %v3433, 0.0
      %v3447 = vadd.f32 %v3445, %v3446
      %v3448 = vsel %vm3436, %v3434, 0.0
      %v3449 = vadd.f32 %v3447, %v3448
      %v3450 = vsel %vm3436, %v3435, 0.0
      %v3451 = vadd.f32 %v3449, %v3450
      %v3452 = vrot.slane %v3451, 4
      %v3453 = vadd.f32 %v3451, %v3452
      %v3454 = vrot.slane %v3453, 2
      %v3455 = vadd.f32 %v3453, %v3454
      %v3456 = vrot.slane %v3455, 1
      %v3457 = vadd.f32 %v3455, %v3456
      %v3458 = vmul.f32 %v3457, 0.015625
      %v3459 = vsub.f32 %v3428, %v3458
      %v3460 = vsub.f32 %v3429, %v3458
      %v3461 = vsub.f32 %v3430, %v3458
      %v3462 = vsub.f32 %v3431, %v3458
      %v3463 = vsub.f32 %v3432, %v3458
      %v3464 = vsub.f32 %v3433, %v3458
      %v3465 = vsub.f32 %v3434, %v3458
      %v3466 = vsub.f32 %v3435, %v3458
      %v3467 = vmul.f32 %v3459, %v3459
      %v3468 = vmul.f32 %v3460, %v3460
      %v3469 = vmul.f32 %v3461, %v3461
      %v3470 = vmul.f32 %v3462, %v3462
      %v3471 = vmul.f32 %v3463, %v3463
      %v3472 = vmul.f32 %v3464, %v3464
      %v3473 = vmul.f32 %v3465, %v3465
      %v3474 = vmul.f32 %v3466, %v3466
      %v3475 = vsel %vm3436, %v3467, 0.0
      %v3476 = vsel %vm3436, %v3468, 0.0
      %v3477 = vadd.f32 %v3475, %v3476
      %v3478 = vsel %vm3436, %v3469, 0.0
      %v3479 = vadd.f32 %v3477, %v3478
      %v3480 = vsel %vm3436, %v3470, 0.0
      %v3481 = vadd.f32 %v3479, %v3480
      %v3482 = vsel %vm3436, %v3471, 0.0
      %v3483 = vadd.f32 %v3481, %v3482
      %v3484 = vsel %vm3436, %v3472, 0.0
      %v3485 = vadd.f32 %v3483, %v3484
      %v3486 = vsel %vm3436, %v3473, 0.0
      %v3487 = vadd.f32 %v3485, %v3486
      %v3488 = vsel %vm3436, %v3474, 0.0
      %v3489 = vadd.f32 %v3487, %v3488
      %v3490 = vrot.slane %v3489, 4
      %v3491 = vadd.f32 %v3489, %v3490
      %v3492 = vrot.slane %v3491, 2
      %v3493 = vadd.f32 %v3491, %v3492
      %v3494 = vrot.slane %v3493, 1
      %v3495 = vadd.f32 %v3493, %v3494
      %v3496 = vmul.f32 %v3495, 0.015625
      %v3497 = vadd.f32 %v3496, 1e-05
      %v3498 = vrsqrt.pop %v3497
      %v3499 = vmul.f32 %v3459, %v3498
      %v3500 = vmul.f32 %v3460, %v3498
      %v3501 = vmul.f32 %v3461, %v3498
      %v3502 = vmul.f32 %v3462, %v3498
      %v3503 = vmul.f32 %v3463, %v3498
      %v3504 = vmul.f32 %v3464, %v3498
      %v3505 = vmul.f32 %v3465, %v3498
      %v3506 = vmul.f32 %v3466, %v3498
      %v3507 = vmax.f32 %v3499, 0.0
      %v3508 = vmax.f32 %v3500, 0.0
      %v3509 = vmax.f32 %v3501, 0.0
      %v3510 = vmax.f32 %v3502, 0.0
      %v3511 = vmax.f32 %v3503, 0.0
      %v3512 = vmax.f32 %v3504, 0.0
      %v3513 = vmax.f32 %v3505, 0.0
      %v3514 = vmax.f32 %v3506, 0.0
      %v3515 = vpack.c.bf16 %v3508, %v3507
      %v3516 = vpack.c.bf16 %v3510, %v3509
      %v3517 = vpack.c.bf16 %v3512, %v3511
      %v3518 = vpack.c.bf16 %v3514, %v3513
      %vm3519 = vcmask 518144
      %vm3520 = vmand %vm3519, %vm1164
      %v3521 = vld [vmem:[#allocation3] sm:$0x7]
      %v3522 = vsel %vm3520, 0, %v3521
      %3523 = vst [vmem:[#allocation3] sm:$0x7] %v3522
      %v3524 = vld [vmem:[#allocation3 + $0x4] sm:$0x7]
      %v3525 = vsel %vm3520, 0, %v3524
      %3526 = vst [vmem:[#allocation3 + $0x4] sm:$0x7] %v3525
      %v3527 = vld [vmem:[#allocation3 + $0x8] sm:$0x7]
      %v3528 = vsel %vm3520, 0, %v3527
      %3529 = vst [vmem:[#allocation3 + $0x8] sm:$0x7] %v3528
      %v3530 = vld [vmem:[#allocation3 + $0xc] sm:$0x7]
      %v3531 = vsel %vm3520, 0, %v3530
      %3532 = vst [vmem:[#allocation3 + $0xc] sm:$0x7] %v3531
      %v3533 = vld [vmem:[#allocation3 + $0x10] sm:$0x7]
      %v3534 = vsel %vm3520, 0, %v3533
      %3535 = vst [vmem:[#allocation3 + $0x10] sm:$0x7] %v3534
      %v3536 = vld [vmem:[#allocation3 + $0x14] sm:$0x7]
      %v3537 = vsel %vm3520, 0, %v3536
      %3538 = vst [vmem:[#allocation3 + $0x14] sm:$0x7] %v3537
      %v3539 = vld [vmem:[#allocation3 + $0x18] sm:$0x7]
      %v3540 = vsel %vm3520, 0, %v3539
      %3541 = vst [vmem:[#allocation3 + $0x18] sm:$0x7] %v3540
      %v3542 = vld [vmem:[#allocation3 + $0x1c] sm:$0x7]
      %v3543 = vsel %vm3520, 0, %v3542
      %3544 = vst [vmem:[#allocation3 + $0x1c] sm:$0x7] %v3543
      %v3545 = vld [vmem:[#allocation3 + $0x20] sm:$0x7]
      %v3546 = vsel %vm3520, 0, %v3545
      %3547 = vst [vmem:[#allocation3 + $0x20] sm:$0x7] %v3546
      %v3548 = vld [vmem:[#allocation3 + $0x24] sm:$0x7]
      %v3549 = vsel %vm3520, 0, %v3548
      %3550 = vst [vmem:[#allocation3 + $0x24] sm:$0x7] %v3549
      %v3551 = vld [vmem:[#allocation3 + $0x28] sm:$0x7]
      %v3552 = vsel %vm3520, 0, %v3551
      %3553 = vst [vmem:[#allocation3 + $0x28] sm:$0x7] %v3552
      %v3554 = vld [vmem:[#allocation3 + $0x2c] sm:$0x7]
      %v3555 = vsel %vm3520, 0, %v3554
      %3556 = vst [vmem:[#allocation3 + $0x2c] sm:$0x7] %v3555
      %v3557 = vld [vmem:[#allocation3 + $0x30] sm:$0x7]
      %v3558 = vsel %vm3520, 0, %v3557
      %3559 = vst [vmem:[#allocation3 + $0x30] sm:$0x7] %v3558
      %v3560 = vld [vmem:[#allocation3 + $0x34] sm:$0x7]
      %v3561 = vsel %vm3520, 0, %v3560
      %3562 = vst [vmem:[#allocation3 + $0x34] sm:$0x7] %v3561
      %v3563 = vld [vmem:[#allocation3 + $0x38] sm:$0x7]
      %v3564 = vsel %vm3520, 0, %v3563
      %3565 = vst [vmem:[#allocation3 + $0x38] sm:$0x7] %v3564
      %v3566 = vld [vmem:[#allocation3 + $0x3c] sm:$0x7]
      %v3567 = vsel %vm3520, 0, %v3566
      %3568 = vst [vmem:[#allocation3 + $0x3c] sm:$0x7] %v3567
      %v3569 = vld [vmem:[#allocation3 + $0x40] sm:$0x7]
      %v3570 = vsel %vm3520, 0, %v3569
      %3571 = vst [vmem:[#allocation3 + $0x40] sm:$0x7] %v3570
      %v3572 = vld [vmem:[#allocation3 + $0x44] sm:$0x7]
      %v3573 = vsel %vm3520, 0, %v3572
      %3574 = vst [vmem:[#allocation3 + $0x44] sm:$0x7] %v3573
      %v3575 = vld [vmem:[#allocation3 + $0x48] sm:$0x7]
      %v3576 = vsel %vm3520, 0, %v3575
      %3577 = vst [vmem:[#allocation3 + $0x48] sm:$0x7] %v3576
      %v3578 = vld [vmem:[#allocation3 + $0x4c] sm:$0x7]
      %v3579 = vsel %vm3520, 0, %v3578
      %3580 = vst [vmem:[#allocation3 + $0x4c] sm:$0x7] %v3579
      %v3582 = vunpack.c.l.b16 %v3518
      %v3583 = vpack.c.b16 %v3582, %v3582
      %v3585 = vshrl.u32 %v3583, 16
      %v3587 = vrot.slane %v3585, 7
      %v3588 = vshll.u32 %v3583, 16
      %v3590 = vor.u32 %v3587, %v3588
      %s3592 = scalar_lea.vmem [#allocation3], 4
      %vm3593 = vmand %vm3519, %vm1418
      %v3594 = vld [vmem:[%s3592] sm:$0x7]
      %v3595 = vsel %vm3593, %v3590, %v3594
      %3596 = vst [vmem:[%s3592] sm:$0x7] %v3595
      %v3597 = vrot.slane %v3585, 5
      %v3598 = vrot.slane %v3588, 6
      %v3599 = vor.u32 %v3597, %v3598
      %v3600 = vrot.slane %v3599, 4
      %s3602 = scalar_lea.vmem [#allocation3], 8
      %v3603 = vld [vmem:[%s3602] sm:$0x7]
      %v3604 = vsel %vm3593, %v3600, %v3603
      %3605 = vst [vmem:[%s3602] sm:$0x7] %v3604
      %v3606 = vunpack.c.h.b16 %v3518
      %v3607 = vpack.c.b16 %v3606, %v3606
      %v3609 = vshrl.u32 %v3607, 16
      %v3611 = vrot.slane %v3609, 7
      %v3612 = vshll.u32 %v3607, 16
      %v3614 = vor.u32 %v3611, %v3612
      %s3616 = scalar_lea.vmem [#allocation3], 12
      %v3617 = vld [vmem:[%s3616] sm:$0x7]
      %v3618 = vsel %vm3593, %v3614, %v3617
      %3619 = vst [vmem:[%s3616] sm:$0x7] %v3618
      %v3620 = vrot.slane %v3609, 5
      %v3621 = vrot.slane %v3612, 6
      %v3622 = vor.u32 %v3620, %v3621
      %v3623 = vrot.slane %v3622, 4
      %s3625 = scalar_lea.vmem [#allocation3], 16
      %v3626 = vld [vmem:[%s3625] sm:$0x7]
      %v3627 = vsel %vm3593, %v3623, %v3626
      %3628 = vst [vmem:[%s3625] sm:$0x7] %v3627
      %s3629 = scalar_lea.vmem [#allocation3], 24
      %vm3630 = vcmask 517120
      %3631 = vst.msk [vmem:[%s3629] sm:$0x3] %vm3630, %v3517
      %v3633 = vunpack.c.l.b16 %v3517
      %v3634 = vpack.c.b16 %v3633, %v3633
      %v3635 = vrot.slane %v3634, 6
      %v3636 = vrot.slane %v3635, 4
      %s3638 = scalar_lea.vmem [#allocation3], 28
      %3639 = vst.msk [vmem:[%s3638] sm:$0x3] %vm3630, %v3636
      %v3640 = vunpack.c.h.b16 %v3517
      %v3641 = vpack.c.b16 %v3640, %v3640
      %s3643 = scalar_lea.vmem [#allocation3], 32
      %3644 = vst.msk [vmem:[%s3643] sm:$0x3] %vm3630, %v3641
      %v3645 = vrot.slane %v3641, 6
      %v3646 = vrot.slane %v3645, 4
      %s3648 = scalar_lea.vmem [#allocation3], 36
      %3649 = vst.msk [vmem:[%s3648] sm:$0x3] %vm3630, %v3646
      %v3651 = vunpack.c.l.b16 %v3516
      %v3652 = vpack.c.b16 %v3651, %v3651
      %v3654 = vshrl.u32 %v3652, 16
      %v3656 = vrot.slane %v3654, 7
      %v3657 = vshll.u32 %v3652, 16
      %v3659 = vor.u32 %v3656, %v3657
      %s3661 = scalar_lea.vmem [#allocation3], 40
      %v3662 = vld [vmem:[%s3661] sm:$0x7]
      %v3663 = vsel %vm3593, %v3659, %v3662
      %3664 = vst [vmem:[%s3661] sm:$0x7] %v3663
      %v3665 = vrot.slane %v3654, 5
      %v3666 = vrot.slane %v3657, 6
      %v3667 = vor.u32 %v3665, %v3666
      %v3668 = vrot.slane %v3667, 4
      %s3670 = scalar_lea.vmem [#allocation3], 44
      %v3671 = vld [vmem:[%s3670] sm:$0x7]
      %v3672 = vsel %vm3593, %v3668, %v3671
      %3673 = vst [vmem:[%s3670] sm:$0x7] %v3672
      %v3674 = vunpack.c.h.b16 %v3516
      %v3675 = vpack.c.b16 %v3674, %v3674
      %v3677 = vshrl.u32 %v3675, 16
      %v3679 = vrot.slane %v3677, 7
      %v3680 = vshll.u32 %v3675, 16
      %v3682 = vor.u32 %v3679, %v3680
      %s3684 = scalar_lea.vmem [#allocation3], 48
      %v3685 = vld [vmem:[%s3684] sm:$0x7]
      %v3686 = vsel %vm3593, %v3682, %v3685
      %3687 = vst [vmem:[%s3684] sm:$0x7] %v3686
      %v3688 = vrot.slane %v3677, 5
      %v3689 = vrot.slane %v3680, 6
      %v3690 = vor.u32 %v3688, %v3689
      %v3691 = vrot.slane %v3690, 4
      %s3693 = scalar_lea.vmem [#allocation3], 52
      %v3694 = vld [vmem:[%s3693] sm:$0x7]
      %v3695 = vsel %vm3593, %v3691, %v3694
      %3696 = vst [vmem:[%s3693] sm:$0x7] %v3695
      %s3697 = scalar_lea.vmem [#allocation3], 60
      %3698 = vst.msk [vmem:[%s3697] sm:$0x3] %vm3630, %v3515
      %v3700 = vunpack.c.l.b16 %v3515
      %v3701 = vpack.c.b16 %v3700, %v3700
      %v3702 = vrot.slane %v3701, 6
      %v3703 = vrot.slane %v3702, 4
      %s3705 = scalar_lea.vmem [#allocation3], 64
      %3706 = vst.msk [vmem:[%s3705] sm:$0x3] %vm3630, %v3703
      %v3707 = vunpack.c.h.b16 %v3515
      %v3708 = vpack.c.b16 %v3707, %v3707
      %s3710 = scalar_lea.vmem [#allocation3], 68
      %3711 = vst.msk [vmem:[%s3710] sm:$0x3] %vm3630, %v3708
      %v3712 = vrot.slane %v3708, 6
      %v3713 = vrot.slane %v3712, 4
      %s3715 = scalar_lea.vmem [#allocation3], 72
      %3716 = vst.msk [vmem:[%s3715] sm:$0x3] %vm3630, %v3713
      %v3717 = vld [vmem:[#allocation3] sm:$0x3]
      %v3718 = vld [vmem:[#allocation3 + $0x4] sm:$0x3]
      %v3719 = vld [vmem:[#allocation3 + $0x8] sm:$0x3]
      %v3720 = vld [vmem:[#allocation3 + $0xc] sm:$0x3]
      %v3721 = vld [vmem:[%s5] sm:$0xf]
      %v3722 = vld [vmem:[%s5 + $0x4] sm:$0xf]
      %v3723 = vld [vmem:[%s5 + $0x8] sm:$0xf]
      %v3724 = vld [vmem:[%s5 + $0xc] sm:$0xf]
      %v3725 = vld [vmem:[%s5 + $0x10] sm:$0xf]
      %v3726 = vld [vmem:[%s5 + $0x14] sm:$0xf]
      %v3727 = vld [vmem:[%s5 + $0x18] sm:$0xf]
      %v3728 = vld [vmem:[%s5 + $0x1c] sm:$0xf]
      %s3729 = scalar_lea.vmem [#allocation3], 20
      %v3730 = vld [vmem:[%s3729] sm:$0x3]
      %v3731 = vld [vmem:[%s3729 + $0x4] sm:$0x3]
      %v3732 = vld [vmem:[%s3729 + $0x8] sm:$0x3]
      %v3733 = vld [vmem:[%s3729 + $0xc] sm:$0x3]
      %s3734 = scalar_lea.vmem %s5, 32
      %v3735 = vld [vmem:[%s3734] sm:$0xf]
      %v3736 = vld [vmem:[%s3734 + $0x4] sm:$0xf]
      %v3737 = vld [vmem:[%s3734 + $0x8] sm:$0xf]
      %v3738 = vld [vmem:[%s3734 + $0xc] sm:$0xf]
      %v3739 = vld [vmem:[%s3734 + $0x10] sm:$0xf]
      %v3740 = vld [vmem:[%s3734 + $0x14] sm:$0xf]
      %v3741 = vld [vmem:[%s3734 + $0x18] sm:$0xf]
      %v3742 = vld [vmem:[%s3734 + $0x1c] sm:$0xf]
      %v3747 = vcombine.low %v3730, %v3731
      %v3748 = vcombine.low %v3732, %v3733
      %v3750 = vunpack.c.l.s4 1983009808
      %v3751 = vunpack.c.0.s8 %v3750
      %v3752 = vlaneseq
      %v3753 = vshrl.u32 %v3752, 7
      %v3754 = vsub.s32 %v3751, %v3753
      %v3755 = vrot.slane %v3747, %v3754
      %v3757 = vunpack.c.l.s4 1983009808
      %v3758 = vunpack.c.0.s8 %v3757
      %v3759 = vlaneseq
      %v3760 = vshrl.u32 %v3759, 7
      %v3761 = vsub.s32 %v3758, %v3760
      %v3762 = vrot.slane %v3748, %v3761
      %v3763 = vcombine.low %v3755, %v3762
      %v3772 = vunpack.c.l.b16 %v3735
      %v3773 = vunpack.c.l.b16 %v3736
      %v3774 = vunpack.c.l.b16 %v3737
      %v3775 = vunpack.c.l.b16 %v3738
      %v3776 = vunpack.c.l.b16 %v3739
      %v3777 = vunpack.c.l.b16 %v3740
      %v3778 = vunpack.c.l.b16 %v3741
      %v3779 = vunpack.c.l.b16 %v3742
      %v3780 = vpack.c.b16 %v3773, %v3772
      %v3781 = vpack.c.b16 %v3775, %v3774
      %v3782 = vpack.c.b16 %v3777, %v3776
      %v3783 = vpack.c.b16 %v3779, %v3778
      %v3789 = vsel %vm3436, %v3763, 0
      %3791 = vmatprep.subr.bf16.mxu0 0
      %3792 = vmatpush1.bf16.msra.mxu0 0
      %3793 = vmatprep.subr.bf16.mxu0 0
      %3794 = vmatpush1.bf16.msra.mxu0 0
      %3795 = vmatprep.subr.bf16.mxu0 0
      %3796 = vmatpush1.bf16.msra.mxu0 0
      %3797 = vmatprep.subr.bf16.mxu0 0
      %3798 = vmatpush1.bf16.msra.mxu0 0
      %3799 = vmatprep.subr.bf16.mxu0 0
      %3800 = vmatpush1.bf16.msra.mxu0 %v3783
      %3801 = vmatprep.subr.bf16.mxu0 0
      %3802 = vmatpush1.bf16.msra.mxu0 %v3782
      %3803 = vmatprep.subr.bf16.mxu0 0
      %3804 = vmatpush1.bf16.msra.mxu0 %v3781
      %3805 = vmatprep.subr.bf16.mxu0 0
      %3806 = vmatpush1.bf16.msra.mxu0 %v3780
      %3807 = vmatprep.subr.bf16.mxu0 0
      %3808 = vmatpush2.bf16.msra.mxu0 0
      %3809 = vmatprep.subr.bf16.mxu0 0
      %3810 = vmatpush2.bf16.msra.mxu0 0
      %3811 = vmatprep.subr.bf16.mxu0 0
      %3812 = vmatpush2.bf16.msra.mxu0 0
      %3813 = vmatprep.subr.bf16.mxu0 0
      %3814 = vmatpush2.bf16.msra.mxu0 0
      %3815 = vmatprep.subr.bf16.mxu0 0
      %3816 = vmatpush2.bf16.msra.mxu0 0
      %3817 = vmatprep.subr.bf16.mxu0 0
      %3818 = vmatpush2.bf16.msra.mxu0 0
      %3819 = vmatprep.subr.bf16.mxu0 0
      %3820 = vmatpush2.bf16.msra.mxu0 0
      %3821 = vmatprep.subr.bf16.mxu0 0
      %3822 = vmatpush2.bf16.msra.mxu0 0
      %3823 = vmatprep.mubr.bf16.mxu0 0
      %3824 = vmatmul.mubr.bf16.gmra.mxu0 %v3789
      %v3825 = vpop.f32.mrf.mxu0
      %v3826 = vadd.f32 0.0, %v3825
      %v3827 = vpop.f32.mrf.mxu0
      %v3828 = vpop.f32.mrf.mxu0
      %v3829 = vadd.f32 0.0, %v3828
      %v3830 = vpop.f32.mrf.mxu0
      %3831 = vdwg.mxu0
      %v3836 = vcombine.low %v3717, %v3718
      %v3837 = vcombine.low %v3719, %v3720
      %v3839 = vunpack.c.l.s4 1983009808
      %v3840 = vunpack.c.0.s8 %v3839
      %v3841 = vlaneseq
      %v3842 = vshrl.u32 %v3841, 7
      %v3843 = vsub.s32 %v3840, %v3842
      %v3844 = vrot.slane %v3836, %v3843
      %v3846 = vunpack.c.l.s4 1983009808
      %v3847 = vunpack.c.0.s8 %v3846
      %v3848 = vlaneseq
      %v3849 = vshrl.u32 %v3848, 7
      %v3850 = vsub.s32 %v3847, %v3849
      %v3851 = vrot.slane %v3837, %v3850
      %v3852 = vcombine.low %v3844, %v3851
      %v3861 = vunpack.c.l.b16 %v3721
      %v3862 = vunpack.c.l.b16 %v3722
      %v3863 = vunpack.c.l.b16 %v3723
      %v3864 = vunpack.c.l.b16 %v3724
      %v3865 = vunpack.c.l.b16 %v3725
      %v3866 = vunpack.c.l.b16 %v3726
      %v3867 = vunpack.c.l.b16 %v3727
      %v3868 = vunpack.c.l.b16 %v3728
      %v3869 = vpack.c.b16 %v3862, %v3861
      %v3870 = vpack.c.b16 %v3864, %v3863
      %v3871 = vpack.c.b16 %v3866, %v3865
      %v3872 = vpack.c.b16 %v3868, %v3867
      %v3878 = vsel %vm3436, %v3852, 0
      %3880 = vmatprep.subr.bf16.mxu0 0
      %3881 = vmatpush1.bf16.msra.mxu0 0
      %3882 = vmatprep.subr.bf16.mxu0 0
      %3883 = vmatpush1.bf16.msra.mxu0 0
      %3884 = vmatprep.subr.bf16.mxu0 0
      %3885 = vmatpush1.bf16.msra.mxu0 0
      %3886 = vmatprep.subr.bf16.mxu0 0
      %3887 = vmatpush1.bf16.msra.mxu0 0
      %3888 = vmatprep.subr.bf16.mxu0 0
      %3889 = vmatpush1.bf16.msra.mxu0 %v3872
      %3890 = vmatprep.subr.bf16.mxu0 0
      %3891 = vmatpush1.bf16.msra.mxu0 %v3871
      %3892 = vmatprep.subr.bf16.mxu0 0
      %3893 = vmatpush1.bf16.msra.mxu0 %v3870
      %3894 = vmatprep.subr.bf16.mxu0 0
      %3895 = vmatpush1.bf16.msra.mxu0 %v3869
      %3896 = vmatprep.subr.bf16.mxu0 0
      %3897 = vmatpush2.bf16.msra.mxu0 0
      %3898 = vmatprep.subr.bf16.mxu0 0
      %3899 = vmatpush2.bf16.msra.mxu0 0
      %3900 = vmatprep.subr.bf16.mxu0 0
      %3901 = vmatpush2.bf16.msra.mxu0 0
      %3902 = vmatprep.subr.bf16.mxu0 0
      %3903 = vmatpush2.bf16.msra.mxu0 0
      %3904 = vmatprep.subr.bf16.mxu0 0
      %3905 = vmatpush2.bf16.msra.mxu0 0
      %3906 = vmatprep.subr.bf16.mxu0 0
      %3907 = vmatpush2.bf16.msra.mxu0 0
      %3908 = vmatprep.subr.bf16.mxu0 0
      %3909 = vmatpush2.bf16.msra.mxu0 0
      %3910 = vmatprep.subr.bf16.mxu0 0
      %3911 = vmatpush2.bf16.msra.mxu0 0
      %3912 = vmatprep.mubr.bf16.mxu0 0
      %3913 = vmatmul.mubr.bf16.gmra.mxu0 %v3878
      %v3914 = vpop.f32.mrf.mxu0
      %v3915 = vadd.f32 %v3826, %v3914
      %v3916 = vpop.f32.mrf.mxu0
      %v3917 = vpop.f32.mrf.mxu0
      %v3918 = vadd.f32 %v3829, %v3917
      %v3919 = vpop.f32.mrf.mxu0
      %3920 = vdwg.mxu0
      %v3921 = vld [vmem:[#allocation3] sm:$0x7]
      %v3922 = vld [vmem:[#allocation3 + $0x4] sm:$0x7]
      %v3923 = vld [vmem:[#allocation3 + $0x8] sm:$0x7]
      %v3924 = vld [vmem:[#allocation3 + $0xc] sm:$0x7]
      %v3930 = vunpack.c.l.s4 1983009808
      %v3931 = vunpack.c.0.s8 %v3930
      %v3932 = vlaneseq
      %v3933 = vshrl.u32 %v3932, 7
      %v3934 = vsub.s32 %v3931, %v3933
      %v3935 = vrot.slane %v3921, %v3934
      %v3936 = vcombine.high %v3935, %v3935
      %v3938 = vunpack.c.l.s4 1983009808
      %v3939 = vunpack.c.0.s8 %v3938
      %v3940 = vlaneseq
      %v3941 = vshrl.u32 %v3940, 7
      %v3942 = vsub.s32 %v3939, %v3941
      %v3943 = vrot.slane %v3922, %v3942
      %v3944 = vcombine.high %v3943, %v3943
      %v3946 = vunpack.c.l.s4 1983009808
      %v3947 = vunpack.c.0.s8 %v3946
      %v3948 = vlaneseq
      %v3949 = vshrl.u32 %v3948, 7
      %v3950 = vsub.s32 %v3947, %v3949
      %v3951 = vrot.slane %v3923, %v3950
      %v3952 = vcombine.high %v3951, %v3951
      %v3954 = vunpack.c.l.s4 1983009808
      %v3955 = vunpack.c.0.s8 %v3954
      %v3956 = vlaneseq
      %v3957 = vshrl.u32 %v3956, 7
      %v3958 = vsub.s32 %v3955, %v3957
      %v3959 = vrot.slane %v3924, %v3958
      %v3960 = vcombine.high %v3959, %v3959
      %vm3961 = vsmask.f32 1280
      %vm3962 = vsmask.f32 3336
      %vm3963 = vmor %vm3961, %vm3962
      %vm3964 = vsmask.f32 5392
      %vm3965 = vmor %vm3963, %vm3964
      %vm3966 = vsmask.f32 7448
      %vm3967 = vmor %vm3965, %vm3966
      %v3969 = vshrl.u32 %v3935, 16
      %v3971 = vrot.slane %v3969, 6
      %v3972 = vshll.u32 %v3935, 16
      %v3974 = vrot.slane %v3972, 7
      %v3975 = vor.u32 %v3971, %v3974
      %v3976 = vrot.slane %v3975, 2
      %v3978 = vshll.u32 %v3936, 16
      %v3980 = vrot.slane %v3978, 7
      %v3981 = vsel %vm3967, %v3976, %v3980
      %v3983 = vshrl.u32 %v3943, 16
      %v3985 = vrot.slane %v3983, 6
      %v3986 = vshll.u32 %v3943, 16
      %v3988 = vrot.slane %v3986, 7
      %v3989 = vor.u32 %v3985, %v3988
      %v3990 = vrot.slane %v3989, 2
      %v3992 = vshll.u32 %v3944, 16
      %v3994 = vrot.slane %v3992, 7
      %v3995 = vsel %vm3967, %v3990, %v3994
      %v3997 = vshrl.u32 %v3951, 16
      %v3999 = vrot.slane %v3997, 6
      %v4000 = vshll.u32 %v3951, 16
      %v4002 = vrot.slane %v4000, 7
      %v4003 = vor.u32 %v3999, %v4002
      %v4004 = vrot.slane %v4003, 2
      %v4006 = vshll.u32 %v3952, 16
      %v4008 = vrot.slane %v4006, 7
      %v4009 = vsel %vm3967, %v4004, %v4008
      %v4011 = vshrl.u32 %v3959, 16
      %v4013 = vrot.slane %v4011, 6
      %v4014 = vshll.u32 %v3959, 16
      %v4016 = vrot.slane %v4014, 7
      %v4017 = vor.u32 %v4013, %v4016
      %v4018 = vrot.slane %v4017, 2
      %v4020 = vshll.u32 %v3960, 16
      %v4022 = vrot.slane %v4020, 7
      %v4023 = vsel %vm3967, %v4018, %v4022
      %s4024 = scalar_lea.vmem %s5, 64
      %v4025 = vld [vmem:[%s4024] sm:$0xf]
      %v4026 = vld [vmem:[%s4024 + $0x4] sm:$0xf]
      %v4027 = vld [vmem:[%s4024 + $0x8] sm:$0xf]
      %v4028 = vld [vmem:[%s4024 + $0xc] sm:$0xf]
      %v4029 = vld [vmem:[%s4024 + $0x10] sm:$0xf]
      %v4030 = vld [vmem:[%s4024 + $0x14] sm:$0xf]
      %v4031 = vld [vmem:[%s4024 + $0x18] sm:$0xf]
      %v4032 = vld [vmem:[%s4024 + $0x1c] sm:$0xf]
      %v4033 = vcombine.low %v3981, %v3995
      %v4034 = vcombine.low %v4009, %v4023
      %v4036 = vunpack.c.l.s4 1983009808
      %v4037 = vunpack.c.0.s8 %v4036
      %v4038 = vlaneseq
      %v4039 = vshrl.u32 %v4038, 7
      %v4040 = vsub.s32 %v4037, %v4039
      %v4041 = vrot.slane %v4033, %v4040
      %v4043 = vunpack.c.l.s4 1983009808
      %v4044 = vunpack.c.0.s8 %v4043
      %v4045 = vlaneseq
      %v4046 = vshrl.u32 %v4045, 7
      %v4047 = vsub.s32 %v4044, %v4046
      %v4048 = vrot.slane %v4034, %v4047
      %v4049 = vcombine.low %v4041, %v4048
      %v4058 = vunpack.c.l.b16 %v4025
      %v4059 = vunpack.c.l.b16 %v4026
      %v4060 = vunpack.c.l.b16 %v4027
      %v4061 = vunpack.c.l.b16 %v4028
      %v4062 = vunpack.c.l.b16 %v4029
      %v4063 = vunpack.c.l.b16 %v4030
      %v4064 = vunpack.c.l.b16 %v4031
      %v4065 = vunpack.c.l.b16 %v4032
      %v4066 = vpack.c.b16 %v4059, %v4058
      %v4067 = vpack.c.b16 %v4061, %v4060
      %v4068 = vpack.c.b16 %v4063, %v4062
      %v4069 = vpack.c.b16 %v4065, %v4064
      %v4075 = vsel %vm3436, %v4049, 0
      %4077 = vmatprep.subr.bf16.mxu0 0
      %4078 = vmatpush1.bf16.msra.mxu0 0
      %4079 = vmatprep.subr.bf16.mxu0 0
      %4080 = vmatpush1.bf16.msra.mxu0 0
      %4081 = vmatprep.subr.bf16.mxu0 0
      %4082 = vmatpush1.bf16.msra.mxu0 0
      %4083 = vmatprep.subr.bf16.mxu0 0
      %4084 = vmatpush1.bf16.msra.mxu0 0
      %4085 = vmatprep.subr.bf16.mxu0 0
      %4086 = vmatpush1.bf16.msra.mxu0 %v4069
      %4087 = vmatprep.subr.bf16.mxu0 0
      %4088 = vmatpush1.bf16.msra.mxu0 %v4068
      %4089 = vmatprep.subr.bf16.mxu0 0
      %4090 = vmatpush1.bf16.msra.mxu0 %v4067
      %4091 = vmatprep.subr.bf16.mxu0 0
      %4092 = vmatpush1.bf16.msra.mxu0 %v4066
      %4093 = vmatprep.subr.bf16.mxu0 0
      %4094 = vmatpush2.bf16.msra.mxu0 0
      %4095 = vmatprep.subr.bf16.mxu0 0
      %4096 = vmatpush2.bf16.msra.mxu0 0
      %4097 = vmatprep.subr.bf16.mxu0 0
      %4098 = vmatpush2.bf16.msra.mxu0 0
      %4099 = vmatprep.subr.bf16.mxu0 0
      %4100 = vmatpush2.bf16.msra.mxu0 0
      %4101 = vmatprep.subr.bf16.mxu0 0
      %4102 = vmatpush2.bf16.msra.mxu0 0
      %4103 = vmatprep.subr.bf16.mxu0 0
      %4104 = vmatpush2.bf16.msra.mxu0 0
      %4105 = vmatprep.subr.bf16.mxu0 0
      %4106 = vmatpush2.bf16.msra.mxu0 0
      %4107 = vmatprep.subr.bf16.mxu0 0
      %4108 = vmatpush2.bf16.msra.mxu0 0
      %4109 = vmatprep.mubr.bf16.mxu0 0
      %4110 = vmatmul.mubr.bf16.gmra.mxu0 %v4075
      %v4111 = vpop.f32.mrf.mxu0
      %v4112 = vadd.f32 0.0, %v4111
      %v4113 = vpop.f32.mrf.mxu0
      %v4114 = vpop.f32.mrf.mxu0
      %v4115 = vadd.f32 0.0, %v4114
      %v4116 = vpop.f32.mrf.mxu0
      %4117 = vdwg.mxu0
      %v4118 = vadd.f32 %v3915, %v4112
      %v4119 = vadd.f32 %v3918, %v4115
      %v4120 = vld [vmem:[%s3661] sm:$0x3]
      %v4121 = vld [vmem:[%s3661 + $0x4] sm:$0x3]
      %v4122 = vld [vmem:[%s3661 + $0x8] sm:$0x3]
      %v4123 = vld [vmem:[%s3661 + $0xc] sm:$0x3]
      %s4124 = scalar_lea.vmem %s5, 96
      %v4125 = vld [vmem:[%s4124] sm:$0xf]
      %v4126 = vld [vmem:[%s4124 + $0x4] sm:$0xf]
      %v4127 = vld [vmem:[%s4124 + $0x8] sm:$0xf]
      %v4128 = vld [vmem:[%s4124 + $0xc] sm:$0xf]
      %v4129 = vld [vmem:[%s4124 + $0x10] sm:$0xf]
      %v4130 = vld [vmem:[%s4124 + $0x14] sm:$0xf]
      %v4131 = vld [vmem:[%s4124 + $0x18] sm:$0xf]
      %v4132 = vld [vmem:[%s4124 + $0x1c] sm:$0xf]
      %v4137 = vcombine.low %v4120, %v4121
      %v4138 = vcombine.low %v4122, %v4123
      %v4140 = vunpack.c.l.s4 1983009808
      %v4141 = vunpack.c.0.s8 %v4140
      %v4142 = vlaneseq
      %v4143 = vshrl.u32 %v4142, 7
      %v4144 = vsub.s32 %v4141, %v4143
      %v4145 = vrot.slane %v4137, %v4144
      %v4147 = vunpack.c.l.s4 1983009808
      %v4148 = vunpack.c.0.s8 %v4147
      %v4149 = vlaneseq
      %v4150 = vshrl.u32 %v4149, 7
      %v4151 = vsub.s32 %v4148, %v4150
      %v4152 = vrot.slane %v4138, %v4151
      %v4153 = vcombine.low %v4145, %v4152
      %v4162 = vunpack.c.l.b16 %v4125
      %v4163 = vunpack.c.l.b16 %v4126
      %v4164 = vunpack.c.l.b16 %v4127
      %v4165 = vunpack.c.l.b16 %v4128
      %v4166 = vunpack.c.l.b16 %v4129
      %v4167 = vunpack.c.l.b16 %v4130
      %v4168 = vunpack.c.l.b16 %v4131
      %v4169 = vunpack.c.l.b16 %v4132
      %v4170 = vpack.c.b16 %v4163, %v4162
      %v4171 = vpack.c.b16 %v4165, %v4164
      %v4172 = vpack.c.b16 %v4167, %v4166
      %v4173 = vpack.c.b16 %v4169, %v4168
      %v4179 = vsel %vm3436, %v4153, 0
      %4181 = vmatprep.subr.bf16.mxu0 0
      %4182 = vmatpush1.bf16.msra.mxu0 0
      %4183 = vmatprep.subr.bf16.mxu0 0
      %4184 = vmatpush1.bf16.msra.mxu0 0
      %4185 = vmatprep.subr.bf16.mxu0 0
      %4186 = vmatpush1.bf16.msra.mxu0 0
      %4187 = vmatprep.subr.bf16.mxu0 0
      %4188 = vmatpush1.bf16.msra.mxu0 0
      %4189 = vmatprep.subr.bf16.mxu0 0
      %4190 = vmatpush1.bf16.msra.mxu0 %v4173
      %4191 = vmatprep.subr.bf16.mxu0 0
      %4192 = vmatpush1.bf16.msra.mxu0 %v4172
      %4193 = vmatprep.subr.bf16.mxu0 0
      %4194 = vmatpush1.bf16.msra.mxu0 %v4171
      %4195 = vmatprep.subr.bf16.mxu0 0
      %4196 = vmatpush1.bf16.msra.mxu0 %v4170
      %4197 = vmatprep.subr.bf16.mxu0 0
      %4198 = vmatpush2.bf16.msra.mxu0 0
      %4199 = vmatprep.subr.bf16.mxu0 0
      %4200 = vmatpush2.bf16.msra.mxu0 0
      %4201 = vmatprep.subr.bf16.mxu0 0
      %4202 = vmatpush2.bf16.msra.mxu0 0
      %4203 = vmatprep.subr.bf16.mxu0 0
      %4204 = vmatpush2.bf16.msra.mxu0 0
      %4205 = vmatprep.subr.bf16.mxu0 0
      %4206 = vmatpush2.bf16.msra.mxu0 0
      %4207 = vmatprep.subr.bf16.mxu0 0
      %4208 = vmatpush2.bf16.msra.mxu0 0
      %4209 = vmatprep.subr.bf16.mxu0 0
      %4210 = vmatpush2.bf16.msra.mxu0 0
      %4211 = vmatprep.subr.bf16.mxu0 0
      %4212 = vmatpush2.bf16.msra.mxu0 0
      %4213 = vmatprep.mubr.bf16.mxu0 0
      %4214 = vmatmul.mubr.bf16.gmra.mxu0 %v4179
      %v4215 = vpop.f32.mrf.mxu0
      %v4216 = vadd.f32 0.0, %v4215
      %v4217 = vpop.f32.mrf.mxu0
      %v4218 = vpop.f32.mrf.mxu0
      %v4219 = vadd.f32 0.0, %v4218
      %v4220 = vpop.f32.mrf.mxu0
      %4221 = vdwg.mxu0
      %v4222 = vadd.f32 %v4118, %v4216
      %v4223 = vadd.f32 %v4119, %v4219
      %v4224 = vld [vmem:[%s3697] sm:$0x3]
      %v4225 = vld [vmem:[%s3697 + $0x4] sm:$0x3]
      %v4226 = vld [vmem:[%s3697 + $0x8] sm:$0x3]
      %v4227 = vld [vmem:[%s3697 + $0xc] sm:$0x3]
      %s4228 = scalar_lea.vmem %s5, 128
      %v4229 = vld [vmem:[%s4228] sm:$0xf]
      %v4230 = vld [vmem:[%s4228 + $0x4] sm:$0xf]
      %v4231 = vld [vmem:[%s4228 + $0x8] sm:$0xf]
      %v4232 = vld [vmem:[%s4228 + $0xc] sm:$0xf]
      %v4233 = vld [vmem:[%s4228 + $0x10] sm:$0xf]
      %v4234 = vld [vmem:[%s4228 + $0x14] sm:$0xf]
      %v4235 = vld [vmem:[%s4228 + $0x18] sm:$0xf]
      %v4236 = vld [vmem:[%s4228 + $0x1c] sm:$0xf]
      %v4241 = vcombine.low %v4224, %v4225
      %v4242 = vcombine.low %v4226, %v4227
      %v4244 = vunpack.c.l.s4 1983009808
      %v4245 = vunpack.c.0.s8 %v4244
      %v4246 = vlaneseq
      %v4247 = vshrl.u32 %v4246, 7
      %v4248 = vsub.s32 %v4245, %v4247
      %v4249 = vrot.slane %v4241, %v4248
      %v4251 = vunpack.c.l.s4 1983009808
      %v4252 = vunpack.c.0.s8 %v4251
      %v4253 = vlaneseq
      %v4254 = vshrl.u32 %v4253, 7
      %v4255 = vsub.s32 %v4252, %v4254
      %v4256 = vrot.slane %v4242, %v4255
      %v4257 = vcombine.low %v4249, %v4256
      %v4266 = vunpack.c.l.b16 %v4229
      %v4267 = vunpack.c.l.b16 %v4230
      %v4268 = vunpack.c.l.b16 %v4231
      %v4269 = vunpack.c.l.b16 %v4232
      %v4270 = vunpack.c.l.b16 %v4233
      %v4271 = vunpack.c.l.b16 %v4234
      %v4272 = vunpack.c.l.b16 %v4235
      %v4273 = vunpack.c.l.b16 %v4236
      %v4274 = vpack.c.b16 %v4267, %v4266
      %v4275 = vpack.c.b16 %v4269, %v4268
      %v4276 = vpack.c.b16 %v4271, %v4270
      %v4277 = vpack.c.b16 %v4273, %v4272
      %v4283 = vsel %vm3436, %v4257, 0
      %4285 = vmatprep.subr.bf16.mxu0 0
      %4286 = vmatpush1.bf16.msra.mxu0 0
      %4287 = vmatprep.subr.bf16.mxu0 0
      %4288 = vmatpush1.bf16.msra.mxu0 0
      %4289 = vmatprep.subr.bf16.mxu0 0
      %4290 = vmatpush1.bf16.msra.mxu0 0
      %4291 = vmatprep.subr.bf16.mxu0 0
      %4292 = vmatpush1.bf16.msra.mxu0 0
      %4293 = vmatprep.subr.bf16.mxu0 0
      %4294 = vmatpush1.bf16.msra.mxu0 %v4277
      %4295 = vmatprep.subr.bf16.mxu0 0
      %4296 = vmatpush1.bf16.msra.mxu0 %v4276
      %4297 = vmatprep.subr.bf16.mxu0 0
      %4298 = vmatpush1.bf16.msra.mxu0 %v4275
      %4299 = vmatprep.subr.bf16.mxu0 0
      %4300 = vmatpush1.bf16.msra.mxu0 %v4274
      %4301 = vmatprep.subr.bf16.mxu0 0
      %4302 = vmatpush2.bf16.msra.mxu0 0
      %4303 = vmatprep.subr.bf16.mxu0 0
      %4304 = vmatpush2.bf16.msra.mxu0 0
      %4305 = vmatprep.subr.bf16.mxu0 0
      %4306 = vmatpush2.bf16.msra.mxu0 0
      %4307 = vmatprep.subr.bf16.mxu0 0
      %4308 = vmatpush2.bf16.msra.mxu0 0
      %4309 = vmatprep.subr.bf16.mxu0 0
      %4310 = vmatpush2.bf16.msra.mxu0 0
      %4311 = vmatprep.subr.bf16.mxu0 0
      %4312 = vmatpush2.bf16.msra.mxu0 0
      %4313 = vmatprep.subr.bf16.mxu0 0
      %4314 = vmatpush2.bf16.msra.mxu0 0
      %4315 = vmatprep.subr.bf16.mxu0 0
      %4316 = vmatpush2.bf16.msra.mxu0 0
      %4317 = vmatprep.mubr.bf16.mxu0 0
      %4318 = vmatmul.mubr.bf16.gmra.mxu0 %v4283
      %v4319 = vpop.f32.mrf.mxu0
      %v4320 = vadd.f32 0.0, %v4319
      %v4321 = vpop.f32.mrf.mxu0
      %v4322 = vpop.f32.mrf.mxu0
      %v4323 = vadd.f32 0.0, %v4322
      %v4324 = vpop.f32.mrf.mxu0
      %4325 = vdwg.mxu0
      %v4326 = vadd.f32 %v4222, %v4320
      %v4327 = vadd.f32 %v4223, %v4323
      %v4328 = vld [vmem:[%s3661] sm:$0x7]
      %v4329 = vld [vmem:[%s3661 + $0x4] sm:$0x7]
      %v4330 = vld [vmem:[%s3661 + $0x8] sm:$0x7]
      %v4331 = vld [vmem:[%s3661 + $0xc] sm:$0x7]
      %v4337 = vunpack.c.l.s4 1983009808
      %v4338 = vunpack.c.0.s8 %v4337
      %v4339 = vlaneseq
      %v4340 = vshrl.u32 %v4339, 7
      %v4341 = vsub.s32 %v4338, %v4340
      %v4342 = vrot.slane %v4328, %v4341
      %v4343 = vcombine.high %v4342, %v4342
      %v4345 = vunpack.c.l.s4 1983009808
      %v4346 = vunpack.c.0.s8 %v4345
      %v4347 = vlaneseq
      %v4348 = vshrl.u32 %v4347, 7
      %v4349 = vsub.s32 %v4346, %v4348
      %v4350 = vrot.slane %v4329, %v4349
      %v4351 = vcombine.high %v4350, %v4350
      %v4353 = vunpack.c.l.s4 1983009808
      %v4354 = vunpack.c.0.s8 %v4353
      %v4355 = vlaneseq
      %v4356 = vshrl.u32 %v4355, 7
      %v4357 = vsub.s32 %v4354, %v4356
      %v4358 = vrot.slane %v4330, %v4357
      %v4359 = vcombine.high %v4358, %v4358
      %v4361 = vunpack.c.l.s4 1983009808
      %v4362 = vunpack.c.0.s8 %v4361
      %v4363 = vlaneseq
      %v4364 = vshrl.u32 %v4363, 7
      %v4365 = vsub.s32 %v4362, %v4364
      %v4366 = vrot.slane %v4331, %v4365
      %v4367 = vcombine.high %v4366, %v4366
      %v4369 = vshrl.u32 %v4342, 16
      %v4371 = vrot.slane %v4369, 6
      %v4372 = vshll.u32 %v4342, 16
      %v4374 = vrot.slane %v4372, 7
      %v4375 = vor.u32 %v4371, %v4374
      %v4376 = vrot.slane %v4375, 2
      %v4378 = vshll.u32 %v4343, 16
      %v4380 = vrot.slane %v4378, 7
      %v4381 = vsel %vm3967, %v4376, %v4380
      %v4383 = vshrl.u32 %v4350, 16
      %v4385 = vrot.slane %v4383, 6
      %v4386 = vshll.u32 %v4350, 16
      %v4388 = vrot.slane %v4386, 7
      %v4389 = vor.u32 %v4385, %v4388
      %v4390 = vrot.slane %v4389, 2
      %v4392 = vshll.u32 %v4351, 16
      %v4394 = vrot.slane %v4392, 7
      %v4395 = vsel %vm3967, %v4390, %v4394
      %v4397 = vshrl.u32 %v4358, 16
      %v4399 = vrot.slane %v4397, 6
      %v4400 = vshll.u32 %v4358, 16
      %v4402 = vrot.slane %v4400, 7
      %v4403 = vor.u32 %v4399, %v4402
      %v4404 = vrot.slane %v4403, 2
      %v4406 = vshll.u32 %v4359, 16
      %v4408 = vrot.slane %v4406, 7
      %v4409 = vsel %vm3967, %v4404, %v4408
      %v4411 = vshrl.u32 %v4366, 16
      %v4413 = vrot.slane %v4411, 6
      %v4414 = vshll.u32 %v4366, 16
      %v4416 = vrot.slane %v4414, 7
      %v4417 = vor.u32 %v4413, %v4416
      %v4418 = vrot.slane %v4417, 2
      %v4420 = vshll.u32 %v4367, 16
      %v4422 = vrot.slane %v4420, 7
      %v4423 = vsel %vm3967, %v4418, %v4422
      %s4424 = scalar_lea.vmem %s5, 160
      %v4425 = vld [vmem:[%s4424] sm:$0xf]
      %v4426 = vld [vmem:[%s4424 + $0x4] sm:$0xf]
      %v4427 = vld [vmem:[%s4424 + $0x8] sm:$0xf]
      %v4428 = vld [vmem:[%s4424 + $0xc] sm:$0xf]
      %v4429 = vld [vmem:[%s4424 + $0x10] sm:$0xf]
      %v4430 = vld [vmem:[%s4424 + $0x14] sm:$0xf]
      %v4431 = vld [vmem:[%s4424 + $0x18] sm:$0xf]
      %v4432 = vld [vmem:[%s4424 + $0x1c] sm:$0xf]
      %v4433 = vcombine.low %v4381, %v4395
      %v4434 = vcombine.low %v4409, %v4423
      %v4436 = vunpack.c.l.s4 1983009808
      %v4437 = vunpack.c.0.s8 %v4436
      %v4438 = vlaneseq
      %v4439 = vshrl.u32 %v4438, 7
      %v4440 = vsub.s32 %v4437, %v4439
      %v4441 = vrot.slane %v4433, %v4440
      %v4443 = vunpack.c.l.s4 1983009808
      %v4444 = vunpack.c.0.s8 %v4443
      %v4445 = vlaneseq
      %v4446 = vshrl.u32 %v4445, 7
      %v4447 = vsub.s32 %v4444, %v4446
      %v4448 = vrot.slane %v4434, %v4447
      %v4449 = vcombine.low %v4441, %v4448
      %v4458 = vunpack.c.l.b16 %v4425
      %v4459 = vunpack.c.l.b16 %v4426
      %v4460 = vunpack.c.l.b16 %v4427
      %v4461 = vunpack.c.l.b16 %v4428
      %v4462 = vunpack.c.l.b16 %v4429
      %v4463 = vunpack.c.l.b16 %v4430
      %v4464 = vunpack.c.l.b16 %v4431
      %v4465 = vunpack.c.l.b16 %v4432
      %v4466 = vpack.c.b16 %v4459, %v4458
      %v4467 = vpack.c.b16 %v4461, %v4460
      %v4468 = vpack.c.b16 %v4463, %v4462
      %v4469 = vpack.c.b16 %v4465, %v4464
      %v4475 = vsel %vm3436, %v4449, 0
      %4477 = vmatprep.subr.bf16.mxu0 0
      %4478 = vmatpush1.bf16.msra.mxu0 0
      %4479 = vmatprep.subr.bf16.mxu0 0
      %4480 = vmatpush1.bf16.msra.mxu0 0
      %4481 = vmatprep.subr.bf16.mxu0 0
      %4482 = vmatpush1.bf16.msra.mxu0 0
      %4483 = vmatprep.subr.bf16.mxu0 0
      %4484 = vmatpush1.bf16.msra.mxu0 0
      %4485 = vmatprep.subr.bf16.mxu0 0
      %4486 = vmatpush1.bf16.msra.mxu0 %v4469
      %4487 = vmatprep.subr.bf16.mxu0 0
      %4488 = vmatpush1.bf16.msra.mxu0 %v4468
      %4489 = vmatprep.subr.bf16.mxu0 0
      %4490 = vmatpush1.bf16.msra.mxu0 %v4467
      %4491 = vmatprep.subr.bf16.mxu0 0
      %4492 = vmatpush1.bf16.msra.mxu0 %v4466
      %4493 = vmatprep.subr.bf16.mxu0 0
      %4494 = vmatpush2.bf16.msra.mxu0 0
      %4495 = vmatprep.subr.bf16.mxu0 0
      %4496 = vmatpush2.bf16.msra.mxu0 0
      %4497 = vmatprep.subr.bf16.mxu0 0
      %4498 = vmatpush2.bf16.msra.mxu0 0
      %4499 = vmatprep.subr.bf16.mxu0 0
      %4500 = vmatpush2.bf16.msra.mxu0 0
      %4501 = vmatprep.subr.bf16.mxu0 0
      %4502 = vmatpush2.bf16.msra.mxu0 0
      %4503 = vmatprep.subr.bf16.mxu0 0
      %4504 = vmatpush2.bf16.msra.mxu0 0
      %4505 = vmatprep.subr.bf16.mxu0 0
      %4506 = vmatpush2.bf16.msra.mxu0 0
      %4507 = vmatprep.subr.bf16.mxu0 0
      %4508 = vmatpush2.bf16.msra.mxu0 0
      %4509 = vmatprep.mubr.bf16.mxu0 0
      %4510 = vmatmul.mubr.bf16.gmra.mxu0 %v4475
      %v4511 = vpop.f32.mrf.mxu0
      %v4512 = vadd.f32 0.0, %v4511
      %v4513 = vpop.f32.mrf.mxu0
      %v4514 = vpop.f32.mrf.mxu0
      %v4515 = vadd.f32 0.0, %v4514
      %v4516 = vpop.f32.mrf.mxu0
      %4517 = vdwg.mxu0
      %v4518 = vadd.f32 %v4326, %v4512
      %v4519 = vadd.f32 %v4327, %v4515
      %v4520 = vld [vmem:[%s3592] sm:$0x3]
      %v4521 = vld [vmem:[%s3592 + $0x4] sm:$0x3]
      %v4522 = vld [vmem:[%s3592 + $0x8] sm:$0x3]
      %v4523 = vld [vmem:[%s3592 + $0xc] sm:$0x3]
      %s4524 = scalar_lea.vmem %s5, 192
      %v4525 = vld [vmem:[%s4524] sm:$0xf]
      %v4526 = vld [vmem:[%s4524 + $0x4] sm:$0xf]
      %v4527 = vld [vmem:[%s4524 + $0x8] sm:$0xf]
      %v4528 = vld [vmem:[%s4524 + $0xc] sm:$0xf]
      %v4529 = vld [vmem:[%s4524 + $0x10] sm:$0xf]
      %v4530 = vld [vmem:[%s4524 + $0x14] sm:$0xf]
      %v4531 = vld [vmem:[%s4524 + $0x18] sm:$0xf]
      %v4532 = vld [vmem:[%s4524 + $0x1c] sm:$0xf]
      %v4537 = vcombine.low %v4520, %v4521
      %v4538 = vcombine.low %v4522, %v4523
      %v4540 = vunpack.c.l.s4 1983009808
      %v4541 = vunpack.c.0.s8 %v4540
      %v4542 = vlaneseq
      %v4543 = vshrl.u32 %v4542, 7
      %v4544 = vsub.s32 %v4541, %v4543
      %v4545 = vrot.slane %v4537, %v4544
      %v4547 = vunpack.c.l.s4 1983009808
      %v4548 = vunpack.c.0.s8 %v4547
      %v4549 = vlaneseq
      %v4550 = vshrl.u32 %v4549, 7
      %v4551 = vsub.s32 %v4548, %v4550
      %v4552 = vrot.slane %v4538, %v4551
      %v4553 = vcombine.low %v4545, %v4552
      %v4562 = vunpack.c.l.b16 %v4525
      %v4563 = vunpack.c.l.b16 %v4526
      %v4564 = vunpack.c.l.b16 %v4527
      %v4565 = vunpack.c.l.b16 %v4528
      %v4566 = vunpack.c.l.b16 %v4529
      %v4567 = vunpack.c.l.b16 %v4530
      %v4568 = vunpack.c.l.b16 %v4531
      %v4569 = vunpack.c.l.b16 %v4532
      %v4570 = vpack.c.b16 %v4563, %v4562
      %v4571 = vpack.c.b16 %v4565, %v4564
      %v4572 = vpack.c.b16 %v4567, %v4566
      %v4573 = vpack.c.b16 %v4569, %v4568
      %v4579 = vsel %vm3436, %v4553, 0
      %4581 = vmatprep.subr.bf16.mxu0 0
      %4582 = vmatpush1.bf16.msra.mxu0 0
      %4583 = vmatprep.subr.bf16.mxu0 0
      %4584 = vmatpush1.bf16.msra.mxu0 0
      %4585 = vmatprep.subr.bf16.mxu0 0
      %4586 = vmatpush1.bf16.msra.mxu0 0
      %4587 = vmatprep.subr.bf16.mxu0 0
      %4588 = vmatpush1.bf16.msra.mxu0 0
      %4589 = vmatprep.subr.bf16.mxu0 0
      %4590 = vmatpush1.bf16.msra.mxu0 %v4573
      %4591 = vmatprep.subr.bf16.mxu0 0
      %4592 = vmatpush1.bf16.msra.mxu0 %v4572
      %4593 = vmatprep.subr.bf16.mxu0 0
      %4594 = vmatpush1.bf16.msra.mxu0 %v4571
      %4595 = vmatprep.subr.bf16.mxu0 0
      %4596 = vmatpush1.bf16.msra.mxu0 %v4570
      %4597 = vmatprep.subr.bf16.mxu0 0
      %4598 = vmatpush2.bf16.msra.mxu0 0
      %4599 = vmatprep.subr.bf16.mxu0 0
      %4600 = vmatpush2.bf16.msra.mxu0 0
      %4601 = vmatprep.subr.bf16.mxu0 0
      %4602 = vmatpush2.bf16.msra.mxu0 0
      %4603 = vmatprep.subr.bf16.mxu0 0
      %4604 = vmatpush2.bf16.msra.mxu0 0
      %4605 = vmatprep.subr.bf16.mxu0 0
      %4606 = vmatpush2.bf16.msra.mxu0 0
      %4607 = vmatprep.subr.bf16.mxu0 0
      %4608 = vmatpush2.bf16.msra.mxu0 0
      %4609 = vmatprep.subr.bf16.mxu0 0
      %4610 = vmatpush2.bf16.msra.mxu0 0
      %4611 = vmatprep.subr.bf16.mxu0 0
      %4612 = vmatpush2.bf16.msra.mxu0 0
      %4613 = vmatprep.mubr.bf16.mxu0 0
      %4614 = vmatmul.mubr.bf16.gmra.mxu0 %v4579
      %v4615 = vpop.f32.mrf.mxu0
      %v4616 = vadd.f32 0.0, %v4615
      %v4617 = vpop.f32.mrf.mxu0
      %v4618 = vpop.f32.mrf.mxu0
      %v4619 = vadd.f32 0.0, %v4618
      %v4620 = vpop.f32.mrf.mxu0
      %4621 = vdwg.mxu0
      %v4622 = vadd.f32 %v4518, %v4616
      %v4623 = vadd.f32 %v4519, %v4619
      %v4624 = vld [vmem:[%s3629] sm:$0x3]
      %v4625 = vld [vmem:[%s3629 + $0x4] sm:$0x3]
      %v4626 = vld [vmem:[%s3629 + $0x8] sm:$0x3]
      %v4627 = vld [vmem:[%s3629 + $0xc] sm:$0x3]
      %s4628 = scalar_lea.vmem %s5, 224
      %v4629 = vld [vmem:[%s4628] sm:$0xf]
      %v4630 = vld [vmem:[%s4628 + $0x4] sm:$0xf]
      %v4631 = vld [vmem:[%s4628 + $0x8] sm:$0xf]
      %v4632 = vld [vmem:[%s4628 + $0xc] sm:$0xf]
      %v4633 = vld [vmem:[%s4628 + $0x10] sm:$0xf]
      %v4634 = vld [vmem:[%s4628 + $0x14] sm:$0xf]
      %v4635 = vld [vmem:[%s4628 + $0x18] sm:$0xf]
      %v4636 = vld [vmem:[%s4628 + $0x1c] sm:$0xf]
      %v4641 = vcombine.low %v4624, %v4625
      %v4642 = vcombine.low %v4626, %v4627
      %v4644 = vunpack.c.l.s4 1983009808
      %v4645 = vunpack.c.0.s8 %v4644
      %v4646 = vlaneseq
      %v4647 = vshrl.u32 %v4646, 7
      %v4648 = vsub.s32 %v4645, %v4647
      %v4649 = vrot.slane %v4641, %v4648
      %v4651 = vunpack.c.l.s4 1983009808
      %v4652 = vunpack.c.0.s8 %v4651
      %v4653 = vlaneseq
      %v4654 = vshrl.u32 %v4653, 7
      %v4655 = vsub.s32 %v4652, %v4654
      %v4656 = vrot.slane %v4642, %v4655
      %v4657 = vcombine.low %v4649, %v4656
      %v4666 = vunpack.c.l.b16 %v4629
      %v4667 = vunpack.c.l.b16 %v4630
      %v4668 = vunpack.c.l.b16 %v4631
      %v4669 = vunpack.c.l.b16 %v4632
      %v4670 = vunpack.c.l.b16 %v4633
      %v4671 = vunpack.c.l.b16 %v4634
      %v4672 = vunpack.c.l.b16 %v4635
      %v4673 = vunpack.c.l.b16 %v4636
      %v4674 = vpack.c.b16 %v4667, %v4666
      %v4675 = vpack.c.b16 %v4669, %v4668
      %v4676 = vpack.c.b16 %v4671, %v4670
      %v4677 = vpack.c.b16 %v4673, %v4672
      %v4683 = vsel %vm3436, %v4657, 0
      %4685 = vmatprep.subr.bf16.mxu0 0
      %4686 = vmatpush1.bf16.msra.mxu0 0
      %4687 = vmatprep.subr.bf16.mxu0 0
      %4688 = vmatpush1.bf16.msra.mxu0 0
      %4689 = vmatprep.subr.bf16.mxu0 0
      %4690 = vmatpush1.bf16.msra.mxu0 0
      %4691 = vmatprep.subr.bf16.mxu0 0
      %4692 = vmatpush1.bf16.msra.mxu0 0
      %4693 = vmatprep.subr.bf16.mxu0 0
      %4694 = vmatpush1.bf16.msra.mxu0 %v4677
      %4695 = vmatprep.subr.bf16.mxu0 0
      %4696 = vmatpush1.bf16.msra.mxu0 %v4676
      %4697 = vmatprep.subr.bf16.mxu0 0
      %4698 = vmatpush1.bf16.msra.mxu0 %v4675
      %4699 = vmatprep.subr.bf16.mxu0 0
      %4700 = vmatpush1.bf16.msra.mxu0 %v4674
      %4701 = vmatprep.subr.bf16.mxu0 0
      %4702 = vmatpush2.bf16.msra.mxu0 0
      %4703 = vmatprep.subr.bf16.mxu0 0
      %4704 = vmatpush2.bf16.msra.mxu0 0
      %4705 = vmatprep.subr.bf16.mxu0 0
      %4706 = vmatpush2.bf16.msra.mxu0 0
      %4707 = vmatprep.subr.bf16.mxu0 0
      %4708 = vmatpush2.bf16.msra.mxu0 0
      %4709 = vmatprep.subr.bf16.mxu0 0
      %4710 = vmatpush2.bf16.msra.mxu0 0
      %4711 = vmatprep.subr.bf16.mxu0 0
      %4712 = vmatpush2.bf16.msra.mxu0 0
      %4713 = vmatprep.subr.bf16.mxu0 0
      %4714 = vmatpush2.bf16.msra.mxu0 0
      %4715 = vmatprep.subr.bf16.mxu0 0
      %4716 = vmatpush2.bf16.msra.mxu0 0
      %4717 = vmatprep.mubr.bf16.mxu0 0
      %4718 = vmatmul.mubr.bf16.gmra.mxu0 %v4683
      %v4719 = vpop.f32.mrf.mxu0
      %v4720 = vadd.f32 0.0, %v4719
      %v4721 = vpop.f32.mrf.mxu0
      %v4722 = vpop.f32.mrf.mxu0
      %v4723 = vadd.f32 0.0, %v4722
      %v4724 = vpop.f32.mrf.mxu0
      %4725 = vdwg.mxu0
      %v4726 = vadd.f32 %v4622, %v4720
      %v4727 = vadd.f32 %v4623, %v4723
      %v4728 = vld [vmem:[%s3592] sm:$0x7]
      %v4729 = vld [vmem:[%s3592 + $0x4] sm:$0x7]
      %v4730 = vld [vmem:[%s3592 + $0x8] sm:$0x7]
      %v4731 = vld [vmem:[%s3592 + $0xc] sm:$0x7]
      %v4737 = vunpack.c.l.s4 1983009808
      %v4738 = vunpack.c.0.s8 %v4737
      %v4739 = vlaneseq
      %v4740 = vshrl.u32 %v4739, 7
      %v4741 = vsub.s32 %v4738, %v4740
      %v4742 = vrot.slane %v4728, %v4741
      %v4743 = vcombine.high %v4742, %v4742
      %v4745 = vunpack.c.l.s4 1983009808
      %v4746 = vunpack.c.0.s8 %v4745
      %v4747 = vlaneseq
      %v4748 = vshrl.u32 %v4747, 7
      %v4749 = vsub.s32 %v4746, %v4748
      %v4750 = vrot.slane %v4729, %v4749
      %v4751 = vcombine.high %v4750, %v4750
      %v4753 = vunpack.c.l.s4 1983009808
      %v4754 = vunpack.c.0.s8 %v4753
      %v4755 = vlaneseq
      %v4756 = vshrl.u32 %v4755, 7
      %v4757 = vsub.s32 %v4754, %v4756
      %v4758 = vrot.slane %v4730, %v4757
      %v4759 = vcombine.high %v4758, %v4758
      %v4761 = vunpack.c.l.s4 1983009808
      %v4762 = vunpack.c.0.s8 %v4761
      %v4763 = vlaneseq
      %v4764 = vshrl.u32 %v4763, 7
      %v4765 = vsub.s32 %v4762, %v4764
      %v4766 = vrot.slane %v4731, %v4765
      %v4767 = vcombine.high %v4766, %v4766
      %v4769 = vshrl.u32 %v4742, 16
      %v4771 = vrot.slane %v4769, 6
      %v4772 = vshll.u32 %v4742, 16
      %v4774 = vrot.slane %v4772, 7
      %v4775 = vor.u32 %v4771, %v4774
      %v4776 = vrot.slane %v4775, 2
      %v4778 = vshll.u32 %v4743, 16
      %v4780 = vrot.slane %v4778, 7
      %v4781 = vsel %vm3967, %v4776, %v4780
      %v4783 = vshrl.u32 %v4750, 16
      %v4785 = vrot.slane %v4783, 6
      %v4786 = vshll.u32 %v4750, 16
      %v4788 = vrot.slane %v4786, 7
      %v4789 = vor.u32 %v4785, %v4788
      %v4790 = vrot.slane %v4789, 2
      %v4792 = vshll.u32 %v4751, 16
      %v4794 = vrot.slane %v4792, 7
      %v4795 = vsel %vm3967, %v4790, %v4794
      %v4797 = vshrl.u32 %v4758, 16
      %v4799 = vrot.slane %v4797, 6
      %v4800 = vshll.u32 %v4758, 16
      %v4802 = vrot.slane %v4800, 7
      %v4803 = vor.u32 %v4799, %v4802
      %v4804 = vrot.slane %v4803, 2
      %v4806 = vshll.u32 %v4759, 16
      %v4808 = vrot.slane %v4806, 7
      %v4809 = vsel %vm3967, %v4804, %v4808
      %v4811 = vshrl.u32 %v4766, 16
      %v4813 = vrot.slane %v4811, 6
      %v4814 = vshll.u32 %v4766, 16
      %v4816 = vrot.slane %v4814, 7
      %v4817 = vor.u32 %v4813, %v4816
      %v4818 = vrot.slane %v4817, 2
      %v4820 = vshll.u32 %v4767, 16
      %v4822 = vrot.slane %v4820, 7
      %v4823 = vsel %vm3967, %v4818, %v4822
      %s4824 = scalar_lea.vmem %s5, 256
      %v4825 = vld [vmem:[%s4824] sm:$0xf]
      %v4826 = vld [vmem:[%s4824 + $0x4] sm:$0xf]
      %v4827 = vld [vmem:[%s4824 + $0x8] sm:$0xf]
      %v4828 = vld [vmem:[%s4824 + $0xc] sm:$0xf]
      %v4829 = vld [vmem:[%s4824 + $0x10] sm:$0xf]
      %v4830 = vld [vmem:[%s4824 + $0x14] sm:$0xf]
      %v4831 = vld [vmem:[%s4824 + $0x18] sm:$0xf]
      %v4832 = vld [vmem:[%s4824 + $0x1c] sm:$0xf]
      %v4833 = vcombine.low %v4781, %v4795
      %v4834 = vcombine.low %v4809, %v4823
      %v4836 = vunpack.c.l.s4 1983009808
      %v4837 = vunpack.c.0.s8 %v4836
      %v4838 = vlaneseq
      %v4839 = vshrl.u32 %v4838, 7
      %v4840 = vsub.s32 %v4837, %v4839
      %v4841 = vrot.slane %v4833, %v4840
      %v4843 = vunpack.c.l.s4 1983009808
      %v4844 = vunpack.c.0.s8 %v4843
      %v4845 = vlaneseq
      %v4846 = vshrl.u32 %v4845, 7
      %v4847 = vsub.s32 %v4844, %v4846
      %v4848 = vrot.slane %v4834, %v4847
      %v4849 = vcombine.low %v4841, %v4848
      %v4858 = vunpack.c.l.b16 %v4825
      %v4859 = vunpack.c.l.b16 %v4826
      %v4860 = vunpack.c.l.b16 %v4827
      %v4861 = vunpack.c.l.b16 %v4828
      %v4862 = vunpack.c.l.b16 %v4829
      %v4863 = vunpack.c.l.b16 %v4830
      %v4864 = vunpack.c.l.b16 %v4831
      %v4865 = vunpack.c.l.b16 %v4832
      %v4866 = vpack.c.b16 %v4859, %v4858
      %v4867 = vpack.c.b16 %v4861, %v4860
      %v4868 = vpack.c.b16 %v4863, %v4862
      %v4869 = vpack.c.b16 %v4865, %v4864
      %v4875 = vsel %vm3436, %v4849, 0
      %4877 = vmatprep.subr.bf16.mxu0 0
      %4878 = vmatpush1.bf16.msra.mxu0 0
      %4879 = vmatprep.subr.bf16.mxu0 0
      %4880 = vmatpush1.bf16.msra.mxu0 0
      %4881 = vmatprep.subr.bf16.mxu0 0
      %4882 = vmatpush1.bf16.msra.mxu0 0
      %4883 = vmatprep.subr.bf16.mxu0 0
      %4884 = vmatpush1.bf16.msra.mxu0 0
      %4885 = vmatprep.subr.bf16.mxu0 0
      %4886 = vmatpush1.bf16.msra.mxu0 %v4869
      %4887 = vmatprep.subr.bf16.mxu0 0
      %4888 = vmatpush1.bf16.msra.mxu0 %v4868
      %4889 = vmatprep.subr.bf16.mxu0 0
      %4890 = vmatpush1.bf16.msra.mxu0 %v4867
      %4891 = vmatprep.subr.bf16.mxu0 0
      %4892 = vmatpush1.bf16.msra.mxu0 %v4866
      %4893 = vmatprep.subr.bf16.mxu0 0
      %4894 = vmatpush2.bf16.msra.mxu0 0
      %4895 = vmatprep.subr.bf16.mxu0 0
      %4896 = vmatpush2.bf16.msra.mxu0 0
      %4897 = vmatprep.subr.bf16.mxu0 0
      %4898 = vmatpush2.bf16.msra.mxu0 0
      %4899 = vmatprep.subr.bf16.mxu0 0
      %4900 = vmatpush2.bf16.msra.mxu0 0
      %4901 = vmatprep.subr.bf16.mxu0 0
      %4902 = vmatpush2.bf16.msra.mxu0 0
      %4903 = vmatprep.subr.bf16.mxu0 0
      %4904 = vmatpush2.bf16.msra.mxu0 0
      %4905 = vmatprep.subr.bf16.mxu0 0
      %4906 = vmatpush2.bf16.msra.mxu0 0
      %4907 = vmatprep.subr.bf16.mxu0 0
      %4908 = vmatpush2.bf16.msra.mxu0 0
      %4909 = vmatprep.mubr.bf16.mxu0 0
      %4910 = vmatmul.mubr.bf16.gmra.mxu0 %v4875
      %v4911 = vpop.f32.mrf.mxu0
      %v4912 = vadd.f32 0.0, %v4911
      %v4913 = vpop.f32.mrf.mxu0
      %v4914 = vpop.f32.mrf.mxu0
      %v4915 = vadd.f32 0.0, %v4914
      %v4916 = vpop.f32.mrf.mxu0
      %4917 = vdwg.mxu0
      %v4918 = vadd.f32 %v4726, %v4912
      %v4919 = vadd.f32 %v4727, %v4915
      %v4920 = vld [vmem:[%s6] sm:$0x1]
      %v4922 = vlaneseq
      %v4923 = vshrl.u32 %v4922, 7
      %v4924 = vsub.s32 0, %v4923
      %v4925 = vrot.slane %v4920, %v4924
      %v4927 = vadd.f32 %v4918, %v4925
      %v4928 = vadd.f32 %v4919, %v4925
      %v4929 = vsel %vm3436, %v4927, 0.0
      %v4930 = vsel %vm3436, %v4928, 0.0
      %v4931 = vadd.f32 %v4929, %v4930
      %v4932 = vrot.slane %v4931, 4
      %v4933 = vadd.f32 %v4931, %v4932
      %v4934 = vrot.slane %v4933, 2
      %v4935 = vadd.f32 %v4933, %v4934
      %v4936 = vrot.slane %v4935, 1
      %v4937 = vadd.f32 %v4935, %v4936
      %v4938 = vmul.f32 %v4937, 0.0625
      %v4939 = vsub.f32 %v4927, %v4938
      %v4940 = vsub.f32 %v4928, %v4938
      %v4941 = vmul.f32 %v4939, %v4939
      %v4942 = vmul.f32 %v4940, %v4940
      %v4943 = vsel %vm3436, %v4941, 0.0
      %v4944 = vsel %vm3436, %v4942, 0.0
      %v4945 = vadd.f32 %v4943, %v4944
      %v4946 = vrot.slane %v4945, 4
      %v4947 = vadd.f32 %v4945, %v4946
      %v4948 = vrot.slane %v4947, 2
      %v4949 = vadd.f32 %v4947, %v4948
      %v4950 = vrot.slane %v4949, 1
      %v4951 = vadd.f32 %v4949, %v4950
      %v4952 = vmul.f32 %v4951, 0.0625
      %v4953 = vadd.f32 %v4952, 1e-05
      %v4954 = vrsqrt.pop %v4953
      %v4955 = vmul.f32 %v4939, %v4954
      %v4956 = vmul.f32 %v4940, %v4954
      %v4957 = vmax.f32 %v4955, 0.0
      %v4958 = vmax.f32 %v4956, 0.0
      %s4959 = scalar_lea.vmem [#allocation4], 8
      %vm4960 = vcmask 519168
      %4961 = vst.msk [vmem:[%s4959 + $0x1] sm:$0xf] %vm4960, %v4957
      %s4962 = scalar_lea.vmem [#allocation4], 16
      %vm4963 = vcmask 523268
      %4964 = vst.msk [vmem:[%s4962 - $0x3] sm:$0xf0] %vm4963, %v4957
      %s4965 = scalar_lea.vmem [#allocation4], 24
      %4966 = vst.msk [vmem:[%s4965 + $0x1] sm:$0xf] %vm4960, %v4958
      %s4967 = scalar_lea.vmem [#allocation4], 32
      %4968 = vst.msk [vmem:[%s4967 - $0x3] sm:$0xf0] %vm4963, %v4958
      %4969 = vst.msk [vmem:[#allocation4 - $0x3] sm:$0xf0] %vm4963, %v4957
      %s4970 = scalar_lea.vmem [#allocation4], 40
      %4971 = vst.msk [vmem:[%s4970 + $0x1] sm:$0xf] %vm4960, %v4958
      %v4972 = vld [vmem:[#allocation4 + $0x2] sm:$0x1]
      %v4973 = vld [vmem:[#allocation4 + $0xa] sm:$0x1]
      %v4974 = vld [vmem:[#allocation4 + $0x12] sm:$0x1]
      %v4975 = vld [vmem:[#allocation4 + $0x1a] sm:$0x1]
      %v4976 = vld [vmem:[#allocation4 + $0x22] sm:$0x1]
      %v4977 = vld [vmem:[#allocation4 + $0x2a] sm:$0x1]
      %vm4978 = vcmask 516096
      %4979 = vst.msk [vmem:[#allocation4] sm:$0x1] %vm4978, %v4972
      %4980 = vst.msk [vmem:[#allocation4 + $0x8] sm:$0x1] %vm4978, %v4973
      %4981 = vst.msk [vmem:[#allocation4 + $0x10] sm:$0x1] %vm4978, %v4974
      %4982 = vst.msk [vmem:[#allocation4 + $0x18] sm:$0x1] %vm4978, %v4975
      %4983 = vst.msk [vmem:[#allocation4 + $0x20] sm:$0x1] %vm4978, %v4976
      %4984 = vst.msk [vmem:[#allocation4 + $0x28] sm:$0x1] %vm4978, %v4977
      %v4985 = vld [vmem:[#allocation4 + $0x3] sm:$0x1]
      %v4986 = vld [vmem:[#allocation4 + $0xb] sm:$0x1]
      %v4987 = vld [vmem:[#allocation4 + $0x13] sm:$0x1]
      %v4988 = vld [vmem:[#allocation4 + $0x1b] sm:$0x1]
      %v4989 = vld [vmem:[#allocation4 + $0x23] sm:$0x1]
      %v4990 = vld [vmem:[#allocation4 + $0x2b] sm:$0x1]
      %4991 = vst.msk [vmem:[#allocation4 + $0x5] sm:$0x1] %vm4978, %v4985
      %4992 = vst.msk [vmem:[#allocation4 + $0xd] sm:$0x1] %vm4978, %v4986
      %4993 = vst.msk [vmem:[#allocation4 + $0x15] sm:$0x1] %vm4978, %v4987
      %4994 = vst.msk [vmem:[#allocation4 + $0x1d] sm:$0x1] %vm4978, %v4988
      %4995 = vst.msk [vmem:[#allocation4 + $0x25] sm:$0x1] %vm4978, %v4989
      %4996 = vst.msk [vmem:[#allocation4 + $0x2d] sm:$0x1] %vm4978, %v4990
      %v4997 = vld [vmem:[#allocation4] sm:$0xf]
      %v4998 = vld [vmem:[#allocation4 + $0x8] sm:$0xf]
      %v4999 = vld [vmem:[#allocation4 + $0x10] sm:$0xf]
      %v5000 = vld [vmem:[#allocation4 + $0x18] sm:$0xf]
      %v5001 = vld [vmem:[%s7] sm:$0x1]
      %v5002 = vlaneseq
      %v5003 = vshrl.u32 %v5002, 7
      %v5004 = vsub.s32 0, %v5003
      %v5005 = vrot.slane %v5001, %v5004
      %v5006 = vmul.f32 %v4997, %v5005
      %v5007 = vmul.f32 %v4998, %v5005
      %v5008 = vmul.f32 %v4999, %v5005
      %v5009 = vmul.f32 %v5000, %v5005
      %v5010 = vadd.f32 %v5006, 0.0
      %v5011 = vadd.f32 %v5007, 0.0
      %v5012 = vadd.f32 %v5008, 0.0
      %v5013 = vadd.f32 %v5009, 0.0
      %v5014 = vld [vmem:[#allocation4 + $0x1] sm:$0xf]
      %v5015 = vld [vmem:[#allocation4 + $0x9] sm:$0xf]
      %v5016 = vld [vmem:[#allocation4 + $0x11] sm:$0xf]
      %v5017 = vld [vmem:[#allocation4 + $0x19] sm:$0xf]
      %v5018 = vld [vmem:[%s7 + $0x1] sm:$0x1]
      %v5019 = vlaneseq
      %v5020 = vshrl.u32 %v5019, 7
      %v5021 = vsub.s32 0, %v5020
      %v5022 = vrot.slane %v5018, %v5021
      %v5023 = vmul.f32 %v5014, %v5022
      %v5024 = vmul.f32 %v5015, %v5022
      %v5025 = vmul.f32 %v5016, %v5022
      %v5026 = vmul.f32 %v5017, %v5022
      %v5027 = vadd.f32 %v5010, %v5023
      %v5028 = vadd.f32 %v5011, %v5024
      %v5029 = vadd.f32 %v5012, %v5025
      %v5030 = vadd.f32 %v5013, %v5026
      %v5031 = vld [vmem:[#allocation4 + $0x2] sm:$0xf]
      %v5032 = vld [vmem:[#allocation4 + $0xa] sm:$0xf]
      %v5033 = vld [vmem:[#allocation4 + $0x12] sm:$0xf]
      %v5034 = vld [vmem:[#allocation4 + $0x1a] sm:$0xf]
      %v5035 = vld [vmem:[%s7 + $0x2] sm:$0x1]
      %v5036 = vlaneseq
      %v5037 = vshrl.u32 %v5036, 7
      %v5038 = vsub.s32 0, %v5037
      %v5039 = vrot.slane %v5035, %v5038
      %v5040 = vmul.f32 %v5031, %v5039
      %v5041 = vmul.f32 %v5032, %v5039
      %v5042 = vmul.f32 %v5033, %v5039
      %v5043 = vmul.f32 %v5034, %v5039
      %v5044 = vadd.f32 %v5027, %v5040
      %v5045 = vadd.f32 %v5028, %v5041
      %v5046 = vadd.f32 %v5029, %v5042
      %v5047 = vadd.f32 %v5030, %v5043
      %v5048 = vld [vmem:[%s4959] sm:$0xf]
      %v5049 = vld [vmem:[%s4959 + $0x8] sm:$0xf]
      %v5050 = vld [vmem:[%s4959 + $0x10] sm:$0xf]
      %v5051 = vld [vmem:[%s4959 + $0x18] sm:$0xf]
      %v5052 = vld [vmem:[%s7 + $0x3] sm:$0x1]
      %v5053 = vlaneseq
      %v5054 = vshrl.u32 %v5053, 7
      %v5055 = vsub.s32 0, %v5054
      %v5056 = vrot.slane %v5052, %v5055
      %v5057 = vmul.f32 %v5048, %v5056
      %v5058 = vmul.f32 %v5049, %v5056
      %v5059 = vmul.f32 %v5050, %v5056
      %v5060 = vmul.f32 %v5051, %v5056
      %v5061 = vadd.f32 %v5044, %v5057
      %v5062 = vadd.f32 %v5045, %v5058
      %v5063 = vadd.f32 %v5046, %v5059
      %v5064 = vadd.f32 %v5047, %v5060
      %v5065 = vld [vmem:[%s4959 + $0x1] sm:$0xf]
      %v5066 = vld [vmem:[%s4959 + $0x9] sm:$0xf]
      %v5067 = vld [vmem:[%s4959 + $0x11] sm:$0xf]
      %v5068 = vld [vmem:[%s4959 + $0x19] sm:$0xf]
      %v5069 = vld [vmem:[%s7 + $0x4] sm:$0x1]
      %v5070 = vlaneseq
      %v5071 = vshrl.u32 %v5070, 7
      %v5072 = vsub.s32 0, %v5071
      %v5073 = vrot.slane %v5069, %v5072
      %v5074 = vmul.f32 %v5065, %v5073
      %v5075 = vmul.f32 %v5066, %v5073
      %v5076 = vmul.f32 %v5067, %v5073
      %v5077 = vmul.f32 %v5068, %v5073
      %v5078 = vadd.f32 %v5061, %v5074
      %v5079 = vadd.f32 %v5062, %v5075
      %v5080 = vadd.f32 %v5063, %v5076
      %v5081 = vadd.f32 %v5064, %v5077
      %v5082 = vld [vmem:[%s4959 + $0x2] sm:$0xf]
      %v5083 = vld [vmem:[%s4959 + $0xa] sm:$0xf]
      %v5084 = vld [vmem:[%s4959 + $0x12] sm:$0xf]
      %v5085 = vld [vmem:[%s4959 + $0x1a] sm:$0xf]
      %v5086 = vld [vmem:[%s7 + $0x5] sm:$0x1]
      %v5087 = vlaneseq
      %v5088 = vshrl.u32 %v5087, 7
      %v5089 = vsub.s32 0, %v5088
      %v5090 = vrot.slane %v5086, %v5089
      %v5091 = vmul.f32 %v5082, %v5090
      %v5092 = vmul.f32 %v5083, %v5090
      %v5093 = vmul.f32 %v5084, %v5090
      %v5094 = vmul.f32 %v5085, %v5090
      %v5095 = vadd.f32 %v5078, %v5091
      %v5096 = vadd.f32 %v5079, %v5092
      %v5097 = vadd.f32 %v5080, %v5093
      %v5098 = vadd.f32 %v5081, %v5094
      %v5099 = vld [vmem:[%s4962] sm:$0xf]
      %v5100 = vld [vmem:[%s4962 + $0x8] sm:$0xf]
      %v5101 = vld [vmem:[%s4962 + $0x10] sm:$0xf]
      %v5102 = vld [vmem:[%s4962 + $0x18] sm:$0xf]
      %v5103 = vld [vmem:[%s7 + $0x6] sm:$0x1]
      %v5104 = vlaneseq
      %v5105 = vshrl.u32 %v5104, 7
      %v5106 = vsub.s32 0, %v5105
      %v5107 = vrot.slane %v5103, %v5106
      %v5108 = vmul.f32 %v5099, %v5107
      %v5109 = vmul.f32 %v5100, %v5107
      %v5110 = vmul.f32 %v5101, %v5107
      %v5111 = vmul.f32 %v5102, %v5107
      %v5112 = vadd.f32 %v5095, %v5108
      %v5113 = vadd.f32 %v5096, %v5109
      %v5114 = vadd.f32 %v5097, %v5110
      %v5115 = vadd.f32 %v5098, %v5111
      %v5116 = vld [vmem:[%s4962 + $0x1] sm:$0xf]
      %v5117 = vld [vmem:[%s4962 + $0x9] sm:$0xf]
      %v5118 = vld [vmem:[%s4962 + $0x11] sm:$0xf]
      %v5119 = vld [vmem:[%s4962 + $0x19] sm:$0xf]
      %v5120 = vld [vmem:[%s7 + $0x7] sm:$0x1]
      %v5121 = vlaneseq
      %v5122 = vshrl.u32 %v5121, 7
      %v5123 = vsub.s32 0, %v5122
      %v5124 = vrot.slane %v5120, %v5123
      %v5125 = vmul.f32 %v5116, %v5124
      %v5126 = vmul.f32 %v5117, %v5124
      %v5127 = vmul.f32 %v5118, %v5124
      %v5128 = vmul.f32 %v5119, %v5124
      %v5129 = vadd.f32 %v5112, %v5125
      %v5130 = vadd.f32 %v5113, %v5126
      %v5131 = vadd.f32 %v5114, %v5127
      %v5132 = vadd.f32 %v5115, %v5128
      %v5133 = vld [vmem:[%s4962 + $0x2] sm:$0xf]
      %v5134 = vld [vmem:[%s4962 + $0xa] sm:$0xf]
      %v5135 = vld [vmem:[%s4962 + $0x12] sm:$0xf]
      %v5136 = vld [vmem:[%s4962 + $0x1a] sm:$0xf]
      %v5137 = vld [vmem:[%s7 + $0x8] sm:$0x1]
      %v5138 = vlaneseq
      %v5139 = vshrl.u32 %v5138, 7
      %v5140 = vsub.s32 0, %v5139
      %v5141 = vrot.slane %v5137, %v5140
      %v5142 = vmul.f32 %v5133, %v5141
      %v5143 = vmul.f32 %v5134, %v5141
      %v5144 = vmul.f32 %v5135, %v5141
      %v5145 = vmul.f32 %v5136, %v5141
      %v5146 = vadd.f32 %v5129, %v5142
      %v5147 = vadd.f32 %v5130, %v5143
      %v5148 = vadd.f32 %v5131, %v5144
      %v5149 = vadd.f32 %v5132, %v5145
      %v5150 = vld [vmem:[%s8] sm:$0x1]
      %v5152 = vlaneseq
      %v5153 = vshrl.u32 %v5152, 7
      %v5154 = vsub.s32 0, %v5153
      %v5155 = vrot.slane %v5150, %v5154
      %v5157 = vadd.f32 %v5146, %v5155
      %v5158 = vadd.f32 %v5147, %v5155
      %v5159 = vadd.f32 %v5148, %v5155
      %v5160 = vadd.f32 %v5149, %v5155
      %v5161 = vsel %vm4960, %v5157, 0.0
      %v5162 = vrot.slane %v5161, 4
      %v5163 = vadd.f32 %v5161, %v5162
      %v5164 = vrot.slane %v5163, 2
      %v5165 = vadd.f32 %v5163, %v5164
      %v5166 = vrot.slane %v5165, 1
      %v5167 = vadd.f32 %v5165, %v5166
      %v5168 = vsel %vm4960, %v5158, 0.0
      %v5169 = vrot.slane %v5168, 4
      %v5170 = vadd.f32 %v5168, %v5169
      %v5171 = vrot.slane %v5170, 2
      %v5172 = vadd.f32 %v5170, %v5171
      %v5173 = vrot.slane %v5172, 1
      %v5174 = vadd.f32 %v5172, %v5173
      %v5175 = vsel %vm4960, %v5159, 0.0
      %v5176 = vrot.slane %v5175, 4
      %v5177 = vadd.f32 %v5175, %v5176
      %v5178 = vrot.slane %v5177, 2
      %v5179 = vadd.f32 %v5177, %v5178
      %v5180 = vrot.slane %v5179, 1
      %v5181 = vadd.f32 %v5179, %v5180
      %v5182 = vsel %vm4960, %v5160, 0.0
      %v5183 = vrot.slane %v5182, 4
      %v5184 = vadd.f32 %v5182, %v5183
      %v5185 = vrot.slane %v5184, 2
      %v5186 = vadd.f32 %v5184, %v5185
      %v5187 = vrot.slane %v5186, 1
      %v5188 = vadd.f32 %v5186, %v5187
      %v5189 = vsel %vm3436, %v5167, 0.0
      %v5190 = vsel %vm3436, %v5174, 0.0
      %v5191 = vadd.f32 %v5189, %v5190
      %v5192 = vsel %vm3436, %v5181, 0.0
      %v5193 = vadd.f32 %v5191, %v5192
      %v5194 = vsel %vm3436, %v5188, 0.0
      %v5195 = vadd.f32 %v5193, %v5194
      %v5196 = vmul.f32 %v5195, 0.0625
      %v5197 = vsub.f32 %v5157, %v5196
      %v5198 = vsub.f32 %v5158, %v5196
      %v5199 = vsub.f32 %v5159, %v5196
      %v5200 = vsub.f32 %v5160, %v5196
      %v5201 = vmul.f32 %v5197, %v5197
      %v5202 = vmul.f32 %v5198, %v5198
      %v5203 = vmul.f32 %v5199, %v5199
      %v5204 = vmul.f32 %v5200, %v5200
      %v5205 = vsel %vm4960, %v5201, 0.0
      %v5206 = vrot.slane %v5205, 4
      %v5207 = vadd.f32 %v5205, %v5206
      %v5208 = vrot.slane %v5207, 2
      %v5209 = vadd.f32 %v5207, %v5208
      %v5210 = vrot.slane %v5209, 1
      %v5211 = vadd.f32 %v5209, %v5210
      %v5212 = vsel %vm4960, %v5202, 0.0
      %v5213 = vrot.slane %v5212, 4
      %v5214 = vadd.f32 %v5212, %v5213
      %v5215 = vrot.slane %v5214, 2
      %v5216 = vadd.f32 %v5214, %v5215
      %v5217 = vrot.slane %v5216, 1
      %v5218 = vadd.f32 %v5216, %v5217
      %v5219 = vsel %vm4960, %v5203, 0.0
      %v5220 = vrot.slane %v5219, 4
      %v5221 = vadd.f32 %v5219, %v5220
      %v5222 = vrot.slane %v5221, 2
      %v5223 = vadd.f32 %v5221, %v5222
      %v5224 = vrot.slane %v5223, 1
      %v5225 = vadd.f32 %v5223, %v5224
      %v5226 = vsel %vm4960, %v5204, 0.0
      %v5227 = vrot.slane %v5226, 4
      %v5228 = vadd.f32 %v5226, %v5227
      %v5229 = vrot.slane %v5228, 2
      %v5230 = vadd.f32 %v5228, %v5229
      %v5231 = vrot.slane %v5230, 1
      %v5232 = vadd.f32 %v5230, %v5231
      %v5233 = vsel %vm3436, %v5211, 0.0
      %v5234 = vsel %vm3436, %v5218, 0.0
      %v5235 = vadd.f32 %v5233, %v5234
      %v5236 = vsel %vm3436, %v5225, 0.0
      %v5237 = vadd.f32 %v5235, %v5236
      %v5238 = vsel %vm3436, %v5232, 0.0
      %v5239 = vadd.f32 %v5237, %v5238
      %v5240 = vmul.f32 %v5239, 0.0625
      %v5241 = vadd.f32 %v5240, 1e-05
      %v5242 = vrsqrt.pop %v5241
      %v5243 = vmul.f32 %v5197, %v5242
      %v5244 = vmul.f32 %v5198, %v5242
      %v5245 = vmul.f32 %v5199, %v5242
      %v5246 = vmul.f32 %v5200, %v5242
      %v5247 = vadd.f32 %v5243, %v5065
      %v5248 = vadd.f32 %v5244, %v5066
      %v5249 = vadd.f32 %v5245, %v5067
      %v5250 = vadd.f32 %v5246, %v5068
      %v5251 = vld [vmem:[#allocation5] sm:$0x7]
      %v5252 = vsel %vm3520, 0, %v5251
      %5253 = vst [vmem:[#allocation5] sm:$0x7] %v5252
      %v5254 = vld [vmem:[#allocation5 + $0x4] sm:$0x7]
      %v5255 = vsel %vm3520, 0, %v5254
      %5256 = vst [vmem:[#allocation5 + $0x4] sm:$0x7] %v5255
      %v5257 = vld [vmem:[#allocation5 + $0x8] sm:$0x7]
      %v5258 = vsel %vm3520, 0, %v5257
      %5259 = vst [vmem:[#allocation5 + $0x8] sm:$0x7] %v5258
      %v5260 = vld [vmem:[#allocation5 + $0xc] sm:$0x7]
      %v5261 = vsel %vm3520, 0, %v5260
      %5262 = vst [vmem:[#allocation5 + $0xc] sm:$0x7] %v5261
      %v5263 = vld [vmem:[#allocation5 + $0x10] sm:$0x7]
      %v5264 = vsel %vm3520, 0, %v5263
      %5265 = vst [vmem:[#allocation5 + $0x10] sm:$0x7] %v5264
      %v5266 = vpack.c.bf16 %v5247, %v5247
      %v5267 = vpack.c.bf16 %v5248, %v5248
      %v5268 = vpack.c.bf16 %v5249, %v5249
      %v5269 = vpack.c.bf16 %v5250, %v5250
      %5270 = vst.msk [vmem:[#allocation5] sm:$0x3] %vm3630, %v5266
      %5271 = vst.msk [vmem:[#allocation5 + $0x4] sm:$0x3] %vm3630, %v5267
      %5272 = vst.msk [vmem:[#allocation5 + $0x8] sm:$0x3] %vm3630, %v5268
      %5273 = vst.msk [vmem:[#allocation5 + $0xc] sm:$0x3] %vm3630, %v5269
      %v5274 = vld [vmem:[#allocation5] sm:$0x3]
      %v5275 = vld [vmem:[#allocation5 + $0x4] sm:$0x3]
      %v5276 = vld [vmem:[#allocation5 + $0x8] sm:$0x3]
      %v5277 = vld [vmem:[#allocation5 + $0xc] sm:$0x3]
      %s5278 = scalar_lea.vmem %s9, 128
      %v5279 = vld [vmem:[%s5278] sm:$0xf]
      %v5280 = vld [vmem:[%s5278 + $0x4] sm:$0xf]
      %v5281 = vld [vmem:[%s5278 + $0x8] sm:$0xf]
      %v5282 = vld [vmem:[%s5278 + $0xc] sm:$0xf]
      %v5283 = vld [vmem:[%s5278 + $0x10] sm:$0xf]
      %v5284 = vld [vmem:[%s5278 + $0x14] sm:$0xf]
      %v5285 = vld [vmem:[%s5278 + $0x18] sm:$0xf]
      %v5286 = vld [vmem:[%s5278 + $0x1c] sm:$0xf]
      %v5287 = vld [vmem:[%s10] sm:$0x1]
      %v5289 = vlaneseq
      %v5290 = vshrl.u32 %v5289, 7
      %v5291 = vsub.s32 0, %v5290
      %v5292 = vrot.slane %v5287, %v5291
      %v5298 = vcombine.low %v5274, %v5275
      %v5299 = vcombine.low %v5276, %v5277
      %v5301 = vunpack.c.l.s4 1983009808
      %v5302 = vunpack.c.0.s8 %v5301
      %v5303 = vlaneseq
      %v5304 = vshrl.u32 %v5303, 7
      %v5305 = vsub.s32 %v5302, %v5304
      %v5306 = vrot.slane %v5298, %v5305
      %v5308 = vunpack.c.l.s4 1983009808
      %v5309 = vunpack.c.0.s8 %v5308
      %v5310 = vlaneseq
      %v5311 = vshrl.u32 %v5310, 7
      %v5312 = vsub.s32 %v5309, %v5311
      %v5313 = vrot.slane %v5299, %v5312
      %v5314 = vcombine.low %v5306, %v5313
      %v5323 = vunpack.c.l.b16 %v5279
      %v5324 = vunpack.c.l.b16 %v5280
      %v5325 = vunpack.c.l.b16 %v5281
      %v5326 = vunpack.c.l.b16 %v5282
      %v5327 = vunpack.c.l.b16 %v5283
      %v5328 = vunpack.c.l.b16 %v5284
      %v5329 = vunpack.c.l.b16 %v5285
      %v5330 = vunpack.c.l.b16 %v5286
      %v5331 = vpack.c.b16 %v5324, %v5323
      %v5332 = vpack.c.b16 %v5326, %v5325
      %v5333 = vpack.c.b16 %v5328, %v5327
      %v5334 = vpack.c.b16 %v5330, %v5329
      %v5340 = vsel %vm3436, %v5314, 0
      %5342 = vmatprep.subr.bf16.mxu0 0
      %5343 = vmatpush1.bf16.msra.mxu0 0
      %5344 = vmatprep.subr.bf16.mxu0 0
      %5345 = vmatpush1.bf16.msra.mxu0 0
      %5346 = vmatprep.subr.bf16.mxu0 0
      %5347 = vmatpush1.bf16.msra.mxu0 0
      %5348 = vmatprep.subr.bf16.mxu0 0
      %5349 = vmatpush1.bf16.msra.mxu0 0
      %5350 = vmatprep.subr.bf16.mxu0 0
      %5351 = vmatpush1.bf16.msra.mxu0 %v5334
      %5352 = vmatprep.subr.bf16.mxu0 0
      %5353 = vmatpush1.bf16.msra.mxu0 %v5333
      %5354 = vmatprep.subr.bf16.mxu0 0
      %5355 = vmatpush1.bf16.msra.mxu0 %v5332
      %5356 = vmatprep.subr.bf16.mxu0 0
      %5357 = vmatpush1.bf16.msra.mxu0 %v5331
      %5358 = vmatprep.subr.bf16.mxu0 0
      %5359 = vmatpush2.bf16.msra.mxu0 0
      %5360 = vmatprep.subr.bf16.mxu0 0
      %5361 = vmatpush2.bf16.msra.mxu0 0
      %5362 = vmatprep.subr.bf16.mxu0 0
      %5363 = vmatpush2.bf16.msra.mxu0 0
      %5364 = vmatprep.subr.bf16.mxu0 0
      %5365 = vmatpush2.bf16.msra.mxu0 0
      %5366 = vmatprep.subr.bf16.mxu0 0
      %5367 = vmatpush2.bf16.msra.mxu0 0
      %5368 = vmatprep.subr.bf16.mxu0 0
      %5369 = vmatpush2.bf16.msra.mxu0 0
      %5370 = vmatprep.subr.bf16.mxu0 0
      %5371 = vmatpush2.bf16.msra.mxu0 0
      %5372 = vmatprep.subr.bf16.mxu0 0
      %5373 = vmatpush2.bf16.msra.mxu0 0
      %5374 = vmatprep.mubr.bf16.mxu0 0
      %5375 = vmatmul.mubr.bf16.gmra.mxu0 %v5340
      %v5376 = vpop.f32.mrf.mxu0
      %v5377 = vadd.f32 %v5292, %v5376
      %v5378 = vpop.f32.mrf.mxu0
      %v5379 = vpop.f32.mrf.mxu0
      %v5380 = vadd.f32 %v5292, %v5379
      %v5381 = vpop.f32.mrf.mxu0
      %5382 = vdwg.mxu0
      %vm5383 = vcmask 261120
      %5384 = vst.msk [vmem:[%s386] sm:$0xff] %vm5383, %v5377
      %5385 = vst.msk [vmem:[%s386 + $0x8] sm:$0xff] %vm5383, %v5380
      %v5386 = vld [vmem:[#allocation5] sm:$0x7]
      %v5387 = vld [vmem:[#allocation5 + $0x4] sm:$0x7]
      %v5388 = vld [vmem:[#allocation5 + $0x8] sm:$0x7]
      %v5389 = vld [vmem:[#allocation5 + $0xc] sm:$0x7]
      %v5395 = vunpack.c.l.s4 1983009808
      %v5396 = vunpack.c.0.s8 %v5395
      %v5397 = vlaneseq
      %v5398 = vshrl.u32 %v5397, 7
      %v5399 = vsub.s32 %v5396, %v5398
      %v5400 = vrot.slane %v5386, %v5399
      %v5401 = vcombine.high %v5400, %v5400
      %v5403 = vunpack.c.l.s4 1983009808
      %v5404 = vunpack.c.0.s8 %v5403
      %v5405 = vlaneseq
      %v5406 = vshrl.u32 %v5405, 7
      %v5407 = vsub.s32 %v5404, %v5406
      %v5408 = vrot.slane %v5387, %v5407
      %v5409 = vcombine.high %v5408, %v5408
      %v5411 = vunpack.c.l.s4 1983009808
      %v5412 = vunpack.c.0.s8 %v5411
      %v5413 = vlaneseq
      %v5414 = vshrl.u32 %v5413, 7
      %v5415 = vsub.s32 %v5412, %v5414
      %v5416 = vrot.slane %v5388, %v5415
      %v5417 = vcombine.high %v5416, %v5416
      %v5419 = vunpack.c.l.s4 1983009808
      %v5420 = vunpack.c.0.s8 %v5419
      %v5421 = vlaneseq
      %v5422 = vshrl.u32 %v5421, 7
      %v5423 = vsub.s32 %v5420, %v5422
      %v5424 = vrot.slane %v5389, %v5423
      %v5425 = vcombine.high %v5424, %v5424
      %v5427 = vshrl.u32 %v5400, 16
      %v5429 = vrot.slane %v5427, 6
      %v5430 = vshll.u32 %v5400, 16
      %v5432 = vrot.slane %v5430, 7
      %v5433 = vor.u32 %v5429, %v5432
      %v5434 = vrot.slane %v5433, 2
      %v5436 = vshll.u32 %v5401, 16
      %v5438 = vrot.slane %v5436, 7
      %v5439 = vsel %vm3967, %v5434, %v5438
      %v5441 = vshrl.u32 %v5408, 16
      %v5443 = vrot.slane %v5441, 6
      %v5444 = vshll.u32 %v5408, 16
      %v5446 = vrot.slane %v5444, 7
      %v5447 = vor.u32 %v5443, %v5446
      %v5448 = vrot.slane %v5447, 2
      %v5450 = vshll.u32 %v5409, 16
      %v5452 = vrot.slane %v5450, 7
      %v5453 = vsel %vm3967, %v5448, %v5452
      %v5455 = vshrl.u32 %v5416, 16
      %v5457 = vrot.slane %v5455, 6
      %v5458 = vshll.u32 %v5416, 16
      %v5460 = vrot.slane %v5458, 7
      %v5461 = vor.u32 %v5457, %v5460
      %v5462 = vrot.slane %v5461, 2
      %v5464 = vshll.u32 %v5417, 16
      %v5466 = vrot.slane %v5464, 7
      %v5467 = vsel %vm3967, %v5462, %v5466
      %v5469 = vshrl.u32 %v5424, 16
      %v5471 = vrot.slane %v5469, 6
      %v5472 = vshll.u32 %v5424, 16
      %v5474 = vrot.slane %v5472, 7
      %v5475 = vor.u32 %v5471, %v5474
      %v5476 = vrot.slane %v5475, 2
      %v5478 = vshll.u32 %v5425, 16
      %v5480 = vrot.slane %v5478, 7
      %v5481 = vsel %vm3967, %v5476, %v5480
      %s5482 = scalar_lea.vmem %s9, 96
      %v5483 = vld [vmem:[%s5482] sm:$0xf]
      %v5484 = vld [vmem:[%s5482 + $0x4] sm:$0xf]
      %v5485 = vld [vmem:[%s5482 + $0x8] sm:$0xf]
      %v5486 = vld [vmem:[%s5482 + $0xc] sm:$0xf]
      %v5487 = vld [vmem:[%s5482 + $0x10] sm:$0xf]
      %v5488 = vld [vmem:[%s5482 + $0x14] sm:$0xf]
      %v5489 = vld [vmem:[%s5482 + $0x18] sm:$0xf]
      %v5490 = vld [vmem:[%s5482 + $0x1c] sm:$0xf]
      %v5491 = vld [vmem:[#allocation5] sm:$0x3]
      %v5492 = vld [vmem:[#allocation5 + $0x4] sm:$0x3]
      %v5493 = vld [vmem:[#allocation5 + $0x8] sm:$0x3]
      %v5494 = vld [vmem:[#allocation5 + $0xc] sm:$0x3]
      %s5495 = scalar_lea.vmem %s9, 160
      %v5496 = vld [vmem:[%s5495] sm:$0xf]
      %v5497 = vld [vmem:[%s5495 + $0x4] sm:$0xf]
      %v5498 = vld [vmem:[%s5495 + $0x8] sm:$0xf]
      %v5499 = vld [vmem:[%s5495 + $0xc] sm:$0xf]
      %v5500 = vld [vmem:[%s5495 + $0x10] sm:$0xf]
      %v5501 = vld [vmem:[%s5495 + $0x14] sm:$0xf]
      %v5502 = vld [vmem:[%s5495 + $0x18] sm:$0xf]
      %v5503 = vld [vmem:[%s5495 + $0x1c] sm:$0xf]
      %v5508 = vcombine.low %v5491, %v5492
      %v5509 = vcombine.low %v5493, %v5494
      %v5511 = vunpack.c.l.s4 1983009808
      %v5512 = vunpack.c.0.s8 %v5511
      %v5513 = vlaneseq
      %v5514 = vshrl.u32 %v5513, 7
      %v5515 = vsub.s32 %v5512, %v5514
      %v5516 = vrot.slane %v5508, %v5515
      %v5518 = vunpack.c.l.s4 1983009808
      %v5519 = vunpack.c.0.s8 %v5518
      %v5520 = vlaneseq
      %v5521 = vshrl.u32 %v5520, 7
      %v5522 = vsub.s32 %v5519, %v5521
      %v5523 = vrot.slane %v5509, %v5522
      %v5524 = vcombine.low %v5516, %v5523
      %v5533 = vunpack.c.l.b16 %v5496
      %v5534 = vunpack.c.l.b16 %v5497
      %v5535 = vunpack.c.l.b16 %v5498
      %v5536 = vunpack.c.l.b16 %v5499
      %v5537 = vunpack.c.l.b16 %v5500
      %v5538 = vunpack.c.l.b16 %v5501
      %v5539 = vunpack.c.l.b16 %v5502
      %v5540 = vunpack.c.l.b16 %v5503
      %v5541 = vpack.c.b16 %v5534, %v5533
      %v5542 = vpack.c.b16 %v5536, %v5535
      %v5543 = vpack.c.b16 %v5538, %v5537
      %v5544 = vpack.c.b16 %v5540, %v5539
      %v5550 = vsel %vm3436, %v5524, 0
      %5552 = vmatprep.subr.bf16.mxu0 0
      %5553 = vmatpush1.bf16.msra.mxu0 0
      %5554 = vmatprep.subr.bf16.mxu0 0
      %5555 = vmatpush1.bf16.msra.mxu0 0
      %5556 = vmatprep.subr.bf16.mxu0 0
      %5557 = vmatpush1.bf16.msra.mxu0 0
      %5558 = vmatprep.subr.bf16.mxu0 0
      %5559 = vmatpush1.bf16.msra.mxu0 0
      %5560 = vmatprep.subr.bf16.mxu0 0
      %5561 = vmatpush1.bf16.msra.mxu0 %v5544
      %5562 = vmatprep.subr.bf16.mxu0 0
      %5563 = vmatpush1.bf16.msra.mxu0 %v5543
      %5564 = vmatprep.subr.bf16.mxu0 0
      %5565 = vmatpush1.bf16.msra.mxu0 %v5542
      %5566 = vmatprep.subr.bf16.mxu0 0
      %5567 = vmatpush1.bf16.msra.mxu0 %v5541
      %5568 = vmatprep.subr.bf16.mxu0 0
      %5569 = vmatpush2.bf16.msra.mxu0 0
      %5570 = vmatprep.subr.bf16.mxu0 0
      %5571 = vmatpush2.bf16.msra.mxu0 0
      %5572 = vmatprep.subr.bf16.mxu0 0
      %5573 = vmatpush2.bf16.msra.mxu0 0
      %5574 = vmatprep.subr.bf16.mxu0 0
      %5575 = vmatpush2.bf16.msra.mxu0 0
      %5576 = vmatprep.subr.bf16.mxu0 0
      %5577 = vmatpush2.bf16.msra.mxu0 0
      %5578 = vmatprep.subr.bf16.mxu0 0
      %5579 = vmatpush2.bf16.msra.mxu0 0
      %5580 = vmatprep.subr.bf16.mxu0 0
      %5581 = vmatpush2.bf16.msra.mxu0 0
      %5582 = vmatprep.subr.bf16.mxu0 0
      %5583 = vmatpush2.bf16.msra.mxu0 0
      %5584 = vmatprep.mubr.bf16.mxu0 0
      %5585 = vmatmul.mubr.bf16.gmra.mxu0 %v5550
      %v5586 = vpop.f32.mrf.mxu0
      %v5587 = vadd.f32 0.0, %v5586
      %v5588 = vpop.f32.mrf.mxu0
      %v5589 = vpop.f32.mrf.mxu0
      %v5590 = vadd.f32 0.0, %v5589
      %v5591 = vpop.f32.mrf.mxu0
      %5592 = vdwg.mxu0
      %v5593 = vcombine.low %v5439, %v5453
      %v5594 = vcombine.low %v5467, %v5481
      %v5596 = vunpack.c.l.s4 1983009808
      %v5597 = vunpack.c.0.s8 %v5596
      %v5598 = vlaneseq
      %v5599 = vshrl.u32 %v5598, 7
      %v5600 = vsub.s32 %v5597, %v5599
      %v5601 = vrot.slane %v5593, %v5600
      %v5603 = vunpack.c.l.s4 1983009808
      %v5604 = vunpack.c.0.s8 %v5603
      %v5605 = vlaneseq
      %v5606 = vshrl.u32 %v5605, 7
      %v5607 = vsub.s32 %v5604, %v5606
      %v5608 = vrot.slane %v5594, %v5607
      %v5609 = vcombine.low %v5601, %v5608
      %v5618 = vunpack.c.l.b16 %v5483
      %v5619 = vunpack.c.l.b16 %v5484
      %v5620 = vunpack.c.l.b16 %v5485
      %v5621 = vunpack.c.l.b16 %v5486
      %v5622 = vunpack.c.l.b16 %v5487
      %v5623 = vunpack.c.l.b16 %v5488
      %v5624 = vunpack.c.l.b16 %v5489
      %v5625 = vunpack.c.l.b16 %v5490
      %v5626 = vpack.c.b16 %v5619, %v5618
      %v5627 = vpack.c.b16 %v5621, %v5620
      %v5628 = vpack.c.b16 %v5623, %v5622
      %v5629 = vpack.c.b16 %v5625, %v5624
      %v5635 = vsel %vm3436, %v5609, 0
      %5637 = vmatprep.subr.bf16.mxu0 0
      %5638 = vmatpush1.bf16.msra.mxu0 0
      %5639 = vmatprep.subr.bf16.mxu0 0
      %5640 = vmatpush1.bf16.msra.mxu0 0
      %5641 = vmatprep.subr.bf16.mxu0 0
      %5642 = vmatpush1.bf16.msra.mxu0 0
      %5643 = vmatprep.subr.bf16.mxu0 0
      %5644 = vmatpush1.bf16.msra.mxu0 0
      %5645 = vmatprep.subr.bf16.mxu0 0
      %5646 = vmatpush1.bf16.msra.mxu0 %v5629
      %5647 = vmatprep.subr.bf16.mxu0 0
      %5648 = vmatpush1.bf16.msra.mxu0 %v5628
      %5649 = vmatprep.subr.bf16.mxu0 0
      %5650 = vmatpush1.bf16.msra.mxu0 %v5627
      %5651 = vmatprep.subr.bf16.mxu0 0
      %5652 = vmatpush1.bf16.msra.mxu0 %v5626
      %5653 = vmatprep.subr.bf16.mxu0 0
      %5654 = vmatpush2.bf16.msra.mxu0 0
      %5655 = vmatprep.subr.bf16.mxu0 0
      %5656 = vmatpush2.bf16.msra.mxu0 0
      %5657 = vmatprep.subr.bf16.mxu0 0
      %5658 = vmatpush2.bf16.msra.mxu0 0
      %5659 = vmatprep.subr.bf16.mxu0 0
      %5660 = vmatpush2.bf16.msra.mxu0 0
      %5661 = vmatprep.subr.bf16.mxu0 0
      %5662 = vmatpush2.bf16.msra.mxu0 0
      %5663 = vmatprep.subr.bf16.mxu0 0
      %5664 = vmatpush2.bf16.msra.mxu0 0
      %5665 = vmatprep.subr.bf16.mxu0 0
      %5666 = vmatpush2.bf16.msra.mxu0 0
      %5667 = vmatprep.subr.bf16.mxu0 0
      %5668 = vmatpush2.bf16.msra.mxu0 0
      %5669 = vmatprep.mubr.bf16.mxu0 0
      %5670 = vmatmul.mubr.bf16.gmra.mxu0 %v5635
      %v5671 = vpop.f32.mrf.mxu0
      %v5672 = vadd.f32 %v5587, %v5671
      %v5673 = vpop.f32.mrf.mxu0
      %v5674 = vpop.f32.mrf.mxu0
      %v5675 = vadd.f32 %v5590, %v5674
      %v5676 = vpop.f32.mrf.mxu0
      %5677 = vdwg.mxu0
      %v5678 = vld [vmem:[%s10] sm:$0x1]
      %v5680 = vlaneseq
      %v5681 = vshrl.u32 %v5680, 7
      %v5682 = vsub.s32 0, %v5681
      %v5683 = vrot.slane %v5678, %v5682
      %v5685 = vadd.f32 %v5672, %v5683
      %v5686 = vadd.f32 %v5675, %v5683
      %s5687 = scalar_lea.vmem %s386, 16
      %5688 = vst.msk [vmem:[%s5687] sm:$0xff] %vm5383, %v5685
      %5689 = vst.msk [vmem:[%s5687 + $0x8] sm:$0xff] %vm5383, %v5686
      %s5690 = scalar_lea.vmem [#allocation5], 4
      %v5691 = vld [vmem:[%s5690] sm:$0x3]
      %v5692 = vld [vmem:[%s5690 + $0x4] sm:$0x3]
      %v5693 = vld [vmem:[%s5690 + $0x8] sm:$0x3]
      %v5694 = vld [vmem:[%s5690 + $0xc] sm:$0x3]
      %s5695 = scalar_lea.vmem %s9, 32
      %v5696 = vld [vmem:[%s5695] sm:$0xf]
      %v5697 = vld [vmem:[%s5695 + $0x4] sm:$0xf]
      %v5698 = vld [vmem:[%s5695 + $0x8] sm:$0xf]
      %v5699 = vld [vmem:[%s5695 + $0xc] sm:$0xf]
      %v5700 = vld [vmem:[%s5695 + $0x10] sm:$0xf]
      %v5701 = vld [vmem:[%s5695 + $0x14] sm:$0xf]
      %v5702 = vld [vmem:[%s5695 + $0x18] sm:$0xf]
      %v5703 = vld [vmem:[%s5695 + $0x1c] sm:$0xf]
      %v5704 = vld [vmem:[#allocation5] sm:$0x3]
      %v5705 = vld [vmem:[#allocation5 + $0x4] sm:$0x3]
      %v5706 = vld [vmem:[#allocation5 + $0x8] sm:$0x3]
      %v5707 = vld [vmem:[#allocation5 + $0xc] sm:$0x3]
      %s5708 = scalar_lea.vmem %s9, 224
      %v5709 = vld [vmem:[%s5708] sm:$0xf]
      %v5710 = vld [vmem:[%s5708 + $0x4] sm:$0xf]
      %v5711 = vld [vmem:[%s5708 + $0x8] sm:$0xf]
      %v5712 = vld [vmem:[%s5708 + $0xc] sm:$0xf]
      %v5713 = vld [vmem:[%s5708 + $0x10] sm:$0xf]
      %v5714 = vld [vmem:[%s5708 + $0x14] sm:$0xf]
      %v5715 = vld [vmem:[%s5708 + $0x18] sm:$0xf]
      %v5716 = vld [vmem:[%s5708 + $0x1c] sm:$0xf]
      %v5721 = vcombine.low %v5704, %v5705
      %v5722 = vcombine.low %v5706, %v5707
      %v5724 = vunpack.c.l.s4 1983009808
      %v5725 = vunpack.c.0.s8 %v5724
      %v5726 = vlaneseq
      %v5727 = vshrl.u32 %v5726, 7
      %v5728 = vsub.s32 %v5725, %v5727
      %v5729 = vrot.slane %v5721, %v5728
      %v5731 = vunpack.c.l.s4 1983009808
      %v5732 = vunpack.c.0.s8 %v5731
      %v5733 = vlaneseq
      %v5734 = vshrl.u32 %v5733, 7
      %v5735 = vsub.s32 %v5732, %v5734
      %v5736 = vrot.slane %v5722, %v5735
      %v5737 = vcombine.low %v5729, %v5736
      %v5746 = vunpack.c.l.b16 %v5709
      %v5747 = vunpack.c.l.b16 %v5710
      %v5748 = vunpack.c.l.b16 %v5711
      %v5749 = vunpack.c.l.b16 %v5712
      %v5750 = vunpack.c.l.b16 %v5713
      %v5751 = vunpack.c.l.b16 %v5714
      %v5752 = vunpack.c.l.b16 %v5715
      %v5753 = vunpack.c.l.b16 %v5716
      %v5754 = vpack.c.b16 %v5747, %v5746
      %v5755 = vpack.c.b16 %v5749, %v5748
      %v5756 = vpack.c.b16 %v5751, %v5750
      %v5757 = vpack.c.b16 %v5753, %v5752
      %v5763 = vsel %vm3436, %v5737, 0
      %5765 = vmatprep.subr.bf16.mxu0 0
      %5766 = vmatpush1.bf16.msra.mxu0 0
      %5767 = vmatprep.subr.bf16.mxu0 0
      %5768 = vmatpush1.bf16.msra.mxu0 0
      %5769 = vmatprep.subr.bf16.mxu0 0
      %5770 = vmatpush1.bf16.msra.mxu0 0
      %5771 = vmatprep.subr.bf16.mxu0 0
      %5772 = vmatpush1.bf16.msra.mxu0 0
      %5773 = vmatprep.subr.bf16.mxu0 0
      %5774 = vmatpush1.bf16.msra.mxu0 %v5757
      %5775 = vmatprep.subr.bf16.mxu0 0
      %5776 = vmatpush1.bf16.msra.mxu0 %v5756
      %5777 = vmatprep.subr.bf16.mxu0 0
      %5778 = vmatpush1.bf16.msra.mxu0 %v5755
      %5779 = vmatprep.subr.bf16.mxu0 0
      %5780 = vmatpush1.bf16.msra.mxu0 %v5754
      %5781 = vmatprep.subr.bf16.mxu0 0
      %5782 = vmatpush2.bf16.msra.mxu0 0
      %5783 = vmatprep.subr.bf16.mxu0 0
      %5784 = vmatpush2.bf16.msra.mxu0 0
      %5785 = vmatprep.subr.bf16.mxu0 0
      %5786 = vmatpush2.bf16.msra.mxu0 0
      %5787 = vmatprep.subr.bf16.mxu0 0
      %5788 = vmatpush2.bf16.msra.mxu0 0
      %5789 = vmatprep.subr.bf16.mxu0 0
      %5790 = vmatpush2.bf16.msra.mxu0 0
      %5791 = vmatprep.subr.bf16.mxu0 0
      %5792 = vmatpush2.bf16.msra.mxu0 0
      %5793 = vmatprep.subr.bf16.mxu0 0
      %5794 = vmatpush2.bf16.msra.mxu0 0
      %5795 = vmatprep.subr.bf16.mxu0 0
      %5796 = vmatpush2.bf16.msra.mxu0 0
      %5797 = vmatprep.mubr.bf16.mxu0 0
      %5798 = vmatmul.mubr.bf16.gmra.mxu0 %v5763
      %v5799 = vpop.f32.mrf.mxu0
      %v5800 = vadd.f32 0.0, %v5799
      %v5801 = vpop.f32.mrf.mxu0
      %v5802 = vpop.f32.mrf.mxu0
      %v5803 = vadd.f32 0.0, %v5802
      %v5804 = vpop.f32.mrf.mxu0
      %5805 = vdwg.mxu0
      %v5810 = vcombine.low %v5691, %v5692
      %v5811 = vcombine.low %v5693, %v5694
      %v5813 = vunpack.c.l.s4 1983009808
      %v5814 = vunpack.c.0.s8 %v5813
      %v5815 = vlaneseq
      %v5816 = vshrl.u32 %v5815, 7
      %v5817 = vsub.s32 %v5814, %v5816
      %v5818 = vrot.slane %v5810, %v5817
      %v5820 = vunpack.c.l.s4 1983009808
      %v5821 = vunpack.c.0.s8 %v5820
      %v5822 = vlaneseq
      %v5823 = vshrl.u32 %v5822, 7
      %v5824 = vsub.s32 %v5821, %v5823
      %v5825 = vrot.slane %v5811, %v5824
      %v5826 = vcombine.low %v5818, %v5825
      %v5835 = vunpack.c.l.b16 %v5696
      %v5836 = vunpack.c.l.b16 %v5697
      %v5837 = vunpack.c.l.b16 %v5698
      %v5838 = vunpack.c.l.b16 %v5699
      %v5839 = vunpack.c.l.b16 %v5700
      %v5840 = vunpack.c.l.b16 %v5701
      %v5841 = vunpack.c.l.b16 %v5702
      %v5842 = vunpack.c.l.b16 %v5703
      %v5843 = vpack.c.b16 %v5836, %v5835
      %v5844 = vpack.c.b16 %v5838, %v5837
      %v5845 = vpack.c.b16 %v5840, %v5839
      %v5846 = vpack.c.b16 %v5842, %v5841
      %v5852 = vsel %vm3436, %v5826, 0
      %5854 = vmatprep.subr.bf16.mxu0 0
      %5855 = vmatpush1.bf16.msra.mxu0 0
      %5856 = vmatprep.subr.bf16.mxu0 0
      %5857 = vmatpush1.bf16.msra.mxu0 0
      %5858 = vmatprep.subr.bf16.mxu0 0
      %5859 = vmatpush1.bf16.msra.mxu0 0
      %5860 = vmatprep.subr.bf16.mxu0 0
      %5861 = vmatpush1.bf16.msra.mxu0 0
      %5862 = vmatprep.subr.bf16.mxu0 0
      %5863 = vmatpush1.bf16.msra.mxu0 %v5846
      %5864 = vmatprep.subr.bf16.mxu0 0
      %5865 = vmatpush1.bf16.msra.mxu0 %v5845
      %5866 = vmatprep.subr.bf16.mxu0 0
      %5867 = vmatpush1.bf16.msra.mxu0 %v5844
      %5868 = vmatprep.subr.bf16.mxu0 0
      %5869 = vmatpush1.bf16.msra.mxu0 %v5843
      %5870 = vmatprep.subr.bf16.mxu0 0
      %5871 = vmatpush2.bf16.msra.mxu0 0
      %5872 = vmatprep.subr.bf16.mxu0 0
      %5873 = vmatpush2.bf16.msra.mxu0 0
      %5874 = vmatprep.subr.bf16.mxu0 0
      %5875 = vmatpush2.bf16.msra.mxu0 0
      %5876 = vmatprep.subr.bf16.mxu0 0
      %5877 = vmatpush2.bf16.msra.mxu0 0
      %5878 = vmatprep.subr.bf16.mxu0 0
      %5879 = vmatpush2.bf16.msra.mxu0 0
      %5880 = vmatprep.subr.bf16.mxu0 0
      %5881 = vmatpush2.bf16.msra.mxu0 0
      %5882 = vmatprep.subr.bf16.mxu0 0
      %5883 = vmatpush2.bf16.msra.mxu0 0
      %5884 = vmatprep.subr.bf16.mxu0 0
      %5885 = vmatpush2.bf16.msra.mxu0 0
      %5886 = vmatprep.mubr.bf16.mxu0 0
      %5887 = vmatmul.mubr.bf16.gmra.mxu0 %v5852
      %v5888 = vpop.f32.mrf.mxu0
      %v5889 = vadd.f32 %v5800, %v5888
      %v5890 = vpop.f32.mrf.mxu0
      %v5891 = vpop.f32.mrf.mxu0
      %v5892 = vadd.f32 %v5803, %v5891
      %v5893 = vpop.f32.mrf.mxu0
      %5894 = vdwg.mxu0
      %v5895 = vld [vmem:[%s10] sm:$0x1]
      %v5897 = vlaneseq
      %v5898 = vshrl.u32 %v5897, 7
      %v5899 = vsub.s32 0, %v5898
      %v5900 = vrot.slane %v5895, %v5899
      %v5902 = vadd.f32 %v5889, %v5900
      %v5903 = vadd.f32 %v5892, %v5900
      %s5904 = scalar_lea.vmem %s386, 32
      %5905 = vst.msk [vmem:[%s5904] sm:$0xff] %vm5383, %v5902
      %5906 = vst.msk [vmem:[%s5904 + $0x8] sm:$0xff] %vm5383, %v5903
      %v5907 = vld [vmem:[%s5690] sm:$0x7]
      %v5908 = vld [vmem:[%s5690 + $0x4] sm:$0x7]
      %v5909 = vld [vmem:[%s5690 + $0x8] sm:$0x7]
      %v5910 = vld [vmem:[%s5690 + $0xc] sm:$0x7]
      %v5916 = vunpack.c.l.s4 1983009808
      %v5917 = vunpack.c.0.s8 %v5916
      %v5918 = vlaneseq
      %v5919 = vshrl.u32 %v5918, 7
      %v5920 = vsub.s32 %v5917, %v5919
      %v5921 = vrot.slane %v5907, %v5920
      %v5922 = vcombine.high %v5921, %v5921
      %v5924 = vunpack.c.l.s4 1983009808
      %v5925 = vunpack.c.0.s8 %v5924
      %v5926 = vlaneseq
      %v5927 = vshrl.u32 %v5926, 7
      %v5928 = vsub.s32 %v5925, %v5927
      %v5929 = vrot.slane %v5908, %v5928
      %v5930 = vcombine.high %v5929, %v5929
      %v5932 = vunpack.c.l.s4 1983009808
      %v5933 = vunpack.c.0.s8 %v5932
      %v5934 = vlaneseq
      %v5935 = vshrl.u32 %v5934, 7
      %v5936 = vsub.s32 %v5933, %v5935
      %v5937 = vrot.slane %v5909, %v5936
      %v5938 = vcombine.high %v5937, %v5937
      %v5940 = vunpack.c.l.s4 1983009808
      %v5941 = vunpack.c.0.s8 %v5940
      %v5942 = vlaneseq
      %v5943 = vshrl.u32 %v5942, 7
      %v5944 = vsub.s32 %v5941, %v5943
      %v5945 = vrot.slane %v5910, %v5944
      %v5946 = vcombine.high %v5945, %v5945
      %v5948 = vshrl.u32 %v5921, 16
      %v5950 = vrot.slane %v5948, 6
      %v5951 = vshll.u32 %v5921, 16
      %v5953 = vrot.slane %v5951, 7
      %v5954 = vor.u32 %v5950, %v5953
      %v5955 = vrot.slane %v5954, 2
      %v5957 = vshll.u32 %v5922, 16
      %v5959 = vrot.slane %v5957, 7
      %v5960 = vsel %vm3967, %v5955, %v5959
      %v5962 = vshrl.u32 %v5929, 16
      %v5964 = vrot.slane %v5962, 6
      %v5965 = vshll.u32 %v5929, 16
      %v5967 = vrot.slane %v5965, 7
      %v5968 = vor.u32 %v5964, %v5967
      %v5969 = vrot.slane %v5968, 2
      %v5971 = vshll.u32 %v5930, 16
      %v5973 = vrot.slane %v5971, 7
      %v5974 = vsel %vm3967, %v5969, %v5973
      %v5976 = vshrl.u32 %v5937, 16
      %v5978 = vrot.slane %v5976, 6
      %v5979 = vshll.u32 %v5937, 16
      %v5981 = vrot.slane %v5979, 7
      %v5982 = vor.u32 %v5978, %v5981
      %v5983 = vrot.slane %v5982, 2
      %v5985 = vshll.u32 %v5938, 16
      %v5987 = vrot.slane %v5985, 7
      %v5988 = vsel %vm3967, %v5983, %v5987
      %v5990 = vshrl.u32 %v5945, 16
      %v5992 = vrot.slane %v5990, 6
      %v5993 = vshll.u32 %v5945, 16
      %v5995 = vrot.slane %v5993, 7
      %v5996 = vor.u32 %v5992, %v5995
      %v5997 = vrot.slane %v5996, 2
      %v5999 = vshll.u32 %v5946, 16
      %v6001 = vrot.slane %v5999, 7
      %v6002 = vsel %vm3967, %v5997, %v6001
      %v6003 = vld [vmem:[%s9] sm:$0xf]
      %v6004 = vld [vmem:[%s9 + $0x4] sm:$0xf]
      %v6005 = vld [vmem:[%s9 + $0x8] sm:$0xf]
      %v6006 = vld [vmem:[%s9 + $0xc] sm:$0xf]
      %v6007 = vld [vmem:[%s9 + $0x10] sm:$0xf]
      %v6008 = vld [vmem:[%s9 + $0x14] sm:$0xf]
      %v6009 = vld [vmem:[%s9 + $0x18] sm:$0xf]
      %v6010 = vld [vmem:[%s9 + $0x1c] sm:$0xf]
      %v6011 = vld [vmem:[%s5690] sm:$0x3]
      %v6012 = vld [vmem:[%s5690 + $0x4] sm:$0x3]
      %v6013 = vld [vmem:[%s5690 + $0x8] sm:$0x3]
      %v6014 = vld [vmem:[%s5690 + $0xc] sm:$0x3]
      %s6015 = scalar_lea.vmem %s9, 64
      %v6016 = vld [vmem:[%s6015] sm:$0xf]
      %v6017 = vld [vmem:[%s6015 + $0x4] sm:$0xf]
      %v6018 = vld [vmem:[%s6015 + $0x8] sm:$0xf]
      %v6019 = vld [vmem:[%s6015 + $0xc] sm:$0xf]
      %v6020 = vld [vmem:[%s6015 + $0x10] sm:$0xf]
      %v6021 = vld [vmem:[%s6015 + $0x14] sm:$0xf]
      %v6022 = vld [vmem:[%s6015 + $0x18] sm:$0xf]
      %v6023 = vld [vmem:[%s6015 + $0x1c] sm:$0xf]
      %v6028 = vcombine.low %v6011, %v6012
      %v6029 = vcombine.low %v6013, %v6014
      %v6031 = vunpack.c.l.s4 1983009808
      %v6032 = vunpack.c.0.s8 %v6031
      %v6033 = vlaneseq
      %v6034 = vshrl.u32 %v6033, 7
      %v6035 = vsub.s32 %v6032, %v6034
      %v6036 = vrot.slane %v6028, %v6035
      %v6038 = vunpack.c.l.s4 1983009808
      %v6039 = vunpack.c.0.s8 %v6038
      %v6040 = vlaneseq
      %v6041 = vshrl.u32 %v6040, 7
      %v6042 = vsub.s32 %v6039, %v6041
      %v6043 = vrot.slane %v6029, %v6042
      %v6044 = vcombine.low %v6036, %v6043
      %v6053 = vunpack.c.l.b16 %v6016
      %v6054 = vunpack.c.l.b16 %v6017
      %v6055 = vunpack.c.l.b16 %v6018
      %v6056 = vunpack.c.l.b16 %v6019
      %v6057 = vunpack.c.l.b16 %v6020
      %v6058 = vunpack.c.l.b16 %v6021
      %v6059 = vunpack.c.l.b16 %v6022
      %v6060 = vunpack.c.l.b16 %v6023
      %v6061 = vpack.c.b16 %v6054, %v6053
      %v6062 = vpack.c.b16 %v6056, %v6055
      %v6063 = vpack.c.b16 %v6058, %v6057
      %v6064 = vpack.c.b16 %v6060, %v6059
      %v6070 = vsel %vm3436, %v6044, 0
      %6072 = vmatprep.subr.bf16.mxu0 0
      %6073 = vmatpush1.bf16.msra.mxu0 0
      %6074 = vmatprep.subr.bf16.mxu0 0
      %6075 = vmatpush1.bf16.msra.mxu0 0
      %6076 = vmatprep.subr.bf16.mxu0 0
      %6077 = vmatpush1.bf16.msra.mxu0 0
      %6078 = vmatprep.subr.bf16.mxu0 0
      %6079 = vmatpush1.bf16.msra.mxu0 0
      %6080 = vmatprep.subr.bf16.mxu0 0
      %6081 = vmatpush1.bf16.msra.mxu0 %v6064
      %6082 = vmatprep.subr.bf16.mxu0 0
      %6083 = vmatpush1.bf16.msra.mxu0 %v6063
      %6084 = vmatprep.subr.bf16.mxu0 0
      %6085 = vmatpush1.bf16.msra.mxu0 %v6062
      %6086 = vmatprep.subr.bf16.mxu0 0
      %6087 = vmatpush1.bf16.msra.mxu0 %v6061
      %6088 = vmatprep.subr.bf16.mxu0 0
      %6089 = vmatpush2.bf16.msra.mxu0 0
      %6090 = vmatprep.subr.bf16.mxu0 0
      %6091 = vmatpush2.bf16.msra.mxu0 0
      %6092 = vmatprep.subr.bf16.mxu0 0
      %6093 = vmatpush2.bf16.msra.mxu0 0
      %6094 = vmatprep.subr.bf16.mxu0 0
      %6095 = vmatpush2.bf16.msra.mxu0 0
      %6096 = vmatprep.subr.bf16.mxu0 0
      %6097 = vmatpush2.bf16.msra.mxu0 0
      %6098 = vmatprep.subr.bf16.mxu0 0
      %6099 = vmatpush2.bf16.msra.mxu0 0
      %6100 = vmatprep.subr.bf16.mxu0 0
      %6101 = vmatpush2.bf16.msra.mxu0 0
      %6102 = vmatprep.subr.bf16.mxu0 0
      %6103 = vmatpush2.bf16.msra.mxu0 0
      %6104 = vmatprep.mubr.bf16.mxu0 0
      %6105 = vmatmul.mubr.bf16.gmra.mxu0 %v6070
      %v6106 = vpop.f32.mrf.mxu0
      %v6107 = vadd.f32 0.0, %v6106
      %v6108 = vpop.f32.mrf.mxu0
      %v6109 = vpop.f32.mrf.mxu0
      %v6110 = vadd.f32 0.0, %v6109
      %v6111 = vpop.f32.mrf.mxu0
      %6112 = vdwg.mxu0
      %v6113 = vcombine.low %v5960, %v5974
      %v6114 = vcombine.low %v5988, %v6002
      %v6116 = vunpack.c.l.s4 1983009808
      %v6117 = vunpack.c.0.s8 %v6116
      %v6118 = vlaneseq
      %v6119 = vshrl.u32 %v6118, 7
      %v6120 = vsub.s32 %v6117, %v6119
      %v6121 = vrot.slane %v6113, %v6120
      %v6123 = vunpack.c.l.s4 1983009808
      %v6124 = vunpack.c.0.s8 %v6123
      %v6125 = vlaneseq
      %v6126 = vshrl.u32 %v6125, 7
      %v6127 = vsub.s32 %v6124, %v6126
      %v6128 = vrot.slane %v6114, %v6127
      %v6129 = vcombine.low %v6121, %v6128
      %v6138 = vunpack.c.l.b16 %v6003
      %v6139 = vunpack.c.l.b16 %v6004
      %v6140 = vunpack.c.l.b16 %v6005
      %v6141 = vunpack.c.l.b16 %v6006
      %v6142 = vunpack.c.l.b16 %v6007
      %v6143 = vunpack.c.l.b16 %v6008
      %v6144 = vunpack.c.l.b16 %v6009
      %v6145 = vunpack.c.l.b16 %v6010
      %v6146 = vpack.c.b16 %v6139, %v6138
      %v6147 = vpack.c.b16 %v6141, %v6140
      %v6148 = vpack.c.b16 %v6143, %v6142
      %v6149 = vpack.c.b16 %v6145, %v6144
      %v6155 = vsel %vm3436, %v6129, 0
      %6157 = vmatprep.subr.bf16.mxu0 0
      %6158 = vmatpush1.bf16.msra.mxu0 0
      %6159 = vmatprep.subr.bf16.mxu0 0
      %6160 = vmatpush1.bf16.msra.mxu0 0
      %6161 = vmatprep.subr.bf16.mxu0 0
      %6162 = vmatpush1.bf16.msra.mxu0 0
      %6163 = vmatprep.subr.bf16.mxu0 0
      %6164 = vmatpush1.bf16.msra.mxu0 0
      %6165 = vmatprep.subr.bf16.mxu0 0
      %6166 = vmatpush1.bf16.msra.mxu0 %v6149
      %6167 = vmatprep.subr.bf16.mxu0 0
      %6168 = vmatpush1.bf16.msra.mxu0 %v6148
      %6169 = vmatprep.subr.bf16.mxu0 0
      %6170 = vmatpush1.bf16.msra.mxu0 %v6147
      %6171 = vmatprep.subr.bf16.mxu0 0
      %6172 = vmatpush1.bf16.msra.mxu0 %v6146
      %6173 = vmatprep.subr.bf16.mxu0 0
      %6174 = vmatpush2.bf16.msra.mxu0 0
      %6175 = vmatprep.subr.bf16.mxu0 0
      %6176 = vmatpush2.bf16.msra.mxu0 0
      %6177 = vmatprep.subr.bf16.mxu0 0
      %6178 = vmatpush2.bf16.msra.mxu0 0
      %6179 = vmatprep.subr.bf16.mxu0 0
      %6180 = vmatpush2.bf16.msra.mxu0 0
      %6181 = vmatprep.subr.bf16.mxu0 0
      %6182 = vmatpush2.bf16.msra.mxu0 0
      %6183 = vmatprep.subr.bf16.mxu0 0
      %6184 = vmatpush2.bf16.msra.mxu0 0
      %6185 = vmatprep.subr.bf16.mxu0 0
      %6186 = vmatpush2.bf16.msra.mxu0 0
      %6187 = vmatprep.subr.bf16.mxu0 0
      %6188 = vmatpush2.bf16.msra.mxu0 0
      %6189 = vmatprep.mubr.bf16.mxu0 0
      %6190 = vmatmul.mubr.bf16.gmra.mxu0 %v6155
      %v6191 = vpop.f32.mrf.mxu0
      %v6192 = vadd.f32 %v6107, %v6191
      %v6193 = vpop.f32.mrf.mxu0
      %v6194 = vpop.f32.mrf.mxu0
      %v6195 = vadd.f32 %v6110, %v6194
      %v6196 = vpop.f32.mrf.mxu0
      %6197 = vdwg.mxu0
      %v6198 = vld [vmem:[#allocation5] sm:$0x7]
      %v6199 = vld [vmem:[#allocation5 + $0x4] sm:$0x7]
      %v6200 = vld [vmem:[#allocation5 + $0x8] sm:$0x7]
      %v6201 = vld [vmem:[#allocation5 + $0xc] sm:$0x7]
      %v6207 = vunpack.c.l.s4 1983009808
      %v6208 = vunpack.c.0.s8 %v6207
      %v6209 = vlaneseq
      %v6210 = vshrl.u32 %v6209, 7
      %v6211 = vsub.s32 %v6208, %v6210
      %v6212 = vrot.slane %v6198, %v6211
      %v6213 = vcombine.high %v6212, %v6212
      %v6215 = vunpack.c.l.s4 1983009808
      %v6216 = vunpack.c.0.s8 %v6215
      %v6217 = vlaneseq
      %v6218 = vshrl.u32 %v6217, 7
      %v6219 = vsub.s32 %v6216, %v6218
      %v6220 = vrot.slane %v6199, %v6219
      %v6221 = vcombine.high %v6220, %v6220
      %v6223 = vunpack.c.l.s4 1983009808
      %v6224 = vunpack.c.0.s8 %v6223
      %v6225 = vlaneseq
      %v6226 = vshrl.u32 %v6225, 7
      %v6227 = vsub.s32 %v6224, %v6226
      %v6228 = vrot.slane %v6200, %v6227
      %v6229 = vcombine.high %v6228, %v6228
      %v6231 = vunpack.c.l.s4 1983009808
      %v6232 = vunpack.c.0.s8 %v6231
      %v6233 = vlaneseq
      %v6234 = vshrl.u32 %v6233, 7
      %v6235 = vsub.s32 %v6232, %v6234
      %v6236 = vrot.slane %v6201, %v6235
      %v6237 = vcombine.high %v6236, %v6236
      %v6239 = vshrl.u32 %v6212, 16
      %v6241 = vrot.slane %v6239, 6
      %v6242 = vshll.u32 %v6212, 16
      %v6244 = vrot.slane %v6242, 7
      %v6245 = vor.u32 %v6241, %v6244
      %v6246 = vrot.slane %v6245, 2
      %v6248 = vshll.u32 %v6213, 16
      %v6250 = vrot.slane %v6248, 7
      %v6251 = vsel %vm3967, %v6246, %v6250
      %v6253 = vshrl.u32 %v6220, 16
      %v6255 = vrot.slane %v6253, 6
      %v6256 = vshll.u32 %v6220, 16
      %v6258 = vrot.slane %v6256, 7
      %v6259 = vor.u32 %v6255, %v6258
      %v6260 = vrot.slane %v6259, 2
      %v6262 = vshll.u32 %v6221, 16
      %v6264 = vrot.slane %v6262, 7
      %v6265 = vsel %vm3967, %v6260, %v6264
      %v6267 = vshrl.u32 %v6228, 16
      %v6269 = vrot.slane %v6267, 6
      %v6270 = vshll.u32 %v6228, 16
      %v6272 = vrot.slane %v6270, 7
      %v6273 = vor.u32 %v6269, %v6272
      %v6274 = vrot.slane %v6273, 2
      %v6276 = vshll.u32 %v6229, 16
      %v6278 = vrot.slane %v6276, 7
      %v6279 = vsel %vm3967, %v6274, %v6278
      %v6281 = vshrl.u32 %v6236, 16
      %v6283 = vrot.slane %v6281, 6
      %v6284 = vshll.u32 %v6236, 16
      %v6286 = vrot.slane %v6284, 7
      %v6287 = vor.u32 %v6283, %v6286
      %v6288 = vrot.slane %v6287, 2
      %v6290 = vshll.u32 %v6237, 16
      %v6292 = vrot.slane %v6290, 7
      %v6293 = vsel %vm3967, %v6288, %v6292
      %s6294 = scalar_lea.vmem %s9, 192
      %v6295 = vld [vmem:[%s6294] sm:$0xf]
      %v6296 = vld [vmem:[%s6294 + $0x4] sm:$0xf]
      %v6297 = vld [vmem:[%s6294 + $0x8] sm:$0xf]
      %v6298 = vld [vmem:[%s6294 + $0xc] sm:$0xf]
      %v6299 = vld [vmem:[%s6294 + $0x10] sm:$0xf]
      %v6300 = vld [vmem:[%s6294 + $0x14] sm:$0xf]
      %v6301 = vld [vmem:[%s6294 + $0x18] sm:$0xf]
      %v6302 = vld [vmem:[%s6294 + $0x1c] sm:$0xf]
      %v6303 = vcombine.low %v6251, %v6265
      %v6304 = vcombine.low %v6279, %v6293
      %v6306 = vunpack.c.l.s4 1983009808
      %v6307 = vunpack.c.0.s8 %v6306
      %v6308 = vlaneseq
      %v6309 = vshrl.u32 %v6308, 7
      %v6310 = vsub.s32 %v6307, %v6309
      %v6311 = vrot.slane %v6303, %v6310
      %v6313 = vunpack.c.l.s4 1983009808
      %v6314 = vunpack.c.0.s8 %v6313
      %v6315 = vlaneseq
      %v6316 = vshrl.u32 %v6315, 7
      %v6317 = vsub.s32 %v6314, %v6316
      %v6318 = vrot.slane %v6304, %v6317
      %v6319 = vcombine.low %v6311, %v6318
      %v6328 = vunpack.c.l.b16 %v6295
      %v6329 = vunpack.c.l.b16 %v6296
      %v6330 = vunpack.c.l.b16 %v6297
      %v6331 = vunpack.c.l.b16 %v6298
      %v6332 = vunpack.c.l.b16 %v6299
      %v6333 = vunpack.c.l.b16 %v6300
      %v6334 = vunpack.c.l.b16 %v6301
      %v6335 = vunpack.c.l.b16 %v6302
      %v6336 = vpack.c.b16 %v6329, %v6328
      %v6337 = vpack.c.b16 %v6331, %v6330
      %v6338 = vpack.c.b16 %v6333, %v6332
      %v6339 = vpack.c.b16 %v6335, %v6334
      %v6345 = vsel %vm3436, %v6319, 0
      %6347 = vmatprep.subr.bf16.mxu0 0
      %6348 = vmatpush1.bf16.msra.mxu0 0
      %6349 = vmatprep.subr.bf16.mxu0 0
      %6350 = vmatpush1.bf16.msra.mxu0 0
      %6351 = vmatprep.subr.bf16.mxu0 0
      %6352 = vmatpush1.bf16.msra.mxu0 0
      %6353 = vmatprep.subr.bf16.mxu0 0
      %6354 = vmatpush1.bf16.msra.mxu0 0
      %6355 = vmatprep.subr.bf16.mxu0 0
      %6356 = vmatpush1.bf16.msra.mxu0 %v6339
      %6357 = vmatprep.subr.bf16.mxu0 0
      %6358 = vmatpush1.bf16.msra.mxu0 %v6338
      %6359 = vmatprep.subr.bf16.mxu0 0
      %6360 = vmatpush1.bf16.msra.mxu0 %v6337
      %6361 = vmatprep.subr.bf16.mxu0 0
      %6362 = vmatpush1.bf16.msra.mxu0 %v6336
      %6363 = vmatprep.subr.bf16.mxu0 0
      %6364 = vmatpush2.bf16.msra.mxu0 0
      %6365 = vmatprep.subr.bf16.mxu0 0
      %6366 = vmatpush2.bf16.msra.mxu0 0
      %6367 = vmatprep.subr.bf16.mxu0 0
      %6368 = vmatpush2.bf16.msra.mxu0 0
      %6369 = vmatprep.subr.bf16.mxu0 0
      %6370 = vmatpush2.bf16.msra.mxu0 0
      %6371 = vmatprep.subr.bf16.mxu0 0
      %6372 = vmatpush2.bf16.msra.mxu0 0
      %6373 = vmatprep.subr.bf16.mxu0 0
      %6374 = vmatpush2.bf16.msra.mxu0 0
      %6375 = vmatprep.subr.bf16.mxu0 0
      %6376 = vmatpush2.bf16.msra.mxu0 0
      %6377 = vmatprep.subr.bf16.mxu0 0
      %6378 = vmatpush2.bf16.msra.mxu0 0
      %6379 = vmatprep.mubr.bf16.mxu0 0
      %6380 = vmatmul.mubr.bf16.gmra.mxu0 %v6345
      %v6381 = vpop.f32.mrf.mxu0
      %v6382 = vadd.f32 0.0, %v6381
      %v6383 = vpop.f32.mrf.mxu0
      %v6384 = vpop.f32.mrf.mxu0
      %v6385 = vadd.f32 0.0, %v6384
      %v6386 = vpop.f32.mrf.mxu0
      %6387 = vdwg.mxu0
      %v6388 = vadd.f32 %v6192, %v6382
      %v6389 = vadd.f32 %v6195, %v6385
      %v6390 = vld [vmem:[#allocation5] sm:$0x3]
      %v6391 = vld [vmem:[#allocation5 + $0x4] sm:$0x3]
      %v6392 = vld [vmem:[#allocation5 + $0x8] sm:$0x3]
      %v6393 = vld [vmem:[#allocation5 + $0xc] sm:$0x3]
      %s6394 = scalar_lea.vmem %s9, 256
      %v6395 = vld [vmem:[%s6394] sm:$0xf]
      %v6396 = vld [vmem:[%s6394 + $0x4] sm:$0xf]
      %v6397 = vld [vmem:[%s6394 + $0x8] sm:$0xf]
      %v6398 = vld [vmem:[%s6394 + $0xc] sm:$0xf]
      %v6399 = vld [vmem:[%s6394 + $0x10] sm:$0xf]
      %v6400 = vld [vmem:[%s6394 + $0x14] sm:$0xf]
      %v6401 = vld [vmem:[%s6394 + $0x18] sm:$0xf]
      %v6402 = vld [vmem:[%s6394 + $0x1c] sm:$0xf]
      %v6407 = vcombine.low %v6390, %v6391
      %v6408 = vcombine.low %v6392, %v6393
      %v6410 = vunpack.c.l.s4 1983009808
      %v6411 = vunpack.c.0.s8 %v6410
      %v6412 = vlaneseq
      %v6413 = vshrl.u32 %v6412, 7
      %v6414 = vsub.s32 %v6411, %v6413
      %v6415 = vrot.slane %v6407, %v6414
      %v6417 = vunpack.c.l.s4 1983009808
      %v6418 = vunpack.c.0.s8 %v6417
      %v6419 = vlaneseq
      %v6420 = vshrl.u32 %v6419, 7
      %v6421 = vsub.s32 %v6418, %v6420
      %v6422 = vrot.slane %v6408, %v6421
      %v6423 = vcombine.low %v6415, %v6422
      %v6432 = vunpack.c.l.b16 %v6395
      %v6433 = vunpack.c.l.b16 %v6396
      %v6434 = vunpack.c.l.b16 %v6397
      %v6435 = vunpack.c.l.b16 %v6398
      %v6436 = vunpack.c.l.b16 %v6399
      %v6437 = vunpack.c.l.b16 %v6400
      %v6438 = vunpack.c.l.b16 %v6401
      %v6439 = vunpack.c.l.b16 %v6402
      %v6440 = vpack.c.b16 %v6433, %v6432
      %v6441 = vpack.c.b16 %v6435, %v6434
      %v6442 = vpack.c.b16 %v6437, %v6436
      %v6443 = vpack.c.b16 %v6439, %v6438
      %v6449 = vsel %vm3436, %v6423, 0
      %6451 = vmatprep.subr.bf16.mxu0 0
      %6452 = vmatpush1.bf16.msra.mxu0 0
      %6453 = vmatprep.subr.bf16.mxu0 0
      %6454 = vmatpush1.bf16.msra.mxu0 0
      %6455 = vmatprep.subr.bf16.mxu0 0
      %6456 = vmatpush1.bf16.msra.mxu0 0
      %6457 = vmatprep.subr.bf16.mxu0 0
      %6458 = vmatpush1.bf16.msra.mxu0 0
      %6459 = vmatprep.subr.bf16.mxu0 0
      %6460 = vmatpush1.bf16.msra.mxu0 %v6443
      %6461 = vmatprep.subr.bf16.mxu0 0
      %6462 = vmatpush1.bf16.msra.mxu0 %v6442
      %6463 = vmatprep.subr.bf16.mxu0 0
      %6464 = vmatpush1.bf16.msra.mxu0 %v6441
      %6465 = vmatprep.subr.bf16.mxu0 0
      %6466 = vmatpush1.bf16.msra.mxu0 %v6440
      %6467 = vmatprep.subr.bf16.mxu0 0
      %6468 = vmatpush2.bf16.msra.mxu0 0
      %6469 = vmatprep.subr.bf16.mxu0 0
      %6470 = vmatpush2.bf16.msra.mxu0 0
      %6471 = vmatprep.subr.bf16.mxu0 0
      %6472 = vmatpush2.bf16.msra.mxu0 0
      %6473 = vmatprep.subr.bf16.mxu0 0
      %6474 = vmatpush2.bf16.msra.mxu0 0
      %6475 = vmatprep.subr.bf16.mxu0 0
      %6476 = vmatpush2.bf16.msra.mxu0 0
      %6477 = vmatprep.subr.bf16.mxu0 0
      %6478 = vmatpush2.bf16.msra.mxu0 0
      %6479 = vmatprep.subr.bf16.mxu0 0
      %6480 = vmatpush2.bf16.msra.mxu0 0
      %6481 = vmatprep.subr.bf16.mxu0 0
      %6482 = vmatpush2.bf16.msra.mxu0 0
      %6483 = vmatprep.mubr.bf16.mxu0 0
      %6484 = vmatmul.mubr.bf16.gmra.mxu0 %v6449
      %v6485 = vpop.f32.mrf.mxu0
      %v6486 = vadd.f32 0.0, %v6485
      %v6487 = vpop.f32.mrf.mxu0
      %v6488 = vpop.f32.mrf.mxu0
      %v6489 = vadd.f32 0.0, %v6488
      %v6490 = vpop.f32.mrf.mxu0
      %6491 = vdwg.mxu0
      %v6492 = vadd.f32 %v6388, %v6486
      %v6493 = vadd.f32 %v6389, %v6489
      %v6494 = vld [vmem:[%s10] sm:$0x1]
      %v6496 = vlaneseq
      %v6497 = vshrl.u32 %v6496, 7
      %v6498 = vsub.s32 0, %v6497
      %v6499 = vrot.slane %v6494, %v6498
      %v6501 = vadd.f32 %v6492, %v6499
      %v6502 = vadd.f32 %v6493, %v6499
      %s6503 = scalar_lea.vmem %s386, 48
      %6504 = vst.msk [vmem:[%s6503] sm:$0xff] %vm5383, %v6501
      %6505 = vst.msk [vmem:[%s6503 + $0x8] sm:$0xff] %vm5383, %v6502
      %p6506 = scmp.lt.s32.totalorder %s22, 1
      %s6507 = scalar_select %p6506, %s22, 1
      %s6508 = smul.addr %s6507, 8
      %s6509 = smul.addr %s6508, 8
      %s6510 = scalar_lea.vmem %s11, %s6509
      // Predicated region
      $region65: #{_lambda_.1} parent=63 // pred_check
        %p6511 = pneg %p276
      $region66: #{_lambda_.1} parent=63 // pred_check_branch
        %6513 = sbr.rel (%p6511) target = $region68
      $region67: #{_lambda_.1} parent=63 // pred_region
        _
      $region68: #{_lambda_.1} parent=63 // pred_fallthru
        _
    $region64: #{_lambda_.1} parent=5 // pred_fallthru
      _
    %p6514 = scmp.le.s32.totalorder 2, %s17
    // Predicated region
    $region69: #{_lambda_.1} parent=5 // pred_check
      %p6515 = pneg %p6514
    $region70: #{_lambda_.1} parent=5 // pred_check_branch
      %6517 = sbr.rel (%p6515) target = $region72
    $region71: #{_lambda_.1} parent=5 // pred_region
      %s6518 = ssub.s32 %s17, 2
      // Predicated region
      $region73: #{_lambda_.1} parent=71 // pred_check
        %p6519 = pneg %p282
      $region74: #{_lambda_.1} parent=71 // pred_check_branch
        %6521 = sbr.rel (%p6519) target = $region76
      $region75: #{_lambda_.1} parent=71 // pred_region
        %p6522 = scmp.lt.s32.totalorder %s23, 1
        %s6523 = scalar_select %p6522, %s23, 1
        %s6524 = smul.addr %s6523, 8
        %s6525 = smul.addr %s6524, 8
        %s6526 = scalar_lea.vmem %s11, %s6525
      $region76: #{_lambda_.1} parent=71 // pred_fallthru
        _
    $region72: #{_lambda_.1} parent=5 // pred_fallthru
      _
  $region6: #{_lambda_.1} parent=0 // loop_footer
    %s21 = sadd.s32 1, %s17
  $region7: #{_lambda_.1} parent=0 // loop_footer_branch
    %16 = sbr.rel target = $region3
  $region8: #{_lambda_.1} parent=0 // loop_exit
    _

</llo_original>
